<compile_context>
chip_gen: v6e
topology: v6e:2x2x1
jax: 0.10.0
libtpu: 0.0.40
codegen_flags: <defaults>
</compile_context>

<pallas_src>
import functools

import jax
import jax.numpy as jnp
from jax.experimental import pallas as pl
from jax.experimental.pallas import tpu as pltpu

# Flip to jnp.bfloat16 on v6e / v7x for ~2x MXU throughput and half the weight DMA.
# float32 default keeps parity with the PyTorch reference math (v5e VPU/EUP have no bf16 path,
# so elementwise work below always stays f32 regardless).
_MXU_DTYPE = jnp.float32


def _mm(a, b):
    """Matmul with optional bf16 inputs, always f32 accumulation."""
    return jnp.dot(a.astype(_MXU_DTYPE), b.astype(_MXU_DTYPE),
                   preferred_element_type=jnp.float32)


def _cparams():
    return pltpu.CompilerParams(dimension_semantics=("parallel",))


# ----------------------------------------------------------------------------------------------
# Kernel 1: PBMSA fully fused  (patch_embedding -> in_proj -> MHA -> out_proj -> restore_embedding)
# Grid: one step per patch n; attention sequence is the batch axis (L = B), as in the torch code.
# ----------------------------------------------------------------------------------------------

def _pbmsa_kernel(p_ref, pew_ref, peb_ref, ipw_ref, ipb_ref,
                  ow_ref, ob_ref, rw_ref, rb_ref, o_ref, *, num_heads, head_dim):
    E = num_heads * head_dim
    patch = p_ref[...]                                      # (L, D)
    emb = _mm(patch, pew_ref[...]) + peb_ref[...]           # (L, E)   patch_embedding
    qkv = _mm(emb, ipw_ref[...]) + ipb_ref[...]             # (L, 3E)  in_proj; q columns pre-scaled
    L = patch.shape[0]

    acc = jnp.zeros((L, E), jnp.float32)                    # out_proj accumulator (no concat)
    for h in range(num_heads):
        lo = h * head_dim
        q = qkv[:, lo:lo + head_dim]                         # (L, dh)  already scaled
        k = qkv[:, E + lo:E + lo + head_dim]
        v = qkv[:, 2 * E + lo:2 * E + lo + head_dim]
        s = _mm(q, k.T)                                       # (L, L)
        s = s - jnp.max(s, axis=-1, keepdims=True)            # f32 softmax (v5e-safe)
        e = jnp.exp(s)
        pattn = e * pl.reciprocal(jnp.sum(e, axis=-1, keepdims=True), approx=True)
        acc = acc + _mm(_mm(pattn, v), ow_ref[h])             # (L,dh)@(dh,E): out_proj per head
    ao = acc + ob_ref[...]
    o_ref[...] = (_mm(ao, rw_ref[...]) + rb_ref[...]).astype(o_ref.dtype)   # restore_embedding


def pbmsa_fused(patches, pe_w, pe_b, ip_w, ip_b, ow, ob, rw, rb, *, num_heads):
    N, L, D = patches.shape
    E = pe_w.shape[1]
    hd = E // num_heads
    kern = functools.partial(_pbmsa_kernel, num_heads=num_heads, head_dim=hd)
    return pl.pallas_call(
        kern,
        out_shape=jax.ShapeDtypeStruct((N, L, D), jnp.float32),
        grid=(N,),
        in_specs=[
            pl.BlockSpec((None, L, D), lambda n: (n, 0, 0)),
            pl.BlockSpec((D, E), lambda n: (0, 0)),
            pl.BlockSpec((1, E), lambda n: (0, 0)),
            pl.BlockSpec((E, 3 * E), lambda n: (0, 0)),
            pl.BlockSpec((1, 3 * E), lambda n: (0, 0)),
            pl.BlockSpec((num_heads, hd, E), lambda n: (0, 0, 0)),
            pl.BlockSpec((1, E), lambda n: (0, 0)),
            pl.BlockSpec((E, D), lambda n: (0, 0)),
            pl.BlockSpec((1, D), lambda n: (0, 0)),
        ],
        out_specs=pl.BlockSpec((None, L, D), lambda n: (n, 0, 0)),
        compiler_params=_cparams(),
    )(patches, pe_w, pe_b.reshape(1, E), ip_w, ip_b.reshape(1, 3 * E),
      ow, ob.reshape(1, E), rw, rb.reshape(1, D))


# ----------------------------------------------------------------------------------------------
# Kernel 2: SpatialAttention + ChannelAttention + ReLU + grouped 3x3 conv + LayerNorm, fused.
# Grid: one step per batch sample; everything is in (C, HW) lane-dense layout.
# Padding is done in VMEM scratch (flat row padding + column masks), never in HBM.
# ----------------------------------------------------------------------------------------------

def _block_kernel(x_ref, pb_ref, sa_w_ref, w1_ref, w2_ref, cw_ref, cb_ref,
                  o_ref, sp_ref, gsa_ref, gca_ref, gpb_ref, *, H, W, eps):
    HW = H * W
    x = x_ref[...]                                           # (C, HW)  f32, lane-dense

    # column index of every flattened pixel; validity masks for horizontally shifted taps
    col = jax.lax.broadcasted_iota(jnp.int32, (1, HW), 1) % W
    col_ok = {d: jnp.logical_and(col + d >= 0, col + d <= W - 1)
              for d in range(-3, 4) if d != 0}

    # ---- SpatialAttention: sigmoid( conv7x7([mean_c ; max_c]) ) * x,  49 taps * 2 planes on VPU
    O7 = 3 * W + 3                                           # flat pad offset (3 rows + 3 cols)
    sp_ref[...] = jnp.zeros_like(sp_ref)
    sp_ref[0:1, O7:O7 + HW] = jnp.mean(x, axis=0, keepdims=True)
    sp_ref[1:2, O7:O7 + HW] = jnp.max(x, axis=0, keepdims=True)
    sp = sp_ref[...]                                         # (2, HW + 6W + 6)
    sa_acc = jnp.zeros((1, HW), jnp.float32)
    for di in range(7):
        for dj in range(7):
            s0 = di * W + dj
            win = sp[:, s0:s0 + HW]                          # (2, HW)
            if dj != 3:
                win = jnp.where(col_ok[dj - 3], win, 0.0)
            sa_acc = sa_acc + (win[0:1, :] * sa_w_ref[di * 7 + dj]
                               + win[1:2, :] * sa_w_ref[49 + di * 7 + dj])
    sa_out = jax.nn.sigmoid(sa_acc) * x                      # (1,HW) gate, sublane-broadcast

    # ---- ChannelAttention: sigmoid( MLP(avg) + MLP(max) ) * x
    def ca_mlp(pool):                                        # pool: (C, 1)
        h1 = jnp.maximum(_mm(w1_ref[...], pool), 0.0)        # (hidden, 1)
        return _mm(w2_ref[...], h1)                          # (C, 1)
    ca_gate = jax.nn.sigmoid(ca_mlp(jnp.mean(x, axis=1, keepdims=True)) +
                             ca_mlp(jnp.max(x, axis=1, keepdims=True)))
    ca_out = ca_gate * x                                     # (C,1) gate, lane-broadcast

    # ---- ReLU -> grouped 3x3 conv -> LayerNorm([C,H,W], no affine); acc kept in (C_out, HW)
    O3 = W + 1
    for ref, val in ((gsa_ref, sa_out), (gca_ref, ca_out), (gpb_ref, pb_ref[...])):
        ref[...] = jnp.zeros_like(ref)
        ref[:, O3:O3 + HW] = jnp.maximum(val, 0.0)           # ReLU applied exactly once
    C_out = cw_ref.shape[1]
    acc = jnp.zeros((C_out, HW), jnp.float32)
    for g, gref in enumerate((gsa_ref, gca_ref, gpb_ref)):   # channel groups: sa / ca / pbmsa
        gp = gref[...]                                       # (Cin, HW + 2W + 2)
        for di in range(3):
            for dj in range(3):
                s0 = di * W + dj
                win = gp[:, s0:s0 + HW]                      # (Cin, HW)
                if dj != 1:
                    win = jnp.where(col_ok[dj - 1], win, 0.0)
                acc = acc + _mm(cw_ref[g * 9 + di * 3 + dj], win)   # (C_out,Cin)@(Cin,HW)
    y = acc + cb_ref[...]                                    # + (C_out, 1) bias
    mu = jnp.mean(y, keepdims=True)                          # LayerNorm over the whole sample
    yc = y - mu
    var = jnp.mean(yc * yc, keepdims=True)
    o_ref[...] = (yc * jax.lax.rsqrt(var + eps)).astype(o_ref.dtype)


def fused_sa_ca_conv_ln(x_flat, pb_flat, sa_w, ca_w1, ca_w2, conv_w, conv_b, *, H, W, eps=1e-5):
    B, C, HW = x_flat.shape
    hidden = ca_w1.shape[0]
    PADL7 = HW + 6 * W + 6
    PADL3 = HW + 2 * W + 2
    kern = functools.partial(_block_kernel, H=H, W=W, eps=eps)
    return pl.pallas_call(
        kern,
        out_shape=jax.ShapeDtypeStruct((B, C, HW), jnp.float32),
        grid=(B,),
        in_specs=[
            pl.BlockSpec((None, C, HW), lambda b: (b, 0, 0)),        # x
            pl.BlockSpec((None, C, HW), lambda b: (b, 0, 0)),        # pbmsa_out
            pl.BlockSpec(memory_space=pltpu.MemorySpace.SMEM),       # 7x7 gate weights (scalars)
            pl.BlockSpec((hidden, C), lambda b: (0, 0)),             # CA fc1
            pl.BlockSpec((C, hidden), lambda b: (0, 0)),             # CA fc2
            pl.BlockSpec((27, C, C), lambda b: (0, 0, 0)),           # grouped conv taps
            pl.BlockSpec((C, 1), lambda b: (0, 0)),                  # conv bias
        ],
        out_specs=pl.BlockSpec((None, C, HW), lambda b: (b, 0, 0)),
        scratch_shapes=[
            pltpu.VMEM((2, PADL7), jnp.float32),                     # padded pooled planes (SA)
            pltpu.VMEM((C, PADL3), jnp.float32),                     # padded sa group
            pltpu.VMEM((C, PADL3), jnp.float32),                     # padded ca group
            pltpu.VMEM((C, PADL3), jnp.float32),                     # padded pbmsa group
        ],
        compiler_params=_cparams(),
    )(x_flat, pb_flat, sa_w, ca_w1, ca_w2, conv_w, conv_b.reshape(C, 1))


# ----------------------------------------------------------------------------------------------
# Forward pass (JAX glue is only free reshapes + the PBMSA patch pack/unpack)
# ----------------------------------------------------------------------------------------------

def attention_block_forward(x, params, *, patch_size, num_heads):
    B, C, H, W = x.shape
    HW = H * W
    xf = x.astype(jnp.float32)
    x_flat = xf.reshape(B, C, HW)                            # free: NCHW is already (C, HW)-major

    # ---- PBMSA ----
    p = patch_size
    Hp, Wp = H // p, W // p
    N, D, L = Hp * Wp, C * p * p, B
    # TODO(synk): patch gather/scatter stays in XLA; a BlockSpec-window read would require an
    # in-kernel (B,C,p,p)<->(B,C*p*p) minor-dim reshape that Mosaic does not lower reliably.
    patches = (xf.reshape(B, C, Hp, p, Wp, p)
                 .transpose(2, 4, 0, 1, 3, 5)                # (Hp, Wp, B, C, p, p)
                 .reshape(N, L, D))
    rest = pbmsa_fused(patches, params["pe_w"], params["pe_b"],
                       params["in_proj_w"], params["in_proj_b"],
                       params["out_proj_w"], params["out_proj_b"],
                       params["re_w"], params["re_b"], num_heads=num_heads)   # (N, L, D)
    pbmsa_flat = (rest.reshape(Hp, Wp, B, C, p, p)
                  .transpose(2, 3, 0, 4, 1, 5)               # (B, C, Hp, p, Wp, p)
                  .reshape(B, C, HW))

    # ---- SA + CA + ReLU + grouped conv3x3 + LayerNorm, all in one kernel ----
    out = fused_sa_ca_conv_ln(x_flat, pbmsa_flat,
                              params["sa_conv_w"], params["ca_fc1_w"], params["ca_fc2_w"],
                              params["conv_w"], params["conv_b"], H=H, W=W)   # (B, C, HW)
    return out.reshape(B, C, H, W)


# ----------------------------------------------------------------------------------------------
# Parameter init (layouts documented relative to the torch module)
# ----------------------------------------------------------------------------------------------

def make_params(key, C, patch_size, embed_dim, num_heads):
    assert embed_dim % num_heads == 0
    D = patch_size * patch_size * C
    hidden = max(C // 4, 1)
    dh = embed_dim // num_heads
    keys = jax.random.split(key, 13)

    def init(k, shape, scale=0.05):
        return jax.random.normal(k, shape, jnp.float32) * scale

    # in_proj: torch in_proj_weight.T / in_proj_bias, with the 1/sqrt(head_dim) q-scale folded in.
    scale = 1.0 / float(dh) ** 0.5
    in_proj_w = init(keys[5], (embed_dim, 3 * embed_dim))
    in_proj_b = init(keys[6], (3 * embed_dim,))
    in_proj_w = in_proj_w.at[:, :embed_dim].multiply(scale)
    in_proj_b = in_proj_b.at[:embed_dim].multiply(scale)
    # out_proj: torch out_proj.weight.T (E_in, E_out) reshaped to (num_heads, dh, E_out).
    out_proj_w = init(keys[7], (embed_dim, embed_dim)).reshape(num_heads, dh, embed_dim)

    return {
        # SpatialAttention Conv2d(2,1,7,padding=3,bias=False): torch (1,2,7,7) flattened
        # as sa_conv_w[plane*49 + ky*7 + kx] = torch_w[0, plane, ky, kx].
        "sa_conv_w": init(keys[0], (98,)),
        # ChannelAttention shared MLP (1x1 convs, no bias), ratio=4; stored (out, in) = torch as-is.
        "ca_fc1_w": init(keys[1], (hidden, C)),
        "ca_fc2_w": init(keys[2], (C, hidden)),
        # PBMSA dense weights stored (in_features, out_features) = torch weight.T.
        "pe_w": init(keys[3], (D, embed_dim)),
        "pe_b": init(keys[4], (embed_dim,)),
        "in_proj_w": in_proj_w,
        "in_proj_b": in_proj_b,
        "out_proj_w": out_proj_w,
        "out_proj_b": init(keys[8], (embed_dim,)),
        "re_w": init(keys[9], (embed_dim, D)),
        "re_b": init(keys[10], (D,)),
        # Final Conv2d(3C, C, 3, padding=1): torch (C, 3C, 3, 3) regrouped as
        # conv_w[g*9 + ky*3 + kx, c_out, c_in] = torch_w[c_out, g*C + c_in, ky, kx].
        "conv_w": init(keys[11], (27, C, C)),
        "conv_b": init(keys[12], (C,)),
    }


# ----------------------------------------------------------------------------------------------
# main
# ----------------------------------------------------------------------------------------------

if __name__ == "__main__":
    # small, self-consistent shapes: CA_in_planes=8, image_size=16, patch_size=8,
    # embed_dim=32, num_heads=8, batch=2
    B, C, H, W = 2, 8, 16, 16
    patch_size, embed_dim, num_heads = 8, 32, 8

    key = jax.random.PRNGKey(0)
    pkey, xkey = jax.random.split(key)
    params = make_params(pkey, C, patch_size, embed_dim, num_heads)
    x = jax.random.normal(xkey, (B, C, H, W), jnp.float32)

    fwd = jax.jit(functools.partial(attention_block_forward,
                                    patch_size=patch_size, num_heads=num_heads))
    out = jax.block_until_ready(fwd(x, params))
    assert out.shape == (B, C, H, W), out.shape
    assert bool(jnp.all(jnp.isfinite(out)))
    print("KERNEL_OK")
</pallas_src>

<mosaic_0001>
module attributes {stable_mosaic.version = 11 : i64} {
  func.func @_pbmsa_kernel(%arg0: i32, %arg1: memref<1x2x512xf32, #tpu.memory_space<vmem>>, %arg2: memref<512x32xf32, #tpu.memory_space<vmem>>, %arg3: memref<1x32xf32, #tpu.memory_space<vmem>>, %arg4: memref<32x96xf32, #tpu.memory_space<vmem>>, %arg5: memref<1x96xf32, #tpu.memory_space<vmem>>, %arg6: memref<8x4x32xf32, #tpu.memory_space<vmem>>, %arg7: memref<1x32xf32, #tpu.memory_space<vmem>>, %arg8: memref<32x512xf32, #tpu.memory_space<vmem>>, %arg9: memref<1x512xf32, #tpu.memory_space<vmem>>, %arg10: memref<1x2x512xf32, #tpu.memory_space<vmem>>) attributes {dimension_semantics = [#tpu.dimension_semantics<parallel>], iteration_bounds = array<i64: 4>, scalar_prefetch = 0 : i64, scratch_operands = 0 : i64, tpu.core_type = #tpu.core_type<tc>, window_params = [{transform_indices = @transform_0, window_bounds = array<i64: 1, 2, 512>}, {pipeline_mode = #tpu.pipeline_mode<synchronous>, transform_indices = @transform_1, window_bounds = array<i64: 512, 32>}, {pipeline_mode = #tpu.pipeline_mode<synchronous>, transform_indices = @transform_2, window_bounds = array<i64: 1, 32>}, {pipeline_mode = #tpu.pipeline_mode<synchronous>, transform_indices = @transform_3, window_bounds = array<i64: 32, 96>}, {pipeline_mode = #tpu.pipeline_mode<synchronous>, transform_indices = @transform_4, window_bounds = array<i64: 1, 96>}, {pipeline_mode = #tpu.pipeline_mode<synchronous>, transform_indices = @transform_5, window_bounds = array<i64: 8, 4, 32>}, {pipeline_mode = #tpu.pipeline_mode<synchronous>, transform_indices = @transform_6, window_bounds = array<i64: 1, 32>}, {pipeline_mode = #tpu.pipeline_mode<synchronous>, transform_indices = @transform_7, window_bounds = array<i64: 32, 512>}, {pipeline_mode = #tpu.pipeline_mode<synchronous>, transform_indices = @transform_8, window_bounds = array<i64: 1, 512>}, {transform_indices = @transform_9, window_bounds = array<i64: 1, 2, 512>}]} {
    %c0 = arith.constant 0 : index
    %c0_0 = arith.constant 0 : index
    %c0_1 = arith.constant 0 : index
    %0 = vector.load %arg1[%c0, %c0_0, %c0_1] : memref<1x2x512xf32, #tpu.memory_space<vmem>>, vector<1x2x512xf32>
    %1 = vector.shape_cast %0 : vector<1x2x512xf32> to vector<2x512xf32>
    %c0_2 = arith.constant 0 : index
    %c0_3 = arith.constant 0 : index
    %2 = vector.load %arg2[%c0_2, %c0_3] : memref<512x32xf32, #tpu.memory_space<vmem>>, vector<512x32xf32>
    %cst = arith.constant dense<0.000000e+00> : vector<2x32xf32>
    %3 = tpu.matmul %1, %2, %cst {dimension_numbers = #tpu.dot_dimension_numbers<[1], [0], [0], [1], [0, 0, 1, 1], [], []>} : vector<2x512xf32>, vector<512x32xf32>, vector<2x32xf32> -> vector<2x32xf32>
    %c0_4 = arith.constant 0 : index
    %c0_5 = arith.constant 0 : index
    %4 = vector.load %arg3[%c0_4, %c0_5] : memref<1x32xf32, #tpu.memory_space<vmem>>, vector<1x32xf32>
    %5 = vector.broadcast %4 : vector<1x32xf32> to vector<2x32xf32>
    %6 = arith.addf %3, %5 : vector<2x32xf32>
    %c0_6 = arith.constant 0 : index
    %c0_7 = arith.constant 0 : index
    %7 = vector.load %arg4[%c0_6, %c0_7] : memref<32x96xf32, #tpu.memory_space<vmem>>, vector<32x96xf32>
    %cst_8 = arith.constant dense<0.000000e+00> : vector<2x96xf32>
    %8 = tpu.matmul %6, %7, %cst_8 {dimension_numbers = #tpu.dot_dimension_numbers<[1], [0], [0], [1], [0, 0, 1, 1], [], []>} : vector<2x32xf32>, vector<32x96xf32>, vector<2x96xf32> -> vector<2x96xf32>
    %c0_9 = arith.constant 0 : index
    %c0_10 = arith.constant 0 : index
    %9 = vector.load %arg5[%c0_9, %c0_10] : memref<1x96xf32, #tpu.memory_space<vmem>>, vector<1x96xf32>
    %10 = vector.broadcast %9 : vector<1x96xf32> to vector<2x96xf32>
    %11 = arith.addf %8, %10 : vector<2x96xf32>
    %cst_11 = arith.constant 0.000000e+00 : f32
    %12 = vector.broadcast %cst_11 : f32 to vector<2x32xf32>
    %13 = vector.extract_strided_slice %11 {offsets = [0, 0], sizes = [2, 4], strides = [1, 1]} : vector<2x96xf32> to vector<2x4xf32>
    %14 = vector.extract_strided_slice %11 {offsets = [0, 32], sizes = [2, 4], strides = [1, 1]} : vector<2x96xf32> to vector<2x4xf32>
    %15 = vector.extract_strided_slice %11 {offsets = [0, 64], sizes = [2, 4], strides = [1, 1]} : vector<2x96xf32> to vector<2x4xf32>
    %16 = tpu.transpose %14, [1, 0] : vector<2x4xf32> -> vector<4x2xf32>
    %cst_12 = arith.constant dense<0.000000e+00> : vector<2x2xf32>
    %17 = tpu.matmul %13, %16, %cst_12 {dimension_numbers = #tpu.dot_dimension_numbers<[1], [0], [0], [1], [0, 0, 1, 1], [], []>} : vector<2x4xf32>, vector<4x2xf32>, vector<2x2xf32> -> vector<2x2xf32>
    %cst_13 = arith.constant dense<0xFF800000> : vector<2xf32>
    %18 = vector.multi_reduction <maximumf>, %17, %cst_13 [1] : vector<2x2xf32> to vector<2xf32>
    %19 = vector.shape_cast %18 : vector<2xf32> to vector<2x1xf32>
    %20 = vector.broadcast %19 : vector<2x1xf32> to vector<2x2xf32>
    %21 = arith.subf %17, %20 : vector<2x2xf32>
    %22 = math.exp %21 : vector<2x2xf32>
    %cst_14 = arith.constant dense<0.000000e+00> : vector<2xf32>
    %23 = vector.multi_reduction <add>, %22, %cst_14 [1] : vector<2x2xf32> to vector<2xf32>
    %24 = vector.shape_cast %23 : vector<2xf32> to vector<2x1xf32>
    %25 = tpu.reciprocal %24 {approx = true} : vector<2x1xf32> -> vector<2x1xf32>
    %26 = vector.broadcast %25 : vector<2x1xf32> to vector<2x2xf32>
    %27 = arith.mulf %22, %26 : vector<2x2xf32>
    %cst_15 = arith.constant dense<0.000000e+00> : vector<2x4xf32>
    %28 = tpu.matmul %27, %15, %cst_15 {dimension_numbers = #tpu.dot_dimension_numbers<[1], [0], [0], [1], [0, 0, 1, 1], [], []>} : vector<2x2xf32>, vector<2x4xf32>, vector<2x4xf32> -> vector<2x4xf32>
    %c0_16 = arith.constant 0 : index
    %c0_17 = arith.constant 0 : index
    %c0_18 = arith.constant 0 : index
    %29 = vector.load %arg6[%c0_16, %c0_17, %c0_18] : memref<8x4x32xf32, #tpu.memory_space<vmem>>, vector<1x4x32xf32>
    %30 = vector.shape_cast %29 : vector<1x4x32xf32> to vector<4x32xf32>
    %cst_19 = arith.constant dense<0.000000e+00> : vector<2x32xf32>
    %31 = tpu.matmul %28, %30, %cst_19 {dimension_numbers = #tpu.dot_dimension_numbers<[1], [0], [0], [1], [0, 0, 1, 1], [], []>} : vector<2x4xf32>, vector<4x32xf32>, vector<2x32xf32> -> vector<2x32xf32>
    %32 = arith.addf %12, %31 : vector<2x32xf32>
    %33 = vector.extract_strided_slice %11 {offsets = [0, 4], sizes = [2, 4], strides = [1, 1]} : vector<2x96xf32> to vector<2x4xf32>
    %34 = vector.extract_strided_slice %11 {offsets = [0, 36], sizes = [2, 4], strides = [1, 1]} : vector<2x96xf32> to vector<2x4xf32>
    %35 = vector.extract_strided_slice %11 {offsets = [0, 68], sizes = [2, 4], strides = [1, 1]} : vector<2x96xf32> to vector<2x4xf32>
    %36 = tpu.transpose %34, [1, 0] : vector<2x4xf32> -> vector<4x2xf32>
    %cst_20 = arith.constant dense<0.000000e+00> : vector<2x2xf32>
    %37 = tpu.matmul %33, %36, %cst_20 {dimension_numbers = #tpu.dot_dimension_numbers<[1], [0], [0], [1], [0, 0, 1, 1], [], []>} : vector<2x4xf32>, vector<4x2xf32>, vector<2x2xf32> -> vector<2x2xf32>
    %cst_21 = arith.constant dense<0xFF800000> : vector<2xf32>
    %38 = vector.multi_reduction <maximumf>, %37, %cst_21 [1] : vector<2x2xf32> to vector<2xf32>
    %39 = vector.shape_cast %38 : vector<2xf32> to vector<2x1xf32>
    %40 = vector.broadcast %39 : vector<2x1xf32> to vector<2x2xf32>
    %41 = arith.subf %37, %40 : vector<2x2xf32>
    %42 = math.exp %41 : vector<2x2xf32>
    %cst_22 = arith.constant dense<0.000000e+00> : vector<2xf32>
    %43 = vector.multi_reduction <add>, %42, %cst_22 [1] : vector<2x2xf32> to vector<2xf32>
    %44 = vector.shape_cast %43 : vector<2xf32> to vector<2x1xf32>
    %45 = tpu.reciprocal %44 {approx = true} : vector<2x1xf32> -> vector<2x1xf32>
    %46 = vector.broadcast %45 : vector<2x1xf32> to vector<2x2xf32>
    %47 = arith.mulf %42, %46 : vector<2x2xf32>
    %cst_23 = arith.constant dense<0.000000e+00> : vector<2x4xf32>
    %48 = tpu.matmul %47, %35, %cst_23 {dimension_numbers = #tpu.dot_dimension_numbers<[1], [0], [0], [1], [0, 0, 1, 1], [], []>} : vector<2x2xf32>, vector<2x4xf32>, vector<2x4xf32> -> vector<2x4xf32>
    %c1 = arith.constant 1 : index
    %c0_24 = arith.constant 0 : index
    %c0_25 = arith.constant 0 : index
    %49 = vector.load %arg6[%c1, %c0_24, %c0_25] : memref<8x4x32xf32, #tpu.memory_space<vmem>>, vector<1x4x32xf32>
    %50 = vector.shape_cast %49 : vector<1x4x32xf32> to vector<4x32xf32>
    %cst_26 = arith.constant dense<0.000000e+00> : vector<2x32xf32>
    %51 = tpu.matmul %48, %50, %cst_26 {dimension_numbers = #tpu.dot_dimension_numbers<[1], [0], [0], [1], [0, 0, 1, 1], [], []>} : vector<2x4xf32>, vector<4x32xf32>, vector<2x32xf32> -> vector<2x32xf32>
    %52 = arith.addf %32, %51 : vector<2x32xf32>
    %53 = vector.extract_strided_slice %11 {offsets = [0, 8], sizes = [2, 4], strides = [1, 1]} : vector<2x96xf32> to vector<2x4xf32>
    %54 = vector.extract_strided_slice %11 {offsets = [0, 40], sizes = [2, 4], strides = [1, 1]} : vector<2x96xf32> to vector<2x4xf32>
    %55 = vector.extract_strided_slice %11 {offsets = [0, 72], sizes = [2, 4], strides = [1, 1]} : vector<2x96xf32> to vector<2x4xf32>
    %56 = tpu.transpose %54, [1, 0] : vector<2x4xf32> -> vector<4x2xf32>
    %cst_27 = arith.constant dense<0.000000e+00> : vector<2x2xf32>
    %57 = tpu.matmul %53, %56, %cst_27 {dimension_numbers = #tpu.dot_dimension_numbers<[1], [0], [0], [1], [0, 0, 1, 1], [], []>} : vector<2x4xf32>, vector<4x2xf32>, vector<2x2xf32> -> vector<2x2xf32>
    %cst_28 = arith.constant dense<0xFF800000> : vector<2xf32>
    %58 = vector.multi_reduction <maximumf>, %57, %cst_28 [1] : vector<2x2xf32> to vector<2xf32>
    %59 = vector.shape_cast %58 : vector<2xf32> to vector<2x1xf32>
    %60 = vector.broadcast %59 : vector<2x1xf32> to vector<2x2xf32>
    %61 = arith.subf %57, %60 : vector<2x2xf32>
    %62 = math.exp %61 : vector<2x2xf32>
    %cst_29 = arith.constant dense<0.000000e+00> : vector<2xf32>
    %63 = vector.multi_reduction <add>, %62, %cst_29 [1] : vector<2x2xf32> to vector<2xf32>
    %64 = vector.shape_cast %63 : vector<2xf32> to vector<2x1xf32>
    %65 = tpu.reciprocal %64 {approx = true} : vector<2x1xf32> -> vector<2x1xf32>
    %66 = vector.broadcast %65 : vector<2x1xf32> to vector<2x2xf32>
    %67 = arith.mulf %62, %66 : vector<2x2xf32>
    %cst_30 = arith.constant dense<0.000000e+00> : vector<2x4xf32>
    %68 = tpu.matmul %67, %55, %cst_30 {dimension_numbers = #tpu.dot_dimension_numbers<[1], [0], [0], [1], [0, 0, 1, 1], [], []>} : vector<2x2xf32>, vector<2x4xf32>, vector<2x4xf32> -> vector<2x4xf32>
    %c2 = arith.constant 2 : index
    %c0_31 = arith.constant 0 : index
    %c0_32 = arith.constant 0 : index
    %69 = vector.load %arg6[%c2, %c0_31, %c0_32] : memref<8x4x32xf32, #tpu.memory_space<vmem>>, vector<1x4x32xf32>
    %70 = vector.shape_cast %69 : vector<1x4x32xf32> to vector<4x32xf32>
    %cst_33 = arith.constant dense<0.000000e+00> : vector<2x32xf32>
    %71 = tpu.matmul %68, %70, %cst_33 {dimension_numbers = #tpu.dot_dimension_numbers<[1], [0], [0], [1], [0, 0, 1, 1], [], []>} : vector<2x4xf32>, vector<4x32xf32>, vector<2x32xf32> -> vector<2x32xf32>
    %72 = arith.addf %52, %71 : vector<2x32xf32>
    %73 = vector.extract_strided_slice %11 {offsets = [0, 12], sizes = [2, 4], strides = [1, 1]} : vector<2x96xf32> to vector<2x4xf32>
    %74 = vector.extract_strided_slice %11 {offsets = [0, 44], sizes = [2, 4], strides = [1, 1]} : vector<2x96xf32> to vector<2x4xf32>
    %75 = vector.extract_strided_slice %11 {offsets = [0, 76], sizes = [2, 4], strides = [1, 1]} : vector<2x96xf32> to vector<2x4xf32>
    %76 = tpu.transpose %74, [1, 0] : vector<2x4xf32> -> vector<4x2xf32>
    %cst_34 = arith.constant dense<0.000000e+00> : vector<2x2xf32>
    %77 = tpu.matmul %73, %76, %cst_34 {dimension_numbers = #tpu.dot_dimension_numbers<[1], [0], [0], [1], [0, 0, 1, 1], [], []>} : vector<2x4xf32>, vector<4x2xf32>, vector<2x2xf32> -> vector<2x2xf32>
    %cst_35 = arith.constant dense<0xFF800000> : vector<2xf32>
    %78 = vector.multi_reduction <maximumf>, %77, %cst_35 [1] : vector<2x2xf32> to vector<2xf32>
    %79 = vector.shape_cast %78 : vector<2xf32> to vector<2x1xf32>
    %80 = vector.broadcast %79 : vector<2x1xf32> to vector<2x2xf32>
    %81 = arith.subf %77, %80 : vector<2x2xf32>
    %82 = math.exp %81 : vector<2x2xf32>
    %cst_36 = arith.constant dense<0.000000e+00> : vector<2xf32>
    %83 = vector.multi_reduction <add>, %82, %cst_36 [1] : vector<2x2xf32> to vector<2xf32>
    %84 = vector.shape_cast %83 : vector<2xf32> to vector<2x1xf32>
    %85 = tpu.reciprocal %84 {approx = true} : vector<2x1xf32> -> vector<2x1xf32>
    %86 = vector.broadcast %85 : vector<2x1xf32> to vector<2x2xf32>
    %87 = arith.mulf %82, %86 : vector<2x2xf32>
    %cst_37 = arith.constant dense<0.000000e+00> : vector<2x4xf32>
    %88 = tpu.matmul %87, %75, %cst_37 {dimension_numbers = #tpu.dot_dimension_numbers<[1], [0], [0], [1], [0, 0, 1, 1], [], []>} : vector<2x2xf32>, vector<2x4xf32>, vector<2x4xf32> -> vector<2x4xf32>
    %c3 = arith.constant 3 : index
    %c0_38 = arith.constant 0 : index
    %c0_39 = arith.constant 0 : index
    %89 = vector.load %arg6[%c3, %c0_38, %c0_39] : memref<8x4x32xf32, #tpu.memory_space<vmem>>, vector<1x4x32xf32>
    %90 = vector.shape_cast %89 : vector<1x4x32xf32> to vector<4x32xf32>
    %cst_40 = arith.constant dense<0.000000e+00> : vector<2x32xf32>
    %91 = tpu.matmul %88, %90, %cst_40 {dimension_numbers = #tpu.dot_dimension_numbers<[1], [0], [0], [1], [0, 0, 1, 1], [], []>} : vector<2x4xf32>, vector<4x32xf32>, vector<2x32xf32> -> vector<2x32xf32>
    %92 = arith.addf %72, %91 : vector<2x32xf32>
    %93 = vector.extract_strided_slice %11 {offsets = [0, 16], sizes = [2, 4], strides = [1, 1]} : vector<2x96xf32> to vector<2x4xf32>
    %94 = vector.extract_strided_slice %11 {offsets = [0, 48], sizes = [2, 4], strides = [1, 1]} : vector<2x96xf32> to vector<2x4xf32>
    %95 = vector.extract_strided_slice %11 {offsets = [0, 80], sizes = [2, 4], strides = [1, 1]} : vector<2x96xf32> to vector<2x4xf32>
    %96 = tpu.transpose %94, [1, 0] : vector<2x4xf32> -> vector<4x2xf32>
    %cst_41 = arith.constant dense<0.000000e+00> : vector<2x2xf32>
    %97 = tpu.matmul %93, %96, %cst_41 {dimension_numbers = #tpu.dot_dimension_numbers<[1], [0], [0], [1], [0, 0, 1, 1], [], []>} : vector<2x4xf32>, vector<4x2xf32>, vector<2x2xf32> -> vector<2x2xf32>
    %cst_42 = arith.constant dense<0xFF800000> : vector<2xf32>
    %98 = vector.multi_reduction <maximumf>, %97, %cst_42 [1] : vector<2x2xf32> to vector<2xf32>
    %99 = vector.shape_cast %98 : vector<2xf32> to vector<2x1xf32>
    %100 = vector.broadcast %99 : vector<2x1xf32> to vector<2x2xf32>
    %101 = arith.subf %97, %100 : vector<2x2xf32>
    %102 = math.exp %101 : vector<2x2xf32>
    %cst_43 = arith.constant dense<0.000000e+00> : vector<2xf32>
    %103 = vector.multi_reduction <add>, %102, %cst_43 [1] : vector<2x2xf32> to vector<2xf32>
    %104 = vector.shape_cast %103 : vector<2xf32> to vector<2x1xf32>
    %105 = tpu.reciprocal %104 {approx = true} : vector<2x1xf32> -> vector<2x1xf32>
    %106 = vector.broadcast %105 : vector<2x1xf32> to vector<2x2xf32>
    %107 = arith.mulf %102, %106 : vector<2x2xf32>
    %cst_44 = arith.constant dense<0.000000e+00> : vector<2x4xf32>
    %108 = tpu.matmul %107, %95, %cst_44 {dimension_numbers = #tpu.dot_dimension_numbers<[1], [0], [0], [1], [0, 0, 1, 1], [], []>} : vector<2x2xf32>, vector<2x4xf32>, vector<2x4xf32> -> vector<2x4xf32>
    %c4 = arith.constant 4 : index
    %c0_45 = arith.constant 0 : index
    %c0_46 = arith.constant 0 : index
    %109 = vector.load %arg6[%c4, %c0_45, %c0_46] : memref<8x4x32xf32, #tpu.memory_space<vmem>>, vector<1x4x32xf32>
    %110 = vector.shape_cast %109 : vector<1x4x32xf32> to vector<4x32xf32>
    %cst_47 = arith.constant dense<0.000000e+00> : vector<2x32xf32>
    %111 = tpu.matmul %108, %110, %cst_47 {dimension_numbers = #tpu.dot_dimension_numbers<[1], [0], [0], [1], [0, 0, 1, 1], [], []>} : vector<2x4xf32>, vector<4x32xf32>, vector<2x32xf32> -> vector<2x32xf32>
    %112 = arith.addf %92, %111 : vector<2x32xf32>
    %113 = vector.extract_strided_slice %11 {offsets = [0, 20], sizes = [2, 4], strides = [1, 1]} : vector<2x96xf32> to vector<2x4xf32>
    %114 = vector.extract_strided_slice %11 {offsets = [0, 52], sizes = [2, 4], strides = [1, 1]} : vector<2x96xf32> to vector<2x4xf32>
    %115 = vector.extract_strided_slice %11 {offsets = [0, 84], sizes = [2, 4], strides = [1, 1]} : vector<2x96xf32> to vector<2x4xf32>
    %116 = tpu.transpose %114, [1, 0] : vector<2x4xf32> -> vector<4x2xf32>
    %cst_48 = arith.constant dense<0.000000e+00> : vector<2x2xf32>
    %117 = tpu.matmul %113, %116, %cst_48 {dimension_numbers = #tpu.dot_dimension_numbers<[1], [0], [0], [1], [0, 0, 1, 1], [], []>} : vector<2x4xf32>, vector<4x2xf32>, vector<2x2xf32> -> vector<2x2xf32>
    %cst_49 = arith.constant dense<0xFF800000> : vector<2xf32>
    %118 = vector.multi_reduction <maximumf>, %117, %cst_49 [1] : vector<2x2xf32> to vector<2xf32>
    %119 = vector.shape_cast %118 : vector<2xf32> to vector<2x1xf32>
    %120 = vector.broadcast %119 : vector<2x1xf32> to vector<2x2xf32>
    %121 = arith.subf %117, %120 : vector<2x2xf32>
    %122 = math.exp %121 : vector<2x2xf32>
    %cst_50 = arith.constant dense<0.000000e+00> : vector<2xf32>
    %123 = vector.multi_reduction <add>, %122, %cst_50 [1] : vector<2x2xf32> to vector<2xf32>
    %124 = vector.shape_cast %123 : vector<2xf32> to vector<2x1xf32>
    %125 = tpu.reciprocal %124 {approx = true} : vector<2x1xf32> -> vector<2x1xf32>
    %126 = vector.broadcast %125 : vector<2x1xf32> to vector<2x2xf32>
    %127 = arith.mulf %122, %126 : vector<2x2xf32>
    %cst_51 = arith.constant dense<0.000000e+00> : vector<2x4xf32>
    %128 = tpu.matmul %127, %115, %cst_51 {dimension_numbers = #tpu.dot_dimension_numbers<[1], [0], [0], [1], [0, 0, 1, 1], [], []>} : vector<2x2xf32>, vector<2x4xf32>, vector<2x4xf32> -> vector<2x4xf32>
    %c5 = arith.constant 5 : index
    %c0_52 = arith.constant 0 : index
    %c0_53 = arith.constant 0 : index
    %129 = vector.load %arg6[%c5, %c0_52, %c0_53] : memref<8x4x32xf32, #tpu.memory_space<vmem>>, vector<1x4x32xf32>
    %130 = vector.shape_cast %129 : vector<1x4x32xf32> to vector<4x32xf32>
    %cst_54 = arith.constant dense<0.000000e+00> : vector<2x32xf32>
    %131 = tpu.matmul %128, %130, %cst_54 {dimension_numbers = #tpu.dot_dimension_numbers<[1], [0], [0], [1], [0, 0, 1, 1], [], []>} : vector<2x4xf32>, vector<4x32xf32>, vector<2x32xf32> -> vector<2x32xf32>
    %132 = arith.addf %112, %131 : vector<2x32xf32>
    %133 = vector.extract_strided_slice %11 {offsets = [0, 24], sizes = [2, 4], strides = [1, 1]} : vector<2x96xf32> to vector<2x4xf32>
    %134 = vector.extract_strided_slice %11 {offsets = [0, 56], sizes = [2, 4], strides = [1, 1]} : vector<2x96xf32> to vector<2x4xf32>
    %135 = vector.extract_strided_slice %11 {offsets = [0, 88], sizes = [2, 4], strides = [1, 1]} : vector<2x96xf32> to vector<2x4xf32>
    %136 = tpu.transpose %134, [1, 0] : vector<2x4xf32> -> vector<4x2xf32>
    %cst_55 = arith.constant dense<0.000000e+00> : vector<2x2xf32>
    %137 = tpu.matmul %133, %136, %cst_55 {dimension_numbers = #tpu.dot_dimension_numbers<[1], [0], [0], [1], [0, 0, 1, 1], [], []>} : vector<2x4xf32>, vector<4x2xf32>, vector<2x2xf32> -> vector<2x2xf32>
    %cst_56 = arith.constant dense<0xFF800000> : vector<2xf32>
    %138 = vector.multi_reduction <maximumf>, %137, %cst_56 [1] : vector<2x2xf32> to vector<2xf32>
    %139 = vector.shape_cast %138 : vector<2xf32> to vector<2x1xf32>
    %140 = vector.broadcast %139 : vector<2x1xf32> to vector<2x2xf32>
    %141 = arith.subf %137, %140 : vector<2x2xf32>
    %142 = math.exp %141 : vector<2x2xf32>
    %cst_57 = arith.constant dense<0.000000e+00> : vector<2xf32>
    %143 = vector.multi_reduction <add>, %142, %cst_57 [1] : vector<2x2xf32> to vector<2xf32>
    %144 = vector.shape_cast %143 : vector<2xf32> to vector<2x1xf32>
    %145 = tpu.reciprocal %144 {approx = true} : vector<2x1xf32> -> vector<2x1xf32>
    %146 = vector.broadcast %145 : vector<2x1xf32> to vector<2x2xf32>
    %147 = arith.mulf %142, %146 : vector<2x2xf32>
    %cst_58 = arith.constant dense<0.000000e+00> : vector<2x4xf32>
    %148 = tpu.matmul %147, %135, %cst_58 {dimension_numbers = #tpu.dot_dimension_numbers<[1], [0], [0], [1], [0, 0, 1, 1], [], []>} : vector<2x2xf32>, vector<2x4xf32>, vector<2x4xf32> -> vector<2x4xf32>
    %c6 = arith.constant 6 : index
    %c0_59 = arith.constant 0 : index
    %c0_60 = arith.constant 0 : index
    %149 = vector.load %arg6[%c6, %c0_59, %c0_60] : memref<8x4x32xf32, #tpu.memory_space<vmem>>, vector<1x4x32xf32>
    %150 = vector.shape_cast %149 : vector<1x4x32xf32> to vector<4x32xf32>
    %cst_61 = arith.constant dense<0.000000e+00> : vector<2x32xf32>
    %151 = tpu.matmul %148, %150, %cst_61 {dimension_numbers = #tpu.dot_dimension_numbers<[1], [0], [0], [1], [0, 0, 1, 1], [], []>} : vector<2x4xf32>, vector<4x32xf32>, vector<2x32xf32> -> vector<2x32xf32>
    %152 = arith.addf %132, %151 : vector<2x32xf32>
    %153 = vector.extract_strided_slice %11 {offsets = [0, 28], sizes = [2, 4], strides = [1, 1]} : vector<2x96xf32> to vector<2x4xf32>
    %154 = vector.extract_strided_slice %11 {offsets = [0, 60], sizes = [2, 4], strides = [1, 1]} : vector<2x96xf32> to vector<2x4xf32>
    %155 = vector.extract_strided_slice %11 {offsets = [0, 92], sizes = [2, 4], strides = [1, 1]} : vector<2x96xf32> to vector<2x4xf32>
    %156 = tpu.transpose %154, [1, 0] : vector<2x4xf32> -> vector<4x2xf32>
    %cst_62 = arith.constant dense<0.000000e+00> : vector<2x2xf32>
    %157 = tpu.matmul %153, %156, %cst_62 {dimension_numbers = #tpu.dot_dimension_numbers<[1], [0], [0], [1], [0, 0, 1, 1], [], []>} : vector<2x4xf32>, vector<4x2xf32>, vector<2x2xf32> -> vector<2x2xf32>
    %cst_63 = arith.constant dense<0xFF800000> : vector<2xf32>
    %158 = vector.multi_reduction <maximumf>, %157, %cst_63 [1] : vector<2x2xf32> to vector<2xf32>
    %159 = vector.shape_cast %158 : vector<2xf32> to vector<2x1xf32>
    %160 = vector.broadcast %159 : vector<2x1xf32> to vector<2x2xf32>
    %161 = arith.subf %157, %160 : vector<2x2xf32>
    %162 = math.exp %161 : vector<2x2xf32>
    %cst_64 = arith.constant dense<0.000000e+00> : vector<2xf32>
    %163 = vector.multi_reduction <add>, %162, %cst_64 [1] : vector<2x2xf32> to vector<2xf32>
    %164 = vector.shape_cast %163 : vector<2xf32> to vector<2x1xf32>
    %165 = tpu.reciprocal %164 {approx = true} : vector<2x1xf32> -> vector<2x1xf32>
    %166 = vector.broadcast %165 : vector<2x1xf32> to vector<2x2xf32>
    %167 = arith.mulf %162, %166 : vector<2x2xf32>
    %cst_65 = arith.constant dense<0.000000e+00> : vector<2x4xf32>
    %168 = tpu.matmul %167, %155, %cst_65 {dimension_numbers = #tpu.dot_dimension_numbers<[1], [0], [0], [1], [0, 0, 1, 1], [], []>} : vector<2x2xf32>, vector<2x4xf32>, vector<2x4xf32> -> vector<2x4xf32>
    %c7 = arith.constant 7 : index
    %c0_66 = arith.constant 0 : index
    %c0_67 = arith.constant 0 : index
    %169 = vector.load %arg6[%c7, %c0_66, %c0_67] : memref<8x4x32xf32, #tpu.memory_space<vmem>>, vector<1x4x32xf32>
    %170 = vector.shape_cast %169 : vector<1x4x32xf32> to vector<4x32xf32>
    %cst_68 = arith.constant dense<0.000000e+00> : vector<2x32xf32>
    %171 = tpu.matmul %168, %170, %cst_68 {dimension_numbers = #tpu.dot_dimension_numbers<[1], [0], [0], [1], [0, 0, 1, 1], [], []>} : vector<2x4xf32>, vector<4x32xf32>, vector<2x32xf32> -> vector<2x32xf32>
    %172 = arith.addf %152, %171 : vector<2x32xf32>
    %c0_69 = arith.constant 0 : index
    %c0_70 = arith.constant 0 : index
    %173 = vector.load %arg7[%c0_69, %c0_70] : memref<1x32xf32, #tpu.memory_space<vmem>>, vector<1x32xf32>
    %174 = vector.broadcast %173 : vector<1x32xf32> to vector<2x32xf32>
    %175 = arith.addf %172, %174 : vector<2x32xf32>
    %c0_71 = arith.constant 0 : index
    %c0_72 = arith.constant 0 : index
    %176 = vector.load %arg8[%c0_71, %c0_72] : memref<32x512xf32, #tpu.memory_space<vmem>>, vector<32x512xf32>
    %cst_73 = arith.constant dense<0.000000e+00> : vector<2x512xf32>
    %177 = tpu.matmul %175, %176, %cst_73 {dimension_numbers = #tpu.dot_dimension_numbers<[1], [0], [0], [1], [0, 0, 1, 1], [], []>} : vector<2x32xf32>, vector<32x512xf32>, vector<2x512xf32> -> vector<2x512xf32>
    %c0_74 = arith.constant 0 : index
    %c0_75 = arith.constant 0 : index
    %178 = vector.load %arg9[%c0_74, %c0_75] : memref<1x512xf32, #tpu.memory_space<vmem>>, vector<1x512xf32>
    %179 = vector.broadcast %178 : vector<1x512xf32> to vector<2x512xf32>
    %180 = arith.addf %177, %179 : vector<2x512xf32>
    %c0_76 = arith.constant 0 : index
    %c0_77 = arith.constant 0 : index
    %c0_78 = arith.constant 0 : index
    %181 = vector.load %arg10[%c0_76, %c0_77, %c0_78] : memref<1x2x512xf32, #tpu.memory_space<vmem>>, vector<1x2x512xf32>
    %182 = vector.shape_cast %181 : vector<1x2x512xf32> to vector<2x512xf32>
    %183 = vector.shape_cast %180 : vector<2x512xf32> to vector<1x2x512xf32>
    tpu.vector_store %arg10[%c0_76, %c0_77, %c0_78], %183 {strides = array<i32>} : memref<1x2x512xf32, #tpu.memory_space<vmem>>, vector<1x2x512xf32>,
    return
  }
  func.func @transform_0(%arg0: i32) -> (i32, i32, i32) {
    %c0_i32 = arith.constant 0 : i32
    %c0_i32_0 = arith.constant 0 : i32
    %c0_i32_1 = arith.constant 0 : i32
    return %arg0, %c0_i32, %c0_i32_0 : i32, i32, i32
  }
  func.func @transform_1(%arg0: i32) -> (i32, i32) {
    %c0_i32 = arith.constant 0 : i32
    %c0_i32_0 = arith.constant 0 : i32
    %c0_i32_1 = arith.constant 0 : i32
    return %c0_i32, %c0_i32_0 : i32, i32
  }
  func.func @transform_2(%arg0: i32) -> (i32, i32) {
    %c0_i32 = arith.constant 0 : i32
    %c0_i32_0 = arith.constant 0 : i32
    %c0_i32_1 = arith.constant 0 : i32
    return %c0_i32, %c0_i32_0 : i32, i32
  }
  func.func @transform_3(%arg0: i32) -> (i32, i32) {
    %c0_i32 = arith.constant 0 : i32
    %c0_i32_0 = arith.constant 0 : i32
    %c0_i32_1 = arith.constant 0 : i32
    return %c0_i32, %c0_i32_0 : i32, i32
  }
  func.func @transform_4(%arg0: i32) -> (i32, i32) {
    %c0_i32 = arith.constant 0 : i32
    %c0_i32_0 = arith.constant 0 : i32
    %c0_i32_1 = arith.constant 0 : i32
    return %c0_i32, %c0_i32_0 : i32, i32
  }
  func.func @transform_5(%arg0: i32) -> (i32, i32, i32) {
    %c0_i32 = arith.constant 0 : i32
    %c0_i32_0 = arith.constant 0 : i32
    %c0_i32_1 = arith.constant 0 : i32
    %c0_i32_2 = arith.constant 0 : i32
    return %c0_i32, %c0_i32_0, %c0_i32_1 : i32, i32, i32
  }
  func.func @transform_6(%arg0: i32) -> (i32, i32) {
    %c0_i32 = arith.constant 0 : i32
    %c0_i32_0 = arith.constant 0 : i32
    %c0_i32_1 = arith.constant 0 : i32
    return %c0_i32, %c0_i32_0 : i32, i32
  }
  func.func @transform_7(%arg0: i32) -> (i32, i32) {
    %c0_i32 = arith.constant 0 : i32
    %c0_i32_0 = arith.constant 0 : i32
    %c0_i32_1 = arith.constant 0 : i32
    return %c0_i32, %c0_i32_0 : i32, i32
  }
  func.func @transform_8(%arg0: i32) -> (i32, i32) {
    %c0_i32 = arith.constant 0 : i32
    %c0_i32_0 = arith.constant 0 : i32
    %c0_i32_1 = arith.constant 0 : i32
    return %c0_i32, %c0_i32_0 : i32, i32
  }
  func.func @transform_9(%arg0: i32) -> (i32, i32, i32) {
    %c0_i32 = arith.constant 0 : i32
    %c0_i32_0 = arith.constant 0 : i32
    %c0_i32_1 = arith.constant 0 : i32
    return %arg0, %c0_i32, %c0_i32_0 : i32, i32, i32
  }
}

module attributes {stable_mosaic.version = 11 : i64} {
  func.func @_block_kernel(%arg0: i32, %arg1: memref<1x8x256xf32, #tpu.memory_space<vmem>>, %arg2: memref<1x8x256xf32, #tpu.memory_space<vmem>>, %arg3: memref<98xf32, #tpu.memory_space<smem>>, %arg4: memref<2x8xf32, #tpu.memory_space<vmem>>, %arg5: memref<8x2xf32, #tpu.memory_space<vmem>>, %arg6: memref<27x8x8xf32, #tpu.memory_space<vmem>>, %arg7: memref<8x1xf32, #tpu.memory_space<vmem>>, %arg8: memref<1x8x256xf32, #tpu.memory_space<vmem>>, %arg9: memref<2x358xf32, #tpu.memory_space<vmem>>, %arg10: memref<8x290xf32, #tpu.memory_space<vmem>>, %arg11: memref<8x290xf32, #tpu.memory_space<vmem>>, %arg12: memref<8x290xf32, #tpu.memory_space<vmem>>) attributes {dimension_semantics = [#tpu.dimension_semantics<parallel>], iteration_bounds = array<i64: 2>, scalar_prefetch = 0 : i64, scratch_operands = 4 : i64, tpu.core_type = #tpu.core_type<tc>, window_params = [{transform_indices = @transform_0, window_bounds = array<i64: 1, 8, 256>}, {transform_indices = @transform_1, window_bounds = array<i64: 1, 8, 256>}, {transform_indices = @transform_2, window_bounds = array<i64: 98>}, {pipeline_mode = #tpu.pipeline_mode<synchronous>, transform_indices = @transform_3, window_bounds = array<i64: 2, 8>}, {pipeline_mode = #tpu.pipeline_mode<synchronous>, transform_indices = @transform_4, window_bounds = array<i64: 8, 2>}, {pipeline_mode = #tpu.pipeline_mode<synchronous>, transform_indices = @transform_5, window_bounds = array<i64: 27, 8, 8>}, {pipeline_mode = #tpu.pipeline_mode<synchronous>, transform_indices = @transform_6, window_bounds = array<i64: 8, 1>}, {transform_indices = @transform_7, window_bounds = array<i64: 1, 8, 256>}]} {
    %c0 = arith.constant 0 : index
    %c0_0 = arith.constant 0 : index
    %c0_1 = arith.constant 0 : index
    %0 = vector.load %arg1[%c0, %c0_0, %c0_1] : memref<1x8x256xf32, #tpu.memory_space<vmem>>, vector<1x8x256xf32>
    %1 = vector.shape_cast %0 : vector<1x8x256xf32> to vector<8x256xf32>
    %2 = tpu.iota {dimensions = array<i32: 1>} : vector<1x256xi32>
    %c16_i32 = arith.constant 16 : i32
    %c0_i32 = arith.constant 0 : i32
    %3 = arith.cmpi eq, %c16_i32, %c0_i32 : i32
    %c1_i32 = arith.constant 1 : i32
    %4 = arith.select %3, %c1_i32, %c16_i32 : i32
    %5 = vector.broadcast %4 : i32 to vector<1x256xi32>
    %6 = arith.remsi %2, %5 : vector<1x256xi32>
    %c0_i32_2 = arith.constant 0 : i32
    %7 = vector.broadcast %c0_i32_2 : i32 to vector<1x256xi32>
    %8 = arith.cmpi ne, %6, %7 : vector<1x256xi32>
    %c0_i32_3 = arith.constant 0 : i32
    %9 = vector.broadcast %c0_i32_3 : i32 to vector<1x256xi32>
    %10 = arith.cmpi slt, %6, %9 : vector<1x256xi32>
    %c0_i32_4 = arith.constant 0 : i32
    %11 = arith.cmpi slt, %4, %c0_i32_4 : i32
    %12 = vector.broadcast %11 : i1 to vector<1x256xi1>
    %13 = vector.broadcast %12 : vector<1x256xi1> to vector<1x256xi1>
    %14 = arith.xori %10, %13 : vector<1x256xi1>
    %15 = arith.andi %14, %8 : vector<1x256xi1>
    %16 = vector.broadcast %4 : i32 to vector<1x256xi32>
    %17 = arith.addi %6, %16 : vector<1x256xi32>
    %18 = arith.select %15, %17, %6 : vector<1x256xi1>, vector<1x256xi32>
    %c-3_i32 = arith.constant -3 : i32
    %19 = vector.broadcast %c-3_i32 : i32 to vector<1x256xi32>
    %20 = arith.addi %18, %19 : vector<1x256xi32>
    %c0_i32_5 = arith.constant 0 : i32
    %21 = vector.broadcast %c0_i32_5 : i32 to vector<1x256xi32>
    %22 = arith.cmpi sge, %20, %21 : vector<1x256xi32>
    %c-3_i32_6 = arith.constant -3 : i32
    %23 = vector.broadcast %c-3_i32_6 : i32 to vector<1x256xi32>
    %24 = arith.addi %18, %23 : vector<1x256xi32>
    %c15_i32 = arith.constant 15 : i32
    %25 = vector.broadcast %c15_i32 : i32 to vector<1x256xi32>
    %26 = arith.cmpi sle, %24, %25 : vector<1x256xi32>
    %27 = arith.andi %22, %26 : vector<1x256xi1>
    %c-2_i32 = arith.constant -2 : i32
    %28 = vector.broadcast %c-2_i32 : i32 to vector<1x256xi32>
    %29 = arith.addi %18, %28 : vector<1x256xi32>
    %c0_i32_7 = arith.constant 0 : i32
    %30 = vector.broadcast %c0_i32_7 : i32 to vector<1x256xi32>
    %31 = arith.cmpi sge, %29, %30 : vector<1x256xi32>
    %c-2_i32_8 = arith.constant -2 : i32
    %32 = vector.broadcast %c-2_i32_8 : i32 to vector<1x256xi32>
    %33 = arith.addi %18, %32 : vector<1x256xi32>
    %c15_i32_9 = arith.constant 15 : i32
    %34 = vector.broadcast %c15_i32_9 : i32 to vector<1x256xi32>
    %35 = arith.cmpi sle, %33, %34 : vector<1x256xi32>
    %36 = arith.andi %31, %35 : vector<1x256xi1>
    %c-1_i32 = arith.constant -1 : i32
    %37 = vector.broadcast %c-1_i32 : i32 to vector<1x256xi32>
    %38 = arith.addi %18, %37 : vector<1x256xi32>
    %c0_i32_10 = arith.constant 0 : i32
    %39 = vector.broadcast %c0_i32_10 : i32 to vector<1x256xi32>
    %40 = arith.cmpi sge, %38, %39 : vector<1x256xi32>
    %c-1_i32_11 = arith.constant -1 : i32
    %41 = vector.broadcast %c-1_i32_11 : i32 to vector<1x256xi32>
    %42 = arith.addi %18, %41 : vector<1x256xi32>
    %c15_i32_12 = arith.constant 15 : i32
    %43 = vector.broadcast %c15_i32_12 : i32 to vector<1x256xi32>
    %44 = arith.cmpi sle, %42, %43 : vector<1x256xi32>
    %45 = arith.andi %40, %44 : vector<1x256xi1>
    %c1_i32_13 = arith.constant 1 : i32
    %46 = vector.broadcast %c1_i32_13 : i32 to vector<1x256xi32>
    %47 = arith.addi %18, %46 : vector<1x256xi32>
    %c0_i32_14 = arith.constant 0 : i32
    %48 = vector.broadcast %c0_i32_14 : i32 to vector<1x256xi32>
    %49 = arith.cmpi sge, %47, %48 : vector<1x256xi32>
    %c1_i32_15 = arith.constant 1 : i32
    %50 = vector.broadcast %c1_i32_15 : i32 to vector<1x256xi32>
    %51 = arith.addi %18, %50 : vector<1x256xi32>
    %c15_i32_16 = arith.constant 15 : i32
    %52 = vector.broadcast %c15_i32_16 : i32 to vector<1x256xi32>
    %53 = arith.cmpi sle, %51, %52 : vector<1x256xi32>
    %54 = arith.andi %49, %53 : vector<1x256xi1>
    %c2_i32 = arith.constant 2 : i32
    %55 = vector.broadcast %c2_i32 : i32 to vector<1x256xi32>
    %56 = arith.addi %18, %55 : vector<1x256xi32>
    %c0_i32_17 = arith.constant 0 : i32
    %57 = vector.broadcast %c0_i32_17 : i32 to vector<1x256xi32>
    %58 = arith.cmpi sge, %56, %57 : vector<1x256xi32>
    %c2_i32_18 = arith.constant 2 : i32
    %59 = vector.broadcast %c2_i32_18 : i32 to vector<1x256xi32>
    %60 = arith.addi %18, %59 : vector<1x256xi32>
    %c15_i32_19 = arith.constant 15 : i32
    %61 = vector.broadcast %c15_i32_19 : i32 to vector<1x256xi32>
    %62 = arith.cmpi sle, %60, %61 : vector<1x256xi32>
    %63 = arith.andi %58, %62 : vector<1x256xi1>
    %c3_i32 = arith.constant 3 : i32
    %64 = vector.broadcast %c3_i32 : i32 to vector<1x256xi32>
    %65 = arith.addi %18, %64 : vector<1x256xi32>
    %c0_i32_20 = arith.constant 0 : i32
    %66 = vector.broadcast %c0_i32_20 : i32 to vector<1x256xi32>
    %67 = arith.cmpi sge, %65, %66 : vector<1x256xi32>
    %c3_i32_21 = arith.constant 3 : i32
    %68 = vector.broadcast %c3_i32_21 : i32 to vector<1x256xi32>
    %69 = arith.addi %18, %68 : vector<1x256xi32>
    %c15_i32_22 = arith.constant 15 : i32
    %70 = vector.broadcast %c15_i32_22 : i32 to vector<1x256xi32>
    %71 = arith.cmpi sle, %69, %70 : vector<1x256xi32>
    %72 = arith.andi %67, %71 : vector<1x256xi1>
    %cst = arith.constant 0.000000e+00 : f32
    %73 = vector.broadcast %cst : f32 to vector<2x358xf32>
    %c0_23 = arith.constant 0 : index
    %c0_24 = arith.constant 0 : index
    %74 = vector.load %arg9[%c0_23, %c0_24] : memref<2x358xf32, #tpu.memory_space<vmem>>, vector<2x358xf32>
    tpu.vector_store %arg9[%c0_23, %c0_24], %73 {strides = array<i32>} : memref<2x358xf32, #tpu.memory_space<vmem>>, vector<2x358xf32>,
    %cst_25 = arith.constant dense<0.000000e+00> : vector<256xf32>
    %75 = vector.multi_reduction <add>, %1, %cst_25 [0] : vector<8x256xf32> to vector<256xf32>
    %76 = vector.shape_cast %75 : vector<256xf32> to vector<1x256xf32>
    %cst_26 = arith.constant 8.000000e+00 : f32
    %77 = vector.broadcast %cst_26 : f32 to vector<1x256xf32>
    %78 = arith.divf %76, %77 : vector<1x256xf32>
    %c0_27 = arith.constant 0 : index
    %c51 = arith.constant 51 : index
    %79 = vector.load %arg9[%c0_27, %c51] : memref<2x358xf32, #tpu.memory_space<vmem>>, vector<1x256xf32>
    tpu.vector_store %arg9[%c0_27, %c51], %78 {strides = array<i32>} : memref<2x358xf32, #tpu.memory_space<vmem>>, vector<1x256xf32>,
    %cst_28 = arith.constant dense<0xFF800000> : vector<256xf32>
    %80 = vector.multi_reduction <maximumf>, %1, %cst_28 [0] : vector<8x256xf32> to vector<256xf32>
    %81 = vector.shape_cast %80 : vector<256xf32> to vector<1x256xf32>
    %c1 = arith.constant 1 : index
    %c51_29 = arith.constant 51 : index
    %82 = vector.load %arg9[%c1, %c51_29] : memref<2x358xf32, #tpu.memory_space<vmem>>, vector<1x256xf32>
    tpu.vector_store %arg9[%c1, %c51_29], %81 {strides = array<i32>} : memref<2x358xf32, #tpu.memory_space<vmem>>, vector<1x256xf32>,
    %c0_30 = arith.constant 0 : index
    %c0_31 = arith.constant 0 : index
    %83 = vector.load %arg9[%c0_30, %c0_31] : memref<2x358xf32, #tpu.memory_space<vmem>>, vector<2x358xf32>
    %cst_32 = arith.constant 0.000000e+00 : f32
    %84 = vector.broadcast %cst_32 : f32 to vector<1x256xf32>
    %85 = vector.extract_strided_slice %83 {offsets = [0, 0], sizes = [2, 256], strides = [1, 1]} : vector<2x358xf32> to vector<2x256xf32>
    %cst_33 = arith.constant 0.000000e+00 : f32
    %86 = vector.shape_cast %27 : vector<1x256xi1> to vector<1x256xi1>
    %87 = vector.broadcast %86 : vector<1x256xi1> to vector<2x256xi1>
    %88 = vector.broadcast %cst_33 : f32 to vector<2x256xf32>
    %89 = arith.select %87, %85, %88 : vector<2x256xi1>, vector<2x256xf32>
    %90 = vector.extract_strided_slice %89 {offsets = [0, 0], sizes = [1, 256], strides = [1, 1]} : vector<2x256xf32> to vector<1x256xf32>
    %c0_34 = arith.constant 0 : index
    %91 = memref.load %arg3[%c0_34] : memref<98xf32, #tpu.memory_space<smem>>
    %92 = vector.broadcast %91 : f32 to vector<1x256xf32>
    %93 = arith.mulf %90, %92 : vector<1x256xf32>
    %94 = vector.extract_strided_slice %89 {offsets = [1, 0], sizes = [1, 256], strides = [1, 1]} : vector<2x256xf32> to vector<1x256xf32>
    %c49 = arith.constant 49 : index
    %95 = memref.load %arg3[%c49] : memref<98xf32, #tpu.memory_space<smem>>
    %96 = vector.broadcast %95 : f32 to vector<1x256xf32>
    %97 = arith.mulf %94, %96 : vector<1x256xf32>
    %98 = arith.addf %93, %97 : vector<1x256xf32>
    %99 = arith.addf %84, %98 : vector<1x256xf32>
    %100 = vector.extract_strided_slice %83 {offsets = [0, 1], sizes = [2, 256], strides = [1, 1]} : vector<2x358xf32> to vector<2x256xf32>
    %cst_35 = arith.constant 0.000000e+00 : f32
    %101 = vector.shape_cast %36 : vector<1x256xi1> to vector<1x256xi1>
    %102 = vector.broadcast %101 : vector<1x256xi1> to vector<2x256xi1>
    %103 = vector.broadcast %cst_35 : f32 to vector<2x256xf32>
    %104 = arith.select %102, %100, %103 : vector<2x256xi1>, vector<2x256xf32>
    %105 = vector.extract_strided_slice %104 {offsets = [0, 0], sizes = [1, 256], strides = [1, 1]} : vector<2x256xf32> to vector<1x256xf32>
    %c1_36 = arith.constant 1 : index
    %106 = memref.load %arg3[%c1_36] : memref<98xf32, #tpu.memory_space<smem>>
    %107 = vector.broadcast %106 : f32 to vector<1x256xf32>
    %108 = arith.mulf %105, %107 : vector<1x256xf32>
    %109 = vector.extract_strided_slice %104 {offsets = [1, 0], sizes = [1, 256], strides = [1, 1]} : vector<2x256xf32> to vector<1x256xf32>
    %c50 = arith.constant 50 : index
    %110 = memref.load %arg3[%c50] : memref<98xf32, #tpu.memory_space<smem>>
    %111 = vector.broadcast %110 : f32 to vector<1x256xf32>
    %112 = arith.mulf %109, %111 : vector<1x256xf32>
    %113 = arith.addf %108, %112 : vector<1x256xf32>
    %114 = arith.addf %99, %113 : vector<1x256xf32>
    %115 = vector.extract_strided_slice %83 {offsets = [0, 2], sizes = [2, 256], strides = [1, 1]} : vector<2x358xf32> to vector<2x256xf32>
    %cst_37 = arith.constant 0.000000e+00 : f32
    %116 = vector.shape_cast %45 : vector<1x256xi1> to vector<1x256xi1>
    %117 = vector.broadcast %116 : vector<1x256xi1> to vector<2x256xi1>
    %118 = vector.broadcast %cst_37 : f32 to vector<2x256xf32>
    %119 = arith.select %117, %115, %118 : vector<2x256xi1>, vector<2x256xf32>
    %120 = vector.extract_strided_slice %119 {offsets = [0, 0], sizes = [1, 256], strides = [1, 1]} : vector<2x256xf32> to vector<1x256xf32>
    %c2 = arith.constant 2 : index
    %121 = memref.load %arg3[%c2] : memref<98xf32, #tpu.memory_space<smem>>
    %122 = vector.broadcast %121 : f32 to vector<1x256xf32>
    %123 = arith.mulf %120, %122 : vector<1x256xf32>
    %124 = vector.extract_strided_slice %119 {offsets = [1, 0], sizes = [1, 256], strides = [1, 1]} : vector<2x256xf32> to vector<1x256xf32>
    %c51_38 = arith.constant 51 : index
    %125 = memref.load %arg3[%c51_38] : memref<98xf32, #tpu.memory_space<smem>>
    %126 = vector.broadcast %125 : f32 to vector<1x256xf32>
    %127 = arith.mulf %124, %126 : vector<1x256xf32>
    %128 = arith.addf %123, %127 : vector<1x256xf32>
    %129 = arith.addf %114, %128 : vector<1x256xf32>
    %130 = vector.extract_strided_slice %83 {offsets = [0, 3], sizes = [2, 256], strides = [1, 1]} : vector<2x358xf32> to vector<2x256xf32>
    %131 = vector.extract_strided_slice %130 {offsets = [0, 0], sizes = [1, 256], strides = [1, 1]} : vector<2x256xf32> to vector<1x256xf32>
    %c3 = arith.constant 3 : index
    %132 = memref.load %arg3[%c3] : memref<98xf32, #tpu.memory_space<smem>>
    %133 = vector.broadcast %132 : f32 to vector<1x256xf32>
    %134 = arith.mulf %131, %133 : vector<1x256xf32>
    %135 = vector.extract_strided_slice %130 {offsets = [1, 0], sizes = [1, 256], strides = [1, 1]} : vector<2x256xf32> to vector<1x256xf32>
    %c52 = arith.constant 52 : index
    %136 = memref.load %arg3[%c52] : memref<98xf32, #tpu.memory_space<smem>>
    %137 = vector.broadcast %136 : f32 to vector<1x256xf32>
    %138 = arith.mulf %135, %137 : vector<1x256xf32>
    %139 = arith.addf %134, %138 : vector<1x256xf32>
    %140 = arith.addf %129, %139 : vector<1x256xf32>
    %141 = vector.extract_strided_slice %83 {offsets = [0, 4], sizes = [2, 256], strides = [1, 1]} : vector<2x358xf32> to vector<2x256xf32>
    %cst_39 = arith.constant 0.000000e+00 : f32
    %142 = vector.shape_cast %54 : vector<1x256xi1> to vector<1x256xi1>
    %143 = vector.broadcast %142 : vector<1x256xi1> to vector<2x256xi1>
    %144 = vector.broadcast %cst_39 : f32 to vector<2x256xf32>
    %145 = arith.select %143, %141, %144 : vector<2x256xi1>, vector<2x256xf32>
    %146 = vector.extract_strided_slice %145 {offsets = [0, 0], sizes = [1, 256], strides = [1, 1]} : vector<2x256xf32> to vector<1x256xf32>
    %c4 = arith.constant 4 : index
    %147 = memref.load %arg3[%c4] : memref<98xf32, #tpu.memory_space<smem>>
    %148 = vector.broadcast %147 : f32 to vector<1x256xf32>
    %149 = arith.mulf %146, %148 : vector<1x256xf32>
    %150 = vector.extract_strided_slice %145 {offsets = [1, 0], sizes = [1, 256], strides = [1, 1]} : vector<2x256xf32> to vector<1x256xf32>
    %c53 = arith.constant 53 : index
    %151 = memref.load %arg3[%c53] : memref<98xf32, #tpu.memory_space<smem>>
    %152 = vector.broadcast %151 : f32 to vector<1x256xf32>
    %153 = arith.mulf %150, %152 : vector<1x256xf32>
    %154 = arith.addf %149, %153 : vector<1x256xf32>
    %155 = arith.addf %140, %154 : vector<1x256xf32>
    %156 = vector.extract_strided_slice %83 {offsets = [0, 5], sizes = [2, 256], strides = [1, 1]} : vector<2x358xf32> to vector<2x256xf32>
    %cst_40 = arith.constant 0.000000e+00 : f32
    %157 = vector.shape_cast %63 : vector<1x256xi1> to vector<1x256xi1>
    %158 = vector.broadcast %157 : vector<1x256xi1> to vector<2x256xi1>
    %159 = vector.broadcast %cst_40 : f32 to vector<2x256xf32>
    %160 = arith.select %158, %156, %159 : vector<2x256xi1>, vector<2x256xf32>
    %161 = vector.extract_strided_slice %160 {offsets = [0, 0], sizes = [1, 256], strides = [1, 1]} : vector<2x256xf32> to vector<1x256xf32>
    %c5 = arith.constant 5 : index
    %162 = memref.load %arg3[%c5] : memref<98xf32, #tpu.memory_space<smem>>
    %163 = vector.broadcast %162 : f32 to vector<1x256xf32>
    %164 = arith.mulf %161, %163 : vector<1x256xf32>
    %165 = vector.extract_strided_slice %160 {offsets = [1, 0], sizes = [1, 256], strides = [1, 1]} : vector<2x256xf32> to vector<1x256xf32>
    %c54 = arith.constant 54 : index
    %166 = memref.load %arg3[%c54] : memref<98xf32, #tpu.memory_space<smem>>
    %167 = vector.broadcast %166 : f32 to vector<1x256xf32>
    %168 = arith.mulf %165, %167 : vector<1x256xf32>
    %169 = arith.addf %164, %168 : vector<1x256xf32>
    %170 = arith.addf %155, %169 : vector<1x256xf32>
    %171 = vector.extract_strided_slice %83 {offsets = [0, 6], sizes = [2, 256], strides = [1, 1]} : vector<2x358xf32> to vector<2x256xf32>
    %cst_41 = arith.constant 0.000000e+00 : f32
    %172 = vector.shape_cast %72 : vector<1x256xi1> to vector<1x256xi1>
    %173 = vector.broadcast %172 : vector<1x256xi1> to vector<2x256xi1>
    %174 = vector.broadcast %cst_41 : f32 to vector<2x256xf32>
    %175 = arith.select %173, %171, %174 : vector<2x256xi1>, vector<2x256xf32>
    %176 = vector.extract_strided_slice %175 {offsets = [0, 0], sizes = [1, 256], strides = [1, 1]} : vector<2x256xf32> to vector<1x256xf32>
    %c6 = arith.constant 6 : index
    %177 = memref.load %arg3[%c6] : memref<98xf32, #tpu.memory_space<smem>>
    %178 = vector.broadcast %177 : f32 to vector<1x256xf32>
    %179 = arith.mulf %176, %178 : vector<1x256xf32>
    %180 = vector.extract_strided_slice %175 {offsets = [1, 0], sizes = [1, 256], strides = [1, 1]} : vector<2x256xf32> to vector<1x256xf32>
    %c55 = arith.constant 55 : index
    %181 = memref.load %arg3[%c55] : memref<98xf32, #tpu.memory_space<smem>>
    %182 = vector.broadcast %181 : f32 to vector<1x256xf32>
    %183 = arith.mulf %180, %182 : vector<1x256xf32>
    %184 = arith.addf %179, %183 : vector<1x256xf32>
    %185 = arith.addf %170, %184 : vector<1x256xf32>
    %186 = vector.extract_strided_slice %83 {offsets = [0, 16], sizes = [2, 256], strides = [1, 1]} : vector<2x358xf32> to vector<2x256xf32>
    %cst_42 = arith.constant 0.000000e+00 : f32
    %187 = vector.shape_cast %27 : vector<1x256xi1> to vector<1x256xi1>
    %188 = vector.broadcast %187 : vector<1x256xi1> to vector<2x256xi1>
    %189 = vector.broadcast %cst_42 : f32 to vector<2x256xf32>
    %190 = arith.select %188, %186, %189 : vector<2x256xi1>, vector<2x256xf32>
    %191 = vector.extract_strided_slice %190 {offsets = [0, 0], sizes = [1, 256], strides = [1, 1]} : vector<2x256xf32> to vector<1x256xf32>
    %c7 = arith.constant 7 : index
    %192 = memref.load %arg3[%c7] : memref<98xf32, #tpu.memory_space<smem>>
    %193 = vector.broadcast %192 : f32 to vector<1x256xf32>
    %194 = arith.mulf %191, %193 : vector<1x256xf32>
    %195 = vector.extract_strided_slice %190 {offsets = [1, 0], sizes = [1, 256], strides = [1, 1]} : vector<2x256xf32> to vector<1x256xf32>
    %c56 = arith.constant 56 : index
    %196 = memref.load %arg3[%c56] : memref<98xf32, #tpu.memory_space<smem>>
    %197 = vector.broadcast %196 : f32 to vector<1x256xf32>
    %198 = arith.mulf %195, %197 : vector<1x256xf32>
    %199 = arith.addf %194, %198 : vector<1x256xf32>
    %200 = arith.addf %185, %199 : vector<1x256xf32>
    %201 = vector.extract_strided_slice %83 {offsets = [0, 17], sizes = [2, 256], strides = [1, 1]} : vector<2x358xf32> to vector<2x256xf32>
    %cst_43 = arith.constant 0.000000e+00 : f32
    %202 = vector.shape_cast %36 : vector<1x256xi1> to vector<1x256xi1>
    %203 = vector.broadcast %202 : vector<1x256xi1> to vector<2x256xi1>
    %204 = vector.broadcast %cst_43 : f32 to vector<2x256xf32>
    %205 = arith.select %203, %201, %204 : vector<2x256xi1>, vector<2x256xf32>
    %206 = vector.extract_strided_slice %205 {offsets = [0, 0], sizes = [1, 256], strides = [1, 1]} : vector<2x256xf32> to vector<1x256xf32>
    %c8 = arith.constant 8 : index
    %207 = memref.load %arg3[%c8] : memref<98xf32, #tpu.memory_space<smem>>
    %208 = vector.broadcast %207 : f32 to vector<1x256xf32>
    %209 = arith.mulf %206, %208 : vector<1x256xf32>
    %210 = vector.extract_strided_slice %205 {offsets = [1, 0], sizes = [1, 256], strides = [1, 1]} : vector<2x256xf32> to vector<1x256xf32>
    %c57 = arith.constant 57 : index
    %211 = memref.load %arg3[%c57] : memref<98xf32, #tpu.memory_space<smem>>
    %212 = vector.broadcast %211 : f32 to vector<1x256xf32>
    %213 = arith.mulf %210, %212 : vector<1x256xf32>
    %214 = arith.addf %209, %213 : vector<1x256xf32>
    %215 = arith.addf %200, %214 : vector<1x256xf32>
    %216 = vector.extract_strided_slice %83 {offsets = [0, 18], sizes = [2, 256], strides = [1, 1]} : vector<2x358xf32> to vector<2x256xf32>
    %cst_44 = arith.constant 0.000000e+00 : f32
    %217 = vector.shape_cast %45 : vector<1x256xi1> to vector<1x256xi1>
    %218 = vector.broadcast %217 : vector<1x256xi1> to vector<2x256xi1>
    %219 = vector.broadcast %cst_44 : f32 to vector<2x256xf32>
    %220 = arith.select %218, %216, %219 : vector<2x256xi1>, vector<2x256xf32>
    %221 = vector.extract_strided_slice %220 {offsets = [0, 0], sizes = [1, 256], strides = [1, 1]} : vector<2x256xf32> to vector<1x256xf32>
    %c9 = arith.constant 9 : index
    %222 = memref.load %arg3[%c9] : memref<98xf32, #tpu.memory_space<smem>>
    %223 = vector.broadcast %222 : f32 to vector<1x256xf32>
    %224 = arith.mulf %221, %223 : vector<1x256xf32>
    %225 = vector.extract_strided_slice %220 {offsets = [1, 0], sizes = [1, 256], strides = [1, 1]} : vector<2x256xf32> to vector<1x256xf32>
    %c58 = arith.constant 58 : index
    %226 = memref.load %arg3[%c58] : memref<98xf32, #tpu.memory_space<smem>>
    %227 = vector.broadcast %226 : f32 to vector<1x256xf32>
    %228 = arith.mulf %225, %227 : vector<1x256xf32>
    %229 = arith.addf %224, %228 : vector<1x256xf32>
    %230 = arith.addf %215, %229 : vector<1x256xf32>
    %231 = vector.extract_strided_slice %83 {offsets = [0, 19], sizes = [2, 256], strides = [1, 1]} : vector<2x358xf32> to vector<2x256xf32>
    %232 = vector.extract_strided_slice %231 {offsets = [0, 0], sizes = [1, 256], strides = [1, 1]} : vector<2x256xf32> to vector<1x256xf32>
    %c10 = arith.constant 10 : index
    %233 = memref.load %arg3[%c10] : memref<98xf32, #tpu.memory_space<smem>>
    %234 = vector.broadcast %233 : f32 to vector<1x256xf32>
    %235 = arith.mulf %232, %234 : vector<1x256xf32>
    %236 = vector.extract_strided_slice %231 {offsets = [1, 0], sizes = [1, 256], strides = [1, 1]} : vector<2x256xf32> to vector<1x256xf32>
    %c59 = arith.constant 59 : index
    %237 = memref.load %arg3[%c59] : memref<98xf32, #tpu.memory_space<smem>>
    %238 = vector.broadcast %237 : f32 to vector<1x256xf32>
    %239 = arith.mulf %236, %238 : vector<1x256xf32>
    %240 = arith.addf %235, %239 : vector<1x256xf32>
    %241 = arith.addf %230, %240 : vector<1x256xf32>
    %242 = vector.extract_strided_slice %83 {offsets = [0, 20], sizes = [2, 256], strides = [1, 1]} : vector<2x358xf32> to vector<2x256xf32>
    %cst_45 = arith.constant 0.000000e+00 : f32
    %243 = vector.shape_cast %54 : vector<1x256xi1> to vector<1x256xi1>
    %244 = vector.broadcast %243 : vector<1x256xi1> to vector<2x256xi1>
    %245 = vector.broadcast %cst_45 : f32 to vector<2x256xf32>
    %246 = arith.select %244, %242, %245 : vector<2x256xi1>, vector<2x256xf32>
    %247 = vector.extract_strided_slice %246 {offsets = [0, 0], sizes = [1, 256], strides = [1, 1]} : vector<2x256xf32> to vector<1x256xf32>
    %c11 = arith.constant 11 : index
    %248 = memref.load %arg3[%c11] : memref<98xf32, #tpu.memory_space<smem>>
    %249 = vector.broadcast %248 : f32 to vector<1x256xf32>
    %250 = arith.mulf %247, %249 : vector<1x256xf32>
    %251 = vector.extract_strided_slice %246 {offsets = [1, 0], sizes = [1, 256], strides = [1, 1]} : vector<2x256xf32> to vector<1x256xf32>
    %c60 = arith.constant 60 : index
    %252 = memref.load %arg3[%c60] : memref<98xf32, #tpu.memory_space<smem>>
    %253 = vector.broadcast %252 : f32 to vector<1x256xf32>
    %254 = arith.mulf %251, %253 : vector<1x256xf32>
    %255 = arith.addf %250, %254 : vector<1x256xf32>
    %256 = arith.addf %241, %255 : vector<1x256xf32>
    %257 = vector.extract_strided_slice %83 {offsets = [0, 21], sizes = [2, 256], strides = [1, 1]} : vector<2x358xf32> to vector<2x256xf32>
    %cst_46 = arith.constant 0.000000e+00 : f32
    %258 = vector.shape_cast %63 : vector<1x256xi1> to vector<1x256xi1>
    %259 = vector.broadcast %258 : vector<1x256xi1> to vector<2x256xi1>
    %260 = vector.broadcast %cst_46 : f32 to vector<2x256xf32>
    %261 = arith.select %259, %257, %260 : vector<2x256xi1>, vector<2x256xf32>
    %262 = vector.extract_strided_slice %261 {offsets = [0, 0], sizes = [1, 256], strides = [1, 1]} : vector<2x256xf32> to vector<1x256xf32>
    %c12 = arith.constant 12 : index
    %263 = memref.load %arg3[%c12] : memref<98xf32, #tpu.memory_space<smem>>
    %264 = vector.broadcast %263 : f32 to vector<1x256xf32>
    %265 = arith.mulf %262, %264 : vector<1x256xf32>
    %266 = vector.extract_strided_slice %261 {offsets = [1, 0], sizes = [1, 256], strides = [1, 1]} : vector<2x256xf32> to vector<1x256xf32>
    %c61 = arith.constant 61 : index
    %267 = memref.load %arg3[%c61] : memref<98xf32, #tpu.memory_space<smem>>
    %268 = vector.broadcast %267 : f32 to vector<1x256xf32>
    %269 = arith.mulf %266, %268 : vector<1x256xf32>
    %270 = arith.addf %265, %269 : vector<1x256xf32>
    %271 = arith.addf %256, %270 : vector<1x256xf32>
    %272 = vector.extract_strided_slice %83 {offsets = [0, 22], sizes = [2, 256], strides = [1, 1]} : vector<2x358xf32> to vector<2x256xf32>
    %cst_47 = arith.constant 0.000000e+00 : f32
    %273 = vector.shape_cast %72 : vector<1x256xi1> to vector<1x256xi1>
    %274 = vector.broadcast %273 : vector<1x256xi1> to vector<2x256xi1>
    %275 = vector.broadcast %cst_47 : f32 to vector<2x256xf32>
    %276 = arith.select %274, %272, %275 : vector<2x256xi1>, vector<2x256xf32>
    %277 = vector.extract_strided_slice %276 {offsets = [0, 0], sizes = [1, 256], strides = [1, 1]} : vector<2x256xf32> to vector<1x256xf32>
    %c13 = arith.constant 13 : index
    %278 = memref.load %arg3[%c13] : memref<98xf32, #tpu.memory_space<smem>>
    %279 = vector.broadcast %278 : f32 to vector<1x256xf32>
    %280 = arith.mulf %277, %279 : vector<1x256xf32>
    %281 = vector.extract_strided_slice %276 {offsets = [1, 0], sizes = [1, 256], strides = [1, 1]} : vector<2x256xf32> to vector<1x256xf32>
    %c62 = arith.constant 62 : index
    %282 = memref.load %arg3[%c62] : memref<98xf32, #tpu.memory_space<smem>>
    %283 = vector.broadcast %282 : f32 to vector<1x256xf32>
    %284 = arith.mulf %281, %283 : vector<1x256xf32>
    %285 = arith.addf %280, %284 : vector<1x256xf32>
    %286 = arith.addf %271, %285 : vector<1x256xf32>
    %287 = vector.extract_strided_slice %83 {offsets = [0, 32], sizes = [2, 256], strides = [1, 1]} : vector<2x358xf32> to vector<2x256xf32>
    %cst_48 = arith.constant 0.000000e+00 : f32
    %288 = vector.shape_cast %27 : vector<1x256xi1> to vector<1x256xi1>
    %289 = vector.broadcast %288 : vector<1x256xi1> to vector<2x256xi1>
    %290 = vector.broadcast %cst_48 : f32 to vector<2x256xf32>
    %291 = arith.select %289, %287, %290 : vector<2x256xi1>, vector<2x256xf32>
    %292 = vector.extract_strided_slice %291 {offsets = [0, 0], sizes = [1, 256], strides = [1, 1]} : vector<2x256xf32> to vector<1x256xf32>
    %c14 = arith.constant 14 : index
    %293 = memref.load %arg3[%c14] : memref<98xf32, #tpu.memory_space<smem>>
    %294 = vector.broadcast %293 : f32 to vector<1x256xf32>
    %295 = arith.mulf %292, %294 : vector<1x256xf32>
    %296 = vector.extract_strided_slice %291 {offsets = [1, 0], sizes = [1, 256], strides = [1, 1]} : vector<2x256xf32> to vector<1x256xf32>
    %c63 = arith.constant 63 : index
    %297 = memref.load %arg3[%c63] : memref<98xf32, #tpu.memory_space<smem>>
    %298 = vector.broadcast %297 : f32 to vector<1x256xf32>
    %299 = arith.mulf %296, %298 : vector<1x256xf32>
    %300 = arith.addf %295, %299 : vector<1x256xf32>
    %301 = arith.addf %286, %300 : vector<1x256xf32>
    %302 = vector.extract_strided_slice %83 {offsets = [0, 33], sizes = [2, 256], strides = [1, 1]} : vector<2x358xf32> to vector<2x256xf32>
    %cst_49 = arith.constant 0.000000e+00 : f32
    %303 = vector.shape_cast %36 : vector<1x256xi1> to vector<1x256xi1>
    %304 = vector.broadcast %303 : vector<1x256xi1> to vector<2x256xi1>
    %305 = vector.broadcast %cst_49 : f32 to vector<2x256xf32>
    %306 = arith.select %304, %302, %305 : vector<2x256xi1>, vector<2x256xf32>
    %307 = vector.extract_strided_slice %306 {offsets = [0, 0], sizes = [1, 256], strides = [1, 1]} : vector<2x256xf32> to vector<1x256xf32>
    %c15 = arith.constant 15 : index
    %308 = memref.load %arg3[%c15] : memref<98xf32, #tpu.memory_space<smem>>
    %309 = vector.broadcast %308 : f32 to vector<1x256xf32>
    %310 = arith.mulf %307, %309 : vector<1x256xf32>
    %311 = vector.extract_strided_slice %306 {offsets = [1, 0], sizes = [1, 256], strides = [1, 1]} : vector<2x256xf32> to vector<1x256xf32>
    %c64 = arith.constant 64 : index
    %312 = memref.load %arg3[%c64] : memref<98xf32, #tpu.memory_space<smem>>
    %313 = vector.broadcast %312 : f32 to vector<1x256xf32>
    %314 = arith.mulf %311, %313 : vector<1x256xf32>
    %315 = arith.addf %310, %314 : vector<1x256xf32>
    %316 = arith.addf %301, %315 : vector<1x256xf32>
    %317 = vector.extract_strided_slice %83 {offsets = [0, 34], sizes = [2, 256], strides = [1, 1]} : vector<2x358xf32> to vector<2x256xf32>
    %cst_50 = arith.constant 0.000000e+00 : f32
    %318 = vector.shape_cast %45 : vector<1x256xi1> to vector<1x256xi1>
    %319 = vector.broadcast %318 : vector<1x256xi1> to vector<2x256xi1>
    %320 = vector.broadcast %cst_50 : f32 to vector<2x256xf32>
    %321 = arith.select %319, %317, %320 : vector<2x256xi1>, vector<2x256xf32>
    %322 = vector.extract_strided_slice %321 {offsets = [0, 0], sizes = [1, 256], strides = [1, 1]} : vector<2x256xf32> to vector<1x256xf32>
    %c16 = arith.constant 16 : index
    %323 = memref.load %arg3[%c16] : memref<98xf32, #tpu.memory_space<smem>>
    %324 = vector.broadcast %323 : f32 to vector<1x256xf32>
    %325 = arith.mulf %322, %324 : vector<1x256xf32>
    %326 = vector.extract_strided_slice %321 {offsets = [1, 0], sizes = [1, 256], strides = [1, 1]} : vector<2x256xf32> to vector<1x256xf32>
    %c65 = arith.constant 65 : index
    %327 = memref.load %arg3[%c65] : memref<98xf32, #tpu.memory_space<smem>>
    %328 = vector.broadcast %327 : f32 to vector<1x256xf32>
    %329 = arith.mulf %326, %328 : vector<1x256xf32>
    %330 = arith.addf %325, %329 : vector<1x256xf32>
    %331 = arith.addf %316, %330 : vector<1x256xf32>
    %332 = vector.extract_strided_slice %83 {offsets = [0, 35], sizes = [2, 256], strides = [1, 1]} : vector<2x358xf32> to vector<2x256xf32>
    %333 = vector.extract_strided_slice %332 {offsets = [0, 0], sizes = [1, 256], strides = [1, 1]} : vector<2x256xf32> to vector<1x256xf32>
    %c17 = arith.constant 17 : index
    %334 = memref.load %arg3[%c17] : memref<98xf32, #tpu.memory_space<smem>>
    %335 = vector.broadcast %334 : f32 to vector<1x256xf32>
    %336 = arith.mulf %333, %335 : vector<1x256xf32>
    %337 = vector.extract_strided_slice %332 {offsets = [1, 0], sizes = [1, 256], strides = [1, 1]} : vector<2x256xf32> to vector<1x256xf32>
    %c66 = arith.constant 66 : index
    %338 = memref.load %arg3[%c66] : memref<98xf32, #tpu.memory_space<smem>>
    %339 = vector.broadcast %338 : f32 to vector<1x256xf32>
    %340 = arith.mulf %337, %339 : vector<1x256xf32>
    %341 = arith.addf %336, %340 : vector<1x256xf32>
    %342 = arith.addf %331, %341 : vector<1x256xf32>
    %343 = vector.extract_strided_slice %83 {offsets = [0, 36], sizes = [2, 256], strides = [1, 1]} : vector<2x358xf32> to vector<2x256xf32>
    %cst_51 = arith.constant 0.000000e+00 : f32
    %344 = vector.shape_cast %54 : vector<1x256xi1> to vector<1x256xi1>
    %345 = vector.broadcast %344 : vector<1x256xi1> to vector<2x256xi1>
    %346 = vector.broadcast %cst_51 : f32 to vector<2x256xf32>
    %347 = arith.select %345, %343, %346 : vector<2x256xi1>, vector<2x256xf32>
    %348 = vector.extract_strided_slice %347 {offsets = [0, 0], sizes = [1, 256], strides = [1, 1]} : vector<2x256xf32> to vector<1x256xf32>
    %c18 = arith.constant 18 : index
    %349 = memref.load %arg3[%c18] : memref<98xf32, #tpu.memory_space<smem>>
    %350 = vector.broadcast %349 : f32 to vector<1x256xf32>
    %351 = arith.mulf %348, %350 : vector<1x256xf32>
    %352 = vector.extract_strided_slice %347 {offsets = [1, 0], sizes = [1, 256], strides = [1, 1]} : vector<2x256xf32> to vector<1x256xf32>
    %c67 = arith.constant 67 : index
    %353 = memref.load %arg3[%c67] : memref<98xf32, #tpu.memory_space<smem>>
    %354 = vector.broadcast %353 : f32 to vector<1x256xf32>
    %355 = arith.mulf %352, %354 : vector<1x256xf32>
    %356 = arith.addf %351, %355 : vector<1x256xf32>
    %357 = arith.addf %342, %356 : vector<1x256xf32>
    %358 = vector.extract_strided_slice %83 {offsets = [0, 37], sizes = [2, 256], strides = [1, 1]} : vector<2x358xf32> to vector<2x256xf32>
    %cst_52 = arith.constant 0.000000e+00 : f32
    %359 = vector.shape_cast %63 : vector<1x256xi1> to vector<1x256xi1>
    %360 = vector.broadcast %359 : vector<1x256xi1> to vector<2x256xi1>
    %361 = vector.broadcast %cst_52 : f32 to vector<2x256xf32>
    %362 = arith.select %360, %358, %361 : vector<2x256xi1>, vector<2x256xf32>
    %363 = vector.extract_strided_slice %362 {offsets = [0, 0], sizes = [1, 256], strides = [1, 1]} : vector<2x256xf32> to vector<1x256xf32>
    %c19 = arith.constant 19 : index
    %364 = memref.load %arg3[%c19] : memref<98xf32, #tpu.memory_space<smem>>
    %365 = vector.broadcast %364 : f32 to vector<1x256xf32>
    %366 = arith.mulf %363, %365 : vector<1x256xf32>
    %367 = vector.extract_strided_slice %362 {offsets = [1, 0], sizes = [1, 256], strides = [1, 1]} : vector<2x256xf32> to vector<1x256xf32>
    %c68 = arith.constant 68 : index
    %368 = memref.load %arg3[%c68] : memref<98xf32, #tpu.memory_space<smem>>
    %369 = vector.broadcast %368 : f32 to vector<1x256xf32>
    %370 = arith.mulf %367, %369 : vector<1x256xf32>
    %371 = arith.addf %366, %370 : vector<1x256xf32>
    %372 = arith.addf %357, %371 : vector<1x256xf32>
    %373 = vector.extract_strided_slice %83 {offsets = [0, 38], sizes = [2, 256], strides = [1, 1]} : vector<2x358xf32> to vector<2x256xf32>
    %cst_53 = arith.constant 0.000000e+00 : f32
    %374 = vector.shape_cast %72 : vector<1x256xi1> to vector<1x256xi1>
    %375 = vector.broadcast %374 : vector<1x256xi1> to vector<2x256xi1>
    %376 = vector.broadcast %cst_53 : f32 to vector<2x256xf32>
    %377 = arith.select %375, %373, %376 : vector<2x256xi1>, vector<2x256xf32>
    %378 = vector.extract_strided_slice %377 {offsets = [0, 0], sizes = [1, 256], strides = [1, 1]} : vector<2x256xf32> to vector<1x256xf32>
    %c20 = arith.constant 20 : index
    %379 = memref.load %arg3[%c20] : memref<98xf32, #tpu.memory_space<smem>>
    %380 = vector.broadcast %379 : f32 to vector<1x256xf32>
    %381 = arith.mulf %378, %380 : vector<1x256xf32>
    %382 = vector.extract_strided_slice %377 {offsets = [1, 0], sizes = [1, 256], strides = [1, 1]} : vector<2x256xf32> to vector<1x256xf32>
    %c69 = arith.constant 69 : index
    %383 = memref.load %arg3[%c69] : memref<98xf32, #tpu.memory_space<smem>>
    %384 = vector.broadcast %383 : f32 to vector<1x256xf32>
    %385 = arith.mulf %382, %384 : vector<1x256xf32>
    %386 = arith.addf %381, %385 : vector<1x256xf32>
    %387 = arith.addf %372, %386 : vector<1x256xf32>
    %388 = vector.extract_strided_slice %83 {offsets = [0, 48], sizes = [2, 256], strides = [1, 1]} : vector<2x358xf32> to vector<2x256xf32>
    %cst_54 = arith.constant 0.000000e+00 : f32
    %389 = vector.shape_cast %27 : vector<1x256xi1> to vector<1x256xi1>
    %390 = vector.broadcast %389 : vector<1x256xi1> to vector<2x256xi1>
    %391 = vector.broadcast %cst_54 : f32 to vector<2x256xf32>
    %392 = arith.select %390, %388, %391 : vector<2x256xi1>, vector<2x256xf32>
    %393 = vector.extract_strided_slice %392 {offsets = [0, 0], sizes = [1, 256], strides = [1, 1]} : vector<2x256xf32> to vector<1x256xf32>
    %c21 = arith.constant 21 : index
    %394 = memref.load %arg3[%c21] : memref<98xf32, #tpu.memory_space<smem>>
    %395 = vector.broadcast %394 : f32 to vector<1x256xf32>
    %396 = arith.mulf %393, %395 : vector<1x256xf32>
    %397 = vector.extract_strided_slice %392 {offsets = [1, 0], sizes = [1, 256], strides = [1, 1]} : vector<2x256xf32> to vector<1x256xf32>
    %c70 = arith.constant 70 : index
    %398 = memref.load %arg3[%c70] : memref<98xf32, #tpu.memory_space<smem>>
    %399 = vector.broadcast %398 : f32 to vector<1x256xf32>
    %400 = arith.mulf %397, %399 : vector<1x256xf32>
    %401 = arith.addf %396, %400 : vector<1x256xf32>
    %402 = arith.addf %387, %401 : vector<1x256xf32>
    %403 = vector.extract_strided_slice %83 {offsets = [0, 49], sizes = [2, 256], strides = [1, 1]} : vector<2x358xf32> to vector<2x256xf32>
    %cst_55 = arith.constant 0.000000e+00 : f32
    %404 = vector.shape_cast %36 : vector<1x256xi1> to vector<1x256xi1>
    %405 = vector.broadcast %404 : vector<1x256xi1> to vector<2x256xi1>
    %406 = vector.broadcast %cst_55 : f32 to vector<2x256xf32>
    %407 = arith.select %405, %403, %406 : vector<2x256xi1>, vector<2x256xf32>
    %408 = vector.extract_strided_slice %407 {offsets = [0, 0], sizes = [1, 256], strides = [1, 1]} : vector<2x256xf32> to vector<1x256xf32>
    %c22 = arith.constant 22 : index
    %409 = memref.load %arg3[%c22] : memref<98xf32, #tpu.memory_space<smem>>
    %410 = vector.broadcast %409 : f32 to vector<1x256xf32>
    %411 = arith.mulf %408, %410 : vector<1x256xf32>
    %412 = vector.extract_strided_slice %407 {offsets = [1, 0], sizes = [1, 256], strides = [1, 1]} : vector<2x256xf32> to vector<1x256xf32>
    %c71 = arith.constant 71 : index
    %413 = memref.load %arg3[%c71] : memref<98xf32, #tpu.memory_space<smem>>
    %414 = vector.broadcast %413 : f32 to vector<1x256xf32>
    %415 = arith.mulf %412, %414 : vector<1x256xf32>
    %416 = arith.addf %411, %415 : vector<1x256xf32>
    %417 = arith.addf %402, %416 : vector<1x256xf32>
    %418 = vector.extract_strided_slice %83 {offsets = [0, 50], sizes = [2, 256], strides = [1, 1]} : vector<2x358xf32> to vector<2x256xf32>
    %cst_56 = arith.constant 0.000000e+00 : f32
    %419 = vector.shape_cast %45 : vector<1x256xi1> to vector<1x256xi1>
    %420 = vector.broadcast %419 : vector<1x256xi1> to vector<2x256xi1>
    %421 = vector.broadcast %cst_56 : f32 to vector<2x256xf32>
    %422 = arith.select %420, %418, %421 : vector<2x256xi1>, vector<2x256xf32>
    %423 = vector.extract_strided_slice %422 {offsets = [0, 0], sizes = [1, 256], strides = [1, 1]} : vector<2x256xf32> to vector<1x256xf32>
    %c23 = arith.constant 23 : index
    %424 = memref.load %arg3[%c23] : memref<98xf32, #tpu.memory_space<smem>>
    %425 = vector.broadcast %424 : f32 to vector<1x256xf32>
    %426 = arith.mulf %423, %425 : vector<1x256xf32>
    %427 = vector.extract_strided_slice %422 {offsets = [1, 0], sizes = [1, 256], strides = [1, 1]} : vector<2x256xf32> to vector<1x256xf32>
    %c72 = arith.constant 72 : index
    %428 = memref.load %arg3[%c72] : memref<98xf32, #tpu.memory_space<smem>>
    %429 = vector.broadcast %428 : f32 to vector<1x256xf32>
    %430 = arith.mulf %427, %429 : vector<1x256xf32>
    %431 = arith.addf %426, %430 : vector<1x256xf32>
    %432 = arith.addf %417, %431 : vector<1x256xf32>
    %433 = vector.extract_strided_slice %83 {offsets = [0, 51], sizes = [2, 256], strides = [1, 1]} : vector<2x358xf32> to vector<2x256xf32>
    %434 = vector.extract_strided_slice %433 {offsets = [0, 0], sizes = [1, 256], strides = [1, 1]} : vector<2x256xf32> to vector<1x256xf32>
    %c24 = arith.constant 24 : index
    %435 = memref.load %arg3[%c24] : memref<98xf32, #tpu.memory_space<smem>>
    %436 = vector.broadcast %435 : f32 to vector<1x256xf32>
    %437 = arith.mulf %434, %436 : vector<1x256xf32>
    %438 = vector.extract_strided_slice %433 {offsets = [1, 0], sizes = [1, 256], strides = [1, 1]} : vector<2x256xf32> to vector<1x256xf32>
    %c73 = arith.constant 73 : index
    %439 = memref.load %arg3[%c73] : memref<98xf32, #tpu.memory_space<smem>>
    %440 = vector.broadcast %439 : f32 to vector<1x256xf32>
    %441 = arith.mulf %438, %440 : vector<1x256xf32>
    %442 = arith.addf %437, %441 : vector<1x256xf32>
    %443 = arith.addf %432, %442 : vector<1x256xf32>
    %444 = vector.extract_strided_slice %83 {offsets = [0, 52], sizes = [2, 256], strides = [1, 1]} : vector<2x358xf32> to vector<2x256xf32>
    %cst_57 = arith.constant 0.000000e+00 : f32
    %445 = vector.shape_cast %54 : vector<1x256xi1> to vector<1x256xi1>
    %446 = vector.broadcast %445 : vector<1x256xi1> to vector<2x256xi1>
    %447 = vector.broadcast %cst_57 : f32 to vector<2x256xf32>
    %448 = arith.select %446, %444, %447 : vector<2x256xi1>, vector<2x256xf32>
    %449 = vector.extract_strided_slice %448 {offsets = [0, 0], sizes = [1, 256], strides = [1, 1]} : vector<2x256xf32> to vector<1x256xf32>
    %c25 = arith.constant 25 : index
    %450 = memref.load %arg3[%c25] : memref<98xf32, #tpu.memory_space<smem>>
    %451 = vector.broadcast %450 : f32 to vector<1x256xf32>
    %452 = arith.mulf %449, %451 : vector<1x256xf32>
    %453 = vector.extract_strided_slice %448 {offsets = [1, 0], sizes = [1, 256], strides = [1, 1]} : vector<2x256xf32> to vector<1x256xf32>
    %c74 = arith.constant 74 : index
    %454 = memref.load %arg3[%c74] : memref<98xf32, #tpu.memory_space<smem>>
    %455 = vector.broadcast %454 : f32 to vector<1x256xf32>
    %456 = arith.mulf %453, %455 : vector<1x256xf32>
    %457 = arith.addf %452, %456 : vector<1x256xf32>
    %458 = arith.addf %443, %457 : vector<1x256xf32>
    %459 = vector.extract_strided_slice %83 {offsets = [0, 53], sizes = [2, 256], strides = [1, 1]} : vector<2x358xf32> to vector<2x256xf32>
    %cst_58 = arith.constant 0.000000e+00 : f32
    %460 = vector.shape_cast %63 : vector<1x256xi1> to vector<1x256xi1>
    %461 = vector.broadcast %460 : vector<1x256xi1> to vector<2x256xi1>
    %462 = vector.broadcast %cst_58 : f32 to vector<2x256xf32>
    %463 = arith.select %461, %459, %462 : vector<2x256xi1>, vector<2x256xf32>
    %464 = vector.extract_strided_slice %463 {offsets = [0, 0], sizes = [1, 256], strides = [1, 1]} : vector<2x256xf32> to vector<1x256xf32>
    %c26 = arith.constant 26 : index
    %465 = memref.load %arg3[%c26] : memref<98xf32, #tpu.memory_space<smem>>
    %466 = vector.broadcast %465 : f32 to vector<1x256xf32>
    %467 = arith.mulf %464, %466 : vector<1x256xf32>
    %468 = vector.extract_strided_slice %463 {offsets = [1, 0], sizes = [1, 256], strides = [1, 1]} : vector<2x256xf32> to vector<1x256xf32>
    %c75 = arith.constant 75 : index
    %469 = memref.load %arg3[%c75] : memref<98xf32, #tpu.memory_space<smem>>
    %470 = vector.broadcast %469 : f32 to vector<1x256xf32>
    %471 = arith.mulf %468, %470 : vector<1x256xf32>
    %472 = arith.addf %467, %471 : vector<1x256xf32>
    %473 = arith.addf %458, %472 : vector<1x256xf32>
    %474 = vector.extract_strided_slice %83 {offsets = [0, 54], sizes = [2, 256], strides = [1, 1]} : vector<2x358xf32> to vector<2x256xf32>
    %cst_59 = arith.constant 0.000000e+00 : f32
    %475 = vector.shape_cast %72 : vector<1x256xi1> to vector<1x256xi1>
    %476 = vector.broadcast %475 : vector<1x256xi1> to vector<2x256xi1>
    %477 = vector.broadcast %cst_59 : f32 to vector<2x256xf32>
    %478 = arith.select %476, %474, %477 : vector<2x256xi1>, vector<2x256xf32>
    %479 = vector.extract_strided_slice %478 {offsets = [0, 0], sizes = [1, 256], strides = [1, 1]} : vector<2x256xf32> to vector<1x256xf32>
    %c27 = arith.constant 27 : index
    %480 = memref.load %arg3[%c27] : memref<98xf32, #tpu.memory_space<smem>>
    %481 = vector.broadcast %480 : f32 to vector<1x256xf32>
    %482 = arith.mulf %479, %481 : vector<1x256xf32>
    %483 = vector.extract_strided_slice %478 {offsets = [1, 0], sizes = [1, 256], strides = [1, 1]} : vector<2x256xf32> to vector<1x256xf32>
    %c76 = arith.constant 76 : index
    %484 = memref.load %arg3[%c76] : memref<98xf32, #tpu.memory_space<smem>>
    %485 = vector.broadcast %484 : f32 to vector<1x256xf32>
    %486 = arith.mulf %483, %485 : vector<1x256xf32>
    %487 = arith.addf %482, %486 : vector<1x256xf32>
    %488 = arith.addf %473, %487 : vector<1x256xf32>
    %489 = vector.extract_strided_slice %83 {offsets = [0, 64], sizes = [2, 256], strides = [1, 1]} : vector<2x358xf32> to vector<2x256xf32>
    %cst_60 = arith.constant 0.000000e+00 : f32
    %490 = vector.shape_cast %27 : vector<1x256xi1> to vector<1x256xi1>
    %491 = vector.broadcast %490 : vector<1x256xi1> to vector<2x256xi1>
    %492 = vector.broadcast %cst_60 : f32 to vector<2x256xf32>
    %493 = arith.select %491, %489, %492 : vector<2x256xi1>, vector<2x256xf32>
    %494 = vector.extract_strided_slice %493 {offsets = [0, 0], sizes = [1, 256], strides = [1, 1]} : vector<2x256xf32> to vector<1x256xf32>
    %c28 = arith.constant 28 : index
    %495 = memref.load %arg3[%c28] : memref<98xf32, #tpu.memory_space<smem>>
    %496 = vector.broadcast %495 : f32 to vector<1x256xf32>
    %497 = arith.mulf %494, %496 : vector<1x256xf32>
    %498 = vector.extract_strided_slice %493 {offsets = [1, 0], sizes = [1, 256], strides = [1, 1]} : vector<2x256xf32> to vector<1x256xf32>
    %c77 = arith.constant 77 : index
    %499 = memref.load %arg3[%c77] : memref<98xf32, #tpu.memory_space<smem>>
    %500 = vector.broadcast %499 : f32 to vector<1x256xf32>
    %501 = arith.mulf %498, %500 : vector<1x256xf32>
    %502 = arith.addf %497, %501 : vector<1x256xf32>
    %503 = arith.addf %488, %502 : vector<1x256xf32>
    %504 = vector.extract_strided_slice %83 {offsets = [0, 65], sizes = [2, 256], strides = [1, 1]} : vector<2x358xf32> to vector<2x256xf32>
    %cst_61 = arith.constant 0.000000e+00 : f32
    %505 = vector.shape_cast %36 : vector<1x256xi1> to vector<1x256xi1>
    %506 = vector.broadcast %505 : vector<1x256xi1> to vector<2x256xi1>
    %507 = vector.broadcast %cst_61 : f32 to vector<2x256xf32>
    %508 = arith.select %506, %504, %507 : vector<2x256xi1>, vector<2x256xf32>
    %509 = vector.extract_strided_slice %508 {offsets = [0, 0], sizes = [1, 256], strides = [1, 1]} : vector<2x256xf32> to vector<1x256xf32>
    %c29 = arith.constant 29 : index
    %510 = memref.load %arg3[%c29] : memref<98xf32, #tpu.memory_space<smem>>
    %511 = vector.broadcast %510 : f32 to vector<1x256xf32>
    %512 = arith.mulf %509, %511 : vector<1x256xf32>
    %513 = vector.extract_strided_slice %508 {offsets = [1, 0], sizes = [1, 256], strides = [1, 1]} : vector<2x256xf32> to vector<1x256xf32>
    %c78 = arith.constant 78 : index
    %514 = memref.load %arg3[%c78] : memref<98xf32, #tpu.memory_space<smem>>
    %515 = vector.broadcast %514 : f32 to vector<1x256xf32>
    %516 = arith.mulf %513, %515 : vector<1x256xf32>
    %517 = arith.addf %512, %516 : vector<1x256xf32>
    %518 = arith.addf %503, %517 : vector<1x256xf32>
    %519 = vector.extract_strided_slice %83 {offsets = [0, 66], sizes = [2, 256], strides = [1, 1]} : vector<2x358xf32> to vector<2x256xf32>
    %cst_62 = arith.constant 0.000000e+00 : f32
    %520 = vector.shape_cast %45 : vector<1x256xi1> to vector<1x256xi1>
    %521 = vector.broadcast %520 : vector<1x256xi1> to vector<2x256xi1>
    %522 = vector.broadcast %cst_62 : f32 to vector<2x256xf32>
    %523 = arith.select %521, %519, %522 : vector<2x256xi1>, vector<2x256xf32>
    %524 = vector.extract_strided_slice %523 {offsets = [0, 0], sizes = [1, 256], strides = [1, 1]} : vector<2x256xf32> to vector<1x256xf32>
    %c30 = arith.constant 30 : index
    %525 = memref.load %arg3[%c30] : memref<98xf32, #tpu.memory_space<smem>>
    %526 = vector.broadcast %525 : f32 to vector<1x256xf32>
    %527 = arith.mulf %524, %526 : vector<1x256xf32>
    %528 = vector.extract_strided_slice %523 {offsets = [1, 0], sizes = [1, 256], strides = [1, 1]} : vector<2x256xf32> to vector<1x256xf32>
    %c79 = arith.constant 79 : index
    %529 = memref.load %arg3[%c79] : memref<98xf32, #tpu.memory_space<smem>>
    %530 = vector.broadcast %529 : f32 to vector<1x256xf32>
    %531 = arith.mulf %528, %530 : vector<1x256xf32>
    %532 = arith.addf %527, %531 : vector<1x256xf32>
    %533 = arith.addf %518, %532 : vector<1x256xf32>
    %534 = vector.extract_strided_slice %83 {offsets = [0, 67], sizes = [2, 256], strides = [1, 1]} : vector<2x358xf32> to vector<2x256xf32>
    %535 = vector.extract_strided_slice %534 {offsets = [0, 0], sizes = [1, 256], strides = [1, 1]} : vector<2x256xf32> to vector<1x256xf32>
    %c31 = arith.constant 31 : index
    %536 = memref.load %arg3[%c31] : memref<98xf32, #tpu.memory_space<smem>>
    %537 = vector.broadcast %536 : f32 to vector<1x256xf32>
    %538 = arith.mulf %535, %537 : vector<1x256xf32>
    %539 = vector.extract_strided_slice %534 {offsets = [1, 0], sizes = [1, 256], strides = [1, 1]} : vector<2x256xf32> to vector<1x256xf32>
    %c80 = arith.constant 80 : index
    %540 = memref.load %arg3[%c80] : memref<98xf32, #tpu.memory_space<smem>>
    %541 = vector.broadcast %540 : f32 to vector<1x256xf32>
    %542 = arith.mulf %539, %541 : vector<1x256xf32>
    %543 = arith.addf %538, %542 : vector<1x256xf32>
    %544 = arith.addf %533, %543 : vector<1x256xf32>
    %545 = vector.extract_strided_slice %83 {offsets = [0, 68], sizes = [2, 256], strides = [1, 1]} : vector<2x358xf32> to vector<2x256xf32>
    %cst_63 = arith.constant 0.000000e+00 : f32
    %546 = vector.shape_cast %54 : vector<1x256xi1> to vector<1x256xi1>
    %547 = vector.broadcast %546 : vector<1x256xi1> to vector<2x256xi1>
    %548 = vector.broadcast %cst_63 : f32 to vector<2x256xf32>
    %549 = arith.select %547, %545, %548 : vector<2x256xi1>, vector<2x256xf32>
    %550 = vector.extract_strided_slice %549 {offsets = [0, 0], sizes = [1, 256], strides = [1, 1]} : vector<2x256xf32> to vector<1x256xf32>
    %c32 = arith.constant 32 : index
    %551 = memref.load %arg3[%c32] : memref<98xf32, #tpu.memory_space<smem>>
    %552 = vector.broadcast %551 : f32 to vector<1x256xf32>
    %553 = arith.mulf %550, %552 : vector<1x256xf32>
    %554 = vector.extract_strided_slice %549 {offsets = [1, 0], sizes = [1, 256], strides = [1, 1]} : vector<2x256xf32> to vector<1x256xf32>
    %c81 = arith.constant 81 : index
    %555 = memref.load %arg3[%c81] : memref<98xf32, #tpu.memory_space<smem>>
    %556 = vector.broadcast %555 : f32 to vector<1x256xf32>
    %557 = arith.mulf %554, %556 : vector<1x256xf32>
    %558 = arith.addf %553, %557 : vector<1x256xf32>
    %559 = arith.addf %544, %558 : vector<1x256xf32>
    %560 = vector.extract_strided_slice %83 {offsets = [0, 69], sizes = [2, 256], strides = [1, 1]} : vector<2x358xf32> to vector<2x256xf32>
    %cst_64 = arith.constant 0.000000e+00 : f32
    %561 = vector.shape_cast %63 : vector<1x256xi1> to vector<1x256xi1>
    %562 = vector.broadcast %561 : vector<1x256xi1> to vector<2x256xi1>
    %563 = vector.broadcast %cst_64 : f32 to vector<2x256xf32>
    %564 = arith.select %562, %560, %563 : vector<2x256xi1>, vector<2x256xf32>
    %565 = vector.extract_strided_slice %564 {offsets = [0, 0], sizes = [1, 256], strides = [1, 1]} : vector<2x256xf32> to vector<1x256xf32>
    %c33 = arith.constant 33 : index
    %566 = memref.load %arg3[%c33] : memref<98xf32, #tpu.memory_space<smem>>
    %567 = vector.broadcast %566 : f32 to vector<1x256xf32>
    %568 = arith.mulf %565, %567 : vector<1x256xf32>
    %569 = vector.extract_strided_slice %564 {offsets = [1, 0], sizes = [1, 256], strides = [1, 1]} : vector<2x256xf32> to vector<1x256xf32>
    %c82 = arith.constant 82 : index
    %570 = memref.load %arg3[%c82] : memref<98xf32, #tpu.memory_space<smem>>
    %571 = vector.broadcast %570 : f32 to vector<1x256xf32>
    %572 = arith.mulf %569, %571 : vector<1x256xf32>
    %573 = arith.addf %568, %572 : vector<1x256xf32>
    %574 = arith.addf %559, %573 : vector<1x256xf32>
    %575 = vector.extract_strided_slice %83 {offsets = [0, 70], sizes = [2, 256], strides = [1, 1]} : vector<2x358xf32> to vector<2x256xf32>
    %cst_65 = arith.constant 0.000000e+00 : f32
    %576 = vector.shape_cast %72 : vector<1x256xi1> to vector<1x256xi1>
    %577 = vector.broadcast %576 : vector<1x256xi1> to vector<2x256xi1>
    %578 = vector.broadcast %cst_65 : f32 to vector<2x256xf32>
    %579 = arith.select %577, %575, %578 : vector<2x256xi1>, vector<2x256xf32>
    %580 = vector.extract_strided_slice %579 {offsets = [0, 0], sizes = [1, 256], strides = [1, 1]} : vector<2x256xf32> to vector<1x256xf32>
    %c34 = arith.constant 34 : index
    %581 = memref.load %arg3[%c34] : memref<98xf32, #tpu.memory_space<smem>>
    %582 = vector.broadcast %581 : f32 to vector<1x256xf32>
    %583 = arith.mulf %580, %582 : vector<1x256xf32>
    %584 = vector.extract_strided_slice %579 {offsets = [1, 0], sizes = [1, 256], strides = [1, 1]} : vector<2x256xf32> to vector<1x256xf32>
    %c83 = arith.constant 83 : index
    %585 = memref.load %arg3[%c83] : memref<98xf32, #tpu.memory_space<smem>>
    %586 = vector.broadcast %585 : f32 to vector<1x256xf32>
    %587 = arith.mulf %584, %586 : vector<1x256xf32>
    %588 = arith.addf %583, %587 : vector<1x256xf32>
    %589 = arith.addf %574, %588 : vector<1x256xf32>
    %590 = vector.extract_strided_slice %83 {offsets = [0, 80], sizes = [2, 256], strides = [1, 1]} : vector<2x358xf32> to vector<2x256xf32>
    %cst_66 = arith.constant 0.000000e+00 : f32
    %591 = vector.shape_cast %27 : vector<1x256xi1> to vector<1x256xi1>
    %592 = vector.broadcast %591 : vector<1x256xi1> to vector<2x256xi1>
    %593 = vector.broadcast %cst_66 : f32 to vector<2x256xf32>
    %594 = arith.select %592, %590, %593 : vector<2x256xi1>, vector<2x256xf32>
    %595 = vector.extract_strided_slice %594 {offsets = [0, 0], sizes = [1, 256], strides = [1, 1]} : vector<2x256xf32> to vector<1x256xf32>
    %c35 = arith.constant 35 : index
    %596 = memref.load %arg3[%c35] : memref<98xf32, #tpu.memory_space<smem>>
    %597 = vector.broadcast %596 : f32 to vector<1x256xf32>
    %598 = arith.mulf %595, %597 : vector<1x256xf32>
    %599 = vector.extract_strided_slice %594 {offsets = [1, 0], sizes = [1, 256], strides = [1, 1]} : vector<2x256xf32> to vector<1x256xf32>
    %c84 = arith.constant 84 : index
    %600 = memref.load %arg3[%c84] : memref<98xf32, #tpu.memory_space<smem>>
    %601 = vector.broadcast %600 : f32 to vector<1x256xf32>
    %602 = arith.mulf %599, %601 : vector<1x256xf32>
    %603 = arith.addf %598, %602 : vector<1x256xf32>
    %604 = arith.addf %589, %603 : vector<1x256xf32>
    %605 = vector.extract_strided_slice %83 {offsets = [0, 81], sizes = [2, 256], strides = [1, 1]} : vector<2x358xf32> to vector<2x256xf32>
    %cst_67 = arith.constant 0.000000e+00 : f32
    %606 = vector.shape_cast %36 : vector<1x256xi1> to vector<1x256xi1>
    %607 = vector.broadcast %606 : vector<1x256xi1> to vector<2x256xi1>
    %608 = vector.broadcast %cst_67 : f32 to vector<2x256xf32>
    %609 = arith.select %607, %605, %608 : vector<2x256xi1>, vector<2x256xf32>
    %610 = vector.extract_strided_slice %609 {offsets = [0, 0], sizes = [1, 256], strides = [1, 1]} : vector<2x256xf32> to vector<1x256xf32>
    %c36 = arith.constant 36 : index
    %611 = memref.load %arg3[%c36] : memref<98xf32, #tpu.memory_space<smem>>
    %612 = vector.broadcast %611 : f32 to vector<1x256xf32>
    %613 = arith.mulf %610, %612 : vector<1x256xf32>
    %614 = vector.extract_strided_slice %609 {offsets = [1, 0], sizes = [1, 256], strides = [1, 1]} : vector<2x256xf32> to vector<1x256xf32>
    %c85 = arith.constant 85 : index
    %615 = memref.load %arg3[%c85] : memref<98xf32, #tpu.memory_space<smem>>
    %616 = vector.broadcast %615 : f32 to vector<1x256xf32>
    %617 = arith.mulf %614, %616 : vector<1x256xf32>
    %618 = arith.addf %613, %617 : vector<1x256xf32>
    %619 = arith.addf %604, %618 : vector<1x256xf32>
    %620 = vector.extract_strided_slice %83 {offsets = [0, 82], sizes = [2, 256], strides = [1, 1]} : vector<2x358xf32> to vector<2x256xf32>
    %cst_68 = arith.constant 0.000000e+00 : f32
    %621 = vector.shape_cast %45 : vector<1x256xi1> to vector<1x256xi1>
    %622 = vector.broadcast %621 : vector<1x256xi1> to vector<2x256xi1>
    %623 = vector.broadcast %cst_68 : f32 to vector<2x256xf32>
    %624 = arith.select %622, %620, %623 : vector<2x256xi1>, vector<2x256xf32>
    %625 = vector.extract_strided_slice %624 {offsets = [0, 0], sizes = [1, 256], strides = [1, 1]} : vector<2x256xf32> to vector<1x256xf32>
    %c37 = arith.constant 37 : index
    %626 = memref.load %arg3[%c37] : memref<98xf32, #tpu.memory_space<smem>>
    %627 = vector.broadcast %626 : f32 to vector<1x256xf32>
    %628 = arith.mulf %625, %627 : vector<1x256xf32>
    %629 = vector.extract_strided_slice %624 {offsets = [1, 0], sizes = [1, 256], strides = [1, 1]} : vector<2x256xf32> to vector<1x256xf32>
    %c86 = arith.constant 86 : index
    %630 = memref.load %arg3[%c86] : memref<98xf32, #tpu.memory_space<smem>>
    %631 = vector.broadcast %630 : f32 to vector<1x256xf32>
    %632 = arith.mulf %629, %631 : vector<1x256xf32>
    %633 = arith.addf %628, %632 : vector<1x256xf32>
    %634 = arith.addf %619, %633 : vector<1x256xf32>
    %635 = vector.extract_strided_slice %83 {offsets = [0, 83], sizes = [2, 256], strides = [1, 1]} : vector<2x358xf32> to vector<2x256xf32>
    %636 = vector.extract_strided_slice %635 {offsets = [0, 0], sizes = [1, 256], strides = [1, 1]} : vector<2x256xf32> to vector<1x256xf32>
    %c38 = arith.constant 38 : index
    %637 = memref.load %arg3[%c38] : memref<98xf32, #tpu.memory_space<smem>>
    %638 = vector.broadcast %637 : f32 to vector<1x256xf32>
    %639 = arith.mulf %636, %638 : vector<1x256xf32>
    %640 = vector.extract_strided_slice %635 {offsets = [1, 0], sizes = [1, 256], strides = [1, 1]} : vector<2x256xf32> to vector<1x256xf32>
    %c87 = arith.constant 87 : index
    %641 = memref.load %arg3[%c87] : memref<98xf32, #tpu.memory_space<smem>>
    %642 = vector.broadcast %641 : f32 to vector<1x256xf32>
    %643 = arith.mulf %640, %642 : vector<1x256xf32>
    %644 = arith.addf %639, %643 : vector<1x256xf32>
    %645 = arith.addf %634, %644 : vector<1x256xf32>
    %646 = vector.extract_strided_slice %83 {offsets = [0, 84], sizes = [2, 256], strides = [1, 1]} : vector<2x358xf32> to vector<2x256xf32>
    %cst_69 = arith.constant 0.000000e+00 : f32
    %647 = vector.shape_cast %54 : vector<1x256xi1> to vector<1x256xi1>
    %648 = vector.broadcast %647 : vector<1x256xi1> to vector<2x256xi1>
    %649 = vector.broadcast %cst_69 : f32 to vector<2x256xf32>
    %650 = arith.select %648, %646, %649 : vector<2x256xi1>, vector<2x256xf32>
    %651 = vector.extract_strided_slice %650 {offsets = [0, 0], sizes = [1, 256], strides = [1, 1]} : vector<2x256xf32> to vector<1x256xf32>
    %c39 = arith.constant 39 : index
    %652 = memref.load %arg3[%c39] : memref<98xf32, #tpu.memory_space<smem>>
    %653 = vector.broadcast %652 : f32 to vector<1x256xf32>
    %654 = arith.mulf %651, %653 : vector<1x256xf32>
    %655 = vector.extract_strided_slice %650 {offsets = [1, 0], sizes = [1, 256], strides = [1, 1]} : vector<2x256xf32> to vector<1x256xf32>
    %c88 = arith.constant 88 : index
    %656 = memref.load %arg3[%c88] : memref<98xf32, #tpu.memory_space<smem>>
    %657 = vector.broadcast %656 : f32 to vector<1x256xf32>
    %658 = arith.mulf %655, %657 : vector<1x256xf32>
    %659 = arith.addf %654, %658 : vector<1x256xf32>
    %660 = arith.addf %645, %659 : vector<1x256xf32>
    %661 = vector.extract_strided_slice %83 {offsets = [0, 85], sizes = [2, 256], strides = [1, 1]} : vector<2x358xf32> to vector<2x256xf32>
    %cst_70 = arith.constant 0.000000e+00 : f32
    %662 = vector.shape_cast %63 : vector<1x256xi1> to vector<1x256xi1>
    %663 = vector.broadcast %662 : vector<1x256xi1> to vector<2x256xi1>
    %664 = vector.broadcast %cst_70 : f32 to vector<2x256xf32>
    %665 = arith.select %663, %661, %664 : vector<2x256xi1>, vector<2x256xf32>
    %666 = vector.extract_strided_slice %665 {offsets = [0, 0], sizes = [1, 256], strides = [1, 1]} : vector<2x256xf32> to vector<1x256xf32>
    %c40 = arith.constant 40 : index
    %667 = memref.load %arg3[%c40] : memref<98xf32, #tpu.memory_space<smem>>
    %668 = vector.broadcast %667 : f32 to vector<1x256xf32>
    %669 = arith.mulf %666, %668 : vector<1x256xf32>
    %670 = vector.extract_strided_slice %665 {offsets = [1, 0], sizes = [1, 256], strides = [1, 1]} : vector<2x256xf32> to vector<1x256xf32>
    %c89 = arith.constant 89 : index
    %671 = memref.load %arg3[%c89] : memref<98xf32, #tpu.memory_space<smem>>
    %672 = vector.broadcast %671 : f32 to vector<1x256xf32>
    %673 = arith.mulf %670, %672 : vector<1x256xf32>
    %674 = arith.addf %669, %673 : vector<1x256xf32>
    %675 = arith.addf %660, %674 : vector<1x256xf32>
    %676 = vector.extract_strided_slice %83 {offsets = [0, 86], sizes = [2, 256], strides = [1, 1]} : vector<2x358xf32> to vector<2x256xf32>
    %cst_71 = arith.constant 0.000000e+00 : f32
    %677 = vector.shape_cast %72 : vector<1x256xi1> to vector<1x256xi1>
    %678 = vector.broadcast %677 : vector<1x256xi1> to vector<2x256xi1>
    %679 = vector.broadcast %cst_71 : f32 to vector<2x256xf32>
    %680 = arith.select %678, %676, %679 : vector<2x256xi1>, vector<2x256xf32>
    %681 = vector.extract_strided_slice %680 {offsets = [0, 0], sizes = [1, 256], strides = [1, 1]} : vector<2x256xf32> to vector<1x256xf32>
    %c41 = arith.constant 41 : index
    %682 = memref.load %arg3[%c41] : memref<98xf32, #tpu.memory_space<smem>>
    %683 = vector.broadcast %682 : f32 to vector<1x256xf32>
    %684 = arith.mulf %681, %683 : vector<1x256xf32>
    %685 = vector.extract_strided_slice %680 {offsets = [1, 0], sizes = [1, 256], strides = [1, 1]} : vector<2x256xf32> to vector<1x256xf32>
    %c90 = arith.constant 90 : index
    %686 = memref.load %arg3[%c90] : memref<98xf32, #tpu.memory_space<smem>>
    %687 = vector.broadcast %686 : f32 to vector<1x256xf32>
    %688 = arith.mulf %685, %687 : vector<1x256xf32>
    %689 = arith.addf %684, %688 : vector<1x256xf32>
    %690 = arith.addf %675, %689 : vector<1x256xf32>
    %691 = vector.extract_strided_slice %83 {offsets = [0, 96], sizes = [2, 256], strides = [1, 1]} : vector<2x358xf32> to vector<2x256xf32>
    %cst_72 = arith.constant 0.000000e+00 : f32
    %692 = vector.shape_cast %27 : vector<1x256xi1> to vector<1x256xi1>
    %693 = vector.broadcast %692 : vector<1x256xi1> to vector<2x256xi1>
    %694 = vector.broadcast %cst_72 : f32 to vector<2x256xf32>
    %695 = arith.select %693, %691, %694 : vector<2x256xi1>, vector<2x256xf32>
    %696 = vector.extract_strided_slice %695 {offsets = [0, 0], sizes = [1, 256], strides = [1, 1]} : vector<2x256xf32> to vector<1x256xf32>
    %c42 = arith.constant 42 : index
    %697 = memref.load %arg3[%c42] : memref<98xf32, #tpu.memory_space<smem>>
    %698 = vector.broadcast %697 : f32 to vector<1x256xf32>
    %699 = arith.mulf %696, %698 : vector<1x256xf32>
    %700 = vector.extract_strided_slice %695 {offsets = [1, 0], sizes = [1, 256], strides = [1, 1]} : vector<2x256xf32> to vector<1x256xf32>
    %c91 = arith.constant 91 : index
    %701 = memref.load %arg3[%c91] : memref<98xf32, #tpu.memory_space<smem>>
    %702 = vector.broadcast %701 : f32 to vector<1x256xf32>
    %703 = arith.mulf %700, %702 : vector<1x256xf32>
    %704 = arith.addf %699, %703 : vector<1x256xf32>
    %705 = arith.addf %690, %704 : vector<1x256xf32>
    %706 = vector.extract_strided_slice %83 {offsets = [0, 97], sizes = [2, 256], strides = [1, 1]} : vector<2x358xf32> to vector<2x256xf32>
    %cst_73 = arith.constant 0.000000e+00 : f32
    %707 = vector.shape_cast %36 : vector<1x256xi1> to vector<1x256xi1>
    %708 = vector.broadcast %707 : vector<1x256xi1> to vector<2x256xi1>
    %709 = vector.broadcast %cst_73 : f32 to vector<2x256xf32>
    %710 = arith.select %708, %706, %709 : vector<2x256xi1>, vector<2x256xf32>
    %711 = vector.extract_strided_slice %710 {offsets = [0, 0], sizes = [1, 256], strides = [1, 1]} : vector<2x256xf32> to vector<1x256xf32>
    %c43 = arith.constant 43 : index
    %712 = memref.load %arg3[%c43] : memref<98xf32, #tpu.memory_space<smem>>
    %713 = vector.broadcast %712 : f32 to vector<1x256xf32>
    %714 = arith.mulf %711, %713 : vector<1x256xf32>
    %715 = vector.extract_strided_slice %710 {offsets = [1, 0], sizes = [1, 256], strides = [1, 1]} : vector<2x256xf32> to vector<1x256xf32>
    %c92 = arith.constant 92 : index
    %716 = memref.load %arg3[%c92] : memref<98xf32, #tpu.memory_space<smem>>
    %717 = vector.broadcast %716 : f32 to vector<1x256xf32>
    %718 = arith.mulf %715, %717 : vector<1x256xf32>
    %719 = arith.addf %714, %718 : vector<1x256xf32>
    %720 = arith.addf %705, %719 : vector<1x256xf32>
    %721 = vector.extract_strided_slice %83 {offsets = [0, 98], sizes = [2, 256], strides = [1, 1]} : vector<2x358xf32> to vector<2x256xf32>
    %cst_74 = arith.constant 0.000000e+00 : f32
    %722 = vector.shape_cast %45 : vector<1x256xi1> to vector<1x256xi1>
    %723 = vector.broadcast %722 : vector<1x256xi1> to vector<2x256xi1>
    %724 = vector.broadcast %cst_74 : f32 to vector<2x256xf32>
    %725 = arith.select %723, %721, %724 : vector<2x256xi1>, vector<2x256xf32>
    %726 = vector.extract_strided_slice %725 {offsets = [0, 0], sizes = [1, 256], strides = [1, 1]} : vector<2x256xf32> to vector<1x256xf32>
    %c44 = arith.constant 44 : index
    %727 = memref.load %arg3[%c44] : memref<98xf32, #tpu.memory_space<smem>>
    %728 = vector.broadcast %727 : f32 to vector<1x256xf32>
    %729 = arith.mulf %726, %728 : vector<1x256xf32>
    %730 = vector.extract_strided_slice %725 {offsets = [1, 0], sizes = [1, 256], strides = [1, 1]} : vector<2x256xf32> to vector<1x256xf32>
    %c93 = arith.constant 93 : index
    %731 = memref.load %arg3[%c93] : memref<98xf32, #tpu.memory_space<smem>>
    %732 = vector.broadcast %731 : f32 to vector<1x256xf32>
    %733 = arith.mulf %730, %732 : vector<1x256xf32>
    %734 = arith.addf %729, %733 : vector<1x256xf32>
    %735 = arith.addf %720, %734 : vector<1x256xf32>
    %736 = vector.extract_strided_slice %83 {offsets = [0, 99], sizes = [2, 256], strides = [1, 1]} : vector<2x358xf32> to vector<2x256xf32>
    %737 = vector.extract_strided_slice %736 {offsets = [0, 0], sizes = [1, 256], strides = [1, 1]} : vector<2x256xf32> to vector<1x256xf32>
    %c45 = arith.constant 45 : index
    %738 = memref.load %arg3[%c45] : memref<98xf32, #tpu.memory_space<smem>>
    %739 = vector.broadcast %738 : f32 to vector<1x256xf32>
    %740 = arith.mulf %737, %739 : vector<1x256xf32>
    %741 = vector.extract_strided_slice %736 {offsets = [1, 0], sizes = [1, 256], strides = [1, 1]} : vector<2x256xf32> to vector<1x256xf32>
    %c94 = arith.constant 94 : index
    %742 = memref.load %arg3[%c94] : memref<98xf32, #tpu.memory_space<smem>>
    %743 = vector.broadcast %742 : f32 to vector<1x256xf32>
    %744 = arith.mulf %741, %743 : vector<1x256xf32>
    %745 = arith.addf %740, %744 : vector<1x256xf32>
    %746 = arith.addf %735, %745 : vector<1x256xf32>
    %747 = vector.extract_strided_slice %83 {offsets = [0, 100], sizes = [2, 256], strides = [1, 1]} : vector<2x358xf32> to vector<2x256xf32>
    %cst_75 = arith.constant 0.000000e+00 : f32
    %748 = vector.shape_cast %54 : vector<1x256xi1> to vector<1x256xi1>
    %749 = vector.broadcast %748 : vector<1x256xi1> to vector<2x256xi1>
    %750 = vector.broadcast %cst_75 : f32 to vector<2x256xf32>
    %751 = arith.select %749, %747, %750 : vector<2x256xi1>, vector<2x256xf32>
    %752 = vector.extract_strided_slice %751 {offsets = [0, 0], sizes = [1, 256], strides = [1, 1]} : vector<2x256xf32> to vector<1x256xf32>
    %c46 = arith.constant 46 : index
    %753 = memref.load %arg3[%c46] : memref<98xf32, #tpu.memory_space<smem>>
    %754 = vector.broadcast %753 : f32 to vector<1x256xf32>
    %755 = arith.mulf %752, %754 : vector<1x256xf32>
    %756 = vector.extract_strided_slice %751 {offsets = [1, 0], sizes = [1, 256], strides = [1, 1]} : vector<2x256xf32> to vector<1x256xf32>
    %c95 = arith.constant 95 : index
    %757 = memref.load %arg3[%c95] : memref<98xf32, #tpu.memory_space<smem>>
    %758 = vector.broadcast %757 : f32 to vector<1x256xf32>
    %759 = arith.mulf %756, %758 : vector<1x256xf32>
    %760 = arith.addf %755, %759 : vector<1x256xf32>
    %761 = arith.addf %746, %760 : vector<1x256xf32>
    %762 = vector.extract_strided_slice %83 {offsets = [0, 101], sizes = [2, 256], strides = [1, 1]} : vector<2x358xf32> to vector<2x256xf32>
    %cst_76 = arith.constant 0.000000e+00 : f32
    %763 = vector.shape_cast %63 : vector<1x256xi1> to vector<1x256xi1>
    %764 = vector.broadcast %763 : vector<1x256xi1> to vector<2x256xi1>
    %765 = vector.broadcast %cst_76 : f32 to vector<2x256xf32>
    %766 = arith.select %764, %762, %765 : vector<2x256xi1>, vector<2x256xf32>
    %767 = vector.extract_strided_slice %766 {offsets = [0, 0], sizes = [1, 256], strides = [1, 1]} : vector<2x256xf32> to vector<1x256xf32>
    %c47 = arith.constant 47 : index
    %768 = memref.load %arg3[%c47] : memref<98xf32, #tpu.memory_space<smem>>
    %769 = vector.broadcast %768 : f32 to vector<1x256xf32>
    %770 = arith.mulf %767, %769 : vector<1x256xf32>
    %771 = vector.extract_strided_slice %766 {offsets = [1, 0], sizes = [1, 256], strides = [1, 1]} : vector<2x256xf32> to vector<1x256xf32>
    %c96 = arith.constant 96 : index
    %772 = memref.load %arg3[%c96] : memref<98xf32, #tpu.memory_space<smem>>
    %773 = vector.broadcast %772 : f32 to vector<1x256xf32>
    %774 = arith.mulf %771, %773 : vector<1x256xf32>
    %775 = arith.addf %770, %774 : vector<1x256xf32>
    %776 = arith.addf %761, %775 : vector<1x256xf32>
    %777 = vector.extract_strided_slice %83 {offsets = [0, 102], sizes = [2, 256], strides = [1, 1]} : vector<2x358xf32> to vector<2x256xf32>
    %cst_77 = arith.constant 0.000000e+00 : f32
    %778 = vector.shape_cast %72 : vector<1x256xi1> to vector<1x256xi1>
    %779 = vector.broadcast %778 : vector<1x256xi1> to vector<2x256xi1>
    %780 = vector.broadcast %cst_77 : f32 to vector<2x256xf32>
    %781 = arith.select %779, %777, %780 : vector<2x256xi1>, vector<2x256xf32>
    %782 = vector.extract_strided_slice %781 {offsets = [0, 0], sizes = [1, 256], strides = [1, 1]} : vector<2x256xf32> to vector<1x256xf32>
    %c48 = arith.constant 48 : index
    %783 = memref.load %arg3[%c48] : memref<98xf32, #tpu.memory_space<smem>>
    %784 = vector.broadcast %783 : f32 to vector<1x256xf32>
    %785 = arith.mulf %782, %784 : vector<1x256xf32>
    %786 = vector.extract_strided_slice %781 {offsets = [1, 0], sizes = [1, 256], strides = [1, 1]} : vector<2x256xf32> to vector<1x256xf32>
    %c97 = arith.constant 97 : index
    %787 = memref.load %arg3[%c97] : memref<98xf32, #tpu.memory_space<smem>>
    %788 = vector.broadcast %787 : f32 to vector<1x256xf32>
    %789 = arith.mulf %786, %788 : vector<1x256xf32>
    %790 = arith.addf %785, %789 : vector<1x256xf32>
    %791 = arith.addf %776, %790 : vector<1x256xf32>
    %792 = arith.negf %791 : vector<1x256xf32>
    %793 = math.exp %792 : vector<1x256xf32>
    %cst_78 = arith.constant 1.000000e+00 : f32
    %794 = vector.broadcast %cst_78 : f32 to vector<1x256xf32>
    %795 = arith.addf %794, %793 : vector<1x256xf32>
    %796 = arith.divf %794, %795 : vector<1x256xf32>
    %797 = vector.broadcast %796 : vector<1x256xf32> to vector<8x256xf32>
    %798 = arith.mulf %797, %1 : vector<8x256xf32>
    %cst_79 = arith.constant dense<0.000000e+00> : vector<8xf32>
    %799 = vector.multi_reduction <add>, %1, %cst_79 [1] : vector<8x256xf32> to vector<8xf32>
    %800 = vector.shape_cast %799 : vector<8xf32> to vector<8x1xf32>
    %cst_80 = arith.constant 2.560000e+02 : f32
    %801 = vector.broadcast %cst_80 : f32 to vector<8x1xf32>
    %802 = arith.divf %800, %801 : vector<8x1xf32>
    %c0_81 = arith.constant 0 : index
    %c0_82 = arith.constant 0 : index
    %803 = vector.load %arg4[%c0_81, %c0_82] : memref<2x8xf32, #tpu.memory_space<vmem>>, vector<2x8xf32>
    %cst_83 = arith.constant dense<0.000000e+00> : vector<2x1xf32>
    %804 = tpu.matmul %803, %802, %cst_83 {dimension_numbers = #tpu.dot_dimension_numbers<[1], [0], [0], [1], [0, 0, 1, 1], [], []>} : vector<2x8xf32>, vector<8x1xf32>, vector<2x1xf32> -> vector<2x1xf32>
    %cst_84 = arith.constant 0.000000e+00 : f32
    %805 = vector.broadcast %cst_84 : f32 to vector<2x1xf32>
    %806 = arith.maximumf %804, %805 : vector<2x1xf32>
    %c0_85 = arith.constant 0 : index
    %c0_86 = arith.constant 0 : index
    %807 = vector.load %arg5[%c0_85, %c0_86] : memref<8x2xf32, #tpu.memory_space<vmem>>, vector<8x2xf32>
    %cst_87 = arith.constant dense<0.000000e+00> : vector<8x1xf32>
    %808 = tpu.matmul %807, %806, %cst_87 {dimension_numbers = #tpu.dot_dimension_numbers<[1], [0], [0], [1], [0, 0, 1, 1], [], []>} : vector<8x2xf32>, vector<2x1xf32>, vector<8x1xf32> -> vector<8x1xf32>
    %cst_88 = arith.constant dense<0xFF800000> : vector<8xf32>
    %809 = vector.multi_reduction <maximumf>, %1, %cst_88 [1] : vector<8x256xf32> to vector<8xf32>
    %810 = vector.shape_cast %809 : vector<8xf32> to vector<8x1xf32>
    %c0_89 = arith.constant 0 : index
    %c0_90 = arith.constant 0 : index
    %811 = vector.load %arg4[%c0_89, %c0_90] : memref<2x8xf32, #tpu.memory_space<vmem>>, vector<2x8xf32>
    %cst_91 = arith.constant dense<0.000000e+00> : vector<2x1xf32>
    %812 = tpu.matmul %811, %810, %cst_91 {dimension_numbers = #tpu.dot_dimension_numbers<[1], [0], [0], [1], [0, 0, 1, 1], [], []>} : vector<2x8xf32>, vector<8x1xf32>, vector<2x1xf32> -> vector<2x1xf32>
    %cst_92 = arith.constant 0.000000e+00 : f32
    %813 = vector.broadcast %cst_92 : f32 to vector<2x1xf32>
    %814 = arith.maximumf %812, %813 : vector<2x1xf32>
    %c0_93 = arith.constant 0 : index
    %c0_94 = arith.constant 0 : index
    %815 = vector.load %arg5[%c0_93, %c0_94] : memref<8x2xf32, #tpu.memory_space<vmem>>, vector<8x2xf32>
    %cst_95 = arith.constant dense<0.000000e+00> : vector<8x1xf32>
    %816 = tpu.matmul %815, %814, %cst_95 {dimension_numbers = #tpu.dot_dimension_numbers<[1], [0], [0], [1], [0, 0, 1, 1], [], []>} : vector<8x2xf32>, vector<2x1xf32>, vector<8x1xf32> -> vector<8x1xf32>
    %817 = arith.addf %808, %816 : vector<8x1xf32>
    %818 = arith.negf %817 : vector<8x1xf32>
    %819 = math.exp %818 : vector<8x1xf32>
    %cst_96 = arith.constant 1.000000e+00 : f32
    %820 = vector.broadcast %cst_96 : f32 to vector<8x1xf32>
    %821 = arith.addf %820, %819 : vector<8x1xf32>
    %822 = arith.divf %820, %821 : vector<8x1xf32>
    %823 = vector.broadcast %822 : vector<8x1xf32> to vector<8x256xf32>
    %824 = arith.mulf %823, %1 : vector<8x256xf32>
    %c0_97 = arith.constant 0 : index
    %c0_98 = arith.constant 0 : index
    %c0_99 = arith.constant 0 : index
    %825 = vector.load %arg2[%c0_97, %c0_98, %c0_99] : memref<1x8x256xf32, #tpu.memory_space<vmem>>, vector<1x8x256xf32>
    %826 = vector.shape_cast %825 : vector<1x8x256xf32> to vector<8x256xf32>
    %cst_100 = arith.constant 0.000000e+00 : f32
    %827 = vector.broadcast %cst_100 : f32 to vector<8x290xf32>
    %c0_101 = arith.constant 0 : index
    %c0_102 = arith.constant 0 : index
    %828 = vector.load %arg10[%c0_101, %c0_102] : memref<8x290xf32, #tpu.memory_space<vmem>>, vector<8x290xf32>
    tpu.vector_store %arg10[%c0_101, %c0_102], %827 {strides = array<i32>} : memref<8x290xf32, #tpu.memory_space<vmem>>, vector<8x290xf32>,
    %cst_103 = arith.constant 0.000000e+00 : f32
    %829 = vector.broadcast %cst_103 : f32 to vector<8x256xf32>
    %830 = arith.maximumf %798, %829 : vector<8x256xf32>
    %c0_104 = arith.constant 0 : index
    %c17_105 = arith.constant 17 : index
    %831 = vector.load %arg10[%c0_104, %c17_105] : memref<8x290xf32, #tpu.memory_space<vmem>>, vector<8x256xf32>
    tpu.vector_store %arg10[%c0_104, %c17_105], %830 {strides = array<i32>} : memref<8x290xf32, #tpu.memory_space<vmem>>, vector<8x256xf32>,
    %cst_106 = arith.constant 0.000000e+00 : f32
    %832 = vector.broadcast %cst_106 : f32 to vector<8x290xf32>
    %c0_107 = arith.constant 0 : index
    %c0_108 = arith.constant 0 : index
    %833 = vector.load %arg11[%c0_107, %c0_108] : memref<8x290xf32, #tpu.memory_space<vmem>>, vector<8x290xf32>
    tpu.vector_store %arg11[%c0_107, %c0_108], %832 {strides = array<i32>} : memref<8x290xf32, #tpu.memory_space<vmem>>, vector<8x290xf32>,
    %cst_109 = arith.constant 0.000000e+00 : f32
    %834 = vector.broadcast %cst_109 : f32 to vector<8x256xf32>
    %835 = arith.maximumf %824, %834 : vector<8x256xf32>
    %c0_110 = arith.constant 0 : index
    %c17_111 = arith.constant 17 : index
    %836 = vector.load %arg11[%c0_110, %c17_111] : memref<8x290xf32, #tpu.memory_space<vmem>>, vector<8x256xf32>
    tpu.vector_store %arg11[%c0_110, %c17_111], %835 {strides = array<i32>} : memref<8x290xf32, #tpu.memory_space<vmem>>, vector<8x256xf32>,
    %cst_112 = arith.constant 0.000000e+00 : f32
    %837 = vector.broadcast %cst_112 : f32 to vector<8x290xf32>
    %c0_113 = arith.constant 0 : index
    %c0_114 = arith.constant 0 : index
    %838 = vector.load %arg12[%c0_113, %c0_114] : memref<8x290xf32, #tpu.memory_space<vmem>>, vector<8x290xf32>
    tpu.vector_store %arg12[%c0_113, %c0_114], %837 {strides = array<i32>} : memref<8x290xf32, #tpu.memory_space<vmem>>, vector<8x290xf32>,
    %cst_115 = arith.constant 0.000000e+00 : f32
    %839 = vector.broadcast %cst_115 : f32 to vector<8x256xf32>
    %840 = arith.maximumf %826, %839 : vector<8x256xf32>
    %c0_116 = arith.constant 0 : index
    %c17_117 = arith.constant 17 : index
    %841 = vector.load %arg12[%c0_116, %c17_117] : memref<8x290xf32, #tpu.memory_space<vmem>>, vector<8x256xf32>
    tpu.vector_store %arg12[%c0_116, %c17_117], %840 {strides = array<i32>} : memref<8x290xf32, #tpu.memory_space<vmem>>, vector<8x256xf32>,
    %cst_118 = arith.constant 0.000000e+00 : f32
    %842 = vector.broadcast %cst_118 : f32 to vector<8x256xf32>
    %c0_119 = arith.constant 0 : index
    %c0_120 = arith.constant 0 : index
    %843 = vector.load %arg10[%c0_119, %c0_120] : memref<8x290xf32, #tpu.memory_space<vmem>>, vector<8x290xf32>
    %844 = vector.extract_strided_slice %843 {offsets = [0, 0], sizes = [8, 256], strides = [1, 1]} : vector<8x290xf32> to vector<8x256xf32>
    %cst_121 = arith.constant 0.000000e+00 : f32
    %845 = vector.shape_cast %45 : vector<1x256xi1> to vector<1x256xi1>
    %846 = vector.broadcast %845 : vector<1x256xi1> to vector<8x256xi1>
    %847 = vector.broadcast %cst_121 : f32 to vector<8x256xf32>
    %848 = arith.select %846, %844, %847 : vector<8x256xi1>, vector<8x256xf32>
    %c0_122 = arith.constant 0 : index
    %c0_123 = arith.constant 0 : index
    %c0_124 = arith.constant 0 : index
    %849 = vector.load %arg6[%c0_122, %c0_123, %c0_124] : memref<27x8x8xf32, #tpu.memory_space<vmem>>, vector<1x8x8xf32>
    %850 = vector.shape_cast %849 : vector<1x8x8xf32> to vector<8x8xf32>
    %cst_125 = arith.constant dense<0.000000e+00> : vector<8x256xf32>
    %851 = tpu.matmul %850, %848, %cst_125 {dimension_numbers = #tpu.dot_dimension_numbers<[1], [0], [0], [1], [0, 0, 1, 1], [], []>} : vector<8x8xf32>, vector<8x256xf32>, vector<8x256xf32> -> vector<8x256xf32>
    %852 = arith.addf %842, %851 : vector<8x256xf32>
    %853 = vector.extract_strided_slice %843 {offsets = [0, 1], sizes = [8, 256], strides = [1, 1]} : vector<8x290xf32> to vector<8x256xf32>
    %c1_126 = arith.constant 1 : index
    %c0_127 = arith.constant 0 : index
    %c0_128 = arith.constant 0 : index
    %854 = vector.load %arg6[%c1_126, %c0_127, %c0_128] : memref<27x8x8xf32, #tpu.memory_space<vmem>>, vector<1x8x8xf32>
    %855 = vector.shape_cast %854 : vector<1x8x8xf32> to vector<8x8xf32>
    %cst_129 = arith.constant dense<0.000000e+00> : vector<8x256xf32>
    %856 = tpu.matmul %855, %853, %cst_129 {dimension_numbers = #tpu.dot_dimension_numbers<[1], [0], [0], [1], [0, 0, 1, 1], [], []>} : vector<8x8xf32>, vector<8x256xf32>, vector<8x256xf32> -> vector<8x256xf32>
    %857 = arith.addf %852, %856 : vector<8x256xf32>
    %858 = vector.extract_strided_slice %843 {offsets = [0, 2], sizes = [8, 256], strides = [1, 1]} : vector<8x290xf32> to vector<8x256xf32>
    %cst_130 = arith.constant 0.000000e+00 : f32
    %859 = vector.shape_cast %54 : vector<1x256xi1> to vector<1x256xi1>
    %860 = vector.broadcast %859 : vector<1x256xi1> to vector<8x256xi1>
    %861 = vector.broadcast %cst_130 : f32 to vector<8x256xf32>
    %862 = arith.select %860, %858, %861 : vector<8x256xi1>, vector<8x256xf32>
    %c2_131 = arith.constant 2 : index
    %c0_132 = arith.constant 0 : index
    %c0_133 = arith.constant 0 : index
    %863 = vector.load %arg6[%c2_131, %c0_132, %c0_133] : memref<27x8x8xf32, #tpu.memory_space<vmem>>, vector<1x8x8xf32>
    %864 = vector.shape_cast %863 : vector<1x8x8xf32> to vector<8x8xf32>
    %cst_134 = arith.constant dense<0.000000e+00> : vector<8x256xf32>
    %865 = tpu.matmul %864, %862, %cst_134 {dimension_numbers = #tpu.dot_dimension_numbers<[1], [0], [0], [1], [0, 0, 1, 1], [], []>} : vector<8x8xf32>, vector<8x256xf32>, vector<8x256xf32> -> vector<8x256xf32>
    %866 = arith.addf %857, %865 : vector<8x256xf32>
    %867 = vector.extract_strided_slice %843 {offsets = [0, 16], sizes = [8, 256], strides = [1, 1]} : vector<8x290xf32> to vector<8x256xf32>
    %cst_135 = arith.constant 0.000000e+00 : f32
    %868 = vector.shape_cast %45 : vector<1x256xi1> to vector<1x256xi1>
    %869 = vector.broadcast %868 : vector<1x256xi1> to vector<8x256xi1>
    %870 = vector.broadcast %cst_135 : f32 to vector<8x256xf32>
    %871 = arith.select %869, %867, %870 : vector<8x256xi1>, vector<8x256xf32>
    %c3_136 = arith.constant 3 : index
    %c0_137 = arith.constant 0 : index
    %c0_138 = arith.constant 0 : index
    %872 = vector.load %arg6[%c3_136, %c0_137, %c0_138] : memref<27x8x8xf32, #tpu.memory_space<vmem>>, vector<1x8x8xf32>
    %873 = vector.shape_cast %872 : vector<1x8x8xf32> to vector<8x8xf32>
    %cst_139 = arith.constant dense<0.000000e+00> : vector<8x256xf32>
    %874 = tpu.matmul %873, %871, %cst_139 {dimension_numbers = #tpu.dot_dimension_numbers<[1], [0], [0], [1], [0, 0, 1, 1], [], []>} : vector<8x8xf32>, vector<8x256xf32>, vector<8x256xf32> -> vector<8x256xf32>
    %875 = arith.addf %866, %874 : vector<8x256xf32>
    %876 = vector.extract_strided_slice %843 {offsets = [0, 17], sizes = [8, 256], strides = [1, 1]} : vector<8x290xf32> to vector<8x256xf32>
    %c4_140 = arith.constant 4 : index
    %c0_141 = arith.constant 0 : index
    %c0_142 = arith.constant 0 : index
    %877 = vector.load %arg6[%c4_140, %c0_141, %c0_142] : memref<27x8x8xf32, #tpu.memory_space<vmem>>, vector<1x8x8xf32>
    %878 = vector.shape_cast %877 : vector<1x8x8xf32> to vector<8x8xf32>
    %cst_143 = arith.constant dense<0.000000e+00> : vector<8x256xf32>
    %879 = tpu.matmul %878, %876, %cst_143 {dimension_numbers = #tpu.dot_dimension_numbers<[1], [0], [0], [1], [0, 0, 1, 1], [], []>} : vector<8x8xf32>, vector<8x256xf32>, vector<8x256xf32> -> vector<8x256xf32>
    %880 = arith.addf %875, %879 : vector<8x256xf32>
    %881 = vector.extract_strided_slice %843 {offsets = [0, 18], sizes = [8, 256], strides = [1, 1]} : vector<8x290xf32> to vector<8x256xf32>
    %cst_144 = arith.constant 0.000000e+00 : f32
    %882 = vector.shape_cast %54 : vector<1x256xi1> to vector<1x256xi1>
    %883 = vector.broadcast %882 : vector<1x256xi1> to vector<8x256xi1>
    %884 = vector.broadcast %cst_144 : f32 to vector<8x256xf32>
    %885 = arith.select %883, %881, %884 : vector<8x256xi1>, vector<8x256xf32>
    %c5_145 = arith.constant 5 : index
    %c0_146 = arith.constant 0 : index
    %c0_147 = arith.constant 0 : index
    %886 = vector.load %arg6[%c5_145, %c0_146, %c0_147] : memref<27x8x8xf32, #tpu.memory_space<vmem>>, vector<1x8x8xf32>
    %887 = vector.shape_cast %886 : vector<1x8x8xf32> to vector<8x8xf32>
    %cst_148 = arith.constant dense<0.000000e+00> : vector<8x256xf32>
    %888 = tpu.matmul %887, %885, %cst_148 {dimension_numbers = #tpu.dot_dimension_numbers<[1], [0], [0], [1], [0, 0, 1, 1], [], []>} : vector<8x8xf32>, vector<8x256xf32>, vector<8x256xf32> -> vector<8x256xf32>
    %889 = arith.addf %880, %888 : vector<8x256xf32>
    %890 = vector.extract_strided_slice %843 {offsets = [0, 32], sizes = [8, 256], strides = [1, 1]} : vector<8x290xf32> to vector<8x256xf32>
    %cst_149 = arith.constant 0.000000e+00 : f32
    %891 = vector.shape_cast %45 : vector<1x256xi1> to vector<1x256xi1>
    %892 = vector.broadcast %891 : vector<1x256xi1> to vector<8x256xi1>
    %893 = vector.broadcast %cst_149 : f32 to vector<8x256xf32>
    %894 = arith.select %892, %890, %893 : vector<8x256xi1>, vector<8x256xf32>
    %c6_150 = arith.constant 6 : index
    %c0_151 = arith.constant 0 : index
    %c0_152 = arith.constant 0 : index
    %895 = vector.load %arg6[%c6_150, %c0_151, %c0_152] : memref<27x8x8xf32, #tpu.memory_space<vmem>>, vector<1x8x8xf32>
    %896 = vector.shape_cast %895 : vector<1x8x8xf32> to vector<8x8xf32>
    %cst_153 = arith.constant dense<0.000000e+00> : vector<8x256xf32>
    %897 = tpu.matmul %896, %894, %cst_153 {dimension_numbers = #tpu.dot_dimension_numbers<[1], [0], [0], [1], [0, 0, 1, 1], [], []>} : vector<8x8xf32>, vector<8x256xf32>, vector<8x256xf32> -> vector<8x256xf32>
    %898 = arith.addf %889, %897 : vector<8x256xf32>
    %899 = vector.extract_strided_slice %843 {offsets = [0, 33], sizes = [8, 256], strides = [1, 1]} : vector<8x290xf32> to vector<8x256xf32>
    %c7_154 = arith.constant 7 : index
    %c0_155 = arith.constant 0 : index
    %c0_156 = arith.constant 0 : index
    %900 = vector.load %arg6[%c7_154, %c0_155, %c0_156] : memref<27x8x8xf32, #tpu.memory_space<vmem>>, vector<1x8x8xf32>
    %901 = vector.shape_cast %900 : vector<1x8x8xf32> to vector<8x8xf32>
    %cst_157 = arith.constant dense<0.000000e+00> : vector<8x256xf32>
    %902 = tpu.matmul %901, %899, %cst_157 {dimension_numbers = #tpu.dot_dimension_numbers<[1], [0], [0], [1], [0, 0, 1, 1], [], []>} : vector<8x8xf32>, vector<8x256xf32>, vector<8x256xf32> -> vector<8x256xf32>
    %903 = arith.addf %898, %902 : vector<8x256xf32>
    %904 = vector.extract_strided_slice %843 {offsets = [0, 34], sizes = [8, 256], strides = [1, 1]} : vector<8x290xf32> to vector<8x256xf32>
    %cst_158 = arith.constant 0.000000e+00 : f32
    %905 = vector.shape_cast %54 : vector<1x256xi1> to vector<1x256xi1>
    %906 = vector.broadcast %905 : vector<1x256xi1> to vector<8x256xi1>
    %907 = vector.broadcast %cst_158 : f32 to vector<8x256xf32>
    %908 = arith.select %906, %904, %907 : vector<8x256xi1>, vector<8x256xf32>
    %c8_159 = arith.constant 8 : index
    %c0_160 = arith.constant 0 : index
    %c0_161 = arith.constant 0 : index
    %909 = vector.load %arg6[%c8_159, %c0_160, %c0_161] : memref<27x8x8xf32, #tpu.memory_space<vmem>>, vector<1x8x8xf32>
    %910 = vector.shape_cast %909 : vector<1x8x8xf32> to vector<8x8xf32>
    %cst_162 = arith.constant dense<0.000000e+00> : vector<8x256xf32>
    %911 = tpu.matmul %910, %908, %cst_162 {dimension_numbers = #tpu.dot_dimension_numbers<[1], [0], [0], [1], [0, 0, 1, 1], [], []>} : vector<8x8xf32>, vector<8x256xf32>, vector<8x256xf32> -> vector<8x256xf32>
    %912 = arith.addf %903, %911 : vector<8x256xf32>
    %c0_163 = arith.constant 0 : index
    %c0_164 = arith.constant 0 : index
    %913 = vector.load %arg11[%c0_163, %c0_164] : memref<8x290xf32, #tpu.memory_space<vmem>>, vector<8x290xf32>
    %914 = vector.extract_strided_slice %913 {offsets = [0, 0], sizes = [8, 256], strides = [1, 1]} : vector<8x290xf32> to vector<8x256xf32>
    %cst_165 = arith.constant 0.000000e+00 : f32
    %915 = vector.shape_cast %45 : vector<1x256xi1> to vector<1x256xi1>
    %916 = vector.broadcast %915 : vector<1x256xi1> to vector<8x256xi1>
    %917 = vector.broadcast %cst_165 : f32 to vector<8x256xf32>
    %918 = arith.select %916, %914, %917 : vector<8x256xi1>, vector<8x256xf32>
    %c9_166 = arith.constant 9 : index
    %c0_167 = arith.constant 0 : index
    %c0_168 = arith.constant 0 : index
    %919 = vector.load %arg6[%c9_166, %c0_167, %c0_168] : memref<27x8x8xf32, #tpu.memory_space<vmem>>, vector<1x8x8xf32>
    %920 = vector.shape_cast %919 : vector<1x8x8xf32> to vector<8x8xf32>
    %cst_169 = arith.constant dense<0.000000e+00> : vector<8x256xf32>
    %921 = tpu.matmul %920, %918, %cst_169 {dimension_numbers = #tpu.dot_dimension_numbers<[1], [0], [0], [1], [0, 0, 1, 1], [], []>} : vector<8x8xf32>, vector<8x256xf32>, vector<8x256xf32> -> vector<8x256xf32>
    %922 = arith.addf %912, %921 : vector<8x256xf32>
    %923 = vector.extract_strided_slice %913 {offsets = [0, 1], sizes = [8, 256], strides = [1, 1]} : vector<8x290xf32> to vector<8x256xf32>
    %c10_170 = arith.constant 10 : index
    %c0_171 = arith.constant 0 : index
    %c0_172 = arith.constant 0 : index
    %924 = vector.load %arg6[%c10_170, %c0_171, %c0_172] : memref<27x8x8xf32, #tpu.memory_space<vmem>>, vector<1x8x8xf32>
    %925 = vector.shape_cast %924 : vector<1x8x8xf32> to vector<8x8xf32>
    %cst_173 = arith.constant dense<0.000000e+00> : vector<8x256xf32>
    %926 = tpu.matmul %925, %923, %cst_173 {dimension_numbers = #tpu.dot_dimension_numbers<[1], [0], [0], [1], [0, 0, 1, 1], [], []>} : vector<8x8xf32>, vector<8x256xf32>, vector<8x256xf32> -> vector<8x256xf32>
    %927 = arith.addf %922, %926 : vector<8x256xf32>
    %928 = vector.extract_strided_slice %913 {offsets = [0, 2], sizes = [8, 256], strides = [1, 1]} : vector<8x290xf32> to vector<8x256xf32>
    %cst_174 = arith.constant 0.000000e+00 : f32
    %929 = vector.shape_cast %54 : vector<1x256xi1> to vector<1x256xi1>
    %930 = vector.broadcast %929 : vector<1x256xi1> to vector<8x256xi1>
    %931 = vector.broadcast %cst_174 : f32 to vector<8x256xf32>
    %932 = arith.select %930, %928, %931 : vector<8x256xi1>, vector<8x256xf32>
    %c11_175 = arith.constant 11 : index
    %c0_176 = arith.constant 0 : index
    %c0_177 = arith.constant 0 : index
    %933 = vector.load %arg6[%c11_175, %c0_176, %c0_177] : memref<27x8x8xf32, #tpu.memory_space<vmem>>, vector<1x8x8xf32>
    %934 = vector.shape_cast %933 : vector<1x8x8xf32> to vector<8x8xf32>
    %cst_178 = arith.constant dense<0.000000e+00> : vector<8x256xf32>
    %935 = tpu.matmul %934, %932, %cst_178 {dimension_numbers = #tpu.dot_dimension_numbers<[1], [0], [0], [1], [0, 0, 1, 1], [], []>} : vector<8x8xf32>, vector<8x256xf32>, vector<8x256xf32> -> vector<8x256xf32>
    %936 = arith.addf %927, %935 : vector<8x256xf32>
    %937 = vector.extract_strided_slice %913 {offsets = [0, 16], sizes = [8, 256], strides = [1, 1]} : vector<8x290xf32> to vector<8x256xf32>
    %cst_179 = arith.constant 0.000000e+00 : f32
    %938 = vector.shape_cast %45 : vector<1x256xi1> to vector<1x256xi1>
    %939 = vector.broadcast %938 : vector<1x256xi1> to vector<8x256xi1>
    %940 = vector.broadcast %cst_179 : f32 to vector<8x256xf32>
    %941 = arith.select %939, %937, %940 : vector<8x256xi1>, vector<8x256xf32>
    %c12_180 = arith.constant 12 : index
    %c0_181 = arith.constant 0 : index
    %c0_182 = arith.constant 0 : index
    %942 = vector.load %arg6[%c12_180, %c0_181, %c0_182] : memref<27x8x8xf32, #tpu.memory_space<vmem>>, vector<1x8x8xf32>
    %943 = vector.shape_cast %942 : vector<1x8x8xf32> to vector<8x8xf32>
    %cst_183 = arith.constant dense<0.000000e+00> : vector<8x256xf32>
    %944 = tpu.matmul %943, %941, %cst_183 {dimension_numbers = #tpu.dot_dimension_numbers<[1], [0], [0], [1], [0, 0, 1, 1], [], []>} : vector<8x8xf32>, vector<8x256xf32>, vector<8x256xf32> -> vector<8x256xf32>
    %945 = arith.addf %936, %944 : vector<8x256xf32>
    %946 = vector.extract_strided_slice %913 {offsets = [0, 17], sizes = [8, 256], strides = [1, 1]} : vector<8x290xf32> to vector<8x256xf32>
    %c13_184 = arith.constant 13 : index
    %c0_185 = arith.constant 0 : index
    %c0_186 = arith.constant 0 : index
    %947 = vector.load %arg6[%c13_184, %c0_185, %c0_186] : memref<27x8x8xf32, #tpu.memory_space<vmem>>, vector<1x8x8xf32>
    %948 = vector.shape_cast %947 : vector<1x8x8xf32> to vector<8x8xf32>
    %cst_187 = arith.constant dense<0.000000e+00> : vector<8x256xf32>
    %949 = tpu.matmul %948, %946, %cst_187 {dimension_numbers = #tpu.dot_dimension_numbers<[1], [0], [0], [1], [0, 0, 1, 1], [], []>} : vector<8x8xf32>, vector<8x256xf32>, vector<8x256xf32> -> vector<8x256xf32>
    %950 = arith.addf %945, %949 : vector<8x256xf32>
    %951 = vector.extract_strided_slice %913 {offsets = [0, 18], sizes = [8, 256], strides = [1, 1]} : vector<8x290xf32> to vector<8x256xf32>
    %cst_188 = arith.constant 0.000000e+00 : f32
    %952 = vector.shape_cast %54 : vector<1x256xi1> to vector<1x256xi1>
    %953 = vector.broadcast %952 : vector<1x256xi1> to vector<8x256xi1>
    %954 = vector.broadcast %cst_188 : f32 to vector<8x256xf32>
    %955 = arith.select %953, %951, %954 : vector<8x256xi1>, vector<8x256xf32>
    %c14_189 = arith.constant 14 : index
    %c0_190 = arith.constant 0 : index
    %c0_191 = arith.constant 0 : index
    %956 = vector.load %arg6[%c14_189, %c0_190, %c0_191] : memref<27x8x8xf32, #tpu.memory_space<vmem>>, vector<1x8x8xf32>
    %957 = vector.shape_cast %956 : vector<1x8x8xf32> to vector<8x8xf32>
    %cst_192 = arith.constant dense<0.000000e+00> : vector<8x256xf32>
    %958 = tpu.matmul %957, %955, %cst_192 {dimension_numbers = #tpu.dot_dimension_numbers<[1], [0], [0], [1], [0, 0, 1, 1], [], []>} : vector<8x8xf32>, vector<8x256xf32>, vector<8x256xf32> -> vector<8x256xf32>
    %959 = arith.addf %950, %958 : vector<8x256xf32>
    %960 = vector.extract_strided_slice %913 {offsets = [0, 32], sizes = [8, 256], strides = [1, 1]} : vector<8x290xf32> to vector<8x256xf32>
    %cst_193 = arith.constant 0.000000e+00 : f32
    %961 = vector.shape_cast %45 : vector<1x256xi1> to vector<1x256xi1>
    %962 = vector.broadcast %961 : vector<1x256xi1> to vector<8x256xi1>
    %963 = vector.broadcast %cst_193 : f32 to vector<8x256xf32>
    %964 = arith.select %962, %960, %963 : vector<8x256xi1>, vector<8x256xf32>
    %c15_194 = arith.constant 15 : index
    %c0_195 = arith.constant 0 : index
    %c0_196 = arith.constant 0 : index
    %965 = vector.load %arg6[%c15_194, %c0_195, %c0_196] : memref<27x8x8xf32, #tpu.memory_space<vmem>>, vector<1x8x8xf32>
    %966 = vector.shape_cast %965 : vector<1x8x8xf32> to vector<8x8xf32>
    %cst_197 = arith.constant dense<0.000000e+00> : vector<8x256xf32>
    %967 = tpu.matmul %966, %964, %cst_197 {dimension_numbers = #tpu.dot_dimension_numbers<[1], [0], [0], [1], [0, 0, 1, 1], [], []>} : vector<8x8xf32>, vector<8x256xf32>, vector<8x256xf32> -> vector<8x256xf32>
    %968 = arith.addf %959, %967 : vector<8x256xf32>
    %969 = vector.extract_strided_slice %913 {offsets = [0, 33], sizes = [8, 256], strides = [1, 1]} : vector<8x290xf32> to vector<8x256xf32>
    %c16_198 = arith.constant 16 : index
    %c0_199 = arith.constant 0 : index
    %c0_200 = arith.constant 0 : index
    %970 = vector.load %arg6[%c16_198, %c0_199, %c0_200] : memref<27x8x8xf32, #tpu.memory_space<vmem>>, vector<1x8x8xf32>
    %971 = vector.shape_cast %970 : vector<1x8x8xf32> to vector<8x8xf32>
    %cst_201 = arith.constant dense<0.000000e+00> : vector<8x256xf32>
    %972 = tpu.matmul %971, %969, %cst_201 {dimension_numbers = #tpu.dot_dimension_numbers<[1], [0], [0], [1], [0, 0, 1, 1], [], []>} : vector<8x8xf32>, vector<8x256xf32>, vector<8x256xf32> -> vector<8x256xf32>
    %973 = arith.addf %968, %972 : vector<8x256xf32>
    %974 = vector.extract_strided_slice %913 {offsets = [0, 34], sizes = [8, 256], strides = [1, 1]} : vector<8x290xf32> to vector<8x256xf32>
    %cst_202 = arith.constant 0.000000e+00 : f32
    %975 = vector.shape_cast %54 : vector<1x256xi1> to vector<1x256xi1>
    %976 = vector.broadcast %975 : vector<1x256xi1> to vector<8x256xi1>
    %977 = vector.broadcast %cst_202 : f32 to vector<8x256xf32>
    %978 = arith.select %976, %974, %977 : vector<8x256xi1>, vector<8x256xf32>
    %c17_203 = arith.constant 17 : index
    %c0_204 = arith.constant 0 : index
    %c0_205 = arith.constant 0 : index
    %979 = vector.load %arg6[%c17_203, %c0_204, %c0_205] : memref<27x8x8xf32, #tpu.memory_space<vmem>>, vector<1x8x8xf32>
    %980 = vector.shape_cast %979 : vector<1x8x8xf32> to vector<8x8xf32>
    %cst_206 = arith.constant dense<0.000000e+00> : vector<8x256xf32>
    %981 = tpu.matmul %980, %978, %cst_206 {dimension_numbers = #tpu.dot_dimension_numbers<[1], [0], [0], [1], [0, 0, 1, 1], [], []>} : vector<8x8xf32>, vector<8x256xf32>, vector<8x256xf32> -> vector<8x256xf32>
    %982 = arith.addf %973, %981 : vector<8x256xf32>
    %c0_207 = arith.constant 0 : index
    %c0_208 = arith.constant 0 : index
    %983 = vector.load %arg12[%c0_207, %c0_208] : memref<8x290xf32, #tpu.memory_space<vmem>>, vector<8x290xf32>
    %984 = vector.extract_strided_slice %983 {offsets = [0, 0], sizes = [8, 256], strides = [1, 1]} : vector<8x290xf32> to vector<8x256xf32>
    %cst_209 = arith.constant 0.000000e+00 : f32
    %985 = vector.shape_cast %45 : vector<1x256xi1> to vector<1x256xi1>
    %986 = vector.broadcast %985 : vector<1x256xi1> to vector<8x256xi1>
    %987 = vector.broadcast %cst_209 : f32 to vector<8x256xf32>
    %988 = arith.select %986, %984, %987 : vector<8x256xi1>, vector<8x256xf32>
    %c18_210 = arith.constant 18 : index
    %c0_211 = arith.constant 0 : index
    %c0_212 = arith.constant 0 : index
    %989 = vector.load %arg6[%c18_210, %c0_211, %c0_212] : memref<27x8x8xf32, #tpu.memory_space<vmem>>, vector<1x8x8xf32>
    %990 = vector.shape_cast %989 : vector<1x8x8xf32> to vector<8x8xf32>
    %cst_213 = arith.constant dense<0.000000e+00> : vector<8x256xf32>
    %991 = tpu.matmul %990, %988, %cst_213 {dimension_numbers = #tpu.dot_dimension_numbers<[1], [0], [0], [1], [0, 0, 1, 1], [], []>} : vector<8x8xf32>, vector<8x256xf32>, vector<8x256xf32> -> vector<8x256xf32>
    %992 = arith.addf %982, %991 : vector<8x256xf32>
    %993 = vector.extract_strided_slice %983 {offsets = [0, 1], sizes = [8, 256], strides = [1, 1]} : vector<8x290xf32> to vector<8x256xf32>
    %c19_214 = arith.constant 19 : index
    %c0_215 = arith.constant 0 : index
    %c0_216 = arith.constant 0 : index
    %994 = vector.load %arg6[%c19_214, %c0_215, %c0_216] : memref<27x8x8xf32, #tpu.memory_space<vmem>>, vector<1x8x8xf32>
    %995 = vector.shape_cast %994 : vector<1x8x8xf32> to vector<8x8xf32>
    %cst_217 = arith.constant dense<0.000000e+00> : vector<8x256xf32>
    %996 = tpu.matmul %995, %993, %cst_217 {dimension_numbers = #tpu.dot_dimension_numbers<[1], [0], [0], [1], [0, 0, 1, 1], [], []>} : vector<8x8xf32>, vector<8x256xf32>, vector<8x256xf32> -> vector<8x256xf32>
    %997 = arith.addf %992, %996 : vector<8x256xf32>
    %998 = vector.extract_strided_slice %983 {offsets = [0, 2], sizes = [8, 256], strides = [1, 1]} : vector<8x290xf32> to vector<8x256xf32>
    %cst_218 = arith.constant 0.000000e+00 : f32
    %999 = vector.shape_cast %54 : vector<1x256xi1> to vector<1x256xi1>
    %1000 = vector.broadcast %999 : vector<1x256xi1> to vector<8x256xi1>
    %1001 = vector.broadcast %cst_218 : f32 to vector<8x256xf32>
    %1002 = arith.select %1000, %998, %1001 : vector<8x256xi1>, vector<8x256xf32>
    %c20_219 = arith.constant 20 : index
    %c0_220 = arith.constant 0 : index
    %c0_221 = arith.constant 0 : index
    %1003 = vector.load %arg6[%c20_219, %c0_220, %c0_221] : memref<27x8x8xf32, #tpu.memory_space<vmem>>, vector<1x8x8xf32>
    %1004 = vector.shape_cast %1003 : vector<1x8x8xf32> to vector<8x8xf32>
    %cst_222 = arith.constant dense<0.000000e+00> : vector<8x256xf32>
    %1005 = tpu.matmul %1004, %1002, %cst_222 {dimension_numbers = #tpu.dot_dimension_numbers<[1], [0], [0], [1], [0, 0, 1, 1], [], []>} : vector<8x8xf32>, vector<8x256xf32>, vector<8x256xf32> -> vector<8x256xf32>
    %1006 = arith.addf %997, %1005 : vector<8x256xf32>
    %1007 = vector.extract_strided_slice %983 {offsets = [0, 16], sizes = [8, 256], strides = [1, 1]} : vector<8x290xf32> to vector<8x256xf32>
    %cst_223 = arith.constant 0.000000e+00 : f32
    %1008 = vector.shape_cast %45 : vector<1x256xi1> to vector<1x256xi1>
    %1009 = vector.broadcast %1008 : vector<1x256xi1> to vector<8x256xi1>
    %1010 = vector.broadcast %cst_223 : f32 to vector<8x256xf32>
    %1011 = arith.select %1009, %1007, %1010 : vector<8x256xi1>, vector<8x256xf32>
    %c21_224 = arith.constant 21 : index
    %c0_225 = arith.constant 0 : index
    %c0_226 = arith.constant 0 : index
    %1012 = vector.load %arg6[%c21_224, %c0_225, %c0_226] : memref<27x8x8xf32, #tpu.memory_space<vmem>>, vector<1x8x8xf32>
    %1013 = vector.shape_cast %1012 : vector<1x8x8xf32> to vector<8x8xf32>
    %cst_227 = arith.constant dense<0.000000e+00> : vector<8x256xf32>
    %1014 = tpu.matmul %1013, %1011, %cst_227 {dimension_numbers = #tpu.dot_dimension_numbers<[1], [0], [0], [1], [0, 0, 1, 1], [], []>} : vector<8x8xf32>, vector<8x256xf32>, vector<8x256xf32> -> vector<8x256xf32>
    %1015 = arith.addf %1006, %1014 : vector<8x256xf32>
    %1016 = vector.extract_strided_slice %983 {offsets = [0, 17], sizes = [8, 256], strides = [1, 1]} : vector<8x290xf32> to vector<8x256xf32>
    %c22_228 = arith.constant 22 : index
    %c0_229 = arith.constant 0 : index
    %c0_230 = arith.constant 0 : index
    %1017 = vector.load %arg6[%c22_228, %c0_229, %c0_230] : memref<27x8x8xf32, #tpu.memory_space<vmem>>, vector<1x8x8xf32>
    %1018 = vector.shape_cast %1017 : vector<1x8x8xf32> to vector<8x8xf32>
    %cst_231 = arith.constant dense<0.000000e+00> : vector<8x256xf32>
    %1019 = tpu.matmul %1018, %1016, %cst_231 {dimension_numbers = #tpu.dot_dimension_numbers<[1], [0], [0], [1], [0, 0, 1, 1], [], []>} : vector<8x8xf32>, vector<8x256xf32>, vector<8x256xf32> -> vector<8x256xf32>
    %1020 = arith.addf %1015, %1019 : vector<8x256xf32>
    %1021 = vector.extract_strided_slice %983 {offsets = [0, 18], sizes = [8, 256], strides = [1, 1]} : vector<8x290xf32> to vector<8x256xf32>
    %cst_232 = arith.constant 0.000000e+00 : f32
    %1022 = vector.shape_cast %54 : vector<1x256xi1> to vector<1x256xi1>
    %1023 = vector.broadcast %1022 : vector<1x256xi1> to vector<8x256xi1>
    %1024 = vector.broadcast %cst_232 : f32 to vector<8x256xf32>
    %1025 = arith.select %1023, %1021, %1024 : vector<8x256xi1>, vector<8x256xf32>
    %c23_233 = arith.constant 23 : index
    %c0_234 = arith.constant 0 : index
    %c0_235 = arith.constant 0 : index
    %1026 = vector.load %arg6[%c23_233, %c0_234, %c0_235] : memref<27x8x8xf32, #tpu.memory_space<vmem>>, vector<1x8x8xf32>
    %1027 = vector.shape_cast %1026 : vector<1x8x8xf32> to vector<8x8xf32>
    %cst_236 = arith.constant dense<0.000000e+00> : vector<8x256xf32>
    %1028 = tpu.matmul %1027, %1025, %cst_236 {dimension_numbers = #tpu.dot_dimension_numbers<[1], [0], [0], [1], [0, 0, 1, 1], [], []>} : vector<8x8xf32>, vector<8x256xf32>, vector<8x256xf32> -> vector<8x256xf32>
    %1029 = arith.addf %1020, %1028 : vector<8x256xf32>
    %1030 = vector.extract_strided_slice %983 {offsets = [0, 32], sizes = [8, 256], strides = [1, 1]} : vector<8x290xf32> to vector<8x256xf32>
    %cst_237 = arith.constant 0.000000e+00 : f32
    %1031 = vector.shape_cast %45 : vector<1x256xi1> to vector<1x256xi1>
    %1032 = vector.broadcast %1031 : vector<1x256xi1> to vector<8x256xi1>
    %1033 = vector.broadcast %cst_237 : f32 to vector<8x256xf32>
    %1034 = arith.select %1032, %1030, %1033 : vector<8x256xi1>, vector<8x256xf32>
    %c24_238 = arith.constant 24 : index
    %c0_239 = arith.constant 0 : index
    %c0_240 = arith.constant 0 : index
    %1035 = vector.load %arg6[%c24_238, %c0_239, %c0_240] : memref<27x8x8xf32, #tpu.memory_space<vmem>>, vector<1x8x8xf32>
    %1036 = vector.shape_cast %1035 : vector<1x8x8xf32> to vector<8x8xf32>
    %cst_241 = arith.constant dense<0.000000e+00> : vector<8x256xf32>
    %1037 = tpu.matmul %1036, %1034, %cst_241 {dimension_numbers = #tpu.dot_dimension_numbers<[1], [0], [0], [1], [0, 0, 1, 1], [], []>} : vector<8x8xf32>, vector<8x256xf32>, vector<8x256xf32> -> vector<8x256xf32>
    %1038 = arith.addf %1029, %1037 : vector<8x256xf32>
    %1039 = vector.extract_strided_slice %983 {offsets = [0, 33], sizes = [8, 256], strides = [1, 1]} : vector<8x290xf32> to vector<8x256xf32>
    %c25_242 = arith.constant 25 : index
    %c0_243 = arith.constant 0 : index
    %c0_244 = arith.constant 0 : index
    %1040 = vector.load %arg6[%c25_242, %c0_243, %c0_244] : memref<27x8x8xf32, #tpu.memory_space<vmem>>, vector<1x8x8xf32>
    %1041 = vector.shape_cast %1040 : vector<1x8x8xf32> to vector<8x8xf32>
    %cst_245 = arith.constant dense<0.000000e+00> : vector<8x256xf32>
    %1042 = tpu.matmul %1041, %1039, %cst_245 {dimension_numbers = #tpu.dot_dimension_numbers<[1], [0], [0], [1], [0, 0, 1, 1], [], []>} : vector<8x8xf32>, vector<8x256xf32>, vector<8x256xf32> -> vector<8x256xf32>
    %1043 = arith.addf %1038, %1042 : vector<8x256xf32>
    %1044 = vector.extract_strided_slice %983 {offsets = [0, 34], sizes = [8, 256], strides = [1, 1]} : vector<8x290xf32> to vector<8x256xf32>
    %cst_246 = arith.constant 0.000000e+00 : f32
    %1045 = vector.shape_cast %54 : vector<1x256xi1> to vector<1x256xi1>
    %1046 = vector.broadcast %1045 : vector<1x256xi1> to vector<8x256xi1>
    %1047 = vector.broadcast %cst_246 : f32 to vector<8x256xf32>
    %1048 = arith.select %1046, %1044, %1047 : vector<8x256xi1>, vector<8x256xf32>
    %c26_247 = arith.constant 26 : index
    %c0_248 = arith.constant 0 : index
    %c0_249 = arith.constant 0 : index
    %1049 = vector.load %arg6[%c26_247, %c0_248, %c0_249] : memref<27x8x8xf32, #tpu.memory_space<vmem>>, vector<1x8x8xf32>
    %1050 = vector.shape_cast %1049 : vector<1x8x8xf32> to vector<8x8xf32>
    %cst_250 = arith.constant dense<0.000000e+00> : vector<8x256xf32>
    %1051 = tpu.matmul %1050, %1048, %cst_250 {dimension_numbers = #tpu.dot_dimension_numbers<[1], [0], [0], [1], [0, 0, 1, 1], [], []>} : vector<8x8xf32>, vector<8x256xf32>, vector<8x256xf32> -> vector<8x256xf32>
    %1052 = arith.addf %1043, %1051 : vector<8x256xf32>
    %c0_251 = arith.constant 0 : index
    %c0_252 = arith.constant 0 : index
    %1053 = vector.load %arg7[%c0_251, %c0_252] : memref<8x1xf32, #tpu.memory_space<vmem>>, vector<8x1xf32>
    %1054 = vector.broadcast %1053 : vector<8x1xf32> to vector<8x256xf32>
    %1055 = arith.addf %1052, %1054 : vector<8x256xf32>
    %1056 = vector.shape_cast %1055 : vector<8x256xf32> to vector<1x8x256xf32>
    %cst_253 = arith.constant dense<0.000000e+00> : vector<1xf32>
    %1057 = vector.multi_reduction <add>, %1056, %cst_253 [1, 2] : vector<1x8x256xf32> to vector<1xf32>
    %1058 = vector.shape_cast %1057 : vector<1xf32> to vector<1x1x1xf32>
    %1059 = vector.extract %1058[0, 0, 0] : f32 from vector<1x1x1xf32>
    %1060 = vector.broadcast %1059 : f32 to vector<1x1xf32>
    %cst_254 = arith.constant 2.048000e+03 : f32
    %1061 = vector.broadcast %cst_254 : f32 to vector<1x1xf32>
    %1062 = arith.divf %1060, %1061 : vector<1x1xf32>
    %1063 = vector.broadcast %1062 : vector<1x1xf32> to vector<8x256xf32>
    %1064 = arith.subf %1055, %1063 : vector<8x256xf32>
    %1065 = arith.mulf %1064, %1064 : vector<8x256xf32>
    %1066 = vector.shape_cast %1065 : vector<8x256xf32> to vector<1x8x256xf32>
    %cst_255 = arith.constant dense<0.000000e+00> : vector<1xf32>
    %1067 = vector.multi_reduction <add>, %1066, %cst_255 [1, 2] : vector<1x8x256xf32> to vector<1xf32>
    %1068 = vector.shape_cast %1067 : vector<1xf32> to vector<1x1x1xf32>
    %1069 = vector.extract %1068[0, 0, 0] : f32 from vector<1x1x1xf32>
    %1070 = vector.broadcast %1069 : f32 to vector<1x1xf32>
    %cst_256 = arith.constant 2.048000e+03 : f32
    %1071 = vector.broadcast %cst_256 : f32 to vector<1x1xf32>
    %1072 = arith.divf %1070, %1071 : vector<1x1xf32>
    %cst_257 = arith.constant 9.99999974E-6 : f32
    %1073 = vector.broadcast %cst_257 : f32 to vector<1x1xf32>
    %1074 = arith.addf %1072, %1073 : vector<1x1xf32>
    %1075 = math.rsqrt %1074 : vector<1x1xf32>
    %1076 = vector.broadcast %1075 : vector<1x1xf32> to vector<8x256xf32>
    %1077 = arith.mulf %1064, %1076 : vector<8x256xf32>
    %c0_258 = arith.constant 0 : index
    %c0_259 = arith.constant 0 : index
    %c0_260 = arith.constant 0 : index
    %1078 = vector.load %arg8[%c0_258, %c0_259, %c0_260] : memref<1x8x256xf32, #tpu.memory_space<vmem>>, vector<1x8x256xf32>
    %1079 = vector.shape_cast %1078 : vector<1x8x256xf32> to vector<8x256xf32>
    %1080 = vector.shape_cast %1077 : vector<8x256xf32> to vector<1x8x256xf32>
    tpu.vector_store %arg8[%c0_258, %c0_259, %c0_260], %1080 {strides = array<i32>} : memref<1x8x256xf32, #tpu.memory_space<vmem>>, vector<1x8x256xf32>,
    return
  }
  func.func @transform_0(%arg0: i32) -> (i32, i32, i32) {
    %c0_i32 = arith.constant 0 : i32
    %c0_i32_0 = arith.constant 0 : i32
    %c0_i32_1 = arith.constant 0 : i32
    return %arg0, %c0_i32, %c0_i32_0 : i32, i32, i32
  }
  func.func @transform_1(%arg0: i32) -> (i32, i32, i32) {
    %c0_i32 = arith.constant 0 : i32
    %c0_i32_0 = arith.constant 0 : i32
    %c0_i32_1 = arith.constant 0 : i32
    return %arg0, %c0_i32, %c0_i32_0 : i32, i32, i32
  }
  func.func @transform_2(%arg0: i32) -> i32 {
    %c0_i32 = arith.constant 0 : i32
    %c0_i32_0 = arith.constant 0 : i32
    return %c0_i32 : i32
  }
  func.func @transform_3(%arg0: i32) -> (i32, i32) {
    %c0_i32 = arith.constant 0 : i32
    %c0_i32_0 = arith.constant 0 : i32
    %c0_i32_1 = arith.constant 0 : i32
    return %c0_i32, %c0_i32_0 : i32, i32
  }
  func.func @transform_4(%arg0: i32) -> (i32, i32) {
    %c0_i32 = arith.constant 0 : i32
    %c0_i32_0 = arith.constant 0 : i32
    %c0_i32_1 = arith.constant 0 : i32
    return %c0_i32, %c0_i32_0 : i32, i32
  }
  func.func @transform_5(%arg0: i32) -> (i32, i32, i32) {
    %c0_i32 = arith.constant 0 : i32
    %c0_i32_0 = arith.constant 0 : i32
    %c0_i32_1 = arith.constant 0 : i32
    %c0_i32_2 = arith.constant 0 : i32
    return %c0_i32, %c0_i32_0, %c0_i32_1 : i32, i32, i32
  }
  func.func @transform_6(%arg0: i32) -> (i32, i32) {
    %c0_i32 = arith.constant 0 : i32
    %c0_i32_0 = arith.constant 0 : i32
    %c0_i32_1 = arith.constant 0 : i32
    return %c0_i32, %c0_i32_0 : i32, i32
  }
  func.func @transform_7(%arg0: i32) -> (i32, i32, i32) {
    %c0_i32 = arith.constant 0 : i32
    %c0_i32_0 = arith.constant 0 : i32
    %c0_i32_1 = arith.constant 0 : i32
    return %arg0, %c0_i32, %c0_i32_0 : i32, i32, i32
  }
}

</mosaic_0001>

<llo_original>
// kernel: attention_block_forward.2
$region0: #{attention_block_forward.2}
  #allocation0 [shape = 'u32[]', space=smem, size = 0x4, offset = 0x4, fixed_abs, tag = 'smem constant byte address 0x4 - core index']
  #allocation1 [shape = 'u32[144,128]{1,0:T(1,128)}', space=vmem, size = 0x12000, scoped, tag = 'internal scratch']
  %s0 = inlined_call_operand.vmem [shape: f32[4,2,512], index: 0, kind: input, shape index: {}]
  %s1 = inlined_call_operand.vmem [shape: f32[512,32], index: 1, kind: input, shape index: {}]
  %s2 = inlined_call_operand.vmem [shape: f32[1,32], index: 2, kind: input, shape index: {}]
  %s3 = inlined_call_operand.vmem [shape: f32[32,96], index: 3, kind: input, shape index: {}]
  %s4 = inlined_call_operand.vmem [shape: f32[1,96], index: 4, kind: input, shape index: {}]
  %s5 = inlined_call_operand.vmem [shape: f32[8,4,32], index: 5, kind: input, shape index: {}]
  %s6 = inlined_call_operand.vmem [shape: f32[1,32], index: 6, kind: input, shape index: {}]
  %s7 = inlined_call_operand.vmem [shape: f32[32,512], index: 7, kind: input, shape index: {}]
  %s8 = inlined_call_operand.vmem [shape: f32[1,512], index: 8, kind: input, shape index: {}]
  %s9 = inlined_call_operand.vmem [shape: f32[4,2,512], index: 9, kind: output, shape index: {}]
  %s10 = sld [smem:[#allocation0]]
  $region69: #{attention_block_forward.2} parent=0
    _
  %s12 = ssub.s32 1, %s10
  %s13 = scalar_select 0, %s12, %s10
  loop: start=0, step=1, limit=6
  $region2: #{attention_block_forward.2} parent=0 // loop_pre_header
    _
  $region3: #{attention_block_forward.2} parent=0 // loop_header
    %s15 = sphi 0, %s19
    %p16 = scmp.ge.s32.totalorder %s15, 6
    %s25 = sphi 0, %s27
    %s28 = sphi 0, %s25
    %s29 = sphi 0, %s28
    %s45 = sphi 0, %s29
    %s49 = sphi 0, %s49
    %s51 = sphi 0, %s49
    %s52 = sphi 0, %s51
    %s66 = sphi 0, %s52
    %s70 = sphi 0, %s70
    %s72 = sphi 0, %s70
    %s73 = sphi 0, %s72
    %s87 = sphi 0, %s73
    %s91 = sphi 0, %s91
    %s93 = sphi 0, %s91
    %s94 = sphi 0, %s93
    %s108 = sphi 0, %s94
    %s112 = sphi 0, %s112
    %s114 = sphi 0, %s112
    %s115 = sphi 0, %s114
    %s129 = sphi 0, %s115
    %s133 = sphi 0, %s133
    %s135 = sphi 0, %s133
    %s136 = sphi 0, %s135
    %s150 = sphi 0, %s136
    %s154 = sphi 0, %s154
    %s156 = sphi 0, %s154
    %s157 = sphi 0, %s156
    %s171 = sphi 0, %s157
    %s175 = sphi 0, %s175
    %s177 = sphi 0, %s175
    %s178 = sphi 0, %s177
    %s192 = sphi 0, %s178
    %s196 = sphi 0, %s196
    %s198 = sphi 0, %s196
    %s199 = sphi 0, %s198
    %s213 = sphi 0, %s199
    %s219 = sphi 0, %s221
    %s222 = sphi 0, %s219
    %s223 = sphi 0, %s222
    %s239 = sphi 0, %s223
  $region4: #{attention_block_forward.2} parent=0 // loop_header_branch
    %18 = sbr.rel (%p16) target = $region8
  $region5: #{attention_block_forward.2} parent=0 // loop_body
    %s20 = ssub.s32 %s15, 1
    %s21 = ssub.s32 %s15, 2
    %s22 = sadd.s32 %s15, 1
    %s23 = ssub.s32 %s15, %s22
    %p24 = scmp.eq.s32.totalorder %s23, 0
    %s26 = sadd.s32 %s25, 1
    %s27 = scalar_select %p24, %s25, %s26
    %p30 = pneg %p24
    %p31 = scmp.eq.s32.totalorder %s15, 3
    %p32 = por %p30, %p31
    %p33 = scmp.ne.s32.totalorder %s25, %s28
    %p34 = scmp.eq.s32.totalorder %s15, 0
    %p35 = por %p33, %p34
    %p36 = scmp.ne.s32.totalorder %s25, %s28
    %p37 = scmp.eq.s32.totalorder %s20, 3
    %p38 = por %p36, %p37
    %p39 = scmp.ne.s32.totalorder %s28, %s29
    %p40 = scmp.eq.s32.totalorder %s20, 0
    %p41 = por %p39, %p40
    %p42 = scmp.ne.s32.totalorder %s28, %s29
    %p43 = scmp.eq.s32.totalorder %s21, 3
    %p44 = por %p42, %p43
    %p46 = scmp.ne.s32.totalorder %s29, %s45
    %p47 = scmp.eq.s32.totalorder %s21, 0
    %p48 = por %p46, %p47
    %s50 = sadd.s32 %s49, 1
    %p53 = scmp.eq.s32.totalorder %s15, 3
    %p54 = scmp.ne.s32.totalorder %s49, %s51
    %p55 = scmp.eq.s32.totalorder %s15, 0
    %p56 = por %p54, %p55
    %p57 = scmp.ne.s32.totalorder %s49, %s51
    %p58 = scmp.eq.s32.totalorder %s20, 3
    %p59 = por %p57, %p58
    %p60 = scmp.ne.s32.totalorder %s51, %s52
    %p61 = scmp.eq.s32.totalorder %s20, 0
    %p62 = por %p60, %p61
    %p63 = scmp.ne.s32.totalorder %s51, %s52
    %p64 = scmp.eq.s32.totalorder %s21, 3
    %p65 = por %p63, %p64
    %p67 = scmp.ne.s32.totalorder %s52, %s66
    %p68 = scmp.eq.s32.totalorder %s21, 0
    %p69 = por %p67, %p68
    %s71 = sadd.s32 %s70, 1
    %p74 = scmp.eq.s32.totalorder %s15, 3
    %p75 = scmp.ne.s32.totalorder %s70, %s72
    %p76 = scmp.eq.s32.totalorder %s15, 0
    %p77 = por %p75, %p76
    %p78 = scmp.ne.s32.totalorder %s70, %s72
    %p79 = scmp.eq.s32.totalorder %s20, 3
    %p80 = por %p78, %p79
    %p81 = scmp.ne.s32.totalorder %s72, %s73
    %p82 = scmp.eq.s32.totalorder %s20, 0
    %p83 = por %p81, %p82
    %p84 = scmp.ne.s32.totalorder %s72, %s73
    %p85 = scmp.eq.s32.totalorder %s21, 3
    %p86 = por %p84, %p85
    %p88 = scmp.ne.s32.totalorder %s73, %s87
    %p89 = scmp.eq.s32.totalorder %s21, 0
    %p90 = por %p88, %p89
    %s92 = sadd.s32 %s91, 1
    %p95 = scmp.eq.s32.totalorder %s15, 3
    %p96 = scmp.ne.s32.totalorder %s91, %s93
    %p97 = scmp.eq.s32.totalorder %s15, 0
    %p98 = por %p96, %p97
    %p99 = scmp.ne.s32.totalorder %s91, %s93
    %p100 = scmp.eq.s32.totalorder %s20, 3
    %p101 = por %p99, %p100
    %p102 = scmp.ne.s32.totalorder %s93, %s94
    %p103 = scmp.eq.s32.totalorder %s20, 0
    %p104 = por %p102, %p103
    %p105 = scmp.ne.s32.totalorder %s93, %s94
    %p106 = scmp.eq.s32.totalorder %s21, 3
    %p107 = por %p105, %p106
    %p109 = scmp.ne.s32.totalorder %s94, %s108
    %p110 = scmp.eq.s32.totalorder %s21, 0
    %p111 = por %p109, %p110
    %s113 = sadd.s32 %s112, 1
    %p116 = scmp.eq.s32.totalorder %s15, 3
    %p117 = scmp.ne.s32.totalorder %s112, %s114
    %p118 = scmp.eq.s32.totalorder %s15, 0
    %p119 = por %p117, %p118
    %p120 = scmp.ne.s32.totalorder %s112, %s114
    %p121 = scmp.eq.s32.totalorder %s20, 3
    %p122 = por %p120, %p121
    %p123 = scmp.ne.s32.totalorder %s114, %s115
    %p124 = scmp.eq.s32.totalorder %s20, 0
    %p125 = por %p123, %p124
    %p126 = scmp.ne.s32.totalorder %s114, %s115
    %p127 = scmp.eq.s32.totalorder %s21, 3
    %p128 = por %p126, %p127
    %p130 = scmp.ne.s32.totalorder %s115, %s129
    %p131 = scmp.eq.s32.totalorder %s21, 0
    %p132 = por %p130, %p131
    %s134 = sadd.s32 %s133, 1
    %p137 = scmp.eq.s32.totalorder %s15, 3
    %p138 = scmp.ne.s32.totalorder %s133, %s135
    %p139 = scmp.eq.s32.totalorder %s15, 0
    %p140 = por %p138, %p139
    %p141 = scmp.ne.s32.totalorder %s133, %s135
    %p142 = scmp.eq.s32.totalorder %s20, 3
    %p143 = por %p141, %p142
    %p144 = scmp.ne.s32.totalorder %s135, %s136
    %p145 = scmp.eq.s32.totalorder %s20, 0
    %p146 = por %p144, %p145
    %p147 = scmp.ne.s32.totalorder %s135, %s136
    %p148 = scmp.eq.s32.totalorder %s21, 3
    %p149 = por %p147, %p148
    %p151 = scmp.ne.s32.totalorder %s136, %s150
    %p152 = scmp.eq.s32.totalorder %s21, 0
    %p153 = por %p151, %p152
    %s155 = sadd.s32 %s154, 1
    %p158 = scmp.eq.s32.totalorder %s15, 3
    %p159 = scmp.ne.s32.totalorder %s154, %s156
    %p160 = scmp.eq.s32.totalorder %s15, 0
    %p161 = por %p159, %p160
    %p162 = scmp.ne.s32.totalorder %s154, %s156
    %p163 = scmp.eq.s32.totalorder %s20, 3
    %p164 = por %p162, %p163
    %p165 = scmp.ne.s32.totalorder %s156, %s157
    %p166 = scmp.eq.s32.totalorder %s20, 0
    %p167 = por %p165, %p166
    %p168 = scmp.ne.s32.totalorder %s156, %s157
    %p169 = scmp.eq.s32.totalorder %s21, 3
    %p170 = por %p168, %p169
    %p172 = scmp.ne.s32.totalorder %s157, %s171
    %p173 = scmp.eq.s32.totalorder %s21, 0
    %p174 = por %p172, %p173
    %s176 = sadd.s32 %s175, 1
    %p179 = scmp.eq.s32.totalorder %s15, 3
    %p180 = scmp.ne.s32.totalorder %s175, %s177
    %p181 = scmp.eq.s32.totalorder %s15, 0
    %p182 = por %p180, %p181
    %p183 = scmp.ne.s32.totalorder %s175, %s177
    %p184 = scmp.eq.s32.totalorder %s20, 3
    %p185 = por %p183, %p184
    %p186 = scmp.ne.s32.totalorder %s177, %s178
    %p187 = scmp.eq.s32.totalorder %s20, 0
    %p188 = por %p186, %p187
    %p189 = scmp.ne.s32.totalorder %s177, %s178
    %p190 = scmp.eq.s32.totalorder %s21, 3
    %p191 = por %p189, %p190
    %p193 = scmp.ne.s32.totalorder %s178, %s192
    %p194 = scmp.eq.s32.totalorder %s21, 0
    %p195 = por %p193, %p194
    %s197 = sadd.s32 %s196, 1
    %p200 = scmp.eq.s32.totalorder %s15, 3
    %p201 = scmp.ne.s32.totalorder %s196, %s198
    %p202 = scmp.eq.s32.totalorder %s15, 0
    %p203 = por %p201, %p202
    %p204 = scmp.ne.s32.totalorder %s196, %s198
    %p205 = scmp.eq.s32.totalorder %s20, 3
    %p206 = por %p204, %p205
    %p207 = scmp.ne.s32.totalorder %s198, %s199
    %p208 = scmp.eq.s32.totalorder %s20, 0
    %p209 = por %p207, %p208
    %p210 = scmp.ne.s32.totalorder %s198, %s199
    %p211 = scmp.eq.s32.totalorder %s21, 3
    %p212 = por %p210, %p211
    %p214 = scmp.ne.s32.totalorder %s199, %s213
    %p215 = scmp.eq.s32.totalorder %s21, 0
    %p216 = por %p214, %p215
    %s217 = ssub.s32 %s15, %s22
    %p218 = scmp.eq.s32.totalorder %s217, 0
    %s220 = sadd.s32 %s219, 1
    %s221 = scalar_select %p218, %s219, %s220
    %p224 = pneg %p218
    %p225 = scmp.eq.s32.totalorder %s15, 3
    %p226 = por %p224, %p225
    %p227 = scmp.ne.s32.totalorder %s219, %s222
    %p228 = scmp.eq.s32.totalorder %s15, 0
    %p229 = por %p227, %p228
    %p230 = scmp.ne.s32.totalorder %s219, %s222
    %p231 = scmp.eq.s32.totalorder %s20, 3
    %p232 = por %p230, %p231
    %p233 = scmp.ne.s32.totalorder %s222, %s223
    %p234 = scmp.eq.s32.totalorder %s20, 0
    %p235 = por %p233, %p234
    %p236 = scmp.ne.s32.totalorder %s222, %s223
    %p237 = scmp.eq.s32.totalorder %s21, 3
    %p238 = por %p236, %p237
    %p240 = scmp.ne.s32.totalorder %s223, %s239
    %p241 = scmp.eq.s32.totalorder %s21, 0
    %p242 = por %p240, %p241
    %p243 = scmp.le.s32.totalorder 1, %s15
    %p244 = scmp.lt.s32.totalorder %s15, 5
    %p245 = pnand %p243, %p244
    %p246 = pneg %p245
    // Predicated region
    $region9: #{attention_block_forward.2} parent=5 // pred_check
      _
    $region10: #{attention_block_forward.2} parent=5 // pred_check_branch
      %248 = sbr.rel (%p245) target = $region12
    $region11: #{attention_block_forward.2} parent=5 // pred_region
      %s249 = ssub.s32 %s15, 1
      // Predicated region
      $region13: #{attention_block_forward.2} parent=11 // pred_check
        %p250 = pneg %p62
      $region14: #{attention_block_forward.2} parent=11 // pred_check_branch
        %252 = sbr.rel (%p250) target = $region16
      $region15: #{attention_block_forward.2} parent=11 // pred_region
        _
      $region16: #{attention_block_forward.2} parent=11 // pred_fallthru
        _
      // Predicated region
      $region17: #{attention_block_forward.2} parent=11 // pred_check
        %p253 = pneg %p83
      $region18: #{attention_block_forward.2} parent=11 // pred_check_branch
        %255 = sbr.rel (%p253) target = $region20
      $region19: #{attention_block_forward.2} parent=11 // pred_region
        _
      $region20: #{attention_block_forward.2} parent=11 // pred_fallthru
        _
      // Predicated region
      $region21: #{attention_block_forward.2} parent=11 // pred_check
        %p256 = pneg %p104
      $region22: #{attention_block_forward.2} parent=11 // pred_check_branch
        %258 = sbr.rel (%p256) target = $region24
      $region23: #{attention_block_forward.2} parent=11 // pred_region
        _
      $region24: #{attention_block_forward.2} parent=11 // pred_fallthru
        _
      // Predicated region
      $region25: #{attention_block_forward.2} parent=11 // pred_check
        %p259 = pneg %p125
      $region26: #{attention_block_forward.2} parent=11 // pred_check_branch
        %261 = sbr.rel (%p259) target = $region28
      $region27: #{attention_block_forward.2} parent=11 // pred_region
        _
      $region28: #{attention_block_forward.2} parent=11 // pred_fallthru
        _
      // Predicated region
      $region29: #{attention_block_forward.2} parent=11 // pred_check
        %p262 = pneg %p146
      $region30: #{attention_block_forward.2} parent=11 // pred_check_branch
        %264 = sbr.rel (%p262) target = $region32
      $region31: #{attention_block_forward.2} parent=11 // pred_region
        _
      $region32: #{attention_block_forward.2} parent=11 // pred_fallthru
        _
      // Predicated region
      $region33: #{attention_block_forward.2} parent=11 // pred_check
        %p265 = pneg %p167
      $region34: #{attention_block_forward.2} parent=11 // pred_check_branch
        %267 = sbr.rel (%p265) target = $region36
      $region35: #{attention_block_forward.2} parent=11 // pred_region
        _
      $region36: #{attention_block_forward.2} parent=11 // pred_fallthru
        _
      // Predicated region
      $region37: #{attention_block_forward.2} parent=11 // pred_check
        %p268 = pneg %p188
      $region38: #{attention_block_forward.2} parent=11 // pred_check_branch
        %270 = sbr.rel (%p268) target = $region40
      $region39: #{attention_block_forward.2} parent=11 // pred_region
        _
      $region40: #{attention_block_forward.2} parent=11 // pred_fallthru
        _
      // Predicated region
      $region41: #{attention_block_forward.2} parent=11 // pred_check
        %p271 = pneg %p209
      $region42: #{attention_block_forward.2} parent=11 // pred_check_branch
        %273 = sbr.rel (%p271) target = $region44
      $region43: #{attention_block_forward.2} parent=11 // pred_region
        _
      $region44: #{attention_block_forward.2} parent=11 // pred_fallthru
        _
    $region12: #{attention_block_forward.2} parent=5 // pred_fallthru
      _
    %p274 = scmp.lt.s32.totalorder %s15, 4
    // Predicated region
    $region45: #{attention_block_forward.2} parent=5 // pred_check
      %p275 = pneg %p274
    $region46: #{attention_block_forward.2} parent=5 // pred_check_branch
      %277 = sbr.rel (%p275) target = $region48
    $region47: #{attention_block_forward.2} parent=5 // pred_region
      // Predicated region
      $region49: #{attention_block_forward.2} parent=47 // pred_check
        %p278 = pneg %p35
      $region50: #{attention_block_forward.2} parent=47 // pred_check_branch
        %280 = sbr.rel (%p278) target = $region52
      $region51: #{attention_block_forward.2} parent=47 // pred_region
        %p281 = scmp.lt.s32.totalorder %s15, 3
        %s282 = scalar_select %p281, %s15, 3
        %s283 = smul.addr %s282, 4
        %s284 = smul.addr %s283, 2
        %s285 = scalar_lea.vmem %s0, %s284
      $region52: #{attention_block_forward.2} parent=47 // pred_fallthru
        _
    $region48: #{attention_block_forward.2} parent=5 // pred_fallthru
      _
    %p286 = scmp.le.s32.totalorder 1, %s15
    %p287 = scmp.lt.s32.totalorder %s15, 5
    %p288 = pnand %p286, %p287
    %p289 = pneg %p288
    // Predicated region
    $region53: #{attention_block_forward.2} parent=5 // pred_check
      _
    $region54: #{attention_block_forward.2} parent=5 // pred_check_branch
      %291 = sbr.rel (%p288) target = $region56
    $region55: #{attention_block_forward.2} parent=5 // pred_region
      %s292 = ssub.s32 %s15, 1
      %p293 = scmp.lt.s32.totalorder %s20, 3
      %s294 = scalar_select %p293, %s20, 3
      %s295 = smul.addr %s294, 4
      %s296 = smul.addr %s295, 2
      %s297 = scalar_lea.vmem %s0, %s296
      %p298 = pneg %p41
      %p299 = pneg %p38
      %p300 = pneg %p62
      %p301 = pneg %p59
      %p302 = pneg %p83
      %p303 = pneg %p80
      %p304 = pneg %p104
      %p305 = pneg %p101
      %p306 = pneg %p125
      %p307 = pneg %p122
      %p308 = pneg %p146
      %p309 = pneg %p143
      %p310 = pneg %p167
      %p311 = pneg %p164
      %p312 = pneg %p188
      %p313 = pneg %p185
      %p314 = pneg %p209
      %p315 = pneg %p206
      %p316 = pneg %p235
      %p317 = pneg %p232
      %p318 = scmp.lt.s32.totalorder %s20, 3
      %s319 = scalar_select %p318, %s20, 3
      %s320 = smul.addr %s319, 4
      %s321 = smul.addr %s320, 2
      %s322 = scalar_lea.vmem %s9, %s321
      %p323 = scmp.lt.s32.totalorder %s20, 3
      %s324 = scalar_select %p323, %s20, 3
      %s325 = smul.addr %s324, 4
      %s326 = smul.addr %s325, 2
      %s327 = scalar_lea.vmem %s0, %s326
      %p328 = scmp.lt.s32.totalorder %s20, 3
      %s329 = scalar_select %p328, %s20, 3
      %s330 = smul.addr %s329, 4
      %s331 = smul.addr %s330, 2
      %s332 = scalar_lea.vmem %s9, %s331
      %v333 = vld [vmem:[%s327] sm:$0xff]
      %v334 = vld [vmem:[%s1] sm:$0xff]
      %v335 = vld [vmem:[%s1 + $0x8] sm:$0xff]
      %v336 = vld [vmem:[%s1 + $0x10] sm:$0xff]
      %v337 = vld [vmem:[%s1 + $0x18] sm:$0xff]
      %v338 = vld [vmem:[%s1 + $0x20] sm:$0xff]
      %v339 = vld [vmem:[%s1 + $0x28] sm:$0xff]
      %v340 = vld [vmem:[%s1 + $0x30] sm:$0xff]
      %v341 = vld [vmem:[%s1 + $0x38] sm:$0xff]
      %v342 = vld [vmem:[%s1 + $0x40] sm:$0xff]
      %v343 = vld [vmem:[%s1 + $0x48] sm:$0xff]
      %v344 = vld [vmem:[%s1 + $0x50] sm:$0xff]
      %v345 = vld [vmem:[%s1 + $0x58] sm:$0xff]
      %v346 = vld [vmem:[%s1 + $0x60] sm:$0xff]
      %v347 = vld [vmem:[%s1 + $0x68] sm:$0xff]
      %v348 = vld [vmem:[%s1 + $0x70] sm:$0xff]
      %v349 = vld [vmem:[%s1 + $0x78] sm:$0xff]
      %v350 = vld [vmem:[%s1 + $0x80] sm:$0xff]
      %v351 = vld [vmem:[%s1 + $0x88] sm:$0xff]
      %v352 = vld [vmem:[%s1 + $0x90] sm:$0xff]
      %v353 = vld [vmem:[%s1 + $0x98] sm:$0xff]
      %v354 = vld [vmem:[%s1 + $0xa0] sm:$0xff]
      %v355 = vld [vmem:[%s1 + $0xa8] sm:$0xff]
      %v356 = vld [vmem:[%s1 + $0xb0] sm:$0xff]
      %v357 = vld [vmem:[%s1 + $0xb8] sm:$0xff]
      %v358 = vld [vmem:[%s1 + $0xc0] sm:$0xff]
      %v359 = vld [vmem:[%s1 + $0xc8] sm:$0xff]
      %v360 = vld [vmem:[%s1 + $0xd0] sm:$0xff]
      %v361 = vld [vmem:[%s1 + $0xd8] sm:$0xff]
      %v362 = vld [vmem:[%s1 + $0xe0] sm:$0xff]
      %v363 = vld [vmem:[%s1 + $0xe8] sm:$0xff]
      %v364 = vld [vmem:[%s1 + $0xf0] sm:$0xff]
      %v365 = vld [vmem:[%s1 + $0xf8] sm:$0xff]
      %v366 = vld [vmem:[%s1 + $0x100] sm:$0xff]
      %v367 = vld [vmem:[%s1 + $0x108] sm:$0xff]
      %v368 = vld [vmem:[%s1 + $0x110] sm:$0xff]
      %v369 = vld [vmem:[%s1 + $0x118] sm:$0xff]
      %v370 = vld [vmem:[%s1 + $0x120] sm:$0xff]
      %v371 = vld [vmem:[%s1 + $0x128] sm:$0xff]
      %v372 = vld [vmem:[%s1 + $0x130] sm:$0xff]
      %v373 = vld [vmem:[%s1 + $0x138] sm:$0xff]
      %v374 = vld [vmem:[%s1 + $0x140] sm:$0xff]
      %v375 = vld [vmem:[%s1 + $0x148] sm:$0xff]
      %v376 = vld [vmem:[%s1 + $0x150] sm:$0xff]
      %v377 = vld [vmem:[%s1 + $0x158] sm:$0xff]
      %v378 = vld [vmem:[%s1 + $0x160] sm:$0xff]
      %v379 = vld [vmem:[%s1 + $0x168] sm:$0xff]
      %v380 = vld [vmem:[%s1 + $0x170] sm:$0xff]
      %v381 = vld [vmem:[%s1 + $0x178] sm:$0xff]
      %v382 = vld [vmem:[%s1 + $0x180] sm:$0xff]
      %v383 = vld [vmem:[%s1 + $0x188] sm:$0xff]
      %v384 = vld [vmem:[%s1 + $0x190] sm:$0xff]
      %v385 = vld [vmem:[%s1 + $0x198] sm:$0xff]
      %v386 = vld [vmem:[%s1 + $0x1a0] sm:$0xff]
      %v387 = vld [vmem:[%s1 + $0x1a8] sm:$0xff]
      %v388 = vld [vmem:[%s1 + $0x1b0] sm:$0xff]
      %v389 = vld [vmem:[%s1 + $0x1b8] sm:$0xff]
      %v390 = vld [vmem:[%s1 + $0x1c0] sm:$0xff]
      %v391 = vld [vmem:[%s1 + $0x1c8] sm:$0xff]
      %v392 = vld [vmem:[%s1 + $0x1d0] sm:$0xff]
      %v393 = vld [vmem:[%s1 + $0x1d8] sm:$0xff]
      %v394 = vld [vmem:[%s1 + $0x1e0] sm:$0xff]
      %v395 = vld [vmem:[%s1 + $0x1e8] sm:$0xff]
      %v396 = vld [vmem:[%s1 + $0x1f0] sm:$0xff]
      %v397 = vld [vmem:[%s1 + $0x1f8] sm:$0xff]
      %v398 = vld [vmem:[%s2] sm:$0x1]
      %v400 = vlaneseq
      %v401 = vshrl.u32 %v400, 7
      %v402 = vsub.s32 0, %v401
      %v403 = vrot.slane %v398, %v402
      %v406 = vcombine.high %v333, %v333
      %v408 = vunpack.c.l.s4 1983009808
      %v409 = vunpack.c.0.s8 %v408
      %v410 = vlaneseq
      %v411 = vshrl.u32 %v410, 7
      %v412 = vsub.s32 %v409, %v411
      %v413 = vrot.slane %v333, %v412
      %v415 = vunpack.c.l.s4 1983009808
      %v416 = vunpack.c.0.s8 %v415
      %v417 = vlaneseq
      %v418 = vshrl.u32 %v417, 7
      %v419 = vsub.s32 %v416, %v418
      %v420 = vrot.slane %v406, %v419
      %v421 = vcombine.high %v413, %v413
      %v422 = vcombine.high %v420, %v420
      %427 = vmatprep.subr.mxu0 0.0
      %428 = vmatpush1.msra.mxu0 %v349
      %429 = vmatprep.subr.mxu0 0.0
      %430 = vmatpush1.msra.mxu0 %v348
      %431 = vmatprep.subr.mxu0 0.0
      %432 = vmatpush1.msra.mxu0 %v347
      %433 = vmatprep.subr.mxu0 0.0
      %434 = vmatpush1.msra.mxu0 %v346
      %435 = vmatprep.subr.mxu0 0.0
      %436 = vmatpush1.msra.mxu0 %v345
      %437 = vmatprep.subr.mxu0 0.0
      %438 = vmatpush1.msra.mxu0 %v344
      %439 = vmatprep.subr.mxu0 0.0
      %440 = vmatpush1.msra.mxu0 %v343
      %441 = vmatprep.subr.mxu0 0.0
      %442 = vmatpush1.msra.mxu0 %v342
      %443 = vmatprep.subr.mxu0 0.0
      %444 = vmatpush1.msra.mxu0 %v341
      %445 = vmatprep.subr.mxu0 0.0
      %446 = vmatpush1.msra.mxu0 %v340
      %447 = vmatprep.subr.mxu0 0.0
      %448 = vmatpush1.msra.mxu0 %v339
      %449 = vmatprep.subr.mxu0 0.0
      %450 = vmatpush1.msra.mxu0 %v338
      %451 = vmatprep.subr.mxu0 0.0
      %452 = vmatpush1.msra.mxu0 %v337
      %453 = vmatprep.subr.mxu0 0.0
      %454 = vmatpush1.msra.mxu0 %v336
      %455 = vmatprep.subr.mxu0 0.0
      %456 = vmatpush1.msra.mxu0 %v335
      %457 = vmatprep.subr.mxu0 0.0
      %458 = vmatpush1.msra.mxu0 %v334
      %459 = vmatprep.subr.mxu0 0.0
      %460 = vmatpush2.msra.mxu0 %v365
      %461 = vmatprep.subr.mxu0 0.0
      %462 = vmatpush2.msra.mxu0 %v364
      %463 = vmatprep.subr.mxu0 0.0
      %464 = vmatpush2.msra.mxu0 %v363
      %465 = vmatprep.subr.mxu0 0.0
      %466 = vmatpush2.msra.mxu0 %v362
      %467 = vmatprep.subr.mxu0 0.0
      %468 = vmatpush2.msra.mxu0 %v361
      %469 = vmatprep.subr.mxu0 0.0
      %470 = vmatpush2.msra.mxu0 %v360
      %471 = vmatprep.subr.mxu0 0.0
      %472 = vmatpush2.msra.mxu0 %v359
      %473 = vmatprep.subr.mxu0 0.0
      %474 = vmatpush2.msra.mxu0 %v358
      %475 = vmatprep.subr.mxu0 0.0
      %476 = vmatpush2.msra.mxu0 %v357
      %477 = vmatprep.subr.mxu0 0.0
      %478 = vmatpush2.msra.mxu0 %v356
      %479 = vmatprep.subr.mxu0 0.0
      %480 = vmatpush2.msra.mxu0 %v355
      %481 = vmatprep.subr.mxu0 0.0
      %482 = vmatpush2.msra.mxu0 %v354
      %483 = vmatprep.subr.mxu0 0.0
      %484 = vmatpush2.msra.mxu0 %v353
      %485 = vmatprep.subr.mxu0 0.0
      %486 = vmatpush2.msra.mxu0 %v352
      %487 = vmatprep.subr.mxu0 0.0
      %488 = vmatpush2.msra.mxu0 %v351
      %489 = vmatprep.subr.mxu0 0.0
      %490 = vmatpush2.msra.mxu0 %v350
      %491 = vmatprep.mubr.f32.mxu0 %v421
      %492 = vmatmul.mubr.f32.gmra.mxu0 %v413
      %v493 = vpop.f32.mrf.mxu0
      %v494 = vadd.f32 %v403, %v493
      %v495 = vpop.f32.mrf.mxu0
      %496 = vdwg.mxu0
      %497 = vmatprep.subr.mxu0 0.0
      %498 = vmatpush1.msra.mxu0 %v381
      %499 = vmatprep.subr.mxu0 0.0
      %500 = vmatpush1.msra.mxu0 %v380
      %501 = vmatprep.subr.mxu0 0.0
      %502 = vmatpush1.msra.mxu0 %v379
      %503 = vmatprep.subr.mxu0 0.0
      %504 = vmatpush1.msra.mxu0 %v378
      %505 = vmatprep.subr.mxu0 0.0
      %506 = vmatpush1.msra.mxu0 %v377
      %507 = vmatprep.subr.mxu0 0.0
      %508 = vmatpush1.msra.mxu0 %v376
      %509 = vmatprep.subr.mxu0 0.0
      %510 = vmatpush1.msra.mxu0 %v375
      %511 = vmatprep.subr.mxu0 0.0
      %512 = vmatpush1.msra.mxu0 %v374
      %513 = vmatprep.subr.mxu0 0.0
      %514 = vmatpush1.msra.mxu0 %v373
      %515 = vmatprep.subr.mxu0 0.0
      %516 = vmatpush1.msra.mxu0 %v372
      %517 = vmatprep.subr.mxu0 0.0
      %518 = vmatpush1.msra.mxu0 %v371
      %519 = vmatprep.subr.mxu0 0.0
      %520 = vmatpush1.msra.mxu0 %v370
      %521 = vmatprep.subr.mxu0 0.0
      %522 = vmatpush1.msra.mxu0 %v369
      %523 = vmatprep.subr.mxu0 0.0
      %524 = vmatpush1.msra.mxu0 %v368
      %525 = vmatprep.subr.mxu0 0.0
      %526 = vmatpush1.msra.mxu0 %v367
      %527 = vmatprep.subr.mxu0 0.0
      %528 = vmatpush1.msra.mxu0 %v366
      %529 = vmatprep.subr.mxu0 0.0
      %530 = vmatpush2.msra.mxu0 %v397
      %531 = vmatprep.subr.mxu0 0.0
      %532 = vmatpush2.msra.mxu0 %v396
      %533 = vmatprep.subr.mxu0 0.0
      %534 = vmatpush2.msra.mxu0 %v395
      %535 = vmatprep.subr.mxu0 0.0
      %536 = vmatpush2.msra.mxu0 %v394
      %537 = vmatprep.subr.mxu0 0.0
      %538 = vmatpush2.msra.mxu0 %v393
      %539 = vmatprep.subr.mxu0 0.0
      %540 = vmatpush2.msra.mxu0 %v392
      %541 = vmatprep.subr.mxu0 0.0
      %542 = vmatpush2.msra.mxu0 %v391
      %543 = vmatprep.subr.mxu0 0.0
      %544 = vmatpush2.msra.mxu0 %v390
      %545 = vmatprep.subr.mxu0 0.0
      %546 = vmatpush2.msra.mxu0 %v389
      %547 = vmatprep.subr.mxu0 0.0
      %548 = vmatpush2.msra.mxu0 %v388
      %549 = vmatprep.subr.mxu0 0.0
      %550 = vmatpush2.msra.mxu0 %v387
      %551 = vmatprep.subr.mxu0 0.0
      %552 = vmatpush2.msra.mxu0 %v386
      %553 = vmatprep.subr.mxu0 0.0
      %554 = vmatpush2.msra.mxu0 %v385
      %555 = vmatprep.subr.mxu0 0.0
      %556 = vmatpush2.msra.mxu0 %v384
      %557 = vmatprep.subr.mxu0 0.0
      %558 = vmatpush2.msra.mxu0 %v383
      %559 = vmatprep.subr.mxu0 0.0
      %560 = vmatpush2.msra.mxu0 %v382
      %561 = vmatprep.mubr.f32.mxu0 %v422
      %562 = vmatmul.mubr.f32.gmra.mxu0 %v420
      %v563 = vpop.f32.mrf.mxu0
      %v564 = vadd.f32 %v494, %v563
      %v565 = vpop.f32.mrf.mxu0
      %566 = vdwg.mxu0
      %v567 = vld [vmem:[%s3] sm:$0xff]
      %v568 = vld [vmem:[%s3 + $0x8] sm:$0xff]
      %v569 = vld [vmem:[%s3 + $0x10] sm:$0xff]
      %v570 = vld [vmem:[%s3 + $0x18] sm:$0xff]
      %v571 = vld [vmem:[%s4] sm:$0x1]
      %v573 = vlaneseq
      %v574 = vshrl.u32 %v573, 7
      %v575 = vsub.s32 0, %v574
      %v576 = vrot.slane %v571, %v575
      %vm578 = vcmask 261120
      %v580 = vsel %vm578, %v564, 0
      %582 = vmatprep.subr.mxu0 0.0
      %583 = vmatpush1.msra.mxu0 0.0
      %584 = vmatprep.subr.mxu0 0.0
      %585 = vmatpush1.msra.mxu0 0.0
      %586 = vmatprep.subr.mxu0 0.0
      %587 = vmatpush1.msra.mxu0 0.0
      %588 = vmatprep.subr.mxu0 0.0
      %589 = vmatpush1.msra.mxu0 0.0
      %590 = vmatprep.subr.mxu0 0.0
      %591 = vmatpush1.msra.mxu0 0.0
      %592 = vmatprep.subr.mxu0 0.0
      %593 = vmatpush1.msra.mxu0 0.0
      %594 = vmatprep.subr.mxu0 0.0
      %595 = vmatpush1.msra.mxu0 0.0
      %596 = vmatprep.subr.mxu0 0.0
      %597 = vmatpush1.msra.mxu0 0.0
      %598 = vmatprep.subr.mxu0 0.0
      %599 = vmatpush1.msra.mxu0 0.0
      %600 = vmatprep.subr.mxu0 0.0
      %601 = vmatpush1.msra.mxu0 0.0
      %602 = vmatprep.subr.mxu0 0.0
      %603 = vmatpush1.msra.mxu0 0.0
      %604 = vmatprep.subr.mxu0 0.0
      %605 = vmatpush1.msra.mxu0 0.0
      %606 = vmatprep.subr.mxu0 0.0
      %607 = vmatpush1.msra.mxu0 %v570
      %608 = vmatprep.subr.mxu0 0.0
      %609 = vmatpush1.msra.mxu0 %v569
      %610 = vmatprep.subr.mxu0 0.0
      %611 = vmatpush1.msra.mxu0 %v568
      %612 = vmatprep.subr.mxu0 0.0
      %613 = vmatpush1.msra.mxu0 %v567
      %614 = vmatprep.subr.mxu0 0.0
      %615 = vmatpush2.msra.mxu0 0.0
      %616 = vmatprep.subr.mxu0 0.0
      %617 = vmatpush2.msra.mxu0 0.0
      %618 = vmatprep.subr.mxu0 0.0
      %619 = vmatpush2.msra.mxu0 0.0
      %620 = vmatprep.subr.mxu0 0.0
      %621 = vmatpush2.msra.mxu0 0.0
      %622 = vmatprep.subr.mxu0 0.0
      %623 = vmatpush2.msra.mxu0 0.0
      %624 = vmatprep.subr.mxu0 0.0
      %625 = vmatpush2.msra.mxu0 0.0
      %626 = vmatprep.subr.mxu0 0.0
      %627 = vmatpush2.msra.mxu0 0.0
      %628 = vmatprep.subr.mxu0 0.0
      %629 = vmatpush2.msra.mxu0 0.0
      %630 = vmatprep.subr.mxu0 0.0
      %631 = vmatpush2.msra.mxu0 0.0
      %632 = vmatprep.subr.mxu0 0.0
      %633 = vmatpush2.msra.mxu0 0.0
      %634 = vmatprep.subr.mxu0 0.0
      %635 = vmatpush2.msra.mxu0 0.0
      %636 = vmatprep.subr.mxu0 0.0
      %637 = vmatpush2.msra.mxu0 0.0
      %638 = vmatprep.subr.mxu0 0.0
      %639 = vmatpush2.msra.mxu0 0.0
      %640 = vmatprep.subr.mxu0 0.0
      %641 = vmatpush2.msra.mxu0 0.0
      %642 = vmatprep.subr.mxu0 0.0
      %643 = vmatpush2.msra.mxu0 0.0
      %644 = vmatprep.subr.mxu0 0.0
      %645 = vmatpush2.msra.mxu0 0.0
      %646 = vmatprep.mubr.f32.mxu0 0.0
      %647 = vmatmul.mubr.f32.gmra.mxu0 %v580
      %v648 = vpop.f32.mrf.mxu0
      %v649 = vadd.f32 %v576, %v648
      %v650 = vpop.f32.mrf.mxu0
      %651 = vdwg.mxu0
      %653 = vrot.lane.b32.xlu0 %v649, 96
      %v654 = vpop.permute.xlu0 %653
      %vm655 = vcmask 31744
      %v656 = vsel %vm655, %v649, 0
      %v658 = vsel %vm655, %v654, 0
      %660 = vmatprep.subr.mxu0 0.0
      %661 = vmatpush1.xpose.msra.mxu0 0.0
      %662 = vmatprep.subr.mxu0 0.0
      %663 = vmatpush1.xpose.msra.mxu0 0.0
      %664 = vmatprep.subr.mxu0 0.0
      %665 = vmatpush1.xpose.msra.mxu0 0.0
      %666 = vmatprep.subr.mxu0 0.0
      %667 = vmatpush1.xpose.msra.mxu0 0.0
      %668 = vmatprep.subr.mxu0 0.0
      %669 = vmatpush1.xpose.msra.mxu0 0.0
      %670 = vmatprep.subr.mxu0 0.0
      %671 = vmatpush1.xpose.msra.mxu0 0.0
      %672 = vmatprep.subr.mxu0 0.0
      %673 = vmatpush1.xpose.msra.mxu0 0.0
      %674 = vmatprep.subr.mxu0 0.0
      %675 = vmatpush1.xpose.msra.mxu0 0.0
      %676 = vmatprep.subr.mxu0 0.0
      %677 = vmatpush1.xpose.msra.mxu0 0.0
      %678 = vmatprep.subr.mxu0 0.0
      %679 = vmatpush1.xpose.msra.mxu0 0.0
      %680 = vmatprep.subr.mxu0 0.0
      %681 = vmatpush1.xpose.msra.mxu0 0.0
      %682 = vmatprep.subr.mxu0 0.0
      %683 = vmatpush1.xpose.msra.mxu0 0.0
      %684 = vmatprep.subr.mxu0 0.0
      %685 = vmatpush1.xpose.msra.mxu0 0.0
      %686 = vmatprep.subr.mxu0 0.0
      %687 = vmatpush1.xpose.msra.mxu0 0.0
      %688 = vmatprep.subr.mxu0 0.0
      %689 = vmatpush1.xpose.msra.mxu0 0.0
      %690 = vmatprep.subr.mxu0 0.0
      %691 = vmatpush1.xpose.msra.mxu0 %v658
      %692 = vmatprep.subr.mxu0 0.0
      %693 = vmatpush2.xpose.msra.mxu0 0.0
      %694 = vmatprep.subr.mxu0 0.0
      %695 = vmatpush2.xpose.msra.mxu0 0.0
      %696 = vmatprep.subr.mxu0 0.0
      %697 = vmatpush2.xpose.msra.mxu0 0.0
      %698 = vmatprep.subr.mxu0 0.0
      %699 = vmatpush2.xpose.msra.mxu0 0.0
      %700 = vmatprep.subr.mxu0 0.0
      %701 = vmatpush2.xpose.msra.mxu0 0.0
      %702 = vmatprep.subr.mxu0 0.0
      %703 = vmatpush2.xpose.msra.mxu0 0.0
      %704 = vmatprep.subr.mxu0 0.0
      %705 = vmatpush2.xpose.msra.mxu0 0.0
      %706 = vmatprep.subr.mxu0 0.0
      %707 = vmatpush2.xpose.msra.mxu0 0.0
      %708 = vmatprep.subr.mxu0 0.0
      %709 = vmatpush2.xpose.msra.mxu0 0.0
      %710 = vmatprep.subr.mxu0 0.0
      %711 = vmatpush2.xpose.msra.mxu0 0.0
      %712 = vmatprep.subr.mxu0 0.0
      %713 = vmatpush2.xpose.msra.mxu0 0.0
      %714 = vmatprep.subr.mxu0 0.0
      %715 = vmatpush2.xpose.msra.mxu0 0.0
      %716 = vmatprep.subr.mxu0 0.0
      %717 = vmatpush2.xpose.msra.mxu0 0.0
      %718 = vmatprep.subr.mxu0 0.0
      %719 = vmatpush2.xpose.msra.mxu0 0.0
      %720 = vmatprep.subr.mxu0 0.0
      %721 = vmatpush2.xpose.msra.mxu0 0.0
      %722 = vmatprep.subr.mxu0 0.0
      %723 = vmatpush2.xpose.msra.mxu0 0.0
      %724 = vmatprep.mubr.f32.mxu0 0.0
      %725 = vmatmul.mubr.f32.gmra.mxu0 %v656
      %v726 = vpop.f32.mrf.mxu0
      %v727 = vadd.f32 0.0, %v726
      %v728 = vpop.f32.mrf.mxu0
      %729 = vdwg.mxu0
      %vm730 = vcmask 9216
      %v731 = vsel %vm730, %v727, -inf
      %732 = vmax.xlane.f32.xlu0 %v731
      %v733 = vpop.xlane.xlu0 %732
      %v734 = vsub.f32 %v727, %v733
      %v735 = vmul.f32 %v734, 1.442695
      %v736 = vpow.pop %v735
      %v737 = vsel %vm730, %v736, 0.0
      %738 = vadd.xlane.f32.xlu0 %v737
      %v739 = vpop.xlane.xlu0 %738
      %v740 = vrcp.pop %v739
      %v741 = vmul.f32 %v736, %v740
      %742 = vrot.lane.b32.xlu0 %v649, 64
      %v743 = vpop.permute.xlu0 %742
      %vm744 = vcmask 15360
      %v746 = vsel %vm744, %v741, 0
      %vm748 = vcmask 1041408
      %v749 = vsel %vm748, %v743, 0
      %751 = vmatprep.subr.mxu0 0.0
      %752 = vmatpush1.msra.mxu0 0.0
      %753 = vmatprep.subr.mxu0 0.0
      %754 = vmatpush1.msra.mxu0 0.0
      %755 = vmatprep.subr.mxu0 0.0
      %756 = vmatpush1.msra.mxu0 0.0
      %757 = vmatprep.subr.mxu0 0.0
      %758 = vmatpush1.msra.mxu0 0.0
      %759 = vmatprep.subr.mxu0 0.0
      %760 = vmatpush1.msra.mxu0 0.0
      %761 = vmatprep.subr.mxu0 0.0
      %762 = vmatpush1.msra.mxu0 0.0
      %763 = vmatprep.subr.mxu0 0.0
      %764 = vmatpush1.msra.mxu0 0.0
      %765 = vmatprep.subr.mxu0 0.0
      %766 = vmatpush1.msra.mxu0 0.0
      %767 = vmatprep.subr.mxu0 0.0
      %768 = vmatpush1.msra.mxu0 0.0
      %769 = vmatprep.subr.mxu0 0.0
      %770 = vmatpush1.msra.mxu0 0.0
      %771 = vmatprep.subr.mxu0 0.0
      %772 = vmatpush1.msra.mxu0 0.0
      %773 = vmatprep.subr.mxu0 0.0
      %774 = vmatpush1.msra.mxu0 0.0
      %775 = vmatprep.subr.mxu0 0.0
      %776 = vmatpush1.msra.mxu0 0.0
      %777 = vmatprep.subr.mxu0 0.0
      %778 = vmatpush1.msra.mxu0 0.0
      %779 = vmatprep.subr.mxu0 0.0
      %780 = vmatpush1.msra.mxu0 0.0
      %781 = vmatprep.subr.mxu0 0.0
      %782 = vmatpush1.msra.mxu0 %v749
      %783 = vmatprep.subr.mxu0 0.0
      %784 = vmatpush2.msra.mxu0 0.0
      %785 = vmatprep.subr.mxu0 0.0
      %786 = vmatpush2.msra.mxu0 0.0
      %787 = vmatprep.subr.mxu0 0.0
      %788 = vmatpush2.msra.mxu0 0.0
      %789 = vmatprep.subr.mxu0 0.0
      %790 = vmatpush2.msra.mxu0 0.0
      %791 = vmatprep.subr.mxu0 0.0
      %792 = vmatpush2.msra.mxu0 0.0
      %793 = vmatprep.subr.mxu0 0.0
      %794 = vmatpush2.msra.mxu0 0.0
      %795 = vmatprep.subr.mxu0 0.0
      %796 = vmatpush2.msra.mxu0 0.0
      %797 = vmatprep.subr.mxu0 0.0
      %798 = vmatpush2.msra.mxu0 0.0
      %799 = vmatprep.subr.mxu0 0.0
      %800 = vmatpush2.msra.mxu0 0.0
      %801 = vmatprep.subr.mxu0 0.0
      %802 = vmatpush2.msra.mxu0 0.0
      %803 = vmatprep.subr.mxu0 0.0
      %804 = vmatpush2.msra.mxu0 0.0
      %805 = vmatprep.subr.mxu0 0.0
      %806 = vmatpush2.msra.mxu0 0.0
      %807 = vmatprep.subr.mxu0 0.0
      %808 = vmatpush2.msra.mxu0 0.0
      %809 = vmatprep.subr.mxu0 0.0
      %810 = vmatpush2.msra.mxu0 0.0
      %811 = vmatprep.subr.mxu0 0.0
      %812 = vmatpush2.msra.mxu0 0.0
      %813 = vmatprep.subr.mxu0 0.0
      %814 = vmatpush2.msra.mxu0 0.0
      %815 = vmatprep.mubr.f32.mxu0 0.0
      %816 = vmatmul.mubr.f32.gmra.mxu0 %v746
      %v817 = vpop.f32.mrf.mxu0
      %v818 = vadd.f32 0.0, %v817
      %v819 = vpop.f32.mrf.mxu0
      %820 = vdwg.mxu0
      %v821 = vld [vmem:[%s5] sm:$0xf]
      %822 = vrot.lane.b32.xlu0 %v649, 124
      %v823 = vpop.permute.xlu0 %822
      %824 = vrot.lane.b32.xlu0 %v649, 92
      %v825 = vpop.permute.xlu0 %824
      %v826 = vsel %vm655, %v823, 0
      %v828 = vsel %vm655, %v825, 0
      %830 = vmatprep.subr.mxu0 0.0
      %831 = vmatpush1.xpose.msra.mxu0 0.0
      %832 = vmatprep.subr.mxu0 0.0
      %833 = vmatpush1.xpose.msra.mxu0 0.0
      %834 = vmatprep.subr.mxu0 0.0
      %835 = vmatpush1.xpose.msra.mxu0 0.0
      %836 = vmatprep.subr.mxu0 0.0
      %837 = vmatpush1.xpose.msra.mxu0 0.0
      %838 = vmatprep.subr.mxu0 0.0
      %839 = vmatpush1.xpose.msra.mxu0 0.0
      %840 = vmatprep.subr.mxu0 0.0
      %841 = vmatpush1.xpose.msra.mxu0 0.0
      %842 = vmatprep.subr.mxu0 0.0
      %843 = vmatpush1.xpose.msra.mxu0 0.0
      %844 = vmatprep.subr.mxu0 0.0
      %845 = vmatpush1.xpose.msra.mxu0 0.0
      %846 = vmatprep.subr.mxu0 0.0
      %847 = vmatpush1.xpose.msra.mxu0 0.0
      %848 = vmatprep.subr.mxu0 0.0
      %849 = vmatpush1.xpose.msra.mxu0 0.0
      %850 = vmatprep.subr.mxu0 0.0
      %851 = vmatpush1.xpose.msra.mxu0 0.0
      %852 = vmatprep.subr.mxu0 0.0
      %853 = vmatpush1.xpose.msra.mxu0 0.0
      %854 = vmatprep.subr.mxu0 0.0
      %855 = vmatpush1.xpose.msra.mxu0 0.0
      %856 = vmatprep.subr.mxu0 0.0
      %857 = vmatpush1.xpose.msra.mxu0 0.0
      %858 = vmatprep.subr.mxu0 0.0
      %859 = vmatpush1.xpose.msra.mxu0 0.0
      %860 = vmatprep.subr.mxu0 0.0
      %861 = vmatpush1.xpose.msra.mxu0 %v828
      %862 = vmatprep.subr.mxu0 0.0
      %863 = vmatpush2.xpose.msra.mxu0 0.0
      %864 = vmatprep.subr.mxu0 0.0
      %865 = vmatpush2.xpose.msra.mxu0 0.0
      %866 = vmatprep.subr.mxu0 0.0
      %867 = vmatpush2.xpose.msra.mxu0 0.0
      %868 = vmatprep.subr.mxu0 0.0
      %869 = vmatpush2.xpose.msra.mxu0 0.0
      %870 = vmatprep.subr.mxu0 0.0
      %871 = vmatpush2.xpose.msra.mxu0 0.0
      %872 = vmatprep.subr.mxu0 0.0
      %873 = vmatpush2.xpose.msra.mxu0 0.0
      %874 = vmatprep.subr.mxu0 0.0
      %875 = vmatpush2.xpose.msra.mxu0 0.0
      %876 = vmatprep.subr.mxu0 0.0
      %877 = vmatpush2.xpose.msra.mxu0 0.0
      %878 = vmatprep.subr.mxu0 0.0
      %879 = vmatpush2.xpose.msra.mxu0 0.0
      %880 = vmatprep.subr.mxu0 0.0
      %881 = vmatpush2.xpose.msra.mxu0 0.0
      %882 = vmatprep.subr.mxu0 0.0
      %883 = vmatpush2.xpose.msra.mxu0 0.0
      %884 = vmatprep.subr.mxu0 0.0
      %885 = vmatpush2.xpose.msra.mxu0 0.0
      %886 = vmatprep.subr.mxu0 0.0
      %887 = vmatpush2.xpose.msra.mxu0 0.0
      %888 = vmatprep.subr.mxu0 0.0
      %889 = vmatpush2.xpose.msra.mxu0 0.0
      %890 = vmatprep.subr.mxu0 0.0
      %891 = vmatpush2.xpose.msra.mxu0 0.0
      %892 = vmatprep.subr.mxu0 0.0
      %893 = vmatpush2.xpose.msra.mxu0 0.0
      %894 = vmatprep.mubr.f32.mxu0 0.0
      %895 = vmatmul.mubr.f32.gmra.mxu0 %v826
      %v896 = vpop.f32.mrf.mxu0
      %v897 = vadd.f32 0.0, %v896
      %v898 = vpop.f32.mrf.mxu0
      %899 = vdwg.mxu0
      %v900 = vsel %vm730, %v897, -inf
      %901 = vmax.xlane.f32.xlu0 %v900
      %v902 = vpop.xlane.xlu0 %901
      %v903 = vsub.f32 %v897, %v902
      %v904 = vmul.f32 %v903, 1.442695
      %v905 = vpow.pop %v904
      %v906 = vsel %vm730, %v905, 0.0
      %907 = vadd.xlane.f32.xlu0 %v906
      %v908 = vpop.xlane.xlu0 %907
      %v909 = vrcp.pop %v908
      %v910 = vmul.f32 %v905, %v909
      %911 = vrot.lane.b32.xlu0 %v649, 60
      %v912 = vpop.permute.xlu0 %911
      %v914 = vsel %vm744, %v910, 0
      %v916 = vsel %vm748, %v912, 0
      %918 = vmatprep.subr.mxu0 0.0
      %919 = vmatpush1.msra.mxu0 0.0
      %920 = vmatprep.subr.mxu0 0.0
      %921 = vmatpush1.msra.mxu0 0.0
      %922 = vmatprep.subr.mxu0 0.0
      %923 = vmatpush1.msra.mxu0 0.0
      %924 = vmatprep.subr.mxu0 0.0
      %925 = vmatpush1.msra.mxu0 0.0
      %926 = vmatprep.subr.mxu0 0.0
      %927 = vmatpush1.msra.mxu0 0.0
      %928 = vmatprep.subr.mxu0 0.0
      %929 = vmatpush1.msra.mxu0 0.0
      %930 = vmatprep.subr.mxu0 0.0
      %931 = vmatpush1.msra.mxu0 0.0
      %932 = vmatprep.subr.mxu0 0.0
      %933 = vmatpush1.msra.mxu0 0.0
      %934 = vmatprep.subr.mxu0 0.0
      %935 = vmatpush1.msra.mxu0 0.0
      %936 = vmatprep.subr.mxu0 0.0
      %937 = vmatpush1.msra.mxu0 0.0
      %938 = vmatprep.subr.mxu0 0.0
      %939 = vmatpush1.msra.mxu0 0.0
      %940 = vmatprep.subr.mxu0 0.0
      %941 = vmatpush1.msra.mxu0 0.0
      %942 = vmatprep.subr.mxu0 0.0
      %943 = vmatpush1.msra.mxu0 0.0
      %944 = vmatprep.subr.mxu0 0.0
      %945 = vmatpush1.msra.mxu0 0.0
      %946 = vmatprep.subr.mxu0 0.0
      %947 = vmatpush1.msra.mxu0 0.0
      %948 = vmatprep.subr.mxu0 0.0
      %949 = vmatpush1.msra.mxu0 %v916
      %950 = vmatprep.subr.mxu0 0.0
      %951 = vmatpush2.msra.mxu0 0.0
      %952 = vmatprep.subr.mxu0 0.0
      %953 = vmatpush2.msra.mxu0 0.0
      %954 = vmatprep.subr.mxu0 0.0
      %955 = vmatpush2.msra.mxu0 0.0
      %956 = vmatprep.subr.mxu0 0.0
      %957 = vmatpush2.msra.mxu0 0.0
      %958 = vmatprep.subr.mxu0 0.0
      %959 = vmatpush2.msra.mxu0 0.0
      %960 = vmatprep.subr.mxu0 0.0
      %961 = vmatpush2.msra.mxu0 0.0
      %962 = vmatprep.subr.mxu0 0.0
      %963 = vmatpush2.msra.mxu0 0.0
      %964 = vmatprep.subr.mxu0 0.0
      %965 = vmatpush2.msra.mxu0 0.0
      %966 = vmatprep.subr.mxu0 0.0
      %967 = vmatpush2.msra.mxu0 0.0
      %968 = vmatprep.subr.mxu0 0.0
      %969 = vmatpush2.msra.mxu0 0.0
      %970 = vmatprep.subr.mxu0 0.0
      %971 = vmatpush2.msra.mxu0 0.0
      %972 = vmatprep.subr.mxu0 0.0
      %973 = vmatpush2.msra.mxu0 0.0
      %974 = vmatprep.subr.mxu0 0.0
      %975 = vmatpush2.msra.mxu0 0.0
      %976 = vmatprep.subr.mxu0 0.0
      %977 = vmatpush2.msra.mxu0 0.0
      %978 = vmatprep.subr.mxu0 0.0
      %979 = vmatpush2.msra.mxu0 0.0
      %980 = vmatprep.subr.mxu0 0.0
      %981 = vmatpush2.msra.mxu0 0.0
      %982 = vmatprep.mubr.f32.mxu0 0.0
      %983 = vmatmul.mubr.f32.gmra.mxu0 %v914
      %v984 = vpop.f32.mrf.mxu0
      %v985 = vadd.f32 0.0, %v984
      %v986 = vpop.f32.mrf.mxu0
      %987 = vdwg.mxu0
      %s988 = scalar_lea.vmem %s5, 4
      %v989 = vld [vmem:[%s988] sm:$0xf]
      %v991 = vsel %vm655, %v985, 0
      %vm993 = vcmask 1043456
      %v995 = vsel %vm993, %v989, 0
      %997 = vmatprep.subr.mxu0 0.0
      %998 = vmatpush1.msra.mxu0 0.0
      %999 = vmatprep.subr.mxu0 0.0
      %1000 = vmatpush1.msra.mxu0 0.0
      %1001 = vmatprep.subr.mxu0 0.0
      %1002 = vmatpush1.msra.mxu0 0.0
      %1003 = vmatprep.subr.mxu0 0.0
      %1004 = vmatpush1.msra.mxu0 0.0
      %1005 = vmatprep.subr.mxu0 0.0
      %1006 = vmatpush1.msra.mxu0 0.0
      %1007 = vmatprep.subr.mxu0 0.0
      %1008 = vmatpush1.msra.mxu0 0.0
      %1009 = vmatprep.subr.mxu0 0.0
      %1010 = vmatpush1.msra.mxu0 0.0
      %1011 = vmatprep.subr.mxu0 0.0
      %1012 = vmatpush1.msra.mxu0 0.0
      %1013 = vmatprep.subr.mxu0 0.0
      %1014 = vmatpush1.msra.mxu0 0.0
      %1015 = vmatprep.subr.mxu0 0.0
      %1016 = vmatpush1.msra.mxu0 0.0
      %1017 = vmatprep.subr.mxu0 0.0
      %1018 = vmatpush1.msra.mxu0 0.0
      %1019 = vmatprep.subr.mxu0 0.0
      %1020 = vmatpush1.msra.mxu0 0.0
      %1021 = vmatprep.subr.mxu0 0.0
      %1022 = vmatpush1.msra.mxu0 0.0
      %1023 = vmatprep.subr.mxu0 0.0
      %1024 = vmatpush1.msra.mxu0 0.0
      %1025 = vmatprep.subr.mxu0 0.0
      %1026 = vmatpush1.msra.mxu0 0.0
      %1027 = vmatprep.subr.mxu0 0.0
      %1028 = vmatpush1.msra.mxu0 %v995
      %1029 = vmatprep.subr.mxu0 0.0
      %1030 = vmatpush2.msra.mxu0 0.0
      %1031 = vmatprep.subr.mxu0 0.0
      %1032 = vmatpush2.msra.mxu0 0.0
      %1033 = vmatprep.subr.mxu0 0.0
      %1034 = vmatpush2.msra.mxu0 0.0
      %1035 = vmatprep.subr.mxu0 0.0
      %1036 = vmatpush2.msra.mxu0 0.0
      %1037 = vmatprep.subr.mxu0 0.0
      %1038 = vmatpush2.msra.mxu0 0.0
      %1039 = vmatprep.subr.mxu0 0.0
      %1040 = vmatpush2.msra.mxu0 0.0
      %1041 = vmatprep.subr.mxu0 0.0
      %1042 = vmatpush2.msra.mxu0 0.0
      %1043 = vmatprep.subr.mxu0 0.0
      %1044 = vmatpush2.msra.mxu0 0.0
      %1045 = vmatprep.subr.mxu0 0.0
      %1046 = vmatpush2.msra.mxu0 0.0
      %1047 = vmatprep.subr.mxu0 0.0
      %1048 = vmatpush2.msra.mxu0 0.0
      %1049 = vmatprep.subr.mxu0 0.0
      %1050 = vmatpush2.msra.mxu0 0.0
      %1051 = vmatprep.subr.mxu0 0.0
      %1052 = vmatpush2.msra.mxu0 0.0
      %1053 = vmatprep.subr.mxu0 0.0
      %1054 = vmatpush2.msra.mxu0 0.0
      %1055 = vmatprep.subr.mxu0 0.0
      %1056 = vmatpush2.msra.mxu0 0.0
      %1057 = vmatprep.subr.mxu0 0.0
      %1058 = vmatpush2.msra.mxu0 0.0
      %1059 = vmatprep.subr.mxu0 0.0
      %1060 = vmatpush2.msra.mxu0 0.0
      %1061 = vmatprep.mubr.f32.mxu0 0.0
      %1062 = vmatmul.mubr.f32.gmra.mxu0 %v991
      %v1063 = vpop.f32.mrf.mxu0
      %v1064 = vadd.f32 0.0, %v1063
      %v1065 = vpop.f32.mrf.mxu0
      %1066 = vdwg.mxu0
      %v1068 = vsel %vm655, %v818, 0
      %v1071 = vsel %vm993, %v821, 0
      %1073 = vmatprep.subr.mxu0 0.0
      %1074 = vmatpush1.msra.mxu0 0.0
      %1075 = vmatprep.subr.mxu0 0.0
      %1076 = vmatpush1.msra.mxu0 0.0
      %1077 = vmatprep.subr.mxu0 0.0
      %1078 = vmatpush1.msra.mxu0 0.0
      %1079 = vmatprep.subr.mxu0 0.0
      %1080 = vmatpush1.msra.mxu0 0.0
      %1081 = vmatprep.subr.mxu0 0.0
      %1082 = vmatpush1.msra.mxu0 0.0
      %1083 = vmatprep.subr.mxu0 0.0
      %1084 = vmatpush1.msra.mxu0 0.0
      %1085 = vmatprep.subr.mxu0 0.0
      %1086 = vmatpush1.msra.mxu0 0.0
      %1087 = vmatprep.subr.mxu0 0.0
      %1088 = vmatpush1.msra.mxu0 0.0
      %1089 = vmatprep.subr.mxu0 0.0
      %1090 = vmatpush1.msra.mxu0 0.0
      %1091 = vmatprep.subr.mxu0 0.0
      %1092 = vmatpush1.msra.mxu0 0.0
      %1093 = vmatprep.subr.mxu0 0.0
      %1094 = vmatpush1.msra.mxu0 0.0
      %1095 = vmatprep.subr.mxu0 0.0
      %1096 = vmatpush1.msra.mxu0 0.0
      %1097 = vmatprep.subr.mxu0 0.0
      %1098 = vmatpush1.msra.mxu0 0.0
      %1099 = vmatprep.subr.mxu0 0.0
      %1100 = vmatpush1.msra.mxu0 0.0
      %1101 = vmatprep.subr.mxu0 0.0
      %1102 = vmatpush1.msra.mxu0 0.0
      %1103 = vmatprep.subr.mxu0 0.0
      %1104 = vmatpush1.msra.mxu0 %v1071
      %1105 = vmatprep.subr.mxu0 0.0
      %1106 = vmatpush2.msra.mxu0 0.0
      %1107 = vmatprep.subr.mxu0 0.0
      %1108 = vmatpush2.msra.mxu0 0.0
      %1109 = vmatprep.subr.mxu0 0.0
      %1110 = vmatpush2.msra.mxu0 0.0
      %1111 = vmatprep.subr.mxu0 0.0
      %1112 = vmatpush2.msra.mxu0 0.0
      %1113 = vmatprep.subr.mxu0 0.0
      %1114 = vmatpush2.msra.mxu0 0.0
      %1115 = vmatprep.subr.mxu0 0.0
      %1116 = vmatpush2.msra.mxu0 0.0
      %1117 = vmatprep.subr.mxu0 0.0
      %1118 = vmatpush2.msra.mxu0 0.0
      %1119 = vmatprep.subr.mxu0 0.0
      %1120 = vmatpush2.msra.mxu0 0.0
      %1121 = vmatprep.subr.mxu0 0.0
      %1122 = vmatpush2.msra.mxu0 0.0
      %1123 = vmatprep.subr.mxu0 0.0
      %1124 = vmatpush2.msra.mxu0 0.0
      %1125 = vmatprep.subr.mxu0 0.0
      %1126 = vmatpush2.msra.mxu0 0.0
      %1127 = vmatprep.subr.mxu0 0.0
      %1128 = vmatpush2.msra.mxu0 0.0
      %1129 = vmatprep.subr.mxu0 0.0
      %1130 = vmatpush2.msra.mxu0 0.0
      %1131 = vmatprep.subr.mxu0 0.0
      %1132 = vmatpush2.msra.mxu0 0.0
      %1133 = vmatprep.subr.mxu0 0.0
      %1134 = vmatpush2.msra.mxu0 0.0
      %1135 = vmatprep.subr.mxu0 0.0
      %1136 = vmatpush2.msra.mxu0 0.0
      %1137 = vmatprep.mubr.f32.mxu0 0.0
      %1138 = vmatmul.mubr.f32.gmra.mxu0 %v1068
      %v1139 = vpop.f32.mrf.mxu0
      %v1140 = vadd.f32 %v1064, %v1139
      %v1141 = vpop.f32.mrf.mxu0
      %1142 = vdwg.mxu0
      %1143 = vrot.lane.b32.xlu0 %v649, 120
      %v1144 = vpop.permute.xlu0 %1143
      %1145 = vrot.lane.b32.xlu0 %v649, 88
      %v1146 = vpop.permute.xlu0 %1145
      %v1147 = vsel %vm655, %v1144, 0
      %v1149 = vsel %vm655, %v1146, 0
      %1151 = vmatprep.subr.mxu0 0.0
      %1152 = vmatpush1.xpose.msra.mxu0 0.0
      %1153 = vmatprep.subr.mxu0 0.0
      %1154 = vmatpush1.xpose.msra.mxu0 0.0
      %1155 = vmatprep.subr.mxu0 0.0
      %1156 = vmatpush1.xpose.msra.mxu0 0.0
      %1157 = vmatprep.subr.mxu0 0.0
      %1158 = vmatpush1.xpose.msra.mxu0 0.0
      %1159 = vmatprep.subr.mxu0 0.0
      %1160 = vmatpush1.xpose.msra.mxu0 0.0
      %1161 = vmatprep.subr.mxu0 0.0
      %1162 = vmatpush1.xpose.msra.mxu0 0.0
      %1163 = vmatprep.subr.mxu0 0.0
      %1164 = vmatpush1.xpose.msra.mxu0 0.0
      %1165 = vmatprep.subr.mxu0 0.0
      %1166 = vmatpush1.xpose.msra.mxu0 0.0
      %1167 = vmatprep.subr.mxu0 0.0
      %1168 = vmatpush1.xpose.msra.mxu0 0.0
      %1169 = vmatprep.subr.mxu0 0.0
      %1170 = vmatpush1.xpose.msra.mxu0 0.0
      %1171 = vmatprep.subr.mxu0 0.0
      %1172 = vmatpush1.xpose.msra.mxu0 0.0
      %1173 = vmatprep.subr.mxu0 0.0
      %1174 = vmatpush1.xpose.msra.mxu0 0.0
      %1175 = vmatprep.subr.mxu0 0.0
      %1176 = vmatpush1.xpose.msra.mxu0 0.0
      %1177 = vmatprep.subr.mxu0 0.0
      %1178 = vmatpush1.xpose.msra.mxu0 0.0
      %1179 = vmatprep.subr.mxu0 0.0
      %1180 = vmatpush1.xpose.msra.mxu0 0.0
      %1181 = vmatprep.subr.mxu0 0.0
      %1182 = vmatpush1.xpose.msra.mxu0 %v1149
      %1183 = vmatprep.subr.mxu0 0.0
      %1184 = vmatpush2.xpose.msra.mxu0 0.0
      %1185 = vmatprep.subr.mxu0 0.0
      %1186 = vmatpush2.xpose.msra.mxu0 0.0
      %1187 = vmatprep.subr.mxu0 0.0
      %1188 = vmatpush2.xpose.msra.mxu0 0.0
      %1189 = vmatprep.subr.mxu0 0.0
      %1190 = vmatpush2.xpose.msra.mxu0 0.0
      %1191 = vmatprep.subr.mxu0 0.0
      %1192 = vmatpush2.xpose.msra.mxu0 0.0
      %1193 = vmatprep.subr.mxu0 0.0
      %1194 = vmatpush2.xpose.msra.mxu0 0.0
      %1195 = vmatprep.subr.mxu0 0.0
      %1196 = vmatpush2.xpose.msra.mxu0 0.0
      %1197 = vmatprep.subr.mxu0 0.0
      %1198 = vmatpush2.xpose.msra.mxu0 0.0
      %1199 = vmatprep.subr.mxu0 0.0
      %1200 = vmatpush2.xpose.msra.mxu0 0.0
      %1201 = vmatprep.subr.mxu0 0.0
      %1202 = vmatpush2.xpose.msra.mxu0 0.0
      %1203 = vmatprep.subr.mxu0 0.0
      %1204 = vmatpush2.xpose.msra.mxu0 0.0
      %1205 = vmatprep.subr.mxu0 0.0
      %1206 = vmatpush2.xpose.msra.mxu0 0.0
      %1207 = vmatprep.subr.mxu0 0.0
      %1208 = vmatpush2.xpose.msra.mxu0 0.0
      %1209 = vmatprep.subr.mxu0 0.0
      %1210 = vmatpush2.xpose.msra.mxu0 0.0
      %1211 = vmatprep.subr.mxu0 0.0
      %1212 = vmatpush2.xpose.msra.mxu0 0.0
      %1213 = vmatprep.subr.mxu0 0.0
      %1214 = vmatpush2.xpose.msra.mxu0 0.0
      %1215 = vmatprep.mubr.f32.mxu0 0.0
      %1216 = vmatmul.mubr.f32.gmra.mxu0 %v1147
      %v1217 = vpop.f32.mrf.mxu0
      %v1218 = vadd.f32 0.0, %v1217
      %v1219 = vpop.f32.mrf.mxu0
      %1220 = vdwg.mxu0
      %v1221 = vsel %vm730, %v1218, -inf
      %1222 = vmax.xlane.f32.xlu0 %v1221
      %v1223 = vpop.xlane.xlu0 %1222
      %v1224 = vsub.f32 %v1218, %v1223
      %v1225 = vmul.f32 %v1224, 1.442695
      %v1226 = vpow.pop %v1225
      %v1227 = vsel %vm730, %v1226, 0.0
      %1228 = vadd.xlane.f32.xlu0 %v1227
      %v1229 = vpop.xlane.xlu0 %1228
      %v1230 = vrcp.pop %v1229
      %v1231 = vmul.f32 %v1226, %v1230
      %1232 = vrot.lane.b32.xlu0 %v649, 56
      %v1233 = vpop.permute.xlu0 %1232
      %v1235 = vsel %vm744, %v1231, 0
      %v1237 = vsel %vm748, %v1233, 0
      %1239 = vmatprep.subr.mxu0 0.0
      %1240 = vmatpush1.msra.mxu0 0.0
      %1241 = vmatprep.subr.mxu0 0.0
      %1242 = vmatpush1.msra.mxu0 0.0
      %1243 = vmatprep.subr.mxu0 0.0
      %1244 = vmatpush1.msra.mxu0 0.0
      %1245 = vmatprep.subr.mxu0 0.0
      %1246 = vmatpush1.msra.mxu0 0.0
      %1247 = vmatprep.subr.mxu0 0.0
      %1248 = vmatpush1.msra.mxu0 0.0
      %1249 = vmatprep.subr.mxu0 0.0
      %1250 = vmatpush1.msra.mxu0 0.0
      %1251 = vmatprep.subr.mxu0 0.0
      %1252 = vmatpush1.msra.mxu0 0.0
      %1253 = vmatprep.subr.mxu0 0.0
      %1254 = vmatpush1.msra.mxu0 0.0
      %1255 = vmatprep.subr.mxu0 0.0
      %1256 = vmatpush1.msra.mxu0 0.0
      %1257 = vmatprep.subr.mxu0 0.0
      %1258 = vmatpush1.msra.mxu0 0.0
      %1259 = vmatprep.subr.mxu0 0.0
      %1260 = vmatpush1.msra.mxu0 0.0
      %1261 = vmatprep.subr.mxu0 0.0
      %1262 = vmatpush1.msra.mxu0 0.0
      %1263 = vmatprep.subr.mxu0 0.0
      %1264 = vmatpush1.msra.mxu0 0.0
      %1265 = vmatprep.subr.mxu0 0.0
      %1266 = vmatpush1.msra.mxu0 0.0
      %1267 = vmatprep.subr.mxu0 0.0
      %1268 = vmatpush1.msra.mxu0 0.0
      %1269 = vmatprep.subr.mxu0 0.0
      %1270 = vmatpush1.msra.mxu0 %v1237
      %1271 = vmatprep.subr.mxu0 0.0
      %1272 = vmatpush2.msra.mxu0 0.0
      %1273 = vmatprep.subr.mxu0 0.0
      %1274 = vmatpush2.msra.mxu0 0.0
      %1275 = vmatprep.subr.mxu0 0.0
      %1276 = vmatpush2.msra.mxu0 0.0
      %1277 = vmatprep.subr.mxu0 0.0
      %1278 = vmatpush2.msra.mxu0 0.0
      %1279 = vmatprep.subr.mxu0 0.0
      %1280 = vmatpush2.msra.mxu0 0.0
      %1281 = vmatprep.subr.mxu0 0.0
      %1282 = vmatpush2.msra.mxu0 0.0
      %1283 = vmatprep.subr.mxu0 0.0
      %1284 = vmatpush2.msra.mxu0 0.0
      %1285 = vmatprep.subr.mxu0 0.0
      %1286 = vmatpush2.msra.mxu0 0.0
      %1287 = vmatprep.subr.mxu0 0.0
      %1288 = vmatpush2.msra.mxu0 0.0
      %1289 = vmatprep.subr.mxu0 0.0
      %1290 = vmatpush2.msra.mxu0 0.0
      %1291 = vmatprep.subr.mxu0 0.0
      %1292 = vmatpush2.msra.mxu0 0.0
      %1293 = vmatprep.subr.mxu0 0.0
      %1294 = vmatpush2.msra.mxu0 0.0
      %1295 = vmatprep.subr.mxu0 0.0
      %1296 = vmatpush2.msra.mxu0 0.0
      %1297 = vmatprep.subr.mxu0 0.0
      %1298 = vmatpush2.msra.mxu0 0.0
      %1299 = vmatprep.subr.mxu0 0.0
      %1300 = vmatpush2.msra.mxu0 0.0
      %1301 = vmatprep.subr.mxu0 0.0
      %1302 = vmatpush2.msra.mxu0 0.0
      %1303 = vmatprep.mubr.f32.mxu0 0.0
      %1304 = vmatmul.mubr.f32.gmra.mxu0 %v1235
      %v1305 = vpop.f32.mrf.mxu0
      %v1306 = vadd.f32 0.0, %v1305
      %v1307 = vpop.f32.mrf.mxu0
      %1308 = vdwg.mxu0
      %s1309 = scalar_lea.vmem %s5, 8
      %v1310 = vld [vmem:[%s1309] sm:$0xf]
      %v1312 = vsel %vm655, %v1306, 0
      %v1315 = vsel %vm993, %v1310, 0
      %1317 = vmatprep.subr.mxu0 0.0
      %1318 = vmatpush1.msra.mxu0 0.0
      %1319 = vmatprep.subr.mxu0 0.0
      %1320 = vmatpush1.msra.mxu0 0.0
      %1321 = vmatprep.subr.mxu0 0.0
      %1322 = vmatpush1.msra.mxu0 0.0
      %1323 = vmatprep.subr.mxu0 0.0
      %1324 = vmatpush1.msra.mxu0 0.0
      %1325 = vmatprep.subr.mxu0 0.0
      %1326 = vmatpush1.msra.mxu0 0.0
      %1327 = vmatprep.subr.mxu0 0.0
      %1328 = vmatpush1.msra.mxu0 0.0
      %1329 = vmatprep.subr.mxu0 0.0
      %1330 = vmatpush1.msra.mxu0 0.0
      %1331 = vmatprep.subr.mxu0 0.0
      %1332 = vmatpush1.msra.mxu0 0.0
      %1333 = vmatprep.subr.mxu0 0.0
      %1334 = vmatpush1.msra.mxu0 0.0
      %1335 = vmatprep.subr.mxu0 0.0
      %1336 = vmatpush1.msra.mxu0 0.0
      %1337 = vmatprep.subr.mxu0 0.0
      %1338 = vmatpush1.msra.mxu0 0.0
      %1339 = vmatprep.subr.mxu0 0.0
      %1340 = vmatpush1.msra.mxu0 0.0
      %1341 = vmatprep.subr.mxu0 0.0
      %1342 = vmatpush1.msra.mxu0 0.0
      %1343 = vmatprep.subr.mxu0 0.0
      %1344 = vmatpush1.msra.mxu0 0.0
      %1345 = vmatprep.subr.mxu0 0.0
      %1346 = vmatpush1.msra.mxu0 0.0
      %1347 = vmatprep.subr.mxu0 0.0
      %1348 = vmatpush1.msra.mxu0 %v1315
      %1349 = vmatprep.subr.mxu0 0.0
      %1350 = vmatpush2.msra.mxu0 0.0
      %1351 = vmatprep.subr.mxu0 0.0
      %1352 = vmatpush2.msra.mxu0 0.0
      %1353 = vmatprep.subr.mxu0 0.0
      %1354 = vmatpush2.msra.mxu0 0.0
      %1355 = vmatprep.subr.mxu0 0.0
      %1356 = vmatpush2.msra.mxu0 0.0
      %1357 = vmatprep.subr.mxu0 0.0
      %1358 = vmatpush2.msra.mxu0 0.0
      %1359 = vmatprep.subr.mxu0 0.0
      %1360 = vmatpush2.msra.mxu0 0.0
      %1361 = vmatprep.subr.mxu0 0.0
      %1362 = vmatpush2.msra.mxu0 0.0
      %1363 = vmatprep.subr.mxu0 0.0
      %1364 = vmatpush2.msra.mxu0 0.0
      %1365 = vmatprep.subr.mxu0 0.0
      %1366 = vmatpush2.msra.mxu0 0.0
      %1367 = vmatprep.subr.mxu0 0.0
      %1368 = vmatpush2.msra.mxu0 0.0
      %1369 = vmatprep.subr.mxu0 0.0
      %1370 = vmatpush2.msra.mxu0 0.0
      %1371 = vmatprep.subr.mxu0 0.0
      %1372 = vmatpush2.msra.mxu0 0.0
      %1373 = vmatprep.subr.mxu0 0.0
      %1374 = vmatpush2.msra.mxu0 0.0
      %1375 = vmatprep.subr.mxu0 0.0
      %1376 = vmatpush2.msra.mxu0 0.0
      %1377 = vmatprep.subr.mxu0 0.0
      %1378 = vmatpush2.msra.mxu0 0.0
      %1379 = vmatprep.subr.mxu0 0.0
      %1380 = vmatpush2.msra.mxu0 0.0
      %1381 = vmatprep.mubr.f32.mxu0 0.0
      %1382 = vmatmul.mubr.f32.gmra.mxu0 %v1312
      %v1383 = vpop.f32.mrf.mxu0
      %v1384 = vadd.f32 0.0, %v1383
      %v1385 = vpop.f32.mrf.mxu0
      %1386 = vdwg.mxu0
      %v1387 = vadd.f32 %v1140, %v1384
      %1388 = vrot.lane.b32.xlu0 %v649, 116
      %v1389 = vpop.permute.xlu0 %1388
      %1390 = vrot.lane.b32.xlu0 %v649, 84
      %v1391 = vpop.permute.xlu0 %1390
      %v1392 = vsel %vm655, %v1389, 0
      %v1394 = vsel %vm655, %v1391, 0
      %1396 = vmatprep.subr.mxu0 0.0
      %1397 = vmatpush1.xpose.msra.mxu0 0.0
      %1398 = vmatprep.subr.mxu0 0.0
      %1399 = vmatpush1.xpose.msra.mxu0 0.0
      %1400 = vmatprep.subr.mxu0 0.0
      %1401 = vmatpush1.xpose.msra.mxu0 0.0
      %1402 = vmatprep.subr.mxu0 0.0
      %1403 = vmatpush1.xpose.msra.mxu0 0.0
      %1404 = vmatprep.subr.mxu0 0.0
      %1405 = vmatpush1.xpose.msra.mxu0 0.0
      %1406 = vmatprep.subr.mxu0 0.0
      %1407 = vmatpush1.xpose.msra.mxu0 0.0
      %1408 = vmatprep.subr.mxu0 0.0
      %1409 = vmatpush1.xpose.msra.mxu0 0.0
      %1410 = vmatprep.subr.mxu0 0.0
      %1411 = vmatpush1.xpose.msra.mxu0 0.0
      %1412 = vmatprep.subr.mxu0 0.0
      %1413 = vmatpush1.xpose.msra.mxu0 0.0
      %1414 = vmatprep.subr.mxu0 0.0
      %1415 = vmatpush1.xpose.msra.mxu0 0.0
      %1416 = vmatprep.subr.mxu0 0.0
      %1417 = vmatpush1.xpose.msra.mxu0 0.0
      %1418 = vmatprep.subr.mxu0 0.0
      %1419 = vmatpush1.xpose.msra.mxu0 0.0
      %1420 = vmatprep.subr.mxu0 0.0
      %1421 = vmatpush1.xpose.msra.mxu0 0.0
      %1422 = vmatprep.subr.mxu0 0.0
      %1423 = vmatpush1.xpose.msra.mxu0 0.0
      %1424 = vmatprep.subr.mxu0 0.0
      %1425 = vmatpush1.xpose.msra.mxu0 0.0
      %1426 = vmatprep.subr.mxu0 0.0
      %1427 = vmatpush1.xpose.msra.mxu0 %v1394
      %1428 = vmatprep.subr.mxu0 0.0
      %1429 = vmatpush2.xpose.msra.mxu0 0.0
      %1430 = vmatprep.subr.mxu0 0.0
      %1431 = vmatpush2.xpose.msra.mxu0 0.0
      %1432 = vmatprep.subr.mxu0 0.0
      %1433 = vmatpush2.xpose.msra.mxu0 0.0
      %1434 = vmatprep.subr.mxu0 0.0
      %1435 = vmatpush2.xpose.msra.mxu0 0.0
      %1436 = vmatprep.subr.mxu0 0.0
      %1437 = vmatpush2.xpose.msra.mxu0 0.0
      %1438 = vmatprep.subr.mxu0 0.0
      %1439 = vmatpush2.xpose.msra.mxu0 0.0
      %1440 = vmatprep.subr.mxu0 0.0
      %1441 = vmatpush2.xpose.msra.mxu0 0.0
      %1442 = vmatprep.subr.mxu0 0.0
      %1443 = vmatpush2.xpose.msra.mxu0 0.0
      %1444 = vmatprep.subr.mxu0 0.0
      %1445 = vmatpush2.xpose.msra.mxu0 0.0
      %1446 = vmatprep.subr.mxu0 0.0
      %1447 = vmatpush2.xpose.msra.mxu0 0.0
      %1448 = vmatprep.subr.mxu0 0.0
      %1449 = vmatpush2.xpose.msra.mxu0 0.0
      %1450 = vmatprep.subr.mxu0 0.0
      %1451 = vmatpush2.xpose.msra.mxu0 0.0
      %1452 = vmatprep.subr.mxu0 0.0
      %1453 = vmatpush2.xpose.msra.mxu0 0.0
      %1454 = vmatprep.subr.mxu0 0.0
      %1455 = vmatpush2.xpose.msra.mxu0 0.0
      %1456 = vmatprep.subr.mxu0 0.0
      %1457 = vmatpush2.xpose.msra.mxu0 0.0
      %1458 = vmatprep.subr.mxu0 0.0
      %1459 = vmatpush2.xpose.msra.mxu0 0.0
      %1460 = vmatprep.mubr.f32.mxu0 0.0
      %1461 = vmatmul.mubr.f32.gmra.mxu0 %v1392
      %v1462 = vpop.f32.mrf.mxu0
      %v1463 = vadd.f32 0.0, %v1462
      %v1464 = vpop.f32.mrf.mxu0
      %1465 = vdwg.mxu0
      %v1466 = vsel %vm730, %v1463, -inf
      %1467 = vmax.xlane.f32.xlu0 %v1466
      %v1468 = vpop.xlane.xlu0 %1467
      %v1469 = vsub.f32 %v1463, %v1468
      %v1470 = vmul.f32 %v1469, 1.442695
      %v1471 = vpow.pop %v1470
      %v1472 = vsel %vm730, %v1471, 0.0
      %1473 = vadd.xlane.f32.xlu0 %v1472
      %v1474 = vpop.xlane.xlu0 %1473
      %v1475 = vrcp.pop %v1474
      %v1476 = vmul.f32 %v1471, %v1475
      %1477 = vrot.lane.b32.xlu0 %v649, 52
      %v1478 = vpop.permute.xlu0 %1477
      %v1480 = vsel %vm744, %v1476, 0
      %v1482 = vsel %vm748, %v1478, 0
      %1484 = vmatprep.subr.mxu0 0.0
      %1485 = vmatpush1.msra.mxu0 0.0
      %1486 = vmatprep.subr.mxu0 0.0
      %1487 = vmatpush1.msra.mxu0 0.0
      %1488 = vmatprep.subr.mxu0 0.0
      %1489 = vmatpush1.msra.mxu0 0.0
      %1490 = vmatprep.subr.mxu0 0.0
      %1491 = vmatpush1.msra.mxu0 0.0
      %1492 = vmatprep.subr.mxu0 0.0
      %1493 = vmatpush1.msra.mxu0 0.0
      %1494 = vmatprep.subr.mxu0 0.0
      %1495 = vmatpush1.msra.mxu0 0.0
      %1496 = vmatprep.subr.mxu0 0.0
      %1497 = vmatpush1.msra.mxu0 0.0
      %1498 = vmatprep.subr.mxu0 0.0
      %1499 = vmatpush1.msra.mxu0 0.0
      %1500 = vmatprep.subr.mxu0 0.0
      %1501 = vmatpush1.msra.mxu0 0.0
      %1502 = vmatprep.subr.mxu0 0.0
      %1503 = vmatpush1.msra.mxu0 0.0
      %1504 = vmatprep.subr.mxu0 0.0
      %1505 = vmatpush1.msra.mxu0 0.0
      %1506 = vmatprep.subr.mxu0 0.0
      %1507 = vmatpush1.msra.mxu0 0.0
      %1508 = vmatprep.subr.mxu0 0.0
      %1509 = vmatpush1.msra.mxu0 0.0
      %1510 = vmatprep.subr.mxu0 0.0
      %1511 = vmatpush1.msra.mxu0 0.0
      %1512 = vmatprep.subr.mxu0 0.0
      %1513 = vmatpush1.msra.mxu0 0.0
      %1514 = vmatprep.subr.mxu0 0.0
      %1515 = vmatpush1.msra.mxu0 %v1482
      %1516 = vmatprep.subr.mxu0 0.0
      %1517 = vmatpush2.msra.mxu0 0.0
      %1518 = vmatprep.subr.mxu0 0.0
      %1519 = vmatpush2.msra.mxu0 0.0
      %1520 = vmatprep.subr.mxu0 0.0
      %1521 = vmatpush2.msra.mxu0 0.0
      %1522 = vmatprep.subr.mxu0 0.0
      %1523 = vmatpush2.msra.mxu0 0.0
      %1524 = vmatprep.subr.mxu0 0.0
      %1525 = vmatpush2.msra.mxu0 0.0
      %1526 = vmatprep.subr.mxu0 0.0
      %1527 = vmatpush2.msra.mxu0 0.0
      %1528 = vmatprep.subr.mxu0 0.0
      %1529 = vmatpush2.msra.mxu0 0.0
      %1530 = vmatprep.subr.mxu0 0.0
      %1531 = vmatpush2.msra.mxu0 0.0
      %1532 = vmatprep.subr.mxu0 0.0
      %1533 = vmatpush2.msra.mxu0 0.0
      %1534 = vmatprep.subr.mxu0 0.0
      %1535 = vmatpush2.msra.mxu0 0.0
      %1536 = vmatprep.subr.mxu0 0.0
      %1537 = vmatpush2.msra.mxu0 0.0
      %1538 = vmatprep.subr.mxu0 0.0
      %1539 = vmatpush2.msra.mxu0 0.0
      %1540 = vmatprep.subr.mxu0 0.0
      %1541 = vmatpush2.msra.mxu0 0.0
      %1542 = vmatprep.subr.mxu0 0.0
      %1543 = vmatpush2.msra.mxu0 0.0
      %1544 = vmatprep.subr.mxu0 0.0
      %1545 = vmatpush2.msra.mxu0 0.0
      %1546 = vmatprep.subr.mxu0 0.0
      %1547 = vmatpush2.msra.mxu0 0.0
      %1548 = vmatprep.mubr.f32.mxu0 0.0
      %1549 = vmatmul.mubr.f32.gmra.mxu0 %v1480
      %v1550 = vpop.f32.mrf.mxu0
      %v1551 = vadd.f32 0.0, %v1550
      %v1552 = vpop.f32.mrf.mxu0
      %1553 = vdwg.mxu0
      %s1554 = scalar_lea.vmem %s5, 12
      %v1555 = vld [vmem:[%s1554] sm:$0xf]
      %v1557 = vsel %vm655, %v1551, 0
      %v1560 = vsel %vm993, %v1555, 0
      %1562 = vmatprep.subr.mxu0 0.0
      %1563 = vmatpush1.msra.mxu0 0.0
      %1564 = vmatprep.subr.mxu0 0.0
      %1565 = vmatpush1.msra.mxu0 0.0
      %1566 = vmatprep.subr.mxu0 0.0
      %1567 = vmatpush1.msra.mxu0 0.0
      %1568 = vmatprep.subr.mxu0 0.0
      %1569 = vmatpush1.msra.mxu0 0.0
      %1570 = vmatprep.subr.mxu0 0.0
      %1571 = vmatpush1.msra.mxu0 0.0
      %1572 = vmatprep.subr.mxu0 0.0
      %1573 = vmatpush1.msra.mxu0 0.0
      %1574 = vmatprep.subr.mxu0 0.0
      %1575 = vmatpush1.msra.mxu0 0.0
      %1576 = vmatprep.subr.mxu0 0.0
      %1577 = vmatpush1.msra.mxu0 0.0
      %1578 = vmatprep.subr.mxu0 0.0
      %1579 = vmatpush1.msra.mxu0 0.0
      %1580 = vmatprep.subr.mxu0 0.0
      %1581 = vmatpush1.msra.mxu0 0.0
      %1582 = vmatprep.subr.mxu0 0.0
      %1583 = vmatpush1.msra.mxu0 0.0
      %1584 = vmatprep.subr.mxu0 0.0
      %1585 = vmatpush1.msra.mxu0 0.0
      %1586 = vmatprep.subr.mxu0 0.0
      %1587 = vmatpush1.msra.mxu0 0.0
      %1588 = vmatprep.subr.mxu0 0.0
      %1589 = vmatpush1.msra.mxu0 0.0
      %1590 = vmatprep.subr.mxu0 0.0
      %1591 = vmatpush1.msra.mxu0 0.0
      %1592 = vmatprep.subr.mxu0 0.0
      %1593 = vmatpush1.msra.mxu0 %v1560
      %1594 = vmatprep.subr.mxu0 0.0
      %1595 = vmatpush2.msra.mxu0 0.0
      %1596 = vmatprep.subr.mxu0 0.0
      %1597 = vmatpush2.msra.mxu0 0.0
      %1598 = vmatprep.subr.mxu0 0.0
      %1599 = vmatpush2.msra.mxu0 0.0
      %1600 = vmatprep.subr.mxu0 0.0
      %1601 = vmatpush2.msra.mxu0 0.0
      %1602 = vmatprep.subr.mxu0 0.0
      %1603 = vmatpush2.msra.mxu0 0.0
      %1604 = vmatprep.subr.mxu0 0.0
      %1605 = vmatpush2.msra.mxu0 0.0
      %1606 = vmatprep.subr.mxu0 0.0
      %1607 = vmatpush2.msra.mxu0 0.0
      %1608 = vmatprep.subr.mxu0 0.0
      %1609 = vmatpush2.msra.mxu0 0.0
      %1610 = vmatprep.subr.mxu0 0.0
      %1611 = vmatpush2.msra.mxu0 0.0
      %1612 = vmatprep.subr.mxu0 0.0
      %1613 = vmatpush2.msra.mxu0 0.0
      %1614 = vmatprep.subr.mxu0 0.0
      %1615 = vmatpush2.msra.mxu0 0.0
      %1616 = vmatprep.subr.mxu0 0.0
      %1617 = vmatpush2.msra.mxu0 0.0
      %1618 = vmatprep.subr.mxu0 0.0
      %1619 = vmatpush2.msra.mxu0 0.0
      %1620 = vmatprep.subr.mxu0 0.0
      %1621 = vmatpush2.msra.mxu0 0.0
      %1622 = vmatprep.subr.mxu0 0.0
      %1623 = vmatpush2.msra.mxu0 0.0
      %1624 = vmatprep.subr.mxu0 0.0
      %1625 = vmatpush2.msra.mxu0 0.0
      %1626 = vmatprep.mubr.f32.mxu0 0.0
      %1627 = vmatmul.mubr.f32.gmra.mxu0 %v1557
      %v1628 = vpop.f32.mrf.mxu0
      %v1629 = vadd.f32 0.0, %v1628
      %v1630 = vpop.f32.mrf.mxu0
      %1631 = vdwg.mxu0
      %v1632 = vadd.f32 %v1387, %v1629
      %1633 = vrot.lane.b32.xlu0 %v649, 112
      %v1634 = vpop.permute.xlu0 %1633
      %1635 = vrot.lane.b32.xlu0 %v649, 80
      %v1636 = vpop.permute.xlu0 %1635
      %v1637 = vsel %vm655, %v1634, 0
      %v1639 = vsel %vm655, %v1636, 0
      %1641 = vmatprep.subr.mxu0 0.0
      %1642 = vmatpush1.xpose.msra.mxu0 0.0
      %1643 = vmatprep.subr.mxu0 0.0
      %1644 = vmatpush1.xpose.msra.mxu0 0.0
      %1645 = vmatprep.subr.mxu0 0.0
      %1646 = vmatpush1.xpose.msra.mxu0 0.0
      %1647 = vmatprep.subr.mxu0 0.0
      %1648 = vmatpush1.xpose.msra.mxu0 0.0
      %1649 = vmatprep.subr.mxu0 0.0
      %1650 = vmatpush1.xpose.msra.mxu0 0.0
      %1651 = vmatprep.subr.mxu0 0.0
      %1652 = vmatpush1.xpose.msra.mxu0 0.0
      %1653 = vmatprep.subr.mxu0 0.0
      %1654 = vmatpush1.xpose.msra.mxu0 0.0
      %1655 = vmatprep.subr.mxu0 0.0
      %1656 = vmatpush1.xpose.msra.mxu0 0.0
      %1657 = vmatprep.subr.mxu0 0.0
      %1658 = vmatpush1.xpose.msra.mxu0 0.0
      %1659 = vmatprep.subr.mxu0 0.0
      %1660 = vmatpush1.xpose.msra.mxu0 0.0
      %1661 = vmatprep.subr.mxu0 0.0
      %1662 = vmatpush1.xpose.msra.mxu0 0.0
      %1663 = vmatprep.subr.mxu0 0.0
      %1664 = vmatpush1.xpose.msra.mxu0 0.0
      %1665 = vmatprep.subr.mxu0 0.0
      %1666 = vmatpush1.xpose.msra.mxu0 0.0
      %1667 = vmatprep.subr.mxu0 0.0
      %1668 = vmatpush1.xpose.msra.mxu0 0.0
      %1669 = vmatprep.subr.mxu0 0.0
      %1670 = vmatpush1.xpose.msra.mxu0 0.0
      %1671 = vmatprep.subr.mxu0 0.0
      %1672 = vmatpush1.xpose.msra.mxu0 %v1639
      %1673 = vmatprep.subr.mxu0 0.0
      %1674 = vmatpush2.xpose.msra.mxu0 0.0
      %1675 = vmatprep.subr.mxu0 0.0
      %1676 = vmatpush2.xpose.msra.mxu0 0.0
      %1677 = vmatprep.subr.mxu0 0.0
      %1678 = vmatpush2.xpose.msra.mxu0 0.0
      %1679 = vmatprep.subr.mxu0 0.0
      %1680 = vmatpush2.xpose.msra.mxu0 0.0
      %1681 = vmatprep.subr.mxu0 0.0
      %1682 = vmatpush2.xpose.msra.mxu0 0.0
      %1683 = vmatprep.subr.mxu0 0.0
      %1684 = vmatpush2.xpose.msra.mxu0 0.0
      %1685 = vmatprep.subr.mxu0 0.0
      %1686 = vmatpush2.xpose.msra.mxu0 0.0
      %1687 = vmatprep.subr.mxu0 0.0
      %1688 = vmatpush2.xpose.msra.mxu0 0.0
      %1689 = vmatprep.subr.mxu0 0.0
      %1690 = vmatpush2.xpose.msra.mxu0 0.0
      %1691 = vmatprep.subr.mxu0 0.0
      %1692 = vmatpush2.xpose.msra.mxu0 0.0
      %1693 = vmatprep.subr.mxu0 0.0
      %1694 = vmatpush2.xpose.msra.mxu0 0.0
      %1695 = vmatprep.subr.mxu0 0.0
      %1696 = vmatpush2.xpose.msra.mxu0 0.0
      %1697 = vmatprep.subr.mxu0 0.0
      %1698 = vmatpush2.xpose.msra.mxu0 0.0
      %1699 = vmatprep.subr.mxu0 0.0
      %1700 = vmatpush2.xpose.msra.mxu0 0.0
      %1701 = vmatprep.subr.mxu0 0.0
      %1702 = vmatpush2.xpose.msra.mxu0 0.0
      %1703 = vmatprep.subr.mxu0 0.0
      %1704 = vmatpush2.xpose.msra.mxu0 0.0
      %1705 = vmatprep.mubr.f32.mxu0 0.0
      %1706 = vmatmul.mubr.f32.gmra.mxu0 %v1637
      %v1707 = vpop.f32.mrf.mxu0
      %v1708 = vadd.f32 0.0, %v1707
      %v1709 = vpop.f32.mrf.mxu0
      %1710 = vdwg.mxu0
      %v1711 = vsel %vm730, %v1708, -inf
      %1712 = vmax.xlane.f32.xlu0 %v1711
      %v1713 = vpop.xlane.xlu0 %1712
      %v1714 = vsub.f32 %v1708, %v1713
      %v1715 = vmul.f32 %v1714, 1.442695
      %v1716 = vpow.pop %v1715
      %v1717 = vsel %vm730, %v1716, 0.0
      %1718 = vadd.xlane.f32.xlu0 %v1717
      %v1719 = vpop.xlane.xlu0 %1718
      %v1720 = vrcp.pop %v1719
      %v1721 = vmul.f32 %v1716, %v1720
      %1722 = vrot.lane.b32.xlu0 %v649, 48
      %v1723 = vpop.permute.xlu0 %1722
      %v1725 = vsel %vm744, %v1721, 0
      %v1727 = vsel %vm748, %v1723, 0
      %1729 = vmatprep.subr.mxu0 0.0
      %1730 = vmatpush1.msra.mxu0 0.0
      %1731 = vmatprep.subr.mxu0 0.0
      %1732 = vmatpush1.msra.mxu0 0.0
      %1733 = vmatprep.subr.mxu0 0.0
      %1734 = vmatpush1.msra.mxu0 0.0
      %1735 = vmatprep.subr.mxu0 0.0
      %1736 = vmatpush1.msra.mxu0 0.0
      %1737 = vmatprep.subr.mxu0 0.0
      %1738 = vmatpush1.msra.mxu0 0.0
      %1739 = vmatprep.subr.mxu0 0.0
      %1740 = vmatpush1.msra.mxu0 0.0
      %1741 = vmatprep.subr.mxu0 0.0
      %1742 = vmatpush1.msra.mxu0 0.0
      %1743 = vmatprep.subr.mxu0 0.0
      %1744 = vmatpush1.msra.mxu0 0.0
      %1745 = vmatprep.subr.mxu0 0.0
      %1746 = vmatpush1.msra.mxu0 0.0
      %1747 = vmatprep.subr.mxu0 0.0
      %1748 = vmatpush1.msra.mxu0 0.0
      %1749 = vmatprep.subr.mxu0 0.0
      %1750 = vmatpush1.msra.mxu0 0.0
      %1751 = vmatprep.subr.mxu0 0.0
      %1752 = vmatpush1.msra.mxu0 0.0
      %1753 = vmatprep.subr.mxu0 0.0
      %1754 = vmatpush1.msra.mxu0 0.0
      %1755 = vmatprep.subr.mxu0 0.0
      %1756 = vmatpush1.msra.mxu0 0.0
      %1757 = vmatprep.subr.mxu0 0.0
      %1758 = vmatpush1.msra.mxu0 0.0
      %1759 = vmatprep.subr.mxu0 0.0
      %1760 = vmatpush1.msra.mxu0 %v1727
      %1761 = vmatprep.subr.mxu0 0.0
      %1762 = vmatpush2.msra.mxu0 0.0
      %1763 = vmatprep.subr.mxu0 0.0
      %1764 = vmatpush2.msra.mxu0 0.0
      %1765 = vmatprep.subr.mxu0 0.0
      %1766 = vmatpush2.msra.mxu0 0.0
      %1767 = vmatprep.subr.mxu0 0.0
      %1768 = vmatpush2.msra.mxu0 0.0
      %1769 = vmatprep.subr.mxu0 0.0
      %1770 = vmatpush2.msra.mxu0 0.0
      %1771 = vmatprep.subr.mxu0 0.0
      %1772 = vmatpush2.msra.mxu0 0.0
      %1773 = vmatprep.subr.mxu0 0.0
      %1774 = vmatpush2.msra.mxu0 0.0
      %1775 = vmatprep.subr.mxu0 0.0
      %1776 = vmatpush2.msra.mxu0 0.0
      %1777 = vmatprep.subr.mxu0 0.0
      %1778 = vmatpush2.msra.mxu0 0.0
      %1779 = vmatprep.subr.mxu0 0.0
      %1780 = vmatpush2.msra.mxu0 0.0
      %1781 = vmatprep.subr.mxu0 0.0
      %1782 = vmatpush2.msra.mxu0 0.0
      %1783 = vmatprep.subr.mxu0 0.0
      %1784 = vmatpush2.msra.mxu0 0.0
      %1785 = vmatprep.subr.mxu0 0.0
      %1786 = vmatpush2.msra.mxu0 0.0
      %1787 = vmatprep.subr.mxu0 0.0
      %1788 = vmatpush2.msra.mxu0 0.0
      %1789 = vmatprep.subr.mxu0 0.0
      %1790 = vmatpush2.msra.mxu0 0.0
      %1791 = vmatprep.subr.mxu0 0.0
      %1792 = vmatpush2.msra.mxu0 0.0
      %1793 = vmatprep.mubr.f32.mxu0 0.0
      %1794 = vmatmul.mubr.f32.gmra.mxu0 %v1725
      %v1795 = vpop.f32.mrf.mxu0
      %v1796 = vadd.f32 0.0, %v1795
      %v1797 = vpop.f32.mrf.mxu0
      %1798 = vdwg.mxu0
      %s1799 = scalar_lea.vmem %s5, 16
      %v1800 = vld [vmem:[%s1799] sm:$0xf]
      %v1802 = vsel %vm655, %v1796, 0
      %v1805 = vsel %vm993, %v1800, 0
      %1807 = vmatprep.subr.mxu0 0.0
      %1808 = vmatpush1.msra.mxu0 0.0
      %1809 = vmatprep.subr.mxu0 0.0
      %1810 = vmatpush1.msra.mxu0 0.0
      %1811 = vmatprep.subr.mxu0 0.0
      %1812 = vmatpush1.msra.mxu0 0.0
      %1813 = vmatprep.subr.mxu0 0.0
      %1814 = vmatpush1.msra.mxu0 0.0
      %1815 = vmatprep.subr.mxu0 0.0
      %1816 = vmatpush1.msra.mxu0 0.0
      %1817 = vmatprep.subr.mxu0 0.0
      %1818 = vmatpush1.msra.mxu0 0.0
      %1819 = vmatprep.subr.mxu0 0.0
      %1820 = vmatpush1.msra.mxu0 0.0
      %1821 = vmatprep.subr.mxu0 0.0
      %1822 = vmatpush1.msra.mxu0 0.0
      %1823 = vmatprep.subr.mxu0 0.0
      %1824 = vmatpush1.msra.mxu0 0.0
      %1825 = vmatprep.subr.mxu0 0.0
      %1826 = vmatpush1.msra.mxu0 0.0
      %1827 = vmatprep.subr.mxu0 0.0
      %1828 = vmatpush1.msra.mxu0 0.0
      %1829 = vmatprep.subr.mxu0 0.0
      %1830 = vmatpush1.msra.mxu0 0.0
      %1831 = vmatprep.subr.mxu0 0.0
      %1832 = vmatpush1.msra.mxu0 0.0
      %1833 = vmatprep.subr.mxu0 0.0
      %1834 = vmatpush1.msra.mxu0 0.0
      %1835 = vmatprep.subr.mxu0 0.0
      %1836 = vmatpush1.msra.mxu0 0.0
      %1837 = vmatprep.subr.mxu0 0.0
      %1838 = vmatpush1.msra.mxu0 %v1805
      %1839 = vmatprep.subr.mxu0 0.0
      %1840 = vmatpush2.msra.mxu0 0.0
      %1841 = vmatprep.subr.mxu0 0.0
      %1842 = vmatpush2.msra.mxu0 0.0
      %1843 = vmatprep.subr.mxu0 0.0
      %1844 = vmatpush2.msra.mxu0 0.0
      %1845 = vmatprep.subr.mxu0 0.0
      %1846 = vmatpush2.msra.mxu0 0.0
      %1847 = vmatprep.subr.mxu0 0.0
      %1848 = vmatpush2.msra.mxu0 0.0
      %1849 = vmatprep.subr.mxu0 0.0
      %1850 = vmatpush2.msra.mxu0 0.0
      %1851 = vmatprep.subr.mxu0 0.0
      %1852 = vmatpush2.msra.mxu0 0.0
      %1853 = vmatprep.subr.mxu0 0.0
      %1854 = vmatpush2.msra.mxu0 0.0
      %1855 = vmatprep.subr.mxu0 0.0
      %1856 = vmatpush2.msra.mxu0 0.0
      %1857 = vmatprep.subr.mxu0 0.0
      %1858 = vmatpush2.msra.mxu0 0.0
      %1859 = vmatprep.subr.mxu0 0.0
      %1860 = vmatpush2.msra.mxu0 0.0
      %1861 = vmatprep.subr.mxu0 0.0
      %1862 = vmatpush2.msra.mxu0 0.0
      %1863 = vmatprep.subr.mxu0 0.0
      %1864 = vmatpush2.msra.mxu0 0.0
      %1865 = vmatprep.subr.mxu0 0.0
      %1866 = vmatpush2.msra.mxu0 0.0
      %1867 = vmatprep.subr.mxu0 0.0
      %1868 = vmatpush2.msra.mxu0 0.0
      %1869 = vmatprep.subr.mxu0 0.0
      %1870 = vmatpush2.msra.mxu0 0.0
      %1871 = vmatprep.mubr.f32.mxu0 0.0
      %1872 = vmatmul.mubr.f32.gmra.mxu0 %v1802
      %v1873 = vpop.f32.mrf.mxu0
      %v1874 = vadd.f32 0.0, %v1873
      %v1875 = vpop.f32.mrf.mxu0
      %1876 = vdwg.mxu0
      %v1877 = vadd.f32 %v1632, %v1874
      %1878 = vrot.lane.b32.xlu0 %v649, 108
      %v1879 = vpop.permute.xlu0 %1878
      %1880 = vrot.lane.b32.xlu0 %v649, 76
      %v1881 = vpop.permute.xlu0 %1880
      %v1882 = vsel %vm655, %v1879, 0
      %v1884 = vsel %vm655, %v1881, 0
      %1886 = vmatprep.subr.mxu0 0.0
      %1887 = vmatpush1.xpose.msra.mxu0 0.0
      %1888 = vmatprep.subr.mxu0 0.0
      %1889 = vmatpush1.xpose.msra.mxu0 0.0
      %1890 = vmatprep.subr.mxu0 0.0
      %1891 = vmatpush1.xpose.msra.mxu0 0.0
      %1892 = vmatprep.subr.mxu0 0.0
      %1893 = vmatpush1.xpose.msra.mxu0 0.0
      %1894 = vmatprep.subr.mxu0 0.0
      %1895 = vmatpush1.xpose.msra.mxu0 0.0
      %1896 = vmatprep.subr.mxu0 0.0
      %1897 = vmatpush1.xpose.msra.mxu0 0.0
      %1898 = vmatprep.subr.mxu0 0.0
      %1899 = vmatpush1.xpose.msra.mxu0 0.0
      %1900 = vmatprep.subr.mxu0 0.0
      %1901 = vmatpush1.xpose.msra.mxu0 0.0
      %1902 = vmatprep.subr.mxu0 0.0
      %1903 = vmatpush1.xpose.msra.mxu0 0.0
      %1904 = vmatprep.subr.mxu0 0.0
      %1905 = vmatpush1.xpose.msra.mxu0 0.0
      %1906 = vmatprep.subr.mxu0 0.0
      %1907 = vmatpush1.xpose.msra.mxu0 0.0
      %1908 = vmatprep.subr.mxu0 0.0
      %1909 = vmatpush1.xpose.msra.mxu0 0.0
      %1910 = vmatprep.subr.mxu0 0.0
      %1911 = vmatpush1.xpose.msra.mxu0 0.0
      %1912 = vmatprep.subr.mxu0 0.0
      %1913 = vmatpush1.xpose.msra.mxu0 0.0
      %1914 = vmatprep.subr.mxu0 0.0
      %1915 = vmatpush1.xpose.msra.mxu0 0.0
      %1916 = vmatprep.subr.mxu0 0.0
      %1917 = vmatpush1.xpose.msra.mxu0 %v1884
      %1918 = vmatprep.subr.mxu0 0.0
      %1919 = vmatpush2.xpose.msra.mxu0 0.0
      %1920 = vmatprep.subr.mxu0 0.0
      %1921 = vmatpush2.xpose.msra.mxu0 0.0
      %1922 = vmatprep.subr.mxu0 0.0
      %1923 = vmatpush2.xpose.msra.mxu0 0.0
      %1924 = vmatprep.subr.mxu0 0.0
      %1925 = vmatpush2.xpose.msra.mxu0 0.0
      %1926 = vmatprep.subr.mxu0 0.0
      %1927 = vmatpush2.xpose.msra.mxu0 0.0
      %1928 = vmatprep.subr.mxu0 0.0
      %1929 = vmatpush2.xpose.msra.mxu0 0.0
      %1930 = vmatprep.subr.mxu0 0.0
      %1931 = vmatpush2.xpose.msra.mxu0 0.0
      %1932 = vmatprep.subr.mxu0 0.0
      %1933 = vmatpush2.xpose.msra.mxu0 0.0
      %1934 = vmatprep.subr.mxu0 0.0
      %1935 = vmatpush2.xpose.msra.mxu0 0.0
      %1936 = vmatprep.subr.mxu0 0.0
      %1937 = vmatpush2.xpose.msra.mxu0 0.0
      %1938 = vmatprep.subr.mxu0 0.0
      %1939 = vmatpush2.xpose.msra.mxu0 0.0
      %1940 = vmatprep.subr.mxu0 0.0
      %1941 = vmatpush2.xpose.msra.mxu0 0.0
      %1942 = vmatprep.subr.mxu0 0.0
      %1943 = vmatpush2.xpose.msra.mxu0 0.0
      %1944 = vmatprep.subr.mxu0 0.0
      %1945 = vmatpush2.xpose.msra.mxu0 0.0
      %1946 = vmatprep.subr.mxu0 0.0
      %1947 = vmatpush2.xpose.msra.mxu0 0.0
      %1948 = vmatprep.subr.mxu0 0.0
      %1949 = vmatpush2.xpose.msra.mxu0 0.0
      %1950 = vmatprep.mubr.f32.mxu0 0.0
      %1951 = vmatmul.mubr.f32.gmra.mxu0 %v1882
      %v1952 = vpop.f32.mrf.mxu0
      %v1953 = vadd.f32 0.0, %v1952
      %v1954 = vpop.f32.mrf.mxu0
      %1955 = vdwg.mxu0
      %v1956 = vsel %vm730, %v1953, -inf
      %1957 = vmax.xlane.f32.xlu0 %v1956
      %v1958 = vpop.xlane.xlu0 %1957
      %v1959 = vsub.f32 %v1953, %v1958
      %v1960 = vmul.f32 %v1959, 1.442695
      %v1961 = vpow.pop %v1960
      %v1962 = vsel %vm730, %v1961, 0.0
      %1963 = vadd.xlane.f32.xlu0 %v1962
      %v1964 = vpop.xlane.xlu0 %1963
      %v1965 = vrcp.pop %v1964
      %v1966 = vmul.f32 %v1961, %v1965
      %1967 = vrot.lane.b32.xlu0 %v649, 44
      %v1968 = vpop.permute.xlu0 %1967
      %v1970 = vsel %vm744, %v1966, 0
      %v1972 = vsel %vm748, %v1968, 0
      %1974 = vmatprep.subr.mxu0 0.0
      %1975 = vmatpush1.msra.mxu0 0.0
      %1976 = vmatprep.subr.mxu0 0.0
      %1977 = vmatpush1.msra.mxu0 0.0
      %1978 = vmatprep.subr.mxu0 0.0
      %1979 = vmatpush1.msra.mxu0 0.0
      %1980 = vmatprep.subr.mxu0 0.0
      %1981 = vmatpush1.msra.mxu0 0.0
      %1982 = vmatprep.subr.mxu0 0.0
      %1983 = vmatpush1.msra.mxu0 0.0
      %1984 = vmatprep.subr.mxu0 0.0
      %1985 = vmatpush1.msra.mxu0 0.0
      %1986 = vmatprep.subr.mxu0 0.0
      %1987 = vmatpush1.msra.mxu0 0.0
      %1988 = vmatprep.subr.mxu0 0.0
      %1989 = vmatpush1.msra.mxu0 0.0
      %1990 = vmatprep.subr.mxu0 0.0
      %1991 = vmatpush1.msra.mxu0 0.0
      %1992 = vmatprep.subr.mxu0 0.0
      %1993 = vmatpush1.msra.mxu0 0.0
      %1994 = vmatprep.subr.mxu0 0.0
      %1995 = vmatpush1.msra.mxu0 0.0
      %1996 = vmatprep.subr.mxu0 0.0
      %1997 = vmatpush1.msra.mxu0 0.0
      %1998 = vmatprep.subr.mxu0 0.0
      %1999 = vmatpush1.msra.mxu0 0.0
      %2000 = vmatprep.subr.mxu0 0.0
      %2001 = vmatpush1.msra.mxu0 0.0
      %2002 = vmatprep.subr.mxu0 0.0
      %2003 = vmatpush1.msra.mxu0 0.0
      %2004 = vmatprep.subr.mxu0 0.0
      %2005 = vmatpush1.msra.mxu0 %v1972
      %2006 = vmatprep.subr.mxu0 0.0
      %2007 = vmatpush2.msra.mxu0 0.0
      %2008 = vmatprep.subr.mxu0 0.0
      %2009 = vmatpush2.msra.mxu0 0.0
      %2010 = vmatprep.subr.mxu0 0.0
      %2011 = vmatpush2.msra.mxu0 0.0
      %2012 = vmatprep.subr.mxu0 0.0
      %2013 = vmatpush2.msra.mxu0 0.0
      %2014 = vmatprep.subr.mxu0 0.0
      %2015 = vmatpush2.msra.mxu0 0.0
      %2016 = vmatprep.subr.mxu0 0.0
      %2017 = vmatpush2.msra.mxu0 0.0
      %2018 = vmatprep.subr.mxu0 0.0
      %2019 = vmatpush2.msra.mxu0 0.0
      %2020 = vmatprep.subr.mxu0 0.0
      %2021 = vmatpush2.msra.mxu0 0.0
      %2022 = vmatprep.subr.mxu0 0.0
      %2023 = vmatpush2.msra.mxu0 0.0
      %2024 = vmatprep.subr.mxu0 0.0
      %2025 = vmatpush2.msra.mxu0 0.0
      %2026 = vmatprep.subr.mxu0 0.0
      %2027 = vmatpush2.msra.mxu0 0.0
      %2028 = vmatprep.subr.mxu0 0.0
      %2029 = vmatpush2.msra.mxu0 0.0
      %2030 = vmatprep.subr.mxu0 0.0
      %2031 = vmatpush2.msra.mxu0 0.0
      %2032 = vmatprep.subr.mxu0 0.0
      %2033 = vmatpush2.msra.mxu0 0.0
      %2034 = vmatprep.subr.mxu0 0.0
      %2035 = vmatpush2.msra.mxu0 0.0
      %2036 = vmatprep.subr.mxu0 0.0
      %2037 = vmatpush2.msra.mxu0 0.0
      %2038 = vmatprep.mubr.f32.mxu0 0.0
      %2039 = vmatmul.mubr.f32.gmra.mxu0 %v1970
      %v2040 = vpop.f32.mrf.mxu0
      %v2041 = vadd.f32 0.0, %v2040
      %v2042 = vpop.f32.mrf.mxu0
      %2043 = vdwg.mxu0
      %s2044 = scalar_lea.vmem %s5, 20
      %v2045 = vld [vmem:[%s2044] sm:$0xf]
      %v2047 = vsel %vm655, %v2041, 0
      %v2050 = vsel %vm993, %v2045, 0
      %2052 = vmatprep.subr.mxu0 0.0
      %2053 = vmatpush1.msra.mxu0 0.0
      %2054 = vmatprep.subr.mxu0 0.0
      %2055 = vmatpush1.msra.mxu0 0.0
      %2056 = vmatprep.subr.mxu0 0.0
      %2057 = vmatpush1.msra.mxu0 0.0
      %2058 = vmatprep.subr.mxu0 0.0
      %2059 = vmatpush1.msra.mxu0 0.0
      %2060 = vmatprep.subr.mxu0 0.0
      %2061 = vmatpush1.msra.mxu0 0.0
      %2062 = vmatprep.subr.mxu0 0.0
      %2063 = vmatpush1.msra.mxu0 0.0
      %2064 = vmatprep.subr.mxu0 0.0
      %2065 = vmatpush1.msra.mxu0 0.0
      %2066 = vmatprep.subr.mxu0 0.0
      %2067 = vmatpush1.msra.mxu0 0.0
      %2068 = vmatprep.subr.mxu0 0.0
      %2069 = vmatpush1.msra.mxu0 0.0
      %2070 = vmatprep.subr.mxu0 0.0
      %2071 = vmatpush1.msra.mxu0 0.0
      %2072 = vmatprep.subr.mxu0 0.0
      %2073 = vmatpush1.msra.mxu0 0.0
      %2074 = vmatprep.subr.mxu0 0.0
      %2075 = vmatpush1.msra.mxu0 0.0
      %2076 = vmatprep.subr.mxu0 0.0
      %2077 = vmatpush1.msra.mxu0 0.0
      %2078 = vmatprep.subr.mxu0 0.0
      %2079 = vmatpush1.msra.mxu0 0.0
      %2080 = vmatprep.subr.mxu0 0.0
      %2081 = vmatpush1.msra.mxu0 0.0
      %2082 = vmatprep.subr.mxu0 0.0
      %2083 = vmatpush1.msra.mxu0 %v2050
      %2084 = vmatprep.subr.mxu0 0.0
      %2085 = vmatpush2.msra.mxu0 0.0
      %2086 = vmatprep.subr.mxu0 0.0
      %2087 = vmatpush2.msra.mxu0 0.0
      %2088 = vmatprep.subr.mxu0 0.0
      %2089 = vmatpush2.msra.mxu0 0.0
      %2090 = vmatprep.subr.mxu0 0.0
      %2091 = vmatpush2.msra.mxu0 0.0
      %2092 = vmatprep.subr.mxu0 0.0
      %2093 = vmatpush2.msra.mxu0 0.0
      %2094 = vmatprep.subr.mxu0 0.0
      %2095 = vmatpush2.msra.mxu0 0.0
      %2096 = vmatprep.subr.mxu0 0.0
      %2097 = vmatpush2.msra.mxu0 0.0
      %2098 = vmatprep.subr.mxu0 0.0
      %2099 = vmatpush2.msra.mxu0 0.0
      %2100 = vmatprep.subr.mxu0 0.0
      %2101 = vmatpush2.msra.mxu0 0.0
      %2102 = vmatprep.subr.mxu0 0.0
      %2103 = vmatpush2.msra.mxu0 0.0
      %2104 = vmatprep.subr.mxu0 0.0
      %2105 = vmatpush2.msra.mxu0 0.0
      %2106 = vmatprep.subr.mxu0 0.0
      %2107 = vmatpush2.msra.mxu0 0.0
      %2108 = vmatprep.subr.mxu0 0.0
      %2109 = vmatpush2.msra.mxu0 0.0
      %2110 = vmatprep.subr.mxu0 0.0
      %2111 = vmatpush2.msra.mxu0 0.0
      %2112 = vmatprep.subr.mxu0 0.0
      %2113 = vmatpush2.msra.mxu0 0.0
      %2114 = vmatprep.subr.mxu0 0.0
      %2115 = vmatpush2.msra.mxu0 0.0
      %2116 = vmatprep.mubr.f32.mxu0 0.0
      %2117 = vmatmul.mubr.f32.gmra.mxu0 %v2047
      %v2118 = vpop.f32.mrf.mxu0
      %v2119 = vadd.f32 0.0, %v2118
      %v2120 = vpop.f32.mrf.mxu0
      %2121 = vdwg.mxu0
      %v2122 = vadd.f32 %v1877, %v2119
      %2123 = vrot.lane.b32.xlu0 %v649, 104
      %v2124 = vpop.permute.xlu0 %2123
      %2125 = vrot.lane.b32.xlu0 %v649, 72
      %v2126 = vpop.permute.xlu0 %2125
      %v2127 = vsel %vm655, %v2124, 0
      %v2129 = vsel %vm655, %v2126, 0
      %2131 = vmatprep.subr.mxu0 0.0
      %2132 = vmatpush1.xpose.msra.mxu0 0.0
      %2133 = vmatprep.subr.mxu0 0.0
      %2134 = vmatpush1.xpose.msra.mxu0 0.0
      %2135 = vmatprep.subr.mxu0 0.0
      %2136 = vmatpush1.xpose.msra.mxu0 0.0
      %2137 = vmatprep.subr.mxu0 0.0
      %2138 = vmatpush1.xpose.msra.mxu0 0.0
      %2139 = vmatprep.subr.mxu0 0.0
      %2140 = vmatpush1.xpose.msra.mxu0 0.0
      %2141 = vmatprep.subr.mxu0 0.0
      %2142 = vmatpush1.xpose.msra.mxu0 0.0
      %2143 = vmatprep.subr.mxu0 0.0
      %2144 = vmatpush1.xpose.msra.mxu0 0.0
      %2145 = vmatprep.subr.mxu0 0.0
      %2146 = vmatpush1.xpose.msra.mxu0 0.0
      %2147 = vmatprep.subr.mxu0 0.0
      %2148 = vmatpush1.xpose.msra.mxu0 0.0
      %2149 = vmatprep.subr.mxu0 0.0
      %2150 = vmatpush1.xpose.msra.mxu0 0.0
      %2151 = vmatprep.subr.mxu0 0.0
      %2152 = vmatpush1.xpose.msra.mxu0 0.0
      %2153 = vmatprep.subr.mxu0 0.0
      %2154 = vmatpush1.xpose.msra.mxu0 0.0
      %2155 = vmatprep.subr.mxu0 0.0
      %2156 = vmatpush1.xpose.msra.mxu0 0.0
      %2157 = vmatprep.subr.mxu0 0.0
      %2158 = vmatpush1.xpose.msra.mxu0 0.0
      %2159 = vmatprep.subr.mxu0 0.0
      %2160 = vmatpush1.xpose.msra.mxu0 0.0
      %2161 = vmatprep.subr.mxu0 0.0
      %2162 = vmatpush1.xpose.msra.mxu0 %v2129
      %2163 = vmatprep.subr.mxu0 0.0
      %2164 = vmatpush2.xpose.msra.mxu0 0.0
      %2165 = vmatprep.subr.mxu0 0.0
      %2166 = vmatpush2.xpose.msra.mxu0 0.0
      %2167 = vmatprep.subr.mxu0 0.0
      %2168 = vmatpush2.xpose.msra.mxu0 0.0
      %2169 = vmatprep.subr.mxu0 0.0
      %2170 = vmatpush2.xpose.msra.mxu0 0.0
      %2171 = vmatprep.subr.mxu0 0.0
      %2172 = vmatpush2.xpose.msra.mxu0 0.0
      %2173 = vmatprep.subr.mxu0 0.0
      %2174 = vmatpush2.xpose.msra.mxu0 0.0
      %2175 = vmatprep.subr.mxu0 0.0
      %2176 = vmatpush2.xpose.msra.mxu0 0.0
      %2177 = vmatprep.subr.mxu0 0.0
      %2178 = vmatpush2.xpose.msra.mxu0 0.0
      %2179 = vmatprep.subr.mxu0 0.0
      %2180 = vmatpush2.xpose.msra.mxu0 0.0
      %2181 = vmatprep.subr.mxu0 0.0
      %2182 = vmatpush2.xpose.msra.mxu0 0.0
      %2183 = vmatprep.subr.mxu0 0.0
      %2184 = vmatpush2.xpose.msra.mxu0 0.0
      %2185 = vmatprep.subr.mxu0 0.0
      %2186 = vmatpush2.xpose.msra.mxu0 0.0
      %2187 = vmatprep.subr.mxu0 0.0
      %2188 = vmatpush2.xpose.msra.mxu0 0.0
      %2189 = vmatprep.subr.mxu0 0.0
      %2190 = vmatpush2.xpose.msra.mxu0 0.0
      %2191 = vmatprep.subr.mxu0 0.0
      %2192 = vmatpush2.xpose.msra.mxu0 0.0
      %2193 = vmatprep.subr.mxu0 0.0
      %2194 = vmatpush2.xpose.msra.mxu0 0.0
      %2195 = vmatprep.mubr.f32.mxu0 0.0
      %2196 = vmatmul.mubr.f32.gmra.mxu0 %v2127
      %v2197 = vpop.f32.mrf.mxu0
      %v2198 = vadd.f32 0.0, %v2197
      %v2199 = vpop.f32.mrf.mxu0
      %2200 = vdwg.mxu0
      %v2201 = vsel %vm730, %v2198, -inf
      %2202 = vmax.xlane.f32.xlu0 %v2201
      %v2203 = vpop.xlane.xlu0 %2202
      %v2204 = vsub.f32 %v2198, %v2203
      %v2205 = vmul.f32 %v2204, 1.442695
      %v2206 = vpow.pop %v2205
      %v2207 = vsel %vm730, %v2206, 0.0
      %2208 = vadd.xlane.f32.xlu0 %v2207
      %v2209 = vpop.xlane.xlu0 %2208
      %v2210 = vrcp.pop %v2209
      %v2211 = vmul.f32 %v2206, %v2210
      %2212 = vrot.lane.b32.xlu0 %v649, 40
      %v2213 = vpop.permute.xlu0 %2212
      %v2215 = vsel %vm744, %v2211, 0
      %v2217 = vsel %vm748, %v2213, 0
      %2219 = vmatprep.subr.mxu0 0.0
      %2220 = vmatpush1.msra.mxu0 0.0
      %2221 = vmatprep.subr.mxu0 0.0
      %2222 = vmatpush1.msra.mxu0 0.0
      %2223 = vmatprep.subr.mxu0 0.0
      %2224 = vmatpush1.msra.mxu0 0.0
      %2225 = vmatprep.subr.mxu0 0.0
      %2226 = vmatpush1.msra.mxu0 0.0
      %2227 = vmatprep.subr.mxu0 0.0
      %2228 = vmatpush1.msra.mxu0 0.0
      %2229 = vmatprep.subr.mxu0 0.0
      %2230 = vmatpush1.msra.mxu0 0.0
      %2231 = vmatprep.subr.mxu0 0.0
      %2232 = vmatpush1.msra.mxu0 0.0
      %2233 = vmatprep.subr.mxu0 0.0
      %2234 = vmatpush1.msra.mxu0 0.0
      %2235 = vmatprep.subr.mxu0 0.0
      %2236 = vmatpush1.msra.mxu0 0.0
      %2237 = vmatprep.subr.mxu0 0.0
      %2238 = vmatpush1.msra.mxu0 0.0
      %2239 = vmatprep.subr.mxu0 0.0
      %2240 = vmatpush1.msra.mxu0 0.0
      %2241 = vmatprep.subr.mxu0 0.0
      %2242 = vmatpush1.msra.mxu0 0.0
      %2243 = vmatprep.subr.mxu0 0.0
      %2244 = vmatpush1.msra.mxu0 0.0
      %2245 = vmatprep.subr.mxu0 0.0
      %2246 = vmatpush1.msra.mxu0 0.0
      %2247 = vmatprep.subr.mxu0 0.0
      %2248 = vmatpush1.msra.mxu0 0.0
      %2249 = vmatprep.subr.mxu0 0.0
      %2250 = vmatpush1.msra.mxu0 %v2217
      %2251 = vmatprep.subr.mxu0 0.0
      %2252 = vmatpush2.msra.mxu0 0.0
      %2253 = vmatprep.subr.mxu0 0.0
      %2254 = vmatpush2.msra.mxu0 0.0
      %2255 = vmatprep.subr.mxu0 0.0
      %2256 = vmatpush2.msra.mxu0 0.0
      %2257 = vmatprep.subr.mxu0 0.0
      %2258 = vmatpush2.msra.mxu0 0.0
      %2259 = vmatprep.subr.mxu0 0.0
      %2260 = vmatpush2.msra.mxu0 0.0
      %2261 = vmatprep.subr.mxu0 0.0
      %2262 = vmatpush2.msra.mxu0 0.0
      %2263 = vmatprep.subr.mxu0 0.0
      %2264 = vmatpush2.msra.mxu0 0.0
      %2265 = vmatprep.subr.mxu0 0.0
      %2266 = vmatpush2.msra.mxu0 0.0
      %2267 = vmatprep.subr.mxu0 0.0
      %2268 = vmatpush2.msra.mxu0 0.0
      %2269 = vmatprep.subr.mxu0 0.0
      %2270 = vmatpush2.msra.mxu0 0.0
      %2271 = vmatprep.subr.mxu0 0.0
      %2272 = vmatpush2.msra.mxu0 0.0
      %2273 = vmatprep.subr.mxu0 0.0
      %2274 = vmatpush2.msra.mxu0 0.0
      %2275 = vmatprep.subr.mxu0 0.0
      %2276 = vmatpush2.msra.mxu0 0.0
      %2277 = vmatprep.subr.mxu0 0.0
      %2278 = vmatpush2.msra.mxu0 0.0
      %2279 = vmatprep.subr.mxu0 0.0
      %2280 = vmatpush2.msra.mxu0 0.0
      %2281 = vmatprep.subr.mxu0 0.0
      %2282 = vmatpush2.msra.mxu0 0.0
      %2283 = vmatprep.mubr.f32.mxu0 0.0
      %2284 = vmatmul.mubr.f32.gmra.mxu0 %v2215
      %v2285 = vpop.f32.mrf.mxu0
      %v2286 = vadd.f32 0.0, %v2285
      %v2287 = vpop.f32.mrf.mxu0
      %2288 = vdwg.mxu0
      %s2289 = scalar_lea.vmem %s5, 24
      %v2290 = vld [vmem:[%s2289] sm:$0xf]
      %v2292 = vsel %vm655, %v2286, 0
      %v2295 = vsel %vm993, %v2290, 0
      %2297 = vmatprep.subr.mxu0 0.0
      %2298 = vmatpush1.msra.mxu0 0.0
      %2299 = vmatprep.subr.mxu0 0.0
      %2300 = vmatpush1.msra.mxu0 0.0
      %2301 = vmatprep.subr.mxu0 0.0
      %2302 = vmatpush1.msra.mxu0 0.0
      %2303 = vmatprep.subr.mxu0 0.0
      %2304 = vmatpush1.msra.mxu0 0.0
      %2305 = vmatprep.subr.mxu0 0.0
      %2306 = vmatpush1.msra.mxu0 0.0
      %2307 = vmatprep.subr.mxu0 0.0
      %2308 = vmatpush1.msra.mxu0 0.0
      %2309 = vmatprep.subr.mxu0 0.0
      %2310 = vmatpush1.msra.mxu0 0.0
      %2311 = vmatprep.subr.mxu0 0.0
      %2312 = vmatpush1.msra.mxu0 0.0
      %2313 = vmatprep.subr.mxu0 0.0
      %2314 = vmatpush1.msra.mxu0 0.0
      %2315 = vmatprep.subr.mxu0 0.0
      %2316 = vmatpush1.msra.mxu0 0.0
      %2317 = vmatprep.subr.mxu0 0.0
      %2318 = vmatpush1.msra.mxu0 0.0
      %2319 = vmatprep.subr.mxu0 0.0
      %2320 = vmatpush1.msra.mxu0 0.0
      %2321 = vmatprep.subr.mxu0 0.0
      %2322 = vmatpush1.msra.mxu0 0.0
      %2323 = vmatprep.subr.mxu0 0.0
      %2324 = vmatpush1.msra.mxu0 0.0
      %2325 = vmatprep.subr.mxu0 0.0
      %2326 = vmatpush1.msra.mxu0 0.0
      %2327 = vmatprep.subr.mxu0 0.0
      %2328 = vmatpush1.msra.mxu0 %v2295
      %2329 = vmatprep.subr.mxu0 0.0
      %2330 = vmatpush2.msra.mxu0 0.0
      %2331 = vmatprep.subr.mxu0 0.0
      %2332 = vmatpush2.msra.mxu0 0.0
      %2333 = vmatprep.subr.mxu0 0.0
      %2334 = vmatpush2.msra.mxu0 0.0
      %2335 = vmatprep.subr.mxu0 0.0
      %2336 = vmatpush2.msra.mxu0 0.0
      %2337 = vmatprep.subr.mxu0 0.0
      %2338 = vmatpush2.msra.mxu0 0.0
      %2339 = vmatprep.subr.mxu0 0.0
      %2340 = vmatpush2.msra.mxu0 0.0
      %2341 = vmatprep.subr.mxu0 0.0
      %2342 = vmatpush2.msra.mxu0 0.0
      %2343 = vmatprep.subr.mxu0 0.0
      %2344 = vmatpush2.msra.mxu0 0.0
      %2345 = vmatprep.subr.mxu0 0.0
      %2346 = vmatpush2.msra.mxu0 0.0
      %2347 = vmatprep.subr.mxu0 0.0
      %2348 = vmatpush2.msra.mxu0 0.0
      %2349 = vmatprep.subr.mxu0 0.0
      %2350 = vmatpush2.msra.mxu0 0.0
      %2351 = vmatprep.subr.mxu0 0.0
      %2352 = vmatpush2.msra.mxu0 0.0
      %2353 = vmatprep.subr.mxu0 0.0
      %2354 = vmatpush2.msra.mxu0 0.0
      %2355 = vmatprep.subr.mxu0 0.0
      %2356 = vmatpush2.msra.mxu0 0.0
      %2357 = vmatprep.subr.mxu0 0.0
      %2358 = vmatpush2.msra.mxu0 0.0
      %2359 = vmatprep.subr.mxu0 0.0
      %2360 = vmatpush2.msra.mxu0 0.0
      %2361 = vmatprep.mubr.f32.mxu0 0.0
      %2362 = vmatmul.mubr.f32.gmra.mxu0 %v2292
      %v2363 = vpop.f32.mrf.mxu0
      %v2364 = vadd.f32 0.0, %v2363
      %v2365 = vpop.f32.mrf.mxu0
      %2366 = vdwg.mxu0
      %v2367 = vadd.f32 %v2122, %v2364
      %2368 = vrot.lane.b32.xlu0 %v649, 100
      %v2369 = vpop.permute.xlu0 %2368
      %2370 = vrot.lane.b32.xlu0 %v649, 68
      %v2371 = vpop.permute.xlu0 %2370
      %v2372 = vsel %vm655, %v2369, 0
      %v2374 = vsel %vm655, %v2371, 0
      %2376 = vmatprep.subr.mxu0 0.0
      %2377 = vmatpush1.xpose.msra.mxu0 0.0
      %2378 = vmatprep.subr.mxu0 0.0
      %2379 = vmatpush1.xpose.msra.mxu0 0.0
      %2380 = vmatprep.subr.mxu0 0.0
      %2381 = vmatpush1.xpose.msra.mxu0 0.0
      %2382 = vmatprep.subr.mxu0 0.0
      %2383 = vmatpush1.xpose.msra.mxu0 0.0
      %2384 = vmatprep.subr.mxu0 0.0
      %2385 = vmatpush1.xpose.msra.mxu0 0.0
      %2386 = vmatprep.subr.mxu0 0.0
      %2387 = vmatpush1.xpose.msra.mxu0 0.0
      %2388 = vmatprep.subr.mxu0 0.0
      %2389 = vmatpush1.xpose.msra.mxu0 0.0
      %2390 = vmatprep.subr.mxu0 0.0
      %2391 = vmatpush1.xpose.msra.mxu0 0.0
      %2392 = vmatprep.subr.mxu0 0.0
      %2393 = vmatpush1.xpose.msra.mxu0 0.0
      %2394 = vmatprep.subr.mxu0 0.0
      %2395 = vmatpush1.xpose.msra.mxu0 0.0
      %2396 = vmatprep.subr.mxu0 0.0
      %2397 = vmatpush1.xpose.msra.mxu0 0.0
      %2398 = vmatprep.subr.mxu0 0.0
      %2399 = vmatpush1.xpose.msra.mxu0 0.0
      %2400 = vmatprep.subr.mxu0 0.0
      %2401 = vmatpush1.xpose.msra.mxu0 0.0
      %2402 = vmatprep.subr.mxu0 0.0
      %2403 = vmatpush1.xpose.msra.mxu0 0.0
      %2404 = vmatprep.subr.mxu0 0.0
      %2405 = vmatpush1.xpose.msra.mxu0 0.0
      %2406 = vmatprep.subr.mxu0 0.0
      %2407 = vmatpush1.xpose.msra.mxu0 %v2374
      %2408 = vmatprep.subr.mxu0 0.0
      %2409 = vmatpush2.xpose.msra.mxu0 0.0
      %2410 = vmatprep.subr.mxu0 0.0
      %2411 = vmatpush2.xpose.msra.mxu0 0.0
      %2412 = vmatprep.subr.mxu0 0.0
      %2413 = vmatpush2.xpose.msra.mxu0 0.0
      %2414 = vmatprep.subr.mxu0 0.0
      %2415 = vmatpush2.xpose.msra.mxu0 0.0
      %2416 = vmatprep.subr.mxu0 0.0
      %2417 = vmatpush2.xpose.msra.mxu0 0.0
      %2418 = vmatprep.subr.mxu0 0.0
      %2419 = vmatpush2.xpose.msra.mxu0 0.0
      %2420 = vmatprep.subr.mxu0 0.0
      %2421 = vmatpush2.xpose.msra.mxu0 0.0
      %2422 = vmatprep.subr.mxu0 0.0
      %2423 = vmatpush2.xpose.msra.mxu0 0.0
      %2424 = vmatprep.subr.mxu0 0.0
      %2425 = vmatpush2.xpose.msra.mxu0 0.0
      %2426 = vmatprep.subr.mxu0 0.0
      %2427 = vmatpush2.xpose.msra.mxu0 0.0
      %2428 = vmatprep.subr.mxu0 0.0
      %2429 = vmatpush2.xpose.msra.mxu0 0.0
      %2430 = vmatprep.subr.mxu0 0.0
      %2431 = vmatpush2.xpose.msra.mxu0 0.0
      %2432 = vmatprep.subr.mxu0 0.0
      %2433 = vmatpush2.xpose.msra.mxu0 0.0
      %2434 = vmatprep.subr.mxu0 0.0
      %2435 = vmatpush2.xpose.msra.mxu0 0.0
      %2436 = vmatprep.subr.mxu0 0.0
      %2437 = vmatpush2.xpose.msra.mxu0 0.0
      %2438 = vmatprep.subr.mxu0 0.0
      %2439 = vmatpush2.xpose.msra.mxu0 0.0
      %2440 = vmatprep.mubr.f32.mxu0 0.0
      %2441 = vmatmul.mubr.f32.gmra.mxu0 %v2372
      %v2442 = vpop.f32.mrf.mxu0
      %v2443 = vadd.f32 0.0, %v2442
      %v2444 = vpop.f32.mrf.mxu0
      %2445 = vdwg.mxu0
      %v2446 = vsel %vm730, %v2443, -inf
      %2447 = vmax.xlane.f32.xlu0 %v2446
      %v2448 = vpop.xlane.xlu0 %2447
      %v2449 = vsub.f32 %v2443, %v2448
      %v2450 = vmul.f32 %v2449, 1.442695
      %v2451 = vpow.pop %v2450
      %v2452 = vsel %vm730, %v2451, 0.0
      %2453 = vadd.xlane.f32.xlu0 %v2452
      %v2454 = vpop.xlane.xlu0 %2453
      %v2455 = vrcp.pop %v2454
      %v2456 = vmul.f32 %v2451, %v2455
      %2457 = vrot.lane.b32.xlu0 %v649, 36
      %v2458 = vpop.permute.xlu0 %2457
      %v2460 = vsel %vm744, %v2456, 0
      %v2462 = vsel %vm748, %v2458, 0
      %2464 = vmatprep.subr.mxu0 0.0
      %2465 = vmatpush1.msra.mxu0 0.0
      %2466 = vmatprep.subr.mxu0 0.0
      %2467 = vmatpush1.msra.mxu0 0.0
      %2468 = vmatprep.subr.mxu0 0.0
      %2469 = vmatpush1.msra.mxu0 0.0
      %2470 = vmatprep.subr.mxu0 0.0
      %2471 = vmatpush1.msra.mxu0 0.0
      %2472 = vmatprep.subr.mxu0 0.0
      %2473 = vmatpush1.msra.mxu0 0.0
      %2474 = vmatprep.subr.mxu0 0.0
      %2475 = vmatpush1.msra.mxu0 0.0
      %2476 = vmatprep.subr.mxu0 0.0
      %2477 = vmatpush1.msra.mxu0 0.0
      %2478 = vmatprep.subr.mxu0 0.0
      %2479 = vmatpush1.msra.mxu0 0.0
      %2480 = vmatprep.subr.mxu0 0.0
      %2481 = vmatpush1.msra.mxu0 0.0
      %2482 = vmatprep.subr.mxu0 0.0
      %2483 = vmatpush1.msra.mxu0 0.0
      %2484 = vmatprep.subr.mxu0 0.0
      %2485 = vmatpush1.msra.mxu0 0.0
      %2486 = vmatprep.subr.mxu0 0.0
      %2487 = vmatpush1.msra.mxu0 0.0
      %2488 = vmatprep.subr.mxu0 0.0
      %2489 = vmatpush1.msra.mxu0 0.0
      %2490 = vmatprep.subr.mxu0 0.0
      %2491 = vmatpush1.msra.mxu0 0.0
      %2492 = vmatprep.subr.mxu0 0.0
      %2493 = vmatpush1.msra.mxu0 0.0
      %2494 = vmatprep.subr.mxu0 0.0
      %2495 = vmatpush1.msra.mxu0 %v2462
      %2496 = vmatprep.subr.mxu0 0.0
      %2497 = vmatpush2.msra.mxu0 0.0
      %2498 = vmatprep.subr.mxu0 0.0
      %2499 = vmatpush2.msra.mxu0 0.0
      %2500 = vmatprep.subr.mxu0 0.0
      %2501 = vmatpush2.msra.mxu0 0.0
      %2502 = vmatprep.subr.mxu0 0.0
      %2503 = vmatpush2.msra.mxu0 0.0
      %2504 = vmatprep.subr.mxu0 0.0
      %2505 = vmatpush2.msra.mxu0 0.0
      %2506 = vmatprep.subr.mxu0 0.0
      %2507 = vmatpush2.msra.mxu0 0.0
      %2508 = vmatprep.subr.mxu0 0.0
      %2509 = vmatpush2.msra.mxu0 0.0
      %2510 = vmatprep.subr.mxu0 0.0
      %2511 = vmatpush2.msra.mxu0 0.0
      %2512 = vmatprep.subr.mxu0 0.0
      %2513 = vmatpush2.msra.mxu0 0.0
      %2514 = vmatprep.subr.mxu0 0.0
      %2515 = vmatpush2.msra.mxu0 0.0
      %2516 = vmatprep.subr.mxu0 0.0
      %2517 = vmatpush2.msra.mxu0 0.0
      %2518 = vmatprep.subr.mxu0 0.0
      %2519 = vmatpush2.msra.mxu0 0.0
      %2520 = vmatprep.subr.mxu0 0.0
      %2521 = vmatpush2.msra.mxu0 0.0
      %2522 = vmatprep.subr.mxu0 0.0
      %2523 = vmatpush2.msra.mxu0 0.0
      %2524 = vmatprep.subr.mxu0 0.0
      %2525 = vmatpush2.msra.mxu0 0.0
      %2526 = vmatprep.subr.mxu0 0.0
      %2527 = vmatpush2.msra.mxu0 0.0
      %2528 = vmatprep.mubr.f32.mxu0 0.0
      %2529 = vmatmul.mubr.f32.gmra.mxu0 %v2460
      %v2530 = vpop.f32.mrf.mxu0
      %v2531 = vadd.f32 0.0, %v2530
      %v2532 = vpop.f32.mrf.mxu0
      %2533 = vdwg.mxu0
      %s2534 = scalar_lea.vmem %s5, 28
      %v2535 = vld [vmem:[%s2534] sm:$0xf]
      %v2537 = vsel %vm655, %v2531, 0
      %v2540 = vsel %vm993, %v2535, 0
      %2542 = vmatprep.subr.mxu0 0.0
      %2543 = vmatpush1.msra.mxu0 0.0
      %2544 = vmatprep.subr.mxu0 0.0
      %2545 = vmatpush1.msra.mxu0 0.0
      %2546 = vmatprep.subr.mxu0 0.0
      %2547 = vmatpush1.msra.mxu0 0.0
      %2548 = vmatprep.subr.mxu0 0.0
      %2549 = vmatpush1.msra.mxu0 0.0
      %2550 = vmatprep.subr.mxu0 0.0
      %2551 = vmatpush1.msra.mxu0 0.0
      %2552 = vmatprep.subr.mxu0 0.0
      %2553 = vmatpush1.msra.mxu0 0.0
      %2554 = vmatprep.subr.mxu0 0.0
      %2555 = vmatpush1.msra.mxu0 0.0
      %2556 = vmatprep.subr.mxu0 0.0
      %2557 = vmatpush1.msra.mxu0 0.0
      %2558 = vmatprep.subr.mxu0 0.0
      %2559 = vmatpush1.msra.mxu0 0.0
      %2560 = vmatprep.subr.mxu0 0.0
      %2561 = vmatpush1.msra.mxu0 0.0
      %2562 = vmatprep.subr.mxu0 0.0
      %2563 = vmatpush1.msra.mxu0 0.0
      %2564 = vmatprep.subr.mxu0 0.0
      %2565 = vmatpush1.msra.mxu0 0.0
      %2566 = vmatprep.subr.mxu0 0.0
      %2567 = vmatpush1.msra.mxu0 0.0
      %2568 = vmatprep.subr.mxu0 0.0
      %2569 = vmatpush1.msra.mxu0 0.0
      %2570 = vmatprep.subr.mxu0 0.0
      %2571 = vmatpush1.msra.mxu0 0.0
      %2572 = vmatprep.subr.mxu0 0.0
      %2573 = vmatpush1.msra.mxu0 %v2540
      %2574 = vmatprep.subr.mxu0 0.0
      %2575 = vmatpush2.msra.mxu0 0.0
      %2576 = vmatprep.subr.mxu0 0.0
      %2577 = vmatpush2.msra.mxu0 0.0
      %2578 = vmatprep.subr.mxu0 0.0
      %2579 = vmatpush2.msra.mxu0 0.0
      %2580 = vmatprep.subr.mxu0 0.0
      %2581 = vmatpush2.msra.mxu0 0.0
      %2582 = vmatprep.subr.mxu0 0.0
      %2583 = vmatpush2.msra.mxu0 0.0
      %2584 = vmatprep.subr.mxu0 0.0
      %2585 = vmatpush2.msra.mxu0 0.0
      %2586 = vmatprep.subr.mxu0 0.0
      %2587 = vmatpush2.msra.mxu0 0.0
      %2588 = vmatprep.subr.mxu0 0.0
      %2589 = vmatpush2.msra.mxu0 0.0
      %2590 = vmatprep.subr.mxu0 0.0
      %2591 = vmatpush2.msra.mxu0 0.0
      %2592 = vmatprep.subr.mxu0 0.0
      %2593 = vmatpush2.msra.mxu0 0.0
      %2594 = vmatprep.subr.mxu0 0.0
      %2595 = vmatpush2.msra.mxu0 0.0
      %2596 = vmatprep.subr.mxu0 0.0
      %2597 = vmatpush2.msra.mxu0 0.0
      %2598 = vmatprep.subr.mxu0 0.0
      %2599 = vmatpush2.msra.mxu0 0.0
      %2600 = vmatprep.subr.mxu0 0.0
      %2601 = vmatpush2.msra.mxu0 0.0
      %2602 = vmatprep.subr.mxu0 0.0
      %2603 = vmatpush2.msra.mxu0 0.0
      %2604 = vmatprep.subr.mxu0 0.0
      %2605 = vmatpush2.msra.mxu0 0.0
      %2606 = vmatprep.mubr.f32.mxu0 0.0
      %2607 = vmatmul.mubr.f32.gmra.mxu0 %v2537
      %v2608 = vpop.f32.mrf.mxu0
      %v2609 = vadd.f32 0.0, %v2608
      %v2610 = vpop.f32.mrf.mxu0
      %2611 = vdwg.mxu0
      %v2612 = vadd.f32 %v2367, %v2609
      %v2613 = vld [vmem:[%s6] sm:$0x1]
      %v2615 = vlaneseq
      %v2616 = vshrl.u32 %v2615, 7
      %v2617 = vsub.s32 0, %v2616
      %v2618 = vrot.slane %v2613, %v2617
      %v2620 = vadd.f32 %v2612, %v2618
      %v2621 = vld [vmem:[%s7] sm:$0xff]
      %v2622 = vld [vmem:[%s7 + $0x8] sm:$0xff]
      %v2623 = vld [vmem:[%s7 + $0x10] sm:$0xff]
      %v2624 = vld [vmem:[%s7 + $0x18] sm:$0xff]
      %v2625 = vld [vmem:[%s7 + $0x20] sm:$0xff]
      %v2626 = vld [vmem:[%s7 + $0x28] sm:$0xff]
      %v2627 = vld [vmem:[%s7 + $0x30] sm:$0xff]
      %v2628 = vld [vmem:[%s7 + $0x38] sm:$0xff]
      %v2629 = vld [vmem:[%s7 + $0x40] sm:$0xff]
      %v2630 = vld [vmem:[%s7 + $0x48] sm:$0xff]
      %v2631 = vld [vmem:[%s7 + $0x50] sm:$0xff]
      %v2632 = vld [vmem:[%s7 + $0x58] sm:$0xff]
      %v2633 = vld [vmem:[%s7 + $0x60] sm:$0xff]
      %v2634 = vld [vmem:[%s7 + $0x68] sm:$0xff]
      %v2635 = vld [vmem:[%s7 + $0x70] sm:$0xff]
      %v2636 = vld [vmem:[%s7 + $0x78] sm:$0xff]
      %v2637 = vld [vmem:[%s8] sm:$0xf]
      %v2639 = vlaneseq
      %v2640 = vshrl.u32 %v2639, 7
      %v2641 = vsub.s32 0, %v2640
      %v2642 = vrot.slane %v2637, %v2641
      %v2643 = vlaneseq
      %v2644 = vshrl.u32 %v2643, 7
      %v2645 = vsub.s32 1, %v2644
      %v2646 = vrot.slane %v2637, %v2645
      %v2647 = vlaneseq
      %v2648 = vshrl.u32 %v2647, 7
      %v2649 = vsub.s32 2, %v2648
      %v2650 = vrot.slane %v2637, %v2649
      %v2651 = vlaneseq
      %v2652 = vshrl.u32 %v2651, 7
      %v2653 = vsub.s32 3, %v2652
      %v2654 = vrot.slane %v2637, %v2653
      %v2660 = vsel %vm578, %v2620, 0
      %2662 = vmatprep.subr.mxu0 0.0
      %2663 = vmatpush1.msra.mxu0 0.0
      %2664 = vmatprep.subr.mxu0 0.0
      %2665 = vmatpush1.msra.mxu0 0.0
      %2666 = vmatprep.subr.mxu0 0.0
      %2667 = vmatpush1.msra.mxu0 0.0
      %2668 = vmatprep.subr.mxu0 0.0
      %2669 = vmatpush1.msra.mxu0 0.0
      %2670 = vmatprep.subr.mxu0 0.0
      %2671 = vmatpush1.msra.mxu0 0.0
      %2672 = vmatprep.subr.mxu0 0.0
      %2673 = vmatpush1.msra.mxu0 0.0
      %2674 = vmatprep.subr.mxu0 0.0
      %2675 = vmatpush1.msra.mxu0 0.0
      %2676 = vmatprep.subr.mxu0 0.0
      %2677 = vmatpush1.msra.mxu0 0.0
      %2678 = vmatprep.subr.mxu0 0.0
      %2679 = vmatpush1.msra.mxu0 0.0
      %2680 = vmatprep.subr.mxu0 0.0
      %2681 = vmatpush1.msra.mxu0 0.0
      %2682 = vmatprep.subr.mxu0 0.0
      %2683 = vmatpush1.msra.mxu0 0.0
      %2684 = vmatprep.subr.mxu0 0.0
      %2685 = vmatpush1.msra.mxu0 0.0
      %2686 = vmatprep.subr.mxu0 %v2634
      %2687 = vmatpush1.msra.mxu0 %v2633
      %2688 = vmatprep.subr.mxu0 %v2630
      %2689 = vmatpush1.msra.mxu0 %v2629
      %2690 = vmatprep.subr.mxu0 %v2626
      %2691 = vmatpush1.msra.mxu0 %v2625
      %2692 = vmatprep.subr.mxu0 %v2622
      %2693 = vmatpush1.msra.mxu0 %v2621
      %2694 = vmatprep.subr.mxu0 0.0
      %2695 = vmatpush2.msra.mxu0 0.0
      %2696 = vmatprep.subr.mxu0 0.0
      %2697 = vmatpush2.msra.mxu0 0.0
      %2698 = vmatprep.subr.mxu0 0.0
      %2699 = vmatpush2.msra.mxu0 0.0
      %2700 = vmatprep.subr.mxu0 0.0
      %2701 = vmatpush2.msra.mxu0 0.0
      %2702 = vmatprep.subr.mxu0 0.0
      %2703 = vmatpush2.msra.mxu0 0.0
      %2704 = vmatprep.subr.mxu0 0.0
      %2705 = vmatpush2.msra.mxu0 0.0
      %2706 = vmatprep.subr.mxu0 0.0
      %2707 = vmatpush2.msra.mxu0 0.0
      %2708 = vmatprep.subr.mxu0 0.0
      %2709 = vmatpush2.msra.mxu0 0.0
      %2710 = vmatprep.subr.mxu0 0.0
      %2711 = vmatpush2.msra.mxu0 0.0
      %2712 = vmatprep.subr.mxu0 0.0
      %2713 = vmatpush2.msra.mxu0 0.0
      %2714 = vmatprep.subr.mxu0 0.0
      %2715 = vmatpush2.msra.mxu0 0.0
      %2716 = vmatprep.subr.mxu0 0.0
      %2717 = vmatpush2.msra.mxu0 0.0
      %2718 = vmatprep.subr.mxu0 0.0
      %2719 = vmatpush2.msra.mxu0 0.0
      %2720 = vmatprep.subr.mxu0 0.0
      %2721 = vmatpush2.msra.mxu0 0.0
      %2722 = vmatprep.subr.mxu0 0.0
      %2723 = vmatpush2.msra.mxu0 0.0
      %2724 = vmatprep.subr.mxu0 0.0
      %2725 = vmatpush2.msra.mxu0 0.0
      %2726 = vmatprep.mubr.f32.mxu0 0.0
      %2727 = vmatmul.mubr.f32.gmra.mxu0 %v2660
      %v2728 = vpop.f32.mrf.mxu0
      %v2729 = vadd.f32 %v2642, %v2728
      %v2730 = vpop.f32.mrf.mxu0
      %v2731 = vadd.f32 %v2646, %v2730
      %2732 = vdwg.mxu0
      %2733 = vmatprep.subr.mxu0 0.0
      %2734 = vmatpush1.msra.mxu0 0.0
      %2735 = vmatprep.subr.mxu0 0.0
      %2736 = vmatpush1.msra.mxu0 0.0
      %2737 = vmatprep.subr.mxu0 0.0
      %2738 = vmatpush1.msra.mxu0 0.0
      %2739 = vmatprep.subr.mxu0 0.0
      %2740 = vmatpush1.msra.mxu0 0.0
      %2741 = vmatprep.subr.mxu0 0.0
      %2742 = vmatpush1.msra.mxu0 0.0
      %2743 = vmatprep.subr.mxu0 0.0
      %2744 = vmatpush1.msra.mxu0 0.0
      %2745 = vmatprep.subr.mxu0 0.0
      %2746 = vmatpush1.msra.mxu0 0.0
      %2747 = vmatprep.subr.mxu0 0.0
      %2748 = vmatpush1.msra.mxu0 0.0
      %2749 = vmatprep.subr.mxu0 0.0
      %2750 = vmatpush1.msra.mxu0 0.0
      %2751 = vmatprep.subr.mxu0 0.0
      %2752 = vmatpush1.msra.mxu0 0.0
      %2753 = vmatprep.subr.mxu0 0.0
      %2754 = vmatpush1.msra.mxu0 0.0
      %2755 = vmatprep.subr.mxu0 0.0
      %2756 = vmatpush1.msra.mxu0 0.0
      %2757 = vmatprep.subr.mxu0 %v2636
      %2758 = vmatpush1.msra.mxu0 %v2635
      %2759 = vmatprep.subr.mxu0 %v2632
      %2760 = vmatpush1.msra.mxu0 %v2631
      %2761 = vmatprep.subr.mxu0 %v2628
      %2762 = vmatpush1.msra.mxu0 %v2627
      %2763 = vmatprep.subr.mxu0 %v2624
      %2764 = vmatpush1.msra.mxu0 %v2623
      %2765 = vmatprep.subr.mxu0 0.0
      %2766 = vmatpush2.msra.mxu0 0.0
      %2767 = vmatprep.subr.mxu0 0.0
      %2768 = vmatpush2.msra.mxu0 0.0
      %2769 = vmatprep.subr.mxu0 0.0
      %2770 = vmatpush2.msra.mxu0 0.0
      %2771 = vmatprep.subr.mxu0 0.0
      %2772 = vmatpush2.msra.mxu0 0.0
      %2773 = vmatprep.subr.mxu0 0.0
      %2774 = vmatpush2.msra.mxu0 0.0
      %2775 = vmatprep.subr.mxu0 0.0
      %2776 = vmatpush2.msra.mxu0 0.0
      %2777 = vmatprep.subr.mxu0 0.0
      %2778 = vmatpush2.msra.mxu0 0.0
      %2779 = vmatprep.subr.mxu0 0.0
      %2780 = vmatpush2.msra.mxu0 0.0
      %2781 = vmatprep.subr.mxu0 0.0
      %2782 = vmatpush2.msra.mxu0 0.0
      %2783 = vmatprep.subr.mxu0 0.0
      %2784 = vmatpush2.msra.mxu0 0.0
      %2785 = vmatprep.subr.mxu0 0.0
      %2786 = vmatpush2.msra.mxu0 0.0
      %2787 = vmatprep.subr.mxu0 0.0
      %2788 = vmatpush2.msra.mxu0 0.0
      %2789 = vmatprep.subr.mxu0 0.0
      %2790 = vmatpush2.msra.mxu0 0.0
      %2791 = vmatprep.subr.mxu0 0.0
      %2792 = vmatpush2.msra.mxu0 0.0
      %2793 = vmatprep.subr.mxu0 0.0
      %2794 = vmatpush2.msra.mxu0 0.0
      %2795 = vmatprep.subr.mxu0 0.0
      %2796 = vmatpush2.msra.mxu0 0.0
      %2797 = vmatprep.mubr.f32.mxu0 0.0
      %2798 = vmatmul.mubr.f32.gmra.mxu0 %v2660
      %v2799 = vpop.f32.mrf.mxu0
      %v2800 = vadd.f32 %v2650, %v2799
      %v2801 = vpop.f32.mrf.mxu0
      %v2802 = vadd.f32 %v2654, %v2801
      %2803 = vdwg.mxu0
      %v2808 = vcombine.low %v2729, %v2731
      %v2809 = vcombine.low %v2800, %v2802
      %v2811 = vunpack.c.l.s4 1983009808
      %v2812 = vunpack.c.0.s8 %v2811
      %v2813 = vlaneseq
      %v2814 = vshrl.u32 %v2813, 7
      %v2815 = vsub.s32 %v2812, %v2814
      %v2816 = vrot.slane %v2808, %v2815
      %v2818 = vunpack.c.l.s4 1983009808
      %v2819 = vunpack.c.0.s8 %v2818
      %v2820 = vlaneseq
      %v2821 = vshrl.u32 %v2820, 7
      %v2822 = vsub.s32 %v2819, %v2821
      %v2823 = vrot.slane %v2809, %v2822
      %v2824 = vcombine.low %v2816, %v2823
      %2826 = vst [vmem:[%s332] sm:$0xff] %v2824
      %p2827 = scmp.lt.s32.totalorder %s20, 3
      %s2828 = scalar_select %p2827, %s20, 3
      %s2829 = smul.addr %s2828, 4
      %s2830 = smul.addr %s2829, 2
      %s2831 = scalar_lea.vmem %s9, %s2830
      // Predicated region
      $region57: #{attention_block_forward.2} parent=55 // pred_check
        %p2832 = pneg %p232
      $region58: #{attention_block_forward.2} parent=55 // pred_check_branch
        %2834 = sbr.rel (%p2832) target = $region60
      $region59: #{attention_block_forward.2} parent=55 // pred_region
        _
      $region60: #{attention_block_forward.2} parent=55 // pred_fallthru
        _
    $region56: #{attention_block_forward.2} parent=5 // pred_fallthru
      _
    %p2835 = scmp.le.s32.totalorder 2, %s15
    // Predicated region
    $region61: #{attention_block_forward.2} parent=5 // pred_check
      %p2836 = pneg %p2835
    $region62: #{attention_block_forward.2} parent=5 // pred_check_branch
      %2838 = sbr.rel (%p2836) target = $region64
    $region63: #{attention_block_forward.2} parent=5 // pred_region
      %s2839 = ssub.s32 %s15, 2
      // Predicated region
      $region65: #{attention_block_forward.2} parent=63 // pred_check
        %p2840 = pneg %p238
      $region66: #{attention_block_forward.2} parent=63 // pred_check_branch
        %2842 = sbr.rel (%p2840) target = $region68
      $region67: #{attention_block_forward.2} parent=63 // pred_region
        %p2843 = scmp.lt.s32.totalorder %s21, 3
        %s2844 = scalar_select %p2843, %s21, 3
        %s2845 = smul.addr %s2844, 4
        %s2846 = smul.addr %s2845, 2
        %s2847 = scalar_lea.vmem %s9, %s2846
      $region68: #{attention_block_forward.2} parent=63 // pred_fallthru
        _
    $region64: #{attention_block_forward.2} parent=5 // pred_fallthru
      _
  $region6: #{attention_block_forward.2} parent=0 // loop_footer
    %s19 = sadd.s32 1, %s15
  $region7: #{attention_block_forward.2} parent=0 // loop_footer_branch
    %14 = sbr.rel target = $region3
  $region8: #{attention_block_forward.2} parent=0 // loop_exit
    _

// kernel: attention_block_forward.3
$region0: #{attention_block_forward.3}
  #allocation0 [shape = 'u32[]', space=smem, size = 0x4, offset = 0x4, fixed_abs, tag = 'smem constant byte address 0x4 - core index']
  #allocation1 [shape = 'u32[144,128]{1,0:T(1,128)}', space=vmem, size = 0x12000, scoped, tag = 'internal scratch']
  #allocation2 [shape = 'f32[2,358]{1,0:T(2,128)}', space=vmem, size = 0xc00, scoped, tag = 'scratch operand']
  #allocation3 [shape = 'f32[8,290]{1,0:T(8,128)}', space=vmem, size = 0x3000, scoped, tag = 'scratch operand']
  #allocation4 [shape = 'f32[8,290]{1,0:T(8,128)}', space=vmem, size = 0x3000, scoped, tag = 'scratch operand']
  #allocation5 [shape = 'f32[8,290]{1,0:T(8,128)}', space=vmem, size = 0x3000, scoped, tag = 'scratch operand']
  %s0 = inlined_call_operand.vmem [shape: f32[2,8,256], index: 0, kind: input, shape index: {}]
  %s1 = inlined_call_operand.vmem [shape: f32[2,8,256], index: 1, kind: input, shape index: {}]
  %s2 = inlined_call_operand.vmem [shape: f32[98], index: 2, kind: input, shape index: {}]
  %s3 = inlined_call_operand.vmem [shape: f32[2,8], index: 3, kind: input, shape index: {}]
  %s4 = inlined_call_operand.vmem [shape: f32[8,2], index: 4, kind: input, shape index: {}]
  %s5 = inlined_call_operand.vmem [shape: f32[27,8,8], index: 5, kind: input, shape index: {}]
  %s6 = inlined_call_operand.vmem [shape: f32[8,1], index: 6, kind: input, shape index: {}]
  %s7 = inlined_call_operand.vmem [shape: f32[2,8,256], index: 7, kind: output, shape index: {}]
  %s8 = sld [smem:[#allocation0]]
  $region65: #{attention_block_forward.3} parent=0
    _
  %s10 = ssub.s32 1, %s8
  %s11 = scalar_select 0, %s10, %s8
  $region1: #{attention_block_forward.3} parent=0
    #allocation6 [shape = 'u8[512]{0}', space=smem, size = 0x200, scoped, tag = 'input window, operand 2, single buffered']
    #allocation7 [shape = 's32[2]{0}', space=sflag, size = 0x8, scoped, tag = 'scoped memory for attention_block_forward.3']
    %12 = vsyncpa [#allocation7], 0
    loop: start=0, step=1, limit=4
    $region2: #{attention_block_forward.3} parent=1 // loop_pre_header
      _
    $region3: #{attention_block_forward.3} parent=1 // loop_header
      %s14 = sphi 0, %s18
      %p15 = scmp.ge.s32.totalorder %s14, 4
      %s24 = sphi 0, %s26
      %s27 = sphi 0, %s24
      %s28 = sphi 0, %s27
      %s44 = sphi 0, %s28
      %s50 = sphi 0, %s52
      %s53 = sphi 0, %s50
      %s54 = sphi 0, %s53
      %s70 = sphi 0, %s54
      %s74 = sphi 0, %s74
      %s76 = sphi 0, %s74
      %s77 = sphi 0, %s76
      %s91 = sphi 0, %s77
      %s95 = sphi 0, %s95
      %s97 = sphi 0, %s95
      %s98 = sphi 0, %s97
      %s112 = sphi 0, %s98
      %s116 = sphi 0, %s116
      %s118 = sphi 0, %s116
      %s119 = sphi 0, %s118
      %s133 = sphi 0, %s119
      %s137 = sphi 0, %s137
      %s139 = sphi 0, %s137
      %s140 = sphi 0, %s139
      %s154 = sphi 0, %s140
      %s158 = sphi 0, %s158
      %s160 = sphi 0, %s158
      %s161 = sphi 0, %s160
      %s175 = sphi 0, %s161
      %s181 = sphi 0, %s183
      %s184 = sphi 0, %s181
      %s185 = sphi 0, %s184
      %s201 = sphi 0, %s185
    $region4: #{attention_block_forward.3} parent=1 // loop_header_branch
      %17 = sbr.rel (%p15) target = $region8
    $region5: #{attention_block_forward.3} parent=1 // loop_body
      %s19 = ssub.s32 %s14, 1
      %s20 = ssub.s32 %s14, 2
      %s21 = sadd.s32 %s14, 1
      %s22 = ssub.s32 %s14, %s21
      %p23 = scmp.eq.s32.totalorder %s22, 0
      %s25 = sadd.s32 %s24, 1
      %s26 = scalar_select %p23, %s24, %s25
      %p29 = pneg %p23
      %p30 = scmp.eq.s32.totalorder %s14, 1
      %p31 = por %p29, %p30
      %p32 = scmp.ne.s32.totalorder %s24, %s27
      %p33 = scmp.eq.s32.totalorder %s14, 0
      %p34 = por %p32, %p33
      %p35 = scmp.ne.s32.totalorder %s24, %s27
      %p36 = scmp.eq.s32.totalorder %s19, 1
      %p37 = por %p35, %p36
      %p38 = scmp.ne.s32.totalorder %s27, %s28
      %p39 = scmp.eq.s32.totalorder %s19, 0
      %p40 = por %p38, %p39
      %p41 = scmp.ne.s32.totalorder %s27, %s28
      %p42 = scmp.eq.s32.totalorder %s20, 1
      %p43 = por %p41, %p42
      %p45 = scmp.ne.s32.totalorder %s28, %s44
      %p46 = scmp.eq.s32.totalorder %s20, 0
      %p47 = por %p45, %p46
      %s48 = ssub.s32 %s14, %s21
      %p49 = scmp.eq.s32.totalorder %s48, 0
      %s51 = sadd.s32 %s50, 1
      %s52 = scalar_select %p49, %s50, %s51
      %p55 = pneg %p49
      %p56 = scmp.eq.s32.totalorder %s14, 1
      %p57 = por %p55, %p56
      %p58 = scmp.ne.s32.totalorder %s50, %s53
      %p59 = scmp.eq.s32.totalorder %s14, 0
      %p60 = por %p58, %p59
      %p61 = scmp.ne.s32.totalorder %s50, %s53
      %p62 = scmp.eq.s32.totalorder %s19, 1
      %p63 = por %p61, %p62
      %p64 = scmp.ne.s32.totalorder %s53, %s54
      %p65 = scmp.eq.s32.totalorder %s19, 0
      %p66 = por %p64, %p65
      %p67 = scmp.ne.s32.totalorder %s53, %s54
      %p68 = scmp.eq.s32.totalorder %s20, 1
      %p69 = por %p67, %p68
      %p71 = scmp.ne.s32.totalorder %s54, %s70
      %p72 = scmp.eq.s32.totalorder %s20, 0
      %p73 = por %p71, %p72
      %s75 = sadd.s32 %s74, 1
      %p78 = scmp.eq.s32.totalorder %s14, 1
      %p79 = scmp.ne.s32.totalorder %s74, %s76
      %p80 = scmp.eq.s32.totalorder %s14, 0
      %p81 = por %p79, %p80
      %p82 = scmp.ne.s32.totalorder %s74, %s76
      %p83 = scmp.eq.s32.totalorder %s19, 1
      %p84 = por %p82, %p83
      %p85 = scmp.ne.s32.totalorder %s76, %s77
      %p86 = scmp.eq.s32.totalorder %s19, 0
      %p87 = por %p85, %p86
      %p88 = scmp.ne.s32.totalorder %s76, %s77
      %p89 = scmp.eq.s32.totalorder %s20, 1
      %p90 = por %p88, %p89
      %p92 = scmp.ne.s32.totalorder %s77, %s91
      %p93 = scmp.eq.s32.totalorder %s20, 0
      %p94 = por %p92, %p93
      %s96 = sadd.s32 %s95, 1
      %p99 = scmp.eq.s32.totalorder %s14, 1
      %p100 = scmp.ne.s32.totalorder %s95, %s97
      %p101 = scmp.eq.s32.totalorder %s14, 0
      %p102 = por %p100, %p101
      %p103 = scmp.ne.s32.totalorder %s95, %s97
      %p104 = scmp.eq.s32.totalorder %s19, 1
      %p105 = por %p103, %p104
      %p106 = scmp.ne.s32.totalorder %s97, %s98
      %p107 = scmp.eq.s32.totalorder %s19, 0
      %p108 = por %p106, %p107
      %p109 = scmp.ne.s32.totalorder %s97, %s98
      %p110 = scmp.eq.s32.totalorder %s20, 1
      %p111 = por %p109, %p110
      %p113 = scmp.ne.s32.totalorder %s98, %s112
      %p114 = scmp.eq.s32.totalorder %s20, 0
      %p115 = por %p113, %p114
      %s117 = sadd.s32 %s116, 1
      %p120 = scmp.eq.s32.totalorder %s14, 1
      %p121 = scmp.ne.s32.totalorder %s116, %s118
      %p122 = scmp.eq.s32.totalorder %s14, 0
      %p123 = por %p121, %p122
      %p124 = scmp.ne.s32.totalorder %s116, %s118
      %p125 = scmp.eq.s32.totalorder %s19, 1
      %p126 = por %p124, %p125
      %p127 = scmp.ne.s32.totalorder %s118, %s119
      %p128 = scmp.eq.s32.totalorder %s19, 0
      %p129 = por %p127, %p128
      %p130 = scmp.ne.s32.totalorder %s118, %s119
      %p131 = scmp.eq.s32.totalorder %s20, 1
      %p132 = por %p130, %p131
      %p134 = scmp.ne.s32.totalorder %s119, %s133
      %p135 = scmp.eq.s32.totalorder %s20, 0
      %p136 = por %p134, %p135
      %s138 = sadd.s32 %s137, 1
      %p141 = scmp.eq.s32.totalorder %s14, 1
      %p142 = scmp.ne.s32.totalorder %s137, %s139
      %p143 = scmp.eq.s32.totalorder %s14, 0
      %p144 = por %p142, %p143
      %p145 = scmp.ne.s32.totalorder %s137, %s139
      %p146 = scmp.eq.s32.totalorder %s19, 1
      %p147 = por %p145, %p146
      %p148 = scmp.ne.s32.totalorder %s139, %s140
      %p149 = scmp.eq.s32.totalorder %s19, 0
      %p150 = por %p148, %p149
      %p151 = scmp.ne.s32.totalorder %s139, %s140
      %p152 = scmp.eq.s32.totalorder %s20, 1
      %p153 = por %p151, %p152
      %p155 = scmp.ne.s32.totalorder %s140, %s154
      %p156 = scmp.eq.s32.totalorder %s20, 0
      %p157 = por %p155, %p156
      %s159 = sadd.s32 %s158, 1
      %p162 = scmp.eq.s32.totalorder %s14, 1
      %p163 = scmp.ne.s32.totalorder %s158, %s160
      %p164 = scmp.eq.s32.totalorder %s14, 0
      %p165 = por %p163, %p164
      %p166 = scmp.ne.s32.totalorder %s158, %s160
      %p167 = scmp.eq.s32.totalorder %s19, 1
      %p168 = por %p166, %p167
      %p169 = scmp.ne.s32.totalorder %s160, %s161
      %p170 = scmp.eq.s32.totalorder %s19, 0
      %p171 = por %p169, %p170
      %p172 = scmp.ne.s32.totalorder %s160, %s161
      %p173 = scmp.eq.s32.totalorder %s20, 1
      %p174 = por %p172, %p173
      %p176 = scmp.ne.s32.totalorder %s161, %s175
      %p177 = scmp.eq.s32.totalorder %s20, 0
      %p178 = por %p176, %p177
      %s179 = ssub.s32 %s14, %s21
      %p180 = scmp.eq.s32.totalorder %s179, 0
      %s182 = sadd.s32 %s181, 1
      %s183 = scalar_select %p180, %s181, %s182
      %p186 = pneg %p180
      %p187 = scmp.eq.s32.totalorder %s14, 1
      %p188 = por %p186, %p187
      %p189 = scmp.ne.s32.totalorder %s181, %s184
      %p190 = scmp.eq.s32.totalorder %s14, 0
      %p191 = por %p189, %p190
      %p192 = scmp.ne.s32.totalorder %s181, %s184
      %p193 = scmp.eq.s32.totalorder %s19, 1
      %p194 = por %p192, %p193
      %p195 = scmp.ne.s32.totalorder %s184, %s185
      %p196 = scmp.eq.s32.totalorder %s19, 0
      %p197 = por %p195, %p196
      %p198 = scmp.ne.s32.totalorder %s184, %s185
      %p199 = scmp.eq.s32.totalorder %s20, 1
      %p200 = por %p198, %p199
      %p202 = scmp.ne.s32.totalorder %s185, %s201
      %p203 = scmp.eq.s32.totalorder %s20, 0
      %p204 = por %p202, %p203
      %p205 = scmp.le.s32.totalorder 1, %s14
      %p206 = scmp.lt.s32.totalorder %s14, 3
      %p207 = pnand %p205, %p206
      %p208 = pneg %p207
      // Predicated region
      $region9: #{attention_block_forward.3} parent=5 // pred_check
        _
      $region10: #{attention_block_forward.3} parent=5 // pred_check_branch
        %210 = sbr.rel (%p207) target = $region12
      $region11: #{attention_block_forward.3} parent=5 // pred_region
        %s211 = ssub.s32 %s14, 1
        // Predicated region
        $region13: #{attention_block_forward.3} parent=11 // pred_check
          %p212 = pneg %p87
        $region14: #{attention_block_forward.3} parent=11 // pred_check_branch
          %214 = sbr.rel (%p212) target = $region16
        $region15: #{attention_block_forward.3} parent=11 // pred_region
          %s216 = ssub.s32 16, 16
          %217 = vsyncadd [#allocation7], %s216
          %s219 = sshll.u32 %s2, 4
          %s220 = int_to_ptr.vmem [resolvable:$true] %s219
          %222 = dma.vmem_to_smem %s220, 16, [#allocation6], [#allocation7]
        $region16: #{attention_block_forward.3} parent=11 // pred_fallthru
          _
        // Predicated region
        $region17: #{attention_block_forward.3} parent=11 // pred_check
          %p223 = pneg %p108
        $region18: #{attention_block_forward.3} parent=11 // pred_check_branch
          %225 = sbr.rel (%p223) target = $region20
        $region19: #{attention_block_forward.3} parent=11 // pred_region
          _
        $region20: #{attention_block_forward.3} parent=11 // pred_fallthru
          _
        // Predicated region
        $region21: #{attention_block_forward.3} parent=11 // pred_check
          %p226 = pneg %p129
        $region22: #{attention_block_forward.3} parent=11 // pred_check_branch
          %228 = sbr.rel (%p226) target = $region24
        $region23: #{attention_block_forward.3} parent=11 // pred_region
          _
        $region24: #{attention_block_forward.3} parent=11 // pred_fallthru
          _
        // Predicated region
        $region25: #{attention_block_forward.3} parent=11 // pred_check
          %p229 = pneg %p150
        $region26: #{attention_block_forward.3} parent=11 // pred_check_branch
          %231 = sbr.rel (%p229) target = $region28
        $region27: #{attention_block_forward.3} parent=11 // pred_region
          _
        $region28: #{attention_block_forward.3} parent=11 // pred_fallthru
          _
        // Predicated region
        $region29: #{attention_block_forward.3} parent=11 // pred_check
          %p232 = pneg %p171
        $region30: #{attention_block_forward.3} parent=11 // pred_check_branch
          %234 = sbr.rel (%p232) target = $region32
        $region31: #{attention_block_forward.3} parent=11 // pred_region
          _
        $region32: #{attention_block_forward.3} parent=11 // pred_fallthru
          _
      $region12: #{attention_block_forward.3} parent=5 // pred_fallthru
        _
      %p235 = scmp.lt.s32.totalorder %s14, 2
      // Predicated region
      $region33: #{attention_block_forward.3} parent=5 // pred_check
        %p236 = pneg %p235
      $region34: #{attention_block_forward.3} parent=5 // pred_check_branch
        %238 = sbr.rel (%p236) target = $region36
      $region35: #{attention_block_forward.3} parent=5 // pred_region
        // Predicated region
        $region37: #{attention_block_forward.3} parent=35 // pred_check
          %p239 = pneg %p34
        $region38: #{attention_block_forward.3} parent=35 // pred_check_branch
          %241 = sbr.rel (%p239) target = $region40
        $region39: #{attention_block_forward.3} parent=35 // pred_region
          %p242 = scmp.lt.s32.totalorder %s14, 1
          %s243 = scalar_select %p242, %s14, 1
          %s244 = smul.addr %s243, 2
          %s245 = smul.addr %s244, 8
          %s246 = scalar_lea.vmem %s0, %s245
        $region40: #{attention_block_forward.3} parent=35 // pred_fallthru
          _
        // Predicated region
        $region41: #{attention_block_forward.3} parent=35 // pred_check
          %p247 = pneg %p60
        $region42: #{attention_block_forward.3} parent=35 // pred_check_branch
          %249 = sbr.rel (%p247) target = $region44
        $region43: #{attention_block_forward.3} parent=35 // pred_region
          %p250 = scmp.lt.s32.totalorder %s14, 1
          %s251 = scalar_select %p250, %s14, 1
          %s252 = smul.addr %s251, 2
          %s253 = smul.addr %s252, 8
          %s254 = scalar_lea.vmem %s1, %s253
        $region44: #{attention_block_forward.3} parent=35 // pred_fallthru
          _
      $region36: #{attention_block_forward.3} parent=5 // pred_fallthru
        _
      %p255 = scmp.le.s32.totalorder 1, %s14
      %p256 = scmp.lt.s32.totalorder %s14, 3
      %p257 = pnand %p255, %p256
      %p258 = pneg %p257
      // Predicated region
      $region45: #{attention_block_forward.3} parent=5 // pred_check
        _
      $region46: #{attention_block_forward.3} parent=5 // pred_check_branch
        %260 = sbr.rel (%p257) target = $region48
      $region47: #{attention_block_forward.3} parent=5 // pred_region
        %s261 = ssub.s32 %s14, 1
        // Predicated region
        $region49: #{attention_block_forward.3} parent=47 // pred_check
          %p262 = pneg %p87
        $region50: #{attention_block_forward.3} parent=47 // pred_check_branch
          %264 = sbr.rel (%p262) target = $region52
        $region51: #{attention_block_forward.3} parent=47 // pred_region
          %265 = dma.done [#allocation7], 16
        $region52: #{attention_block_forward.3} parent=47 // pred_fallthru
          _
        %266 = sfence
        %p267 = scmp.lt.s32.totalorder %s19, 1
        %s268 = scalar_select %p267, %s19, 1
        %s269 = smul.addr %s268, 2
        %s270 = smul.addr %s269, 8
        %s271 = scalar_lea.vmem %s0, %s270
        %p272 = pneg %p40
        %p273 = pneg %p37
        %p274 = scmp.lt.s32.totalorder %s19, 1
        %s275 = scalar_select %p274, %s19, 1
        %s276 = smul.addr %s275, 2
        %s277 = smul.addr %s276, 8
        %s278 = scalar_lea.vmem %s1, %s277
        %p279 = pneg %p66
        %p280 = pneg %p63
        %p281 = pneg %p87
        %p282 = pneg %p84
        %p283 = pneg %p108
        %p284 = pneg %p105
        %p285 = pneg %p129
        %p286 = pneg %p126
        %p287 = pneg %p150
        %p288 = pneg %p147
        %p289 = pneg %p171
        %p290 = pneg %p168
        %p291 = pneg %p197
        %p292 = pneg %p194
        %p293 = scmp.lt.s32.totalorder %s19, 1
        %s294 = scalar_select %p293, %s19, 1
        %s295 = smul.addr %s294, 2
        %s296 = smul.addr %s295, 8
        %s297 = scalar_lea.vmem %s7, %s296
        %p298 = scmp.lt.s32.totalorder %s19, 1
        %s299 = scalar_select %p298, %s19, 1
        %s300 = smul.addr %s299, 2
        %s301 = smul.addr %s300, 8
        %s302 = scalar_lea.vmem %s0, %s301
        %p303 = scmp.lt.s32.totalorder %s19, 1
        %s304 = scalar_select %p303, %s19, 1
        %s305 = smul.addr %s304, 2
        %s306 = smul.addr %s305, 8
        %s307 = scalar_lea.vmem %s1, %s306
        %p308 = scmp.lt.s32.totalorder %s19, 1
        %s309 = scalar_select %p308, %s19, 1
        %s310 = smul.addr %s309, 2
        %s311 = smul.addr %s310, 8
        %s312 = scalar_lea.vmem %s7, %s311
        %v313 = vld [vmem:[%s302] sm:$0xff]
        %v314 = vld [vmem:[%s302 + $0x8] sm:$0xff]
        %v315 = vlaneseq
        %v316 = vand.u32 %v315, 127
        %v317 = vadd.s32 %v316, 128
        %vm318 = vcmp.lt.s32.totalorder %v316, 0
        %v319 = vsub.s32 0, %v316
        %v320 = vsel %vm318, %v319, %v316
        %v321 = vshrl.u32 %v320, 4
        %v322 = vand.u32 %v320, 15
        %v323 = vsub.s32 0, %v322
        %v324 = vsel %vm318, %v323, %v322
        %vm325 = vcmp.lt.s32.totalorder %v317, 0
        %v326 = vsub.s32 0, %v317
        %v327 = vsel %vm325, %v326, %v317
        %v328 = vshrl.u32 %v327, 4
        %v329 = vand.u32 %v327, 15
        %v330 = vsub.s32 0, %v329
        %v331 = vsel %vm325, %v330, %v329
        %vm332 = vcmp.ne.s32.totalorder %v324, 0
        %vm333 = vcmp.ne.s32.totalorder %v331, 0
        %vm334 = vcmp.lt.s32.totalorder %v324, 0
        %vm335 = vcmp.lt.s32.totalorder %v331, 0
        %vm336 = vmand %vm334, %vm332
        %vm337 = vmand %vm335, %vm333
        %v338 = vadd.s32 %v324, 16
        %v339 = vadd.s32 %v331, 16
        %v340 = vsel %vm336, %v338, %v324
        %v341 = vsel %vm337, %v339, %v331
        %v342 = vadd.s32 %v340, 4294967293
        %v343 = vadd.s32 %v341, 4294967293
        %vm344 = vcmp.ge.s32.totalorder %v342, 0
        %vm345 = vcmp.ge.s32.totalorder %v343, 0
        %vm346 = vcmp.le.s32.totalorder %v342, 15
        %vm347 = vcmp.le.s32.totalorder %v343, 15
        %vm348 = vmand %vm344, %vm346
        %vm349 = vmand %vm345, %vm347
        %v350 = vadd.s32 %v340, 4294967294
        %v351 = vadd.s32 %v341, 4294967294
        %vm352 = vcmp.ge.s32.totalorder %v350, 0
        %vm353 = vcmp.ge.s32.totalorder %v351, 0
        %vm354 = vcmp.le.s32.totalorder %v350, 15
        %vm355 = vcmp.le.s32.totalorder %v351, 15
        %vm356 = vmand %vm352, %vm354
        %vm357 = vmand %vm353, %vm355
        %v358 = vadd.s32 %v340, 4294967295
        %v359 = vadd.s32 %v341, 4294967295
        %vm360 = vcmp.ge.s32.totalorder %v358, 0
        %vm361 = vcmp.ge.s32.totalorder %v359, 0
        %vm362 = vcmp.le.s32.totalorder %v358, 15
        %vm363 = vcmp.le.s32.totalorder %v359, 15
        %vm364 = vmand %vm360, %vm362
        %vm365 = vmand %vm361, %vm363
        %v366 = vadd.s32 %v340, 1
        %v367 = vadd.s32 %v341, 1
        %vm368 = vcmp.ge.s32.totalorder %v366, 0
        %vm369 = vcmp.ge.s32.totalorder %v367, 0
        %vm370 = vcmp.le.s32.totalorder %v366, 15
        %vm371 = vcmp.le.s32.totalorder %v367, 15
        %vm372 = vmand %vm368, %vm370
        %vm373 = vmand %vm369, %vm371
        %v374 = vadd.s32 %v340, 2
        %v375 = vadd.s32 %v341, 2
        %vm376 = vcmp.ge.s32.totalorder %v374, 0
        %vm377 = vcmp.ge.s32.totalorder %v375, 0
        %vm378 = vcmp.le.s32.totalorder %v374, 15
        %vm379 = vcmp.le.s32.totalorder %v375, 15
        %vm380 = vmand %vm376, %vm378
        %vm381 = vmand %vm377, %vm379
        %v382 = vadd.s32 %v340, 3
        %v383 = vadd.s32 %v341, 3
        %vm384 = vcmp.ge.s32.totalorder %v382, 0
        %vm385 = vcmp.ge.s32.totalorder %v383, 0
        %vm386 = vcmp.le.s32.totalorder %v382, 15
        %vm387 = vcmp.le.s32.totalorder %v383, 15
        %vm388 = vmand %vm384, %vm386
        %vm389 = vmand %vm385, %vm387
        %vm390 = vcmask 1041408
        %vm391 = vcmask 1043458
        %vm392 = vmor %vm391, %vm390
        %vm393 = vcmask 832516
        %vm394 = vmor %vm393, %vm392
        %395 = vst.msk [vmem:[#allocation2] sm:$0x3f] %vm394, 0.0
        %v396 = vrot.slane %v313, 4
        %v397 = vadd.f32 %v313, %v396
        %v398 = vrot.slane %v397, 2
        %v399 = vadd.f32 %v397, %v398
        %v400 = vrot.slane %v399, 1
        %v401 = vadd.f32 %v399, %v400
        %v402 = vrot.slane %v314, 4
        %v403 = vadd.f32 %v314, %v402
        %v404 = vrot.slane %v403, 2
        %v405 = vadd.f32 %v403, %v404
        %v406 = vrot.slane %v405, 1
        %v407 = vadd.f32 %v405, %v406
        %v408 = vrcp.pop 8.0
        %v409 = vmul.f32 %v401, %v408
        %v410 = vmul.f32 %v407, %v408
        %v413 = vcombine.low %v409, %v410
        %v415 = vunpack.c.l.s4 1966171168
        %v416 = vunpack.c.0.s8 %v415
        %v417 = vlaneseq
        %v418 = vshrl.u32 %v417, 7
        %v419 = vsub.s32 %v416, %v418
        %v420 = vrot.slane %v413, %v419
        %v422 = vunpack.c.l.s4 1966171168
        %v423 = vunpack.c.0.s8 %v422
        %v424 = vlaneseq
        %v425 = vshrl.u32 %v424, 7
        %v426 = vsub.s32 %v423, %v425
        %v427 = vrot.slane %v420, %v426
        %428 = vrot.lane.b32.xlu0 %v427, 51
        %v429 = vpop.permute.xlu0 %428
        %v430 = vrot.slane %v429, 7
        %vm431 = vcmask 416768
        %v432 = vsel %vm431, %v430, %v429
        %v434 = vlaneseq
        %vm435 = vcmp.ge.s32.totalorder %v434, 51
        %vm436 = vcmp.lt.s32.totalorder %v434, 307
        %vm437 = vmand %vm435, %vm436
        %438 = vst.msk [vmem:[#allocation2] ss:$2 sm:$0x7] %vm437, %v432
        %v439 = vrot.slane %v313, 4
        %v440 = vmax.f32 %v313, %v439
        %v441 = vrot.slane %v440, 2
        %v442 = vmax.f32 %v440, %v441
        %v443 = vrot.slane %v442, 1
        %v444 = vmax.f32 %v442, %v443
        %v445 = vrot.slane %v314, 4
        %v446 = vmax.f32 %v314, %v445
        %v447 = vrot.slane %v446, 2
        %v448 = vmax.f32 %v446, %v447
        %v449 = vrot.slane %v448, 1
        %v450 = vmax.f32 %v448, %v449
        %v453 = vcombine.low %v444, %v450
        %v455 = vunpack.c.l.s4 1966171168
        %v456 = vunpack.c.0.s8 %v455
        %v457 = vlaneseq
        %v458 = vshrl.u32 %v457, 7
        %v459 = vsub.s32 %v456, %v458
        %v460 = vrot.slane %v453, %v459
        %v462 = vunpack.c.l.s4 1966171168
        %v463 = vunpack.c.0.s8 %v462
        %v464 = vlaneseq
        %v465 = vshrl.u32 %v464, 7
        %v466 = vsub.s32 %v463, %v465
        %v467 = vrot.slane %v460, %v466
        %468 = vrot.lane.b32.xlu0 %v467, 51
        %v469 = vpop.permute.xlu0 %468
        %v470 = vrot.slane %v469, 7
        %v471 = vsel %vm431, %v470, %v469
        %s473 = scalar_lea.vmem [#allocation2], 1
        %474 = vst.msk [vmem:[%s473] ss:$2 sm:$0x7] %vm437, %v471
        %v475 = vld [vmem:[#allocation2] sm:$0x3f]
        %v476 = vsel %vm348, 1, 0
        %v477 = vsel %vm349, 1, 0
        %vm478 = vcmp.eq.s32.totalorder %v476, 1
        %vm479 = vcmp.eq.s32.totalorder %v477, 1
        %v482 = vunpack.c.l.s4 1983009808
        %v483 = vunpack.c.0.s8 %v482
        %v484 = vlaneseq
        %v485 = vshrl.u32 %v484, 7
        %v486 = vsub.s32 %v483, %v485
        %v487 = vrot.slane %v475, %v486
        %v488 = vcombine.high %v487, %v487
        %v491 = vsel %vm478, %v487, 0.0
        %v492 = vsel %vm479, %v488, 0.0
        %s493 = sld [smem:[#allocation6]]
        %v494 = vstv %s493
        %v495 = vmul.f32 %v491, %v494
        %v496 = vmul.f32 %v492, %v494
        %s497 = sld [smem:[#allocation6 + $0x31]]
        %v498 = vstv %s497
        %v499 = vmul.f32 %v491, %v498
        %v500 = vmul.f32 %v492, %v498
        %v503 = vrot.slane %v499, 1
        %v504 = vrot.slane %v500, 1
        %v507 = vadd.f32 %v495, %v503
        %v508 = vadd.f32 %v496, %v504
        %v509 = vadd.f32 %v507, 0.0
        %v510 = vadd.f32 %v508, 0.0
        %v511 = vsel %vm356, 1, 0
        %v512 = vsel %vm357, 1, 0
        %vm513 = vcmp.eq.s32.totalorder %v511, 1
        %vm514 = vcmp.eq.s32.totalorder %v512, 1
        %v515 = vcombine.high %v475, %v475
        %v517 = vunpack.c.l.s4 1983009808
        %v518 = vunpack.c.0.s8 %v517
        %v519 = vlaneseq
        %v520 = vshrl.u32 %v519, 7
        %v521 = vsub.s32 %v518, %v520
        %v522 = vrot.slane %v515, %v521
        %523 = vrot.lane.b32.xlu0 %v487, 127
        %v524 = vpop.permute.xlu0 %523
        %525 = vrot.lane.b32.xlu0 %v488, 127
        %v526 = vpop.permute.xlu0 %525
        %527 = vrot.lane.b32.xlu0 %v522, 127
        %v528 = vpop.permute.xlu0 %527
        %vm529 = vcmask 1039360
        %v530 = vsel %vm529, %v524, %v526
        %v531 = vsel %vm529, %v526, %v528
        %v534 = vsel %vm513, %v530, 0.0
        %v535 = vsel %vm514, %v531, 0.0
        %s536 = sld [smem:[#allocation6 + $0x1]]
        %v537 = vstv %s536
        %v538 = vmul.f32 %v534, %v537
        %v539 = vmul.f32 %v535, %v537
        %s540 = sld [smem:[#allocation6 + $0x32]]
        %v541 = vstv %s540
        %v542 = vmul.f32 %v534, %v541
        %v543 = vmul.f32 %v535, %v541
        %v546 = vrot.slane %v542, 1
        %v547 = vrot.slane %v543, 1
        %v550 = vadd.f32 %v538, %v546
        %v551 = vadd.f32 %v539, %v547
        %v552 = vadd.f32 %v509, %v550
        %v553 = vadd.f32 %v510, %v551
        %v554 = vsel %vm364, 1, 0
        %v555 = vsel %vm365, 1, 0
        %vm556 = vcmp.eq.s32.totalorder %v554, 1
        %vm557 = vcmp.eq.s32.totalorder %v555, 1
        %558 = vrot.lane.b32.xlu0 %v487, 126
        %v559 = vpop.permute.xlu0 %558
        %560 = vrot.lane.b32.xlu0 %v488, 126
        %v561 = vpop.permute.xlu0 %560
        %562 = vrot.lane.b32.xlu0 %v522, 126
        %v563 = vpop.permute.xlu0 %562
        %vm564 = vcmask 1031168
        %v565 = vsel %vm564, %v559, %v561
        %v566 = vsel %vm564, %v561, %v563
        %v569 = vsel %vm556, %v565, 0.0
        %v570 = vsel %vm557, %v566, 0.0
        %s571 = sld [smem:[#allocation6 + $0x2]]
        %v572 = vstv %s571
        %v573 = vmul.f32 %v569, %v572
        %v574 = vmul.f32 %v570, %v572
        %s575 = sld [smem:[#allocation6 + $0x33]]
        %v576 = vstv %s575
        %v577 = vmul.f32 %v569, %v576
        %v578 = vmul.f32 %v570, %v576
        %v581 = vrot.slane %v577, 1
        %v582 = vrot.slane %v578, 1
        %v585 = vadd.f32 %v573, %v581
        %v586 = vadd.f32 %v574, %v582
        %v587 = vadd.f32 %v552, %v585
        %v588 = vadd.f32 %v553, %v586
        %s589 = sld [smem:[#allocation6 + $0x3]]
        %v590 = vstv %s589
        %v591 = vmul.f32 %v475, %v590
        %s592 = sld [smem:[#allocation6 + $0x34]]
        %v593 = vstv %s592
        %v594 = vmul.f32 %v475, %v593
        %v596 = vrot.slane %v594, 7
        %v597 = vrot.slane %v596, 2
        %v599 = vadd.f32 %v591, %v597
        %v601 = vlaneseq
        %v602 = vshrl.u32 %v601, 7
        %v603 = vsub.s32 0, %v602
        %v604 = vrot.slane %v599, %v603
        %v605 = vlaneseq
        %v606 = vshrl.u32 %v605, 7
        %v607 = vsub.s32 2, %v606
        %v608 = vrot.slane %v599, %v607
        %v609 = vlaneseq
        %v610 = vshrl.u32 %v609, 7
        %v611 = vsub.s32 4, %v610
        %v612 = vrot.slane %v599, %v611
        %613 = vrot.lane.b32.xlu0 %v604, 125
        %v614 = vpop.permute.xlu0 %613
        %615 = vrot.lane.b32.xlu0 %v608, 125
        %v616 = vpop.permute.xlu0 %615
        %617 = vrot.lane.b32.xlu0 %v612, 125
        %v618 = vpop.permute.xlu0 %617
        %vm619 = vcmask 1022976
        %v620 = vsel %vm619, %v614, %v616
        %v621 = vsel %vm619, %v616, %v618
        %v624 = vadd.f32 %v587, %v620
        %v625 = vadd.f32 %v588, %v621
        %v626 = vsel %vm372, 1, 0
        %v627 = vsel %vm373, 1, 0
        %vm628 = vcmp.eq.s32.totalorder %v626, 1
        %vm629 = vcmp.eq.s32.totalorder %v627, 1
        %630 = vrot.lane.b32.xlu0 %v487, 124
        %v631 = vpop.permute.xlu0 %630
        %632 = vrot.lane.b32.xlu0 %v488, 124
        %v633 = vpop.permute.xlu0 %632
        %634 = vrot.lane.b32.xlu0 %v522, 124
        %v635 = vpop.permute.xlu0 %634
        %vm636 = vcmask 1014784
        %v637 = vsel %vm636, %v631, %v633
        %v638 = vsel %vm636, %v633, %v635
        %v641 = vsel %vm628, %v637, 0.0
        %v642 = vsel %vm629, %v638, 0.0
        %s643 = sld [smem:[#allocation6 + $0x4]]
        %v644 = vstv %s643
        %v645 = vmul.f32 %v641, %v644
        %v646 = vmul.f32 %v642, %v644
        %s647 = sld [smem:[#allocation6 + $0x35]]
        %v648 = vstv %s647
        %v649 = vmul.f32 %v641, %v648
        %v650 = vmul.f32 %v642, %v648
        %v653 = vrot.slane %v649, 1
        %v654 = vrot.slane %v650, 1
        %v657 = vadd.f32 %v645, %v653
        %v658 = vadd.f32 %v646, %v654
        %v659 = vadd.f32 %v624, %v657
        %v660 = vadd.f32 %v625, %v658
        %v661 = vsel %vm380, 1, 0
        %v662 = vsel %vm381, 1, 0
        %vm663 = vcmp.eq.s32.totalorder %v661, 1
        %vm664 = vcmp.eq.s32.totalorder %v662, 1
        %665 = vrot.lane.b32.xlu0 %v487, 123
        %v666 = vpop.permute.xlu0 %665
        %667 = vrot.lane.b32.xlu0 %v488, 123
        %v668 = vpop.permute.xlu0 %667
        %669 = vrot.lane.b32.xlu0 %v522, 123
        %v670 = vpop.permute.xlu0 %669
        %vm671 = vcmask 1006592
        %v672 = vsel %vm671, %v666, %v668
        %v673 = vsel %vm671, %v668, %v670
        %v676 = vsel %vm663, %v672, 0.0
        %v677 = vsel %vm664, %v673, 0.0
        %s678 = sld [smem:[#allocation6 + $0x5]]
        %v679 = vstv %s678
        %v680 = vmul.f32 %v676, %v679
        %v681 = vmul.f32 %v677, %v679
        %s682 = sld [smem:[#allocation6 + $0x36]]
        %v683 = vstv %s682
        %v684 = vmul.f32 %v676, %v683
        %v685 = vmul.f32 %v677, %v683
        %v688 = vrot.slane %v684, 1
        %v689 = vrot.slane %v685, 1
        %v692 = vadd.f32 %v680, %v688
        %v693 = vadd.f32 %v681, %v689
        %v694 = vadd.f32 %v659, %v692
        %v695 = vadd.f32 %v660, %v693
        %v696 = vsel %vm388, 1, 0
        %v697 = vsel %vm389, 1, 0
        %vm698 = vcmp.eq.s32.totalorder %v696, 1
        %vm699 = vcmp.eq.s32.totalorder %v697, 1
        %700 = vrot.lane.b32.xlu0 %v487, 122
        %v701 = vpop.permute.xlu0 %700
        %702 = vrot.lane.b32.xlu0 %v488, 122
        %v703 = vpop.permute.xlu0 %702
        %704 = vrot.lane.b32.xlu0 %v522, 122
        %v705 = vpop.permute.xlu0 %704
        %vm706 = vcmask 998400
        %v707 = vsel %vm706, %v701, %v703
        %v708 = vsel %vm706, %v703, %v705
        %v711 = vsel %vm698, %v707, 0.0
        %v712 = vsel %vm699, %v708, 0.0
        %s713 = sld [smem:[#allocation6 + $0x6]]
        %v714 = vstv %s713
        %v715 = vmul.f32 %v711, %v714
        %v716 = vmul.f32 %v712, %v714
        %s717 = sld [smem:[#allocation6 + $0x37]]
        %v718 = vstv %s717
        %v719 = vmul.f32 %v711, %v718
        %v720 = vmul.f32 %v712, %v718
        %v723 = vrot.slane %v719, 1
        %v724 = vrot.slane %v720, 1
        %v727 = vadd.f32 %v715, %v723
        %v728 = vadd.f32 %v716, %v724
        %v729 = vadd.f32 %v694, %v727
        %v730 = vadd.f32 %v695, %v728
        %731 = vrot.lane.b32.xlu0 %v487, 112
        %v732 = vpop.permute.xlu0 %731
        %733 = vrot.lane.b32.xlu0 %v488, 112
        %v734 = vpop.permute.xlu0 %733
        %735 = vrot.lane.b32.xlu0 %v522, 112
        %v736 = vpop.permute.xlu0 %735
        %vm737 = vcmask 916480
        %v738 = vsel %vm737, %v732, %v734
        %v739 = vsel %vm737, %v734, %v736
        %v742 = vsel %vm478, %v738, 0.0
        %v743 = vsel %vm479, %v739, 0.0
        %s744 = sld [smem:[#allocation6 + $0x7]]
        %v745 = vstv %s744
        %v746 = vmul.f32 %v742, %v745
        %v747 = vmul.f32 %v743, %v745
        %s748 = sld [smem:[#allocation6 + $0x38]]
        %v749 = vstv %s748
        %v750 = vmul.f32 %v742, %v749
        %v751 = vmul.f32 %v743, %v749
        %v754 = vrot.slane %v750, 1
        %v755 = vrot.slane %v751, 1
        %v758 = vadd.f32 %v746, %v754
        %v759 = vadd.f32 %v747, %v755
        %v760 = vadd.f32 %v729, %v758
        %v761 = vadd.f32 %v730, %v759
        %762 = vrot.lane.b32.xlu0 %v487, 111
        %v763 = vpop.permute.xlu0 %762
        %764 = vrot.lane.b32.xlu0 %v488, 111
        %v765 = vpop.permute.xlu0 %764
        %766 = vrot.lane.b32.xlu0 %v522, 111
        %v767 = vpop.permute.xlu0 %766
        %vm768 = vcmask 908288
        %v769 = vsel %vm768, %v763, %v765
        %v770 = vsel %vm768, %v765, %v767
        %v773 = vsel %vm513, %v769, 0.0
        %v774 = vsel %vm514, %v770, 0.0
        %s775 = sld [smem:[#allocation6 + $0x8]]
        %v776 = vstv %s775
        %v777 = vmul.f32 %v773, %v776
        %v778 = vmul.f32 %v774, %v776
        %s779 = sld [smem:[#allocation6 + $0x39]]
        %v780 = vstv %s779
        %v781 = vmul.f32 %v773, %v780
        %v782 = vmul.f32 %v774, %v780
        %v785 = vrot.slane %v781, 1
        %v786 = vrot.slane %v782, 1
        %v789 = vadd.f32 %v777, %v785
        %v790 = vadd.f32 %v778, %v786
        %v791 = vadd.f32 %v760, %v789
        %v792 = vadd.f32 %v761, %v790
        %793 = vrot.lane.b32.xlu0 %v487, 110
        %v794 = vpop.permute.xlu0 %793
        %795 = vrot.lane.b32.xlu0 %v488, 110
        %v796 = vpop.permute.xlu0 %795
        %797 = vrot.lane.b32.xlu0 %v522, 110
        %v798 = vpop.permute.xlu0 %797
        %vm799 = vcmask 900096
        %v800 = vsel %vm799, %v794, %v796
        %v801 = vsel %vm799, %v796, %v798
        %v804 = vsel %vm556, %v800, 0.0
        %v805 = vsel %vm557, %v801, 0.0
        %s806 = sld [smem:[#allocation6 + $0x9]]
        %v807 = vstv %s806
        %v808 = vmul.f32 %v804, %v807
        %v809 = vmul.f32 %v805, %v807
        %s810 = sld [smem:[#allocation6 + $0x3a]]
        %v811 = vstv %s810
        %v812 = vmul.f32 %v804, %v811
        %v813 = vmul.f32 %v805, %v811
        %v816 = vrot.slane %v812, 1
        %v817 = vrot.slane %v813, 1
        %v820 = vadd.f32 %v808, %v816
        %v821 = vadd.f32 %v809, %v817
        %v822 = vadd.f32 %v791, %v820
        %v823 = vadd.f32 %v792, %v821
        %s824 = sld [smem:[#allocation6 + $0xa]]
        %v825 = vstv %s824
        %v826 = vmul.f32 %v475, %v825
        %s827 = sld [smem:[#allocation6 + $0x3b]]
        %v828 = vstv %s827
        %v829 = vmul.f32 %v475, %v828
        %v831 = vrot.slane %v829, 7
        %v832 = vrot.slane %v831, 2
        %v834 = vadd.f32 %v826, %v832
        %v836 = vlaneseq
        %v837 = vshrl.u32 %v836, 7
        %v838 = vsub.s32 0, %v837
        %v839 = vrot.slane %v834, %v838
        %v840 = vlaneseq
        %v841 = vshrl.u32 %v840, 7
        %v842 = vsub.s32 2, %v841
        %v843 = vrot.slane %v834, %v842
        %v844 = vlaneseq
        %v845 = vshrl.u32 %v844, 7
        %v846 = vsub.s32 4, %v845
        %v847 = vrot.slane %v834, %v846
        %848 = vrot.lane.b32.xlu0 %v839, 109
        %v849 = vpop.permute.xlu0 %848
        %850 = vrot.lane.b32.xlu0 %v843, 109
        %v851 = vpop.permute.xlu0 %850
        %852 = vrot.lane.b32.xlu0 %v847, 109
        %v853 = vpop.permute.xlu0 %852
        %vm854 = vcmask 891904
        %v855 = vsel %vm854, %v849, %v851
        %v856 = vsel %vm854, %v851, %v853
        %v859 = vadd.f32 %v822, %v855
        %v860 = vadd.f32 %v823, %v856
        %861 = vrot.lane.b32.xlu0 %v487, 108
        %v862 = vpop.permute.xlu0 %861
        %863 = vrot.lane.b32.xlu0 %v488, 108
        %v864 = vpop.permute.xlu0 %863
        %865 = vrot.lane.b32.xlu0 %v522, 108
        %v866 = vpop.permute.xlu0 %865
        %vm867 = vcmask 883712
        %v868 = vsel %vm867, %v862, %v864
        %v869 = vsel %vm867, %v864, %v866
        %v872 = vsel %vm628, %v868, 0.0
        %v873 = vsel %vm629, %v869, 0.0
        %s874 = sld [smem:[#allocation6 + $0xb]]
        %v875 = vstv %s874
        %v876 = vmul.f32 %v872, %v875
        %v877 = vmul.f32 %v873, %v875
        %s878 = sld [smem:[#allocation6 + $0x3c]]
        %v879 = vstv %s878
        %v880 = vmul.f32 %v872, %v879
        %v881 = vmul.f32 %v873, %v879
        %v884 = vrot.slane %v880, 1
        %v885 = vrot.slane %v881, 1
        %v888 = vadd.f32 %v876, %v884
        %v889 = vadd.f32 %v877, %v885
        %v890 = vadd.f32 %v859, %v888
        %v891 = vadd.f32 %v860, %v889
        %892 = vrot.lane.b32.xlu0 %v487, 107
        %v893 = vpop.permute.xlu0 %892
        %894 = vrot.lane.b32.xlu0 %v488, 107
        %v895 = vpop.permute.xlu0 %894
        %896 = vrot.lane.b32.xlu0 %v522, 107
        %v897 = vpop.permute.xlu0 %896
        %vm898 = vcmask 875520
        %v899 = vsel %vm898, %v893, %v895
        %v900 = vsel %vm898, %v895, %v897
        %v903 = vsel %vm663, %v899, 0.0
        %v904 = vsel %vm664, %v900, 0.0
        %s905 = sld [smem:[#allocation6 + $0xc]]
        %v906 = vstv %s905
        %v907 = vmul.f32 %v903, %v906
        %v908 = vmul.f32 %v904, %v906
        %s909 = sld [smem:[#allocation6 + $0x3d]]
        %v910 = vstv %s909
        %v911 = vmul.f32 %v903, %v910
        %v912 = vmul.f32 %v904, %v910
        %v915 = vrot.slane %v911, 1
        %v916 = vrot.slane %v912, 1
        %v919 = vadd.f32 %v907, %v915
        %v920 = vadd.f32 %v908, %v916
        %v921 = vadd.f32 %v890, %v919
        %v922 = vadd.f32 %v891, %v920
        %923 = vrot.lane.b32.xlu0 %v487, 106
        %v924 = vpop.permute.xlu0 %923
        %925 = vrot.lane.b32.xlu0 %v488, 106
        %v926 = vpop.permute.xlu0 %925
        %927 = vrot.lane.b32.xlu0 %v522, 106
        %v928 = vpop.permute.xlu0 %927
        %vm929 = vcmask 867328
        %v930 = vsel %vm929, %v924, %v926
        %v931 = vsel %vm929, %v926, %v928
        %v934 = vsel %vm698, %v930, 0.0
        %v935 = vsel %vm699, %v931, 0.0
        %s936 = sld [smem:[#allocation6 + $0xd]]
        %v937 = vstv %s936
        %v938 = vmul.f32 %v934, %v937
        %v939 = vmul.f32 %v935, %v937
        %s940 = sld [smem:[#allocation6 + $0x3e]]
        %v941 = vstv %s940
        %v942 = vmul.f32 %v934, %v941
        %v943 = vmul.f32 %v935, %v941
        %v946 = vrot.slane %v942, 1
        %v947 = vrot.slane %v943, 1
        %v950 = vadd.f32 %v938, %v946
        %v951 = vadd.f32 %v939, %v947
        %v952 = vadd.f32 %v921, %v950
        %v953 = vadd.f32 %v922, %v951
        %954 = vrot.lane.b32.xlu0 %v487, 96
        %v955 = vpop.permute.xlu0 %954
        %956 = vrot.lane.b32.xlu0 %v488, 96
        %v957 = vpop.permute.xlu0 %956
        %958 = vrot.lane.b32.xlu0 %v522, 96
        %v959 = vpop.permute.xlu0 %958
        %vm960 = vcmask 785408
        %v961 = vsel %vm960, %v955, %v957
        %v962 = vsel %vm960, %v957, %v959
        %v965 = vsel %vm478, %v961, 0.0
        %v966 = vsel %vm479, %v962, 0.0
        %s967 = sld [smem:[#allocation6 + $0xe]]
        %v968 = vstv %s967
        %v969 = vmul.f32 %v965, %v968
        %v970 = vmul.f32 %v966, %v968
        %s971 = sld [smem:[#allocation6 + $0x3f]]
        %v972 = vstv %s971
        %v973 = vmul.f32 %v965, %v972
        %v974 = vmul.f32 %v966, %v972
        %v977 = vrot.slane %v973, 1
        %v978 = vrot.slane %v974, 1
        %v981 = vadd.f32 %v969, %v977
        %v982 = vadd.f32 %v970, %v978
        %v983 = vadd.f32 %v952, %v981
        %v984 = vadd.f32 %v953, %v982
        %985 = vrot.lane.b32.xlu0 %v487, 95
        %v986 = vpop.permute.xlu0 %985
        %987 = vrot.lane.b32.xlu0 %v488, 95
        %v988 = vpop.permute.xlu0 %987
        %989 = vrot.lane.b32.xlu0 %v522, 95
        %v990 = vpop.permute.xlu0 %989
        %vm991 = vcmask 777216
        %v992 = vsel %vm991, %v986, %v988
        %v993 = vsel %vm991, %v988, %v990
        %v996 = vsel %vm513, %v992, 0.0
        %v997 = vsel %vm514, %v993, 0.0
        %s998 = sld [smem:[#allocation6 + $0xf]]
        %v999 = vstv %s998
        %v1000 = vmul.f32 %v996, %v999
        %v1001 = vmul.f32 %v997, %v999
        %s1002 = sld [smem:[#allocation6 + $0x40]]
        %v1003 = vstv %s1002
        %v1004 = vmul.f32 %v996, %v1003
        %v1005 = vmul.f32 %v997, %v1003
        %v1008 = vrot.slane %v1004, 1
        %v1009 = vrot.slane %v1005, 1
        %v1012 = vadd.f32 %v1000, %v1008
        %v1013 = vadd.f32 %v1001, %v1009
        %v1014 = vadd.f32 %v983, %v1012
        %v1015 = vadd.f32 %v984, %v1013
        %1016 = vrot.lane.b32.xlu0 %v487, 94
        %v1017 = vpop.permute.xlu0 %1016
        %1018 = vrot.lane.b32.xlu0 %v488, 94
        %v1019 = vpop.permute.xlu0 %1018
        %1020 = vrot.lane.b32.xlu0 %v522, 94
        %v1021 = vpop.permute.xlu0 %1020
        %vm1022 = vcmask 769024
        %v1023 = vsel %vm1022, %v1017, %v1019
        %v1024 = vsel %vm1022, %v1019, %v1021
        %v1027 = vsel %vm556, %v1023, 0.0
        %v1028 = vsel %vm557, %v1024, 0.0
        %s1029 = sld [smem:[#allocation6 + $0x10]]
        %v1030 = vstv %s1029
        %v1031 = vmul.f32 %v1027, %v1030
        %v1032 = vmul.f32 %v1028, %v1030
        %s1033 = sld [smem:[#allocation6 + $0x41]]
        %v1034 = vstv %s1033
        %v1035 = vmul.f32 %v1027, %v1034
        %v1036 = vmul.f32 %v1028, %v1034
        %v1039 = vrot.slane %v1035, 1
        %v1040 = vrot.slane %v1036, 1
        %v1043 = vadd.f32 %v1031, %v1039
        %v1044 = vadd.f32 %v1032, %v1040
        %v1045 = vadd.f32 %v1014, %v1043
        %v1046 = vadd.f32 %v1015, %v1044
        %s1047 = sld [smem:[#allocation6 + $0x11]]
        %v1048 = vstv %s1047
        %v1049 = vmul.f32 %v475, %v1048
        %s1050 = sld [smem:[#allocation6 + $0x42]]
        %v1051 = vstv %s1050
        %v1052 = vmul.f32 %v475, %v1051
        %v1054 = vrot.slane %v1052, 7
        %v1055 = vrot.slane %v1054, 2
        %v1057 = vadd.f32 %v1049, %v1055
        %v1059 = vlaneseq
        %v1060 = vshrl.u32 %v1059, 7
        %v1061 = vsub.s32 0, %v1060
        %v1062 = vrot.slane %v1057, %v1061
        %v1063 = vlaneseq
        %v1064 = vshrl.u32 %v1063, 7
        %v1065 = vsub.s32 2, %v1064
        %v1066 = vrot.slane %v1057, %v1065
        %v1067 = vlaneseq
        %v1068 = vshrl.u32 %v1067, 7
        %v1069 = vsub.s32 4, %v1068
        %v1070 = vrot.slane %v1057, %v1069
        %1071 = vrot.lane.b32.xlu0 %v1062, 93
        %v1072 = vpop.permute.xlu0 %1071
        %1073 = vrot.lane.b32.xlu0 %v1066, 93
        %v1074 = vpop.permute.xlu0 %1073
        %1075 = vrot.lane.b32.xlu0 %v1070, 93
        %v1076 = vpop.permute.xlu0 %1075
        %vm1077 = vcmask 760832
        %v1078 = vsel %vm1077, %v1072, %v1074
        %v1079 = vsel %vm1077, %v1074, %v1076
        %v1082 = vadd.f32 %v1045, %v1078
        %v1083 = vadd.f32 %v1046, %v1079
        %1084 = vrot.lane.b32.xlu0 %v487, 92
        %v1085 = vpop.permute.xlu0 %1084
        %1086 = vrot.lane.b32.xlu0 %v488, 92
        %v1087 = vpop.permute.xlu0 %1086
        %1088 = vrot.lane.b32.xlu0 %v522, 92
        %v1089 = vpop.permute.xlu0 %1088
        %vm1090 = vcmask 752640
        %v1091 = vsel %vm1090, %v1085, %v1087
        %v1092 = vsel %vm1090, %v1087, %v1089
        %v1095 = vsel %vm628, %v1091, 0.0
        %v1096 = vsel %vm629, %v1092, 0.0
        %s1097 = sld [smem:[#allocation6 + $0x12]]
        %v1098 = vstv %s1097
        %v1099 = vmul.f32 %v1095, %v1098
        %v1100 = vmul.f32 %v1096, %v1098
        %s1101 = sld [smem:[#allocation6 + $0x43]]
        %v1102 = vstv %s1101
        %v1103 = vmul.f32 %v1095, %v1102
        %v1104 = vmul.f32 %v1096, %v1102
        %v1107 = vrot.slane %v1103, 1
        %v1108 = vrot.slane %v1104, 1
        %v1111 = vadd.f32 %v1099, %v1107
        %v1112 = vadd.f32 %v1100, %v1108
        %v1113 = vadd.f32 %v1082, %v1111
        %v1114 = vadd.f32 %v1083, %v1112
        %1115 = vrot.lane.b32.xlu0 %v487, 91
        %v1116 = vpop.permute.xlu0 %1115
        %1117 = vrot.lane.b32.xlu0 %v488, 91
        %v1118 = vpop.permute.xlu0 %1117
        %1119 = vrot.lane.b32.xlu0 %v522, 91
        %v1120 = vpop.permute.xlu0 %1119
        %vm1121 = vcmask 744448
        %v1122 = vsel %vm1121, %v1116, %v1118
        %v1123 = vsel %vm1121, %v1118, %v1120
        %v1126 = vsel %vm663, %v1122, 0.0
        %v1127 = vsel %vm664, %v1123, 0.0
        %s1128 = sld [smem:[#allocation6 + $0x13]]
        %v1129 = vstv %s1128
        %v1130 = vmul.f32 %v1126, %v1129
        %v1131 = vmul.f32 %v1127, %v1129
        %s1132 = sld [smem:[#allocation6 + $0x44]]
        %v1133 = vstv %s1132
        %v1134 = vmul.f32 %v1126, %v1133
        %v1135 = vmul.f32 %v1127, %v1133
        %v1138 = vrot.slane %v1134, 1
        %v1139 = vrot.slane %v1135, 1
        %v1142 = vadd.f32 %v1130, %v1138
        %v1143 = vadd.f32 %v1131, %v1139
        %v1144 = vadd.f32 %v1113, %v1142
        %v1145 = vadd.f32 %v1114, %v1143
        %1146 = vrot.lane.b32.xlu0 %v487, 90
        %v1147 = vpop.permute.xlu0 %1146
        %1148 = vrot.lane.b32.xlu0 %v488, 90
        %v1149 = vpop.permute.xlu0 %1148
        %1150 = vrot.lane.b32.xlu0 %v522, 90
        %v1151 = vpop.permute.xlu0 %1150
        %vm1152 = vcmask 736256
        %v1153 = vsel %vm1152, %v1147, %v1149
        %v1154 = vsel %vm1152, %v1149, %v1151
        %v1157 = vsel %vm698, %v1153, 0.0
        %v1158 = vsel %vm699, %v1154, 0.0
        %s1159 = sld [smem:[#allocation6 + $0x14]]
        %v1160 = vstv %s1159
        %v1161 = vmul.f32 %v1157, %v1160
        %v1162 = vmul.f32 %v1158, %v1160
        %s1163 = sld [smem:[#allocation6 + $0x45]]
        %v1164 = vstv %s1163
        %v1165 = vmul.f32 %v1157, %v1164
        %v1166 = vmul.f32 %v1158, %v1164
        %v1169 = vrot.slane %v1165, 1
        %v1170 = vrot.slane %v1166, 1
        %v1173 = vadd.f32 %v1161, %v1169
        %v1174 = vadd.f32 %v1162, %v1170
        %v1175 = vadd.f32 %v1144, %v1173
        %v1176 = vadd.f32 %v1145, %v1174
        %1177 = vrot.lane.b32.xlu0 %v487, 80
        %v1178 = vpop.permute.xlu0 %1177
        %1179 = vrot.lane.b32.xlu0 %v488, 80
        %v1180 = vpop.permute.xlu0 %1179
        %1181 = vrot.lane.b32.xlu0 %v522, 80
        %v1182 = vpop.permute.xlu0 %1181
        %vm1183 = vcmask 654336
        %v1184 = vsel %vm1183, %v1178, %v1180
        %v1185 = vsel %vm1183, %v1180, %v1182
        %v1188 = vsel %vm478, %v1184, 0.0
        %v1189 = vsel %vm479, %v1185, 0.0
        %s1190 = sld [smem:[#allocation6 + $0x15]]
        %v1191 = vstv %s1190
        %v1192 = vmul.f32 %v1188, %v1191
        %v1193 = vmul.f32 %v1189, %v1191
        %s1194 = sld [smem:[#allocation6 + $0x46]]
        %v1195 = vstv %s1194
        %v1196 = vmul.f32 %v1188, %v1195
        %v1197 = vmul.f32 %v1189, %v1195
        %v1200 = vrot.slane %v1196, 1
        %v1201 = vrot.slane %v1197, 1
        %v1204 = vadd.f32 %v1192, %v1200
        %v1205 = vadd.f32 %v1193, %v1201
        %v1206 = vadd.f32 %v1175, %v1204
        %v1207 = vadd.f32 %v1176, %v1205
        %1208 = vrot.lane.b32.xlu0 %v487, 79
        %v1209 = vpop.permute.xlu0 %1208
        %1210 = vrot.lane.b32.xlu0 %v488, 79
        %v1211 = vpop.permute.xlu0 %1210
        %1212 = vrot.lane.b32.xlu0 %v522, 79
        %v1213 = vpop.permute.xlu0 %1212
        %vm1214 = vcmask 646144
        %v1215 = vsel %vm1214, %v1209, %v1211
        %v1216 = vsel %vm1214, %v1211, %v1213
        %v1219 = vsel %vm513, %v1215, 0.0
        %v1220 = vsel %vm514, %v1216, 0.0
        %s1221 = sld [smem:[#allocation6 + $0x16]]
        %v1222 = vstv %s1221
        %v1223 = vmul.f32 %v1219, %v1222
        %v1224 = vmul.f32 %v1220, %v1222
        %s1225 = sld [smem:[#allocation6 + $0x47]]
        %v1226 = vstv %s1225
        %v1227 = vmul.f32 %v1219, %v1226
        %v1228 = vmul.f32 %v1220, %v1226
        %v1231 = vrot.slane %v1227, 1
        %v1232 = vrot.slane %v1228, 1
        %v1235 = vadd.f32 %v1223, %v1231
        %v1236 = vadd.f32 %v1224, %v1232
        %v1237 = vadd.f32 %v1206, %v1235
        %v1238 = vadd.f32 %v1207, %v1236
        %1239 = vrot.lane.b32.xlu0 %v487, 78
        %v1240 = vpop.permute.xlu0 %1239
        %1241 = vrot.lane.b32.xlu0 %v488, 78
        %v1242 = vpop.permute.xlu0 %1241
        %1243 = vrot.lane.b32.xlu0 %v522, 78
        %v1244 = vpop.permute.xlu0 %1243
        %vm1245 = vcmask 637952
        %v1246 = vsel %vm1245, %v1240, %v1242
        %v1247 = vsel %vm1245, %v1242, %v1244
        %v1250 = vsel %vm556, %v1246, 0.0
        %v1251 = vsel %vm557, %v1247, 0.0
        %s1252 = sld [smem:[#allocation6 + $0x17]]
        %v1253 = vstv %s1252
        %v1254 = vmul.f32 %v1250, %v1253
        %v1255 = vmul.f32 %v1251, %v1253
        %s1256 = sld [smem:[#allocation6 + $0x48]]
        %v1257 = vstv %s1256
        %v1258 = vmul.f32 %v1250, %v1257
        %v1259 = vmul.f32 %v1251, %v1257
        %v1262 = vrot.slane %v1258, 1
        %v1263 = vrot.slane %v1259, 1
        %v1266 = vadd.f32 %v1254, %v1262
        %v1267 = vadd.f32 %v1255, %v1263
        %v1268 = vadd.f32 %v1237, %v1266
        %v1269 = vadd.f32 %v1238, %v1267
        %s1270 = sld [smem:[#allocation6 + $0x18]]
        %v1271 = vstv %s1270
        %v1272 = vmul.f32 %v475, %v1271
        %s1273 = sld [smem:[#allocation6 + $0x49]]
        %v1274 = vstv %s1273
        %v1275 = vmul.f32 %v475, %v1274
        %v1277 = vrot.slane %v1275, 7
        %v1278 = vrot.slane %v1277, 2
        %v1280 = vadd.f32 %v1272, %v1278
        %v1282 = vlaneseq
        %v1283 = vshrl.u32 %v1282, 7
        %v1284 = vsub.s32 0, %v1283
        %v1285 = vrot.slane %v1280, %v1284
        %v1286 = vlaneseq
        %v1287 = vshrl.u32 %v1286, 7
        %v1288 = vsub.s32 2, %v1287
        %v1289 = vrot.slane %v1280, %v1288
        %v1290 = vlaneseq
        %v1291 = vshrl.u32 %v1290, 7
        %v1292 = vsub.s32 4, %v1291
        %v1293 = vrot.slane %v1280, %v1292
        %1294 = vrot.lane.b32.xlu0 %v1285, 77
        %v1295 = vpop.permute.xlu0 %1294
        %1296 = vrot.lane.b32.xlu0 %v1289, 77
        %v1297 = vpop.permute.xlu0 %1296
        %1298 = vrot.lane.b32.xlu0 %v1293, 77
        %v1299 = vpop.permute.xlu0 %1298
        %vm1300 = vcmask 629760
        %v1301 = vsel %vm1300, %v1295, %v1297
        %v1302 = vsel %vm1300, %v1297, %v1299
        %v1305 = vadd.f32 %v1268, %v1301
        %v1306 = vadd.f32 %v1269, %v1302
        %1307 = vrot.lane.b32.xlu0 %v487, 76
        %v1308 = vpop.permute.xlu0 %1307
        %1309 = vrot.lane.b32.xlu0 %v488, 76
        %v1310 = vpop.permute.xlu0 %1309
        %1311 = vrot.lane.b32.xlu0 %v522, 76
        %v1312 = vpop.permute.xlu0 %1311
        %vm1313 = vcmask 621568
        %v1314 = vsel %vm1313, %v1308, %v1310
        %v1315 = vsel %vm1313, %v1310, %v1312
        %v1318 = vsel %vm628, %v1314, 0.0
        %v1319 = vsel %vm629, %v1315, 0.0
        %s1320 = sld [smem:[#allocation6 + $0x19]]
        %v1321 = vstv %s1320
        %v1322 = vmul.f32 %v1318, %v1321
        %v1323 = vmul.f32 %v1319, %v1321
        %s1324 = sld [smem:[#allocation6 + $0x4a]]
        %v1325 = vstv %s1324
        %v1326 = vmul.f32 %v1318, %v1325
        %v1327 = vmul.f32 %v1319, %v1325
        %v1330 = vrot.slane %v1326, 1
        %v1331 = vrot.slane %v1327, 1
        %v1334 = vadd.f32 %v1322, %v1330
        %v1335 = vadd.f32 %v1323, %v1331
        %v1336 = vadd.f32 %v1305, %v1334
        %v1337 = vadd.f32 %v1306, %v1335
        %1338 = vrot.lane.b32.xlu0 %v487, 75
        %v1339 = vpop.permute.xlu0 %1338
        %1340 = vrot.lane.b32.xlu0 %v488, 75
        %v1341 = vpop.permute.xlu0 %1340
        %1342 = vrot.lane.b32.xlu0 %v522, 75
        %v1343 = vpop.permute.xlu0 %1342
        %vm1344 = vcmask 613376
        %v1345 = vsel %vm1344, %v1339, %v1341
        %v1346 = vsel %vm1344, %v1341, %v1343
        %v1349 = vsel %vm663, %v1345, 0.0
        %v1350 = vsel %vm664, %v1346, 0.0
        %s1351 = sld [smem:[#allocation6 + $0x1a]]
        %v1352 = vstv %s1351
        %v1353 = vmul.f32 %v1349, %v1352
        %v1354 = vmul.f32 %v1350, %v1352
        %s1355 = sld [smem:[#allocation6 + $0x4b]]
        %v1356 = vstv %s1355
        %v1357 = vmul.f32 %v1349, %v1356
        %v1358 = vmul.f32 %v1350, %v1356
        %v1361 = vrot.slane %v1357, 1
        %v1362 = vrot.slane %v1358, 1
        %v1365 = vadd.f32 %v1353, %v1361
        %v1366 = vadd.f32 %v1354, %v1362
        %v1367 = vadd.f32 %v1336, %v1365
        %v1368 = vadd.f32 %v1337, %v1366
        %1369 = vrot.lane.b32.xlu0 %v487, 74
        %v1370 = vpop.permute.xlu0 %1369
        %1371 = vrot.lane.b32.xlu0 %v488, 74
        %v1372 = vpop.permute.xlu0 %1371
        %1373 = vrot.lane.b32.xlu0 %v522, 74
        %v1374 = vpop.permute.xlu0 %1373
        %vm1375 = vcmask 605184
        %v1376 = vsel %vm1375, %v1370, %v1372
        %v1377 = vsel %vm1375, %v1372, %v1374
        %v1380 = vsel %vm698, %v1376, 0.0
        %v1381 = vsel %vm699, %v1377, 0.0
        %s1382 = sld [smem:[#allocation6 + $0x1b]]
        %v1383 = vstv %s1382
        %v1384 = vmul.f32 %v1380, %v1383
        %v1385 = vmul.f32 %v1381, %v1383
        %s1386 = sld [smem:[#allocation6 + $0x4c]]
        %v1387 = vstv %s1386
        %v1388 = vmul.f32 %v1380, %v1387
        %v1389 = vmul.f32 %v1381, %v1387
        %v1392 = vrot.slane %v1388, 1
        %v1393 = vrot.slane %v1389, 1
        %v1396 = vadd.f32 %v1384, %v1392
        %v1397 = vadd.f32 %v1385, %v1393
        %v1398 = vadd.f32 %v1367, %v1396
        %v1399 = vadd.f32 %v1368, %v1397
        %1400 = vrot.lane.b32.xlu0 %v487, 64
        %v1401 = vpop.permute.xlu0 %1400
        %1402 = vrot.lane.b32.xlu0 %v488, 64
        %v1403 = vpop.permute.xlu0 %1402
        %1404 = vrot.lane.b32.xlu0 %v522, 64
        %v1405 = vpop.permute.xlu0 %1404
        %vm1406 = vcmask 523264
        %v1407 = vsel %vm1406, %v1401, %v1403
        %v1408 = vsel %vm1406, %v1403, %v1405
        %v1411 = vsel %vm478, %v1407, 0.0
        %v1412 = vsel %vm479, %v1408, 0.0
        %s1413 = sld [smem:[#allocation6 + $0x1c]]
        %v1414 = vstv %s1413
        %v1415 = vmul.f32 %v1411, %v1414
        %v1416 = vmul.f32 %v1412, %v1414
        %s1417 = sld [smem:[#allocation6 + $0x4d]]
        %v1418 = vstv %s1417
        %v1419 = vmul.f32 %v1411, %v1418
        %v1420 = vmul.f32 %v1412, %v1418
        %v1423 = vrot.slane %v1419, 1
        %v1424 = vrot.slane %v1420, 1
        %v1427 = vadd.f32 %v1415, %v1423
        %v1428 = vadd.f32 %v1416, %v1424
        %v1429 = vadd.f32 %v1398, %v1427
        %v1430 = vadd.f32 %v1399, %v1428
        %1431 = vrot.lane.b32.xlu0 %v487, 63
        %v1432 = vpop.permute.xlu0 %1431
        %1433 = vrot.lane.b32.xlu0 %v488, 63
        %v1434 = vpop.permute.xlu0 %1433
        %1435 = vrot.lane.b32.xlu0 %v522, 63
        %v1436 = vpop.permute.xlu0 %1435
        %vm1437 = vcmask 515072
        %v1438 = vsel %vm1437, %v1432, %v1434
        %v1439 = vsel %vm1437, %v1434, %v1436
        %v1442 = vsel %vm513, %v1438, 0.0
        %v1443 = vsel %vm514, %v1439, 0.0
        %s1444 = sld [smem:[#allocation6 + $0x1d]]
        %v1445 = vstv %s1444
        %v1446 = vmul.f32 %v1442, %v1445
        %v1447 = vmul.f32 %v1443, %v1445
        %s1448 = sld [smem:[#allocation6 + $0x4e]]
        %v1449 = vstv %s1448
        %v1450 = vmul.f32 %v1442, %v1449
        %v1451 = vmul.f32 %v1443, %v1449
        %v1454 = vrot.slane %v1450, 1
        %v1455 = vrot.slane %v1451, 1
        %v1458 = vadd.f32 %v1446, %v1454
        %v1459 = vadd.f32 %v1447, %v1455
        %v1460 = vadd.f32 %v1429, %v1458
        %v1461 = vadd.f32 %v1430, %v1459
        %1462 = vrot.lane.b32.xlu0 %v487, 62
        %v1463 = vpop.permute.xlu0 %1462
        %1464 = vrot.lane.b32.xlu0 %v488, 62
        %v1465 = vpop.permute.xlu0 %1464
        %1466 = vrot.lane.b32.xlu0 %v522, 62
        %v1467 = vpop.permute.xlu0 %1466
        %vm1468 = vcmask 506880
        %v1469 = vsel %vm1468, %v1463, %v1465
        %v1470 = vsel %vm1468, %v1465, %v1467
        %v1473 = vsel %vm556, %v1469, 0.0
        %v1474 = vsel %vm557, %v1470, 0.0
        %s1475 = sld [smem:[#allocation6 + $0x1e]]
        %v1476 = vstv %s1475
        %v1477 = vmul.f32 %v1473, %v1476
        %v1478 = vmul.f32 %v1474, %v1476
        %s1479 = sld [smem:[#allocation6 + $0x4f]]
        %v1480 = vstv %s1479
        %v1481 = vmul.f32 %v1473, %v1480
        %v1482 = vmul.f32 %v1474, %v1480
        %v1485 = vrot.slane %v1481, 1
        %v1486 = vrot.slane %v1482, 1
        %v1489 = vadd.f32 %v1477, %v1485
        %v1490 = vadd.f32 %v1478, %v1486
        %v1491 = vadd.f32 %v1460, %v1489
        %v1492 = vadd.f32 %v1461, %v1490
        %s1493 = sld [smem:[#allocation6 + $0x1f]]
        %v1494 = vstv %s1493
        %v1495 = vmul.f32 %v475, %v1494
        %s1496 = sld [smem:[#allocation6 + $0x50]]
        %v1497 = vstv %s1496
        %v1498 = vmul.f32 %v475, %v1497
        %v1500 = vrot.slane %v1498, 7
        %v1501 = vrot.slane %v1500, 2
        %v1503 = vadd.f32 %v1495, %v1501
        %v1505 = vlaneseq
        %v1506 = vshrl.u32 %v1505, 7
        %v1507 = vsub.s32 0, %v1506
        %v1508 = vrot.slane %v1503, %v1507
        %v1509 = vlaneseq
        %v1510 = vshrl.u32 %v1509, 7
        %v1511 = vsub.s32 2, %v1510
        %v1512 = vrot.slane %v1503, %v1511
        %v1513 = vlaneseq
        %v1514 = vshrl.u32 %v1513, 7
        %v1515 = vsub.s32 4, %v1514
        %v1516 = vrot.slane %v1503, %v1515
        %1517 = vrot.lane.b32.xlu0 %v1508, 61
        %v1518 = vpop.permute.xlu0 %1517
        %1519 = vrot.lane.b32.xlu0 %v1512, 61
        %v1520 = vpop.permute.xlu0 %1519
        %1521 = vrot.lane.b32.xlu0 %v1516, 61
        %v1522 = vpop.permute.xlu0 %1521
        %vm1523 = vcmask 498688
        %v1524 = vsel %vm1523, %v1518, %v1520
        %v1525 = vsel %vm1523, %v1520, %v1522
        %v1528 = vadd.f32 %v1491, %v1524
        %v1529 = vadd.f32 %v1492, %v1525
        %1530 = vrot.lane.b32.xlu0 %v487, 60
        %v1531 = vpop.permute.xlu0 %1530
        %1532 = vrot.lane.b32.xlu0 %v488, 60
        %v1533 = vpop.permute.xlu0 %1532
        %1534 = vrot.lane.b32.xlu0 %v522, 60
        %v1535 = vpop.permute.xlu0 %1534
        %vm1536 = vcmask 490496
        %v1537 = vsel %vm1536, %v1531, %v1533
        %v1538 = vsel %vm1536, %v1533, %v1535
        %v1541 = vsel %vm628, %v1537, 0.0
        %v1542 = vsel %vm629, %v1538, 0.0
        %s1543 = sld [smem:[#allocation6 + $0x20]]
        %v1544 = vstv %s1543
        %v1545 = vmul.f32 %v1541, %v1544
        %v1546 = vmul.f32 %v1542, %v1544
        %s1547 = sld [smem:[#allocation6 + $0x51]]
        %v1548 = vstv %s1547
        %v1549 = vmul.f32 %v1541, %v1548
        %v1550 = vmul.f32 %v1542, %v1548
        %v1553 = vrot.slane %v1549, 1
        %v1554 = vrot.slane %v1550, 1
        %v1557 = vadd.f32 %v1545, %v1553
        %v1558 = vadd.f32 %v1546, %v1554
        %v1559 = vadd.f32 %v1528, %v1557
        %v1560 = vadd.f32 %v1529, %v1558
        %1561 = vrot.lane.b32.xlu0 %v487, 59
        %v1562 = vpop.permute.xlu0 %1561
        %1563 = vrot.lane.b32.xlu0 %v488, 59
        %v1564 = vpop.permute.xlu0 %1563
        %1565 = vrot.lane.b32.xlu0 %v522, 59
        %v1566 = vpop.permute.xlu0 %1565
        %vm1567 = vcmask 482304
        %v1568 = vsel %vm1567, %v1562, %v1564
        %v1569 = vsel %vm1567, %v1564, %v1566
        %v1572 = vsel %vm663, %v1568, 0.0
        %v1573 = vsel %vm664, %v1569, 0.0
        %s1574 = sld [smem:[#allocation6 + $0x21]]
        %v1575 = vstv %s1574
        %v1576 = vmul.f32 %v1572, %v1575
        %v1577 = vmul.f32 %v1573, %v1575
        %s1578 = sld [smem:[#allocation6 + $0x52]]
        %v1579 = vstv %s1578
        %v1580 = vmul.f32 %v1572, %v1579
        %v1581 = vmul.f32 %v1573, %v1579
        %v1584 = vrot.slane %v1580, 1
        %v1585 = vrot.slane %v1581, 1
        %v1588 = vadd.f32 %v1576, %v1584
        %v1589 = vadd.f32 %v1577, %v1585
        %v1590 = vadd.f32 %v1559, %v1588
        %v1591 = vadd.f32 %v1560, %v1589
        %1592 = vrot.lane.b32.xlu0 %v487, 58
        %v1593 = vpop.permute.xlu0 %1592
        %1594 = vrot.lane.b32.xlu0 %v488, 58
        %v1595 = vpop.permute.xlu0 %1594
        %1596 = vrot.lane.b32.xlu0 %v522, 58
        %v1597 = vpop.permute.xlu0 %1596
        %vm1598 = vcmask 474112
        %v1599 = vsel %vm1598, %v1593, %v1595
        %v1600 = vsel %vm1598, %v1595, %v1597
        %v1603 = vsel %vm698, %v1599, 0.0
        %v1604 = vsel %vm699, %v1600, 0.0
        %s1605 = sld [smem:[#allocation6 + $0x22]]
        %v1606 = vstv %s1605
        %v1607 = vmul.f32 %v1603, %v1606
        %v1608 = vmul.f32 %v1604, %v1606
        %s1609 = sld [smem:[#allocation6 + $0x53]]
        %v1610 = vstv %s1609
        %v1611 = vmul.f32 %v1603, %v1610
        %v1612 = vmul.f32 %v1604, %v1610
        %v1615 = vrot.slane %v1611, 1
        %v1616 = vrot.slane %v1612, 1
        %v1619 = vadd.f32 %v1607, %v1615
        %v1620 = vadd.f32 %v1608, %v1616
        %v1621 = vadd.f32 %v1590, %v1619
        %v1622 = vadd.f32 %v1591, %v1620
        %1623 = vrot.lane.b32.xlu0 %v487, 48
        %v1624 = vpop.permute.xlu0 %1623
        %1625 = vrot.lane.b32.xlu0 %v488, 48
        %v1626 = vpop.permute.xlu0 %1625
        %1627 = vrot.lane.b32.xlu0 %v522, 48
        %v1628 = vpop.permute.xlu0 %1627
        %vm1629 = vcmask 392192
        %v1630 = vsel %vm1629, %v1624, %v1626
        %v1631 = vsel %vm1629, %v1626, %v1628
        %v1634 = vsel %vm478, %v1630, 0.0
        %v1635 = vsel %vm479, %v1631, 0.0
        %s1636 = sld [smem:[#allocation6 + $0x23]]
        %v1637 = vstv %s1636
        %v1638 = vmul.f32 %v1634, %v1637
        %v1639 = vmul.f32 %v1635, %v1637
        %s1640 = sld [smem:[#allocation6 + $0x54]]
        %v1641 = vstv %s1640
        %v1642 = vmul.f32 %v1634, %v1641
        %v1643 = vmul.f32 %v1635, %v1641
        %v1646 = vrot.slane %v1642, 1
        %v1647 = vrot.slane %v1643, 1
        %v1650 = vadd.f32 %v1638, %v1646
        %v1651 = vadd.f32 %v1639, %v1647
        %v1652 = vadd.f32 %v1621, %v1650
        %v1653 = vadd.f32 %v1622, %v1651
        %1654 = vrot.lane.b32.xlu0 %v487, 47
        %v1655 = vpop.permute.xlu0 %1654
        %1656 = vrot.lane.b32.xlu0 %v488, 47
        %v1657 = vpop.permute.xlu0 %1656
        %1658 = vrot.lane.b32.xlu0 %v522, 47
        %v1659 = vpop.permute.xlu0 %1658
        %vm1660 = vcmask 384000
        %v1661 = vsel %vm1660, %v1655, %v1657
        %v1662 = vsel %vm1660, %v1657, %v1659
        %v1665 = vsel %vm513, %v1661, 0.0
        %v1666 = vsel %vm514, %v1662, 0.0
        %s1667 = sld [smem:[#allocation6 + $0x24]]
        %v1668 = vstv %s1667
        %v1669 = vmul.f32 %v1665, %v1668
        %v1670 = vmul.f32 %v1666, %v1668
        %s1671 = sld [smem:[#allocation6 + $0x55]]
        %v1672 = vstv %s1671
        %v1673 = vmul.f32 %v1665, %v1672
        %v1674 = vmul.f32 %v1666, %v1672
        %v1677 = vrot.slane %v1673, 1
        %v1678 = vrot.slane %v1674, 1
        %v1681 = vadd.f32 %v1669, %v1677
        %v1682 = vadd.f32 %v1670, %v1678
        %v1683 = vadd.f32 %v1652, %v1681
        %v1684 = vadd.f32 %v1653, %v1682
        %1685 = vrot.lane.b32.xlu0 %v487, 46
        %v1686 = vpop.permute.xlu0 %1685
        %1687 = vrot.lane.b32.xlu0 %v488, 46
        %v1688 = vpop.permute.xlu0 %1687
        %1689 = vrot.lane.b32.xlu0 %v522, 46
        %v1690 = vpop.permute.xlu0 %1689
        %vm1691 = vcmask 375808
        %v1692 = vsel %vm1691, %v1686, %v1688
        %v1693 = vsel %vm1691, %v1688, %v1690
        %v1696 = vsel %vm556, %v1692, 0.0
        %v1697 = vsel %vm557, %v1693, 0.0
        %s1698 = sld [smem:[#allocation6 + $0x25]]
        %v1699 = vstv %s1698
        %v1700 = vmul.f32 %v1696, %v1699
        %v1701 = vmul.f32 %v1697, %v1699
        %s1702 = sld [smem:[#allocation6 + $0x56]]
        %v1703 = vstv %s1702
        %v1704 = vmul.f32 %v1696, %v1703
        %v1705 = vmul.f32 %v1697, %v1703
        %v1708 = vrot.slane %v1704, 1
        %v1709 = vrot.slane %v1705, 1
        %v1712 = vadd.f32 %v1700, %v1708
        %v1713 = vadd.f32 %v1701, %v1709
        %v1714 = vadd.f32 %v1683, %v1712
        %v1715 = vadd.f32 %v1684, %v1713
        %s1716 = sld [smem:[#allocation6 + $0x26]]
        %v1717 = vstv %s1716
        %v1718 = vmul.f32 %v475, %v1717
        %s1719 = sld [smem:[#allocation6 + $0x57]]
        %v1720 = vstv %s1719
        %v1721 = vmul.f32 %v475, %v1720
        %v1723 = vrot.slane %v1721, 7
        %v1724 = vrot.slane %v1723, 2
        %v1726 = vadd.f32 %v1718, %v1724
        %v1728 = vlaneseq
        %v1729 = vshrl.u32 %v1728, 7
        %v1730 = vsub.s32 0, %v1729
        %v1731 = vrot.slane %v1726, %v1730
        %v1732 = vlaneseq
        %v1733 = vshrl.u32 %v1732, 7
        %v1734 = vsub.s32 2, %v1733
        %v1735 = vrot.slane %v1726, %v1734
        %v1736 = vlaneseq
        %v1737 = vshrl.u32 %v1736, 7
        %v1738 = vsub.s32 4, %v1737
        %v1739 = vrot.slane %v1726, %v1738
        %1740 = vrot.lane.b32.xlu0 %v1731, 45
        %v1741 = vpop.permute.xlu0 %1740
        %1742 = vrot.lane.b32.xlu0 %v1735, 45
        %v1743 = vpop.permute.xlu0 %1742
        %1744 = vrot.lane.b32.xlu0 %v1739, 45
        %v1745 = vpop.permute.xlu0 %1744
        %vm1746 = vcmask 367616
        %v1747 = vsel %vm1746, %v1741, %v1743
        %v1748 = vsel %vm1746, %v1743, %v1745
        %v1751 = vadd.f32 %v1714, %v1747
        %v1752 = vadd.f32 %v1715, %v1748
        %1753 = vrot.lane.b32.xlu0 %v487, 44
        %v1754 = vpop.permute.xlu0 %1753
        %1755 = vrot.lane.b32.xlu0 %v488, 44
        %v1756 = vpop.permute.xlu0 %1755
        %1757 = vrot.lane.b32.xlu0 %v522, 44
        %v1758 = vpop.permute.xlu0 %1757
        %vm1759 = vcmask 359424
        %v1760 = vsel %vm1759, %v1754, %v1756
        %v1761 = vsel %vm1759, %v1756, %v1758
        %v1764 = vsel %vm628, %v1760, 0.0
        %v1765 = vsel %vm629, %v1761, 0.0
        %s1766 = sld [smem:[#allocation6 + $0x27]]
        %v1767 = vstv %s1766
        %v1768 = vmul.f32 %v1764, %v1767
        %v1769 = vmul.f32 %v1765, %v1767
        %s1770 = sld [smem:[#allocation6 + $0x58]]
        %v1771 = vstv %s1770
        %v1772 = vmul.f32 %v1764, %v1771
        %v1773 = vmul.f32 %v1765, %v1771
        %v1776 = vrot.slane %v1772, 1
        %v1777 = vrot.slane %v1773, 1
        %v1780 = vadd.f32 %v1768, %v1776
        %v1781 = vadd.f32 %v1769, %v1777
        %v1782 = vadd.f32 %v1751, %v1780
        %v1783 = vadd.f32 %v1752, %v1781
        %1784 = vrot.lane.b32.xlu0 %v487, 43
        %v1785 = vpop.permute.xlu0 %1784
        %1786 = vrot.lane.b32.xlu0 %v488, 43
        %v1787 = vpop.permute.xlu0 %1786
        %1788 = vrot.lane.b32.xlu0 %v522, 43
        %v1789 = vpop.permute.xlu0 %1788
        %vm1790 = vcmask 351232
        %v1791 = vsel %vm1790, %v1785, %v1787
        %v1792 = vsel %vm1790, %v1787, %v1789
        %v1795 = vsel %vm663, %v1791, 0.0
        %v1796 = vsel %vm664, %v1792, 0.0
        %s1797 = sld [smem:[#allocation6 + $0x28]]
        %v1798 = vstv %s1797
        %v1799 = vmul.f32 %v1795, %v1798
        %v1800 = vmul.f32 %v1796, %v1798
        %s1801 = sld [smem:[#allocation6 + $0x59]]
        %v1802 = vstv %s1801
        %v1803 = vmul.f32 %v1795, %v1802
        %v1804 = vmul.f32 %v1796, %v1802
        %v1807 = vrot.slane %v1803, 1
        %v1808 = vrot.slane %v1804, 1
        %v1811 = vadd.f32 %v1799, %v1807
        %v1812 = vadd.f32 %v1800, %v1808
        %v1813 = vadd.f32 %v1782, %v1811
        %v1814 = vadd.f32 %v1783, %v1812
        %1815 = vrot.lane.b32.xlu0 %v487, 42
        %v1816 = vpop.permute.xlu0 %1815
        %1817 = vrot.lane.b32.xlu0 %v488, 42
        %v1818 = vpop.permute.xlu0 %1817
        %1819 = vrot.lane.b32.xlu0 %v522, 42
        %v1820 = vpop.permute.xlu0 %1819
        %vm1821 = vcmask 343040
        %v1822 = vsel %vm1821, %v1816, %v1818
        %v1823 = vsel %vm1821, %v1818, %v1820
        %v1826 = vsel %vm698, %v1822, 0.0
        %v1827 = vsel %vm699, %v1823, 0.0
        %s1828 = sld [smem:[#allocation6 + $0x29]]
        %v1829 = vstv %s1828
        %v1830 = vmul.f32 %v1826, %v1829
        %v1831 = vmul.f32 %v1827, %v1829
        %s1832 = sld [smem:[#allocation6 + $0x5a]]
        %v1833 = vstv %s1832
        %v1834 = vmul.f32 %v1826, %v1833
        %v1835 = vmul.f32 %v1827, %v1833
        %v1838 = vrot.slane %v1834, 1
        %v1839 = vrot.slane %v1835, 1
        %v1842 = vadd.f32 %v1830, %v1838
        %v1843 = vadd.f32 %v1831, %v1839
        %v1844 = vadd.f32 %v1813, %v1842
        %v1845 = vadd.f32 %v1814, %v1843
        %1846 = vrot.lane.b32.xlu0 %v487, 32
        %v1847 = vpop.permute.xlu0 %1846
        %1848 = vrot.lane.b32.xlu0 %v488, 32
        %v1849 = vpop.permute.xlu0 %1848
        %1850 = vrot.lane.b32.xlu0 %v522, 32
        %v1851 = vpop.permute.xlu0 %1850
        %vm1852 = vcmask 261120
        %v1853 = vsel %vm1852, %v1847, %v1849
        %v1854 = vsel %vm1852, %v1849, %v1851
        %v1857 = vsel %vm478, %v1853, 0.0
        %v1858 = vsel %vm479, %v1854, 0.0
        %s1859 = sld [smem:[#allocation6 + $0x2a]]
        %v1860 = vstv %s1859
        %v1861 = vmul.f32 %v1857, %v1860
        %v1862 = vmul.f32 %v1858, %v1860
        %s1863 = sld [smem:[#allocation6 + $0x5b]]
        %v1864 = vstv %s1863
        %v1865 = vmul.f32 %v1857, %v1864
        %v1866 = vmul.f32 %v1858, %v1864
        %v1869 = vrot.slane %v1865, 1
        %v1870 = vrot.slane %v1866, 1
        %v1873 = vadd.f32 %v1861, %v1869
        %v1874 = vadd.f32 %v1862, %v1870
        %v1875 = vadd.f32 %v1844, %v1873
        %v1876 = vadd.f32 %v1845, %v1874
        %1877 = vrot.lane.b32.xlu0 %v487, 31
        %v1878 = vpop.permute.xlu0 %1877
        %1879 = vrot.lane.b32.xlu0 %v488, 31
        %v1880 = vpop.permute.xlu0 %1879
        %1881 = vrot.lane.b32.xlu0 %v522, 31
        %v1882 = vpop.permute.xlu0 %1881
        %vm1883 = vcmask 252928
        %v1884 = vsel %vm1883, %v1878, %v1880
        %v1885 = vsel %vm1883, %v1880, %v1882
        %v1888 = vsel %vm513, %v1884, 0.0
        %v1889 = vsel %vm514, %v1885, 0.0
        %s1890 = sld [smem:[#allocation6 + $0x2b]]
        %v1891 = vstv %s1890
        %v1892 = vmul.f32 %v1888, %v1891
        %v1893 = vmul.f32 %v1889, %v1891
        %s1894 = sld [smem:[#allocation6 + $0x5c]]
        %v1895 = vstv %s1894
        %v1896 = vmul.f32 %v1888, %v1895
        %v1897 = vmul.f32 %v1889, %v1895
        %v1900 = vrot.slane %v1896, 1
        %v1901 = vrot.slane %v1897, 1
        %v1904 = vadd.f32 %v1892, %v1900
        %v1905 = vadd.f32 %v1893, %v1901
        %v1906 = vadd.f32 %v1875, %v1904
        %v1907 = vadd.f32 %v1876, %v1905
        %1908 = vrot.lane.b32.xlu0 %v487, 30
        %v1909 = vpop.permute.xlu0 %1908
        %1910 = vrot.lane.b32.xlu0 %v488, 30
        %v1911 = vpop.permute.xlu0 %1910
        %1912 = vrot.lane.b32.xlu0 %v522, 30
        %v1913 = vpop.permute.xlu0 %1912
        %vm1914 = vcmask 244736
        %v1915 = vsel %vm1914, %v1909, %v1911
        %v1916 = vsel %vm1914, %v1911, %v1913
        %v1919 = vsel %vm556, %v1915, 0.0
        %v1920 = vsel %vm557, %v1916, 0.0
        %s1921 = sld [smem:[#allocation6 + $0x2c]]
        %v1922 = vstv %s1921
        %v1923 = vmul.f32 %v1919, %v1922
        %v1924 = vmul.f32 %v1920, %v1922
        %s1925 = sld [smem:[#allocation6 + $0x5d]]
        %v1926 = vstv %s1925
        %v1927 = vmul.f32 %v1919, %v1926
        %v1928 = vmul.f32 %v1920, %v1926
        %v1931 = vrot.slane %v1927, 1
        %v1932 = vrot.slane %v1928, 1
        %v1935 = vadd.f32 %v1923, %v1931
        %v1936 = vadd.f32 %v1924, %v1932
        %v1937 = vadd.f32 %v1906, %v1935
        %v1938 = vadd.f32 %v1907, %v1936
        %s1939 = sld [smem:[#allocation6 + $0x2d]]
        %v1940 = vstv %s1939
        %v1941 = vmul.f32 %v475, %v1940
        %s1942 = sld [smem:[#allocation6 + $0x5e]]
        %v1943 = vstv %s1942
        %v1944 = vmul.f32 %v475, %v1943
        %v1946 = vrot.slane %v1944, 7
        %v1947 = vrot.slane %v1946, 2
        %v1949 = vadd.f32 %v1941, %v1947
        %v1951 = vlaneseq
        %v1952 = vshrl.u32 %v1951, 7
        %v1953 = vsub.s32 0, %v1952
        %v1954 = vrot.slane %v1949, %v1953
        %v1955 = vlaneseq
        %v1956 = vshrl.u32 %v1955, 7
        %v1957 = vsub.s32 2, %v1956
        %v1958 = vrot.slane %v1949, %v1957
        %v1959 = vlaneseq
        %v1960 = vshrl.u32 %v1959, 7
        %v1961 = vsub.s32 4, %v1960
        %v1962 = vrot.slane %v1949, %v1961
        %1963 = vrot.lane.b32.xlu0 %v1954, 29
        %v1964 = vpop.permute.xlu0 %1963
        %1965 = vrot.lane.b32.xlu0 %v1958, 29
        %v1966 = vpop.permute.xlu0 %1965
        %1967 = vrot.lane.b32.xlu0 %v1962, 29
        %v1968 = vpop.permute.xlu0 %1967
        %vm1969 = vcmask 236544
        %v1970 = vsel %vm1969, %v1964, %v1966
        %v1971 = vsel %vm1969, %v1966, %v1968
        %v1974 = vadd.f32 %v1937, %v1970
        %v1975 = vadd.f32 %v1938, %v1971
        %1976 = vrot.lane.b32.xlu0 %v487, 28
        %v1977 = vpop.permute.xlu0 %1976
        %1978 = vrot.lane.b32.xlu0 %v488, 28
        %v1979 = vpop.permute.xlu0 %1978
        %1980 = vrot.lane.b32.xlu0 %v522, 28
        %v1981 = vpop.permute.xlu0 %1980
        %vm1982 = vcmask 228352
        %v1983 = vsel %vm1982, %v1977, %v1979
        %v1984 = vsel %vm1982, %v1979, %v1981
        %v1987 = vsel %vm628, %v1983, 0.0
        %v1988 = vsel %vm629, %v1984, 0.0
        %s1989 = sld [smem:[#allocation6 + $0x2e]]
        %v1990 = vstv %s1989
        %v1991 = vmul.f32 %v1987, %v1990
        %v1992 = vmul.f32 %v1988, %v1990
        %s1993 = sld [smem:[#allocation6 + $0x5f]]
        %v1994 = vstv %s1993
        %v1995 = vmul.f32 %v1987, %v1994
        %v1996 = vmul.f32 %v1988, %v1994
        %v1999 = vrot.slane %v1995, 1
        %v2000 = vrot.slane %v1996, 1
        %v2003 = vadd.f32 %v1991, %v1999
        %v2004 = vadd.f32 %v1992, %v2000
        %v2005 = vadd.f32 %v1974, %v2003
        %v2006 = vadd.f32 %v1975, %v2004
        %2007 = vrot.lane.b32.xlu0 %v487, 27
        %v2008 = vpop.permute.xlu0 %2007
        %2009 = vrot.lane.b32.xlu0 %v488, 27
        %v2010 = vpop.permute.xlu0 %2009
        %2011 = vrot.lane.b32.xlu0 %v522, 27
        %v2012 = vpop.permute.xlu0 %2011
        %vm2013 = vcmask 220160
        %v2014 = vsel %vm2013, %v2008, %v2010
        %v2015 = vsel %vm2013, %v2010, %v2012
        %v2018 = vsel %vm663, %v2014, 0.0
        %v2019 = vsel %vm664, %v2015, 0.0
        %s2020 = sld [smem:[#allocation6 + $0x2f]]
        %v2021 = vstv %s2020
        %v2022 = vmul.f32 %v2018, %v2021
        %v2023 = vmul.f32 %v2019, %v2021
        %s2024 = sld [smem:[#allocation6 + $0x60]]
        %v2025 = vstv %s2024
        %v2026 = vmul.f32 %v2018, %v2025
        %v2027 = vmul.f32 %v2019, %v2025
        %v2030 = vrot.slane %v2026, 1
        %v2031 = vrot.slane %v2027, 1
        %v2034 = vadd.f32 %v2022, %v2030
        %v2035 = vadd.f32 %v2023, %v2031
        %v2036 = vadd.f32 %v2005, %v2034
        %v2037 = vadd.f32 %v2006, %v2035
        %2038 = vrot.lane.b32.xlu0 %v487, 26
        %v2039 = vpop.permute.xlu0 %2038
        %2040 = vrot.lane.b32.xlu0 %v488, 26
        %v2041 = vpop.permute.xlu0 %2040
        %2042 = vrot.lane.b32.xlu0 %v522, 26
        %v2043 = vpop.permute.xlu0 %2042
        %vm2044 = vcmask 211968
        %v2045 = vsel %vm2044, %v2039, %v2041
        %v2046 = vsel %vm2044, %v2041, %v2043
        %v2049 = vsel %vm698, %v2045, 0.0
        %v2050 = vsel %vm699, %v2046, 0.0
        %s2051 = sld [smem:[#allocation6 + $0x30]]
        %v2052 = vstv %s2051
        %v2053 = vmul.f32 %v2049, %v2052
        %v2054 = vmul.f32 %v2050, %v2052
        %s2055 = sld [smem:[#allocation6 + $0x61]]
        %v2056 = vstv %s2055
        %v2057 = vmul.f32 %v2049, %v2056
        %v2058 = vmul.f32 %v2050, %v2056
        %v2061 = vrot.slane %v2057, 1
        %v2062 = vrot.slane %v2058, 1
        %v2065 = vadd.f32 %v2053, %v2061
        %v2066 = vadd.f32 %v2054, %v2062
        %v2067 = vadd.f32 %v2036, %v2065
        %v2068 = vadd.f32 %v2037, %v2066
        %v2069 = vxor.u32 %v2067, 2147483648
        %v2070 = vxor.u32 %v2068, 2147483648
        %v2071 = vmul.f32 %v2069, 1.442695
        %v2072 = vpow.pop %v2071
        %v2073 = vmul.f32 %v2070, 1.442695
        %v2074 = vpow.pop %v2073
        %v2075 = vadd.f32 %v2072, 1.0
        %v2076 = vadd.f32 %v2074, 1.0
        %v2077 = vrcp.pop %v2075
        %v2078 = vmul.f32 1.0, %v2077
        %v2079 = vrcp.pop %v2076
        %v2080 = vmul.f32 1.0, %v2079
        %v2081 = vlaneseq
        %v2082 = vshrl.u32 %v2081, 7
        %v2083 = vsub.s32 0, %v2082
        %v2084 = vrot.slane %v2078, %v2083
        %v2085 = vlaneseq
        %v2086 = vshrl.u32 %v2085, 7
        %v2087 = vsub.s32 0, %v2086
        %v2088 = vrot.slane %v2080, %v2087
        %v2089 = vmul.f32 %v2084, %v313
        %v2090 = vmul.f32 %v2088, %v314
        %v2091 = vadd.f32 %v313, %v314
        %2092 = vadd.xlane.f32.xlu0 %v2091
        %v2093 = vpop.xlane.xlu0 %2092
        %v2094 = vrcp.pop 256.0
        %v2095 = vmul.f32 %v2093, %v2094
        %v2096 = vld [vmem:[%s3] sm:$0x3]
        %vm2097 = vcmask 64512
        %v2099 = vsel %vm2097, %v2096, 0
        %2101 = vmatprep.subr.mxu0 0.0
        %2102 = vmatpush1.msra.mxu0 0.0
        %2103 = vmatprep.subr.mxu0 0.0
        %2104 = vmatpush1.msra.mxu0 0.0
        %2105 = vmatprep.subr.mxu0 0.0
        %2106 = vmatpush1.msra.mxu0 0.0
        %2107 = vmatprep.subr.mxu0 0.0
        %2108 = vmatpush1.msra.mxu0 0.0
        %2109 = vmatprep.subr.mxu0 0.0
        %2110 = vmatpush1.msra.mxu0 0.0
        %2111 = vmatprep.subr.mxu0 0.0
        %2112 = vmatpush1.msra.mxu0 0.0
        %2113 = vmatprep.subr.mxu0 0.0
        %2114 = vmatpush1.msra.mxu0 0.0
        %2115 = vmatprep.subr.mxu0 0.0
        %2116 = vmatpush1.msra.mxu0 0.0
        %2117 = vmatprep.subr.mxu0 0.0
        %2118 = vmatpush1.msra.mxu0 0.0
        %2119 = vmatprep.subr.mxu0 0.0
        %2120 = vmatpush1.msra.mxu0 0.0
        %2121 = vmatprep.subr.mxu0 0.0
        %2122 = vmatpush1.msra.mxu0 0.0
        %2123 = vmatprep.subr.mxu0 0.0
        %2124 = vmatpush1.msra.mxu0 0.0
        %2125 = vmatprep.subr.mxu0 0.0
        %2126 = vmatpush1.msra.mxu0 0.0
        %2127 = vmatprep.subr.mxu0 0.0
        %2128 = vmatpush1.msra.mxu0 0.0
        %2129 = vmatprep.subr.mxu0 0.0
        %2130 = vmatpush1.msra.mxu0 0.0
        %2131 = vmatprep.subr.mxu0 0.0
        %2132 = vmatpush1.msra.mxu0 %v2095
        %2133 = vmatprep.subr.mxu0 0.0
        %2134 = vmatpush2.msra.mxu0 0.0
        %2135 = vmatprep.subr.mxu0 0.0
        %2136 = vmatpush2.msra.mxu0 0.0
        %2137 = vmatprep.subr.mxu0 0.0
        %2138 = vmatpush2.msra.mxu0 0.0
        %2139 = vmatprep.subr.mxu0 0.0
        %2140 = vmatpush2.msra.mxu0 0.0
        %2141 = vmatprep.subr.mxu0 0.0
        %2142 = vmatpush2.msra.mxu0 0.0
        %2143 = vmatprep.subr.mxu0 0.0
        %2144 = vmatpush2.msra.mxu0 0.0
        %2145 = vmatprep.subr.mxu0 0.0
        %2146 = vmatpush2.msra.mxu0 0.0
        %2147 = vmatprep.subr.mxu0 0.0
        %2148 = vmatpush2.msra.mxu0 0.0
        %2149 = vmatprep.subr.mxu0 0.0
        %2150 = vmatpush2.msra.mxu0 0.0
        %2151 = vmatprep.subr.mxu0 0.0
        %2152 = vmatpush2.msra.mxu0 0.0
        %2153 = vmatprep.subr.mxu0 0.0
        %2154 = vmatpush2.msra.mxu0 0.0
        %2155 = vmatprep.subr.mxu0 0.0
        %2156 = vmatpush2.msra.mxu0 0.0
        %2157 = vmatprep.subr.mxu0 0.0
        %2158 = vmatpush2.msra.mxu0 0.0
        %2159 = vmatprep.subr.mxu0 0.0
        %2160 = vmatpush2.msra.mxu0 0.0
        %2161 = vmatprep.subr.mxu0 0.0
        %2162 = vmatpush2.msra.mxu0 0.0
        %2163 = vmatprep.subr.mxu0 0.0
        %2164 = vmatpush2.msra.mxu0 0.0
        %2165 = vmatprep.mubr.f32.mxu0 0.0
        %2166 = vmatmul.mubr.f32.gmra.mxu0 %v2099
        %v2167 = vpop.f32.mrf.mxu0
        %v2168 = vadd.f32 0.0, %v2167
        %v2169 = vpop.f32.mrf.mxu0
        %2170 = vdwg.mxu0
        %v2171 = vmax.f32 %v2168, 0.0
        %v2172 = vld [vmem:[%s4] sm:$0xff]
        %v2173 = vmax.f32 %v313, %v314
        %2174 = vmax.xlane.f32.xlu0 %v2173
        %v2175 = vpop.xlane.xlu0 %2174
        %2176 = vmatprep.subr.mxu0 0.0
        %2177 = vmatpush1.msra.mxu0 0.0
        %2178 = vmatprep.subr.mxu0 0.0
        %2179 = vmatpush1.msra.mxu0 0.0
        %2180 = vmatprep.subr.mxu0 0.0
        %2181 = vmatpush1.msra.mxu0 0.0
        %2182 = vmatprep.subr.mxu0 0.0
        %2183 = vmatpush1.msra.mxu0 0.0
        %2184 = vmatprep.subr.mxu0 0.0
        %2185 = vmatpush1.msra.mxu0 0.0
        %2186 = vmatprep.subr.mxu0 0.0
        %2187 = vmatpush1.msra.mxu0 0.0
        %2188 = vmatprep.subr.mxu0 0.0
        %2189 = vmatpush1.msra.mxu0 0.0
        %2190 = vmatprep.subr.mxu0 0.0
        %2191 = vmatpush1.msra.mxu0 0.0
        %2192 = vmatprep.subr.mxu0 0.0
        %2193 = vmatpush1.msra.mxu0 0.0
        %2194 = vmatprep.subr.mxu0 0.0
        %2195 = vmatpush1.msra.mxu0 0.0
        %2196 = vmatprep.subr.mxu0 0.0
        %2197 = vmatpush1.msra.mxu0 0.0
        %2198 = vmatprep.subr.mxu0 0.0
        %2199 = vmatpush1.msra.mxu0 0.0
        %2200 = vmatprep.subr.mxu0 0.0
        %2201 = vmatpush1.msra.mxu0 0.0
        %2202 = vmatprep.subr.mxu0 0.0
        %2203 = vmatpush1.msra.mxu0 0.0
        %2204 = vmatprep.subr.mxu0 0.0
        %2205 = vmatpush1.msra.mxu0 0.0
        %2206 = vmatprep.subr.mxu0 0.0
        %2207 = vmatpush1.msra.mxu0 %v2175
        %2208 = vmatprep.subr.mxu0 0.0
        %2209 = vmatpush2.msra.mxu0 0.0
        %2210 = vmatprep.subr.mxu0 0.0
        %2211 = vmatpush2.msra.mxu0 0.0
        %2212 = vmatprep.subr.mxu0 0.0
        %2213 = vmatpush2.msra.mxu0 0.0
        %2214 = vmatprep.subr.mxu0 0.0
        %2215 = vmatpush2.msra.mxu0 0.0
        %2216 = vmatprep.subr.mxu0 0.0
        %2217 = vmatpush2.msra.mxu0 0.0
        %2218 = vmatprep.subr.mxu0 0.0
        %2219 = vmatpush2.msra.mxu0 0.0
        %2220 = vmatprep.subr.mxu0 0.0
        %2221 = vmatpush2.msra.mxu0 0.0
        %2222 = vmatprep.subr.mxu0 0.0
        %2223 = vmatpush2.msra.mxu0 0.0
        %2224 = vmatprep.subr.mxu0 0.0
        %2225 = vmatpush2.msra.mxu0 0.0
        %2226 = vmatprep.subr.mxu0 0.0
        %2227 = vmatpush2.msra.mxu0 0.0
        %2228 = vmatprep.subr.mxu0 0.0
        %2229 = vmatpush2.msra.mxu0 0.0
        %2230 = vmatprep.subr.mxu0 0.0
        %2231 = vmatpush2.msra.mxu0 0.0
        %2232 = vmatprep.subr.mxu0 0.0
        %2233 = vmatpush2.msra.mxu0 0.0
        %2234 = vmatprep.subr.mxu0 0.0
        %2235 = vmatpush2.msra.mxu0 0.0
        %2236 = vmatprep.subr.mxu0 0.0
        %2237 = vmatpush2.msra.mxu0 0.0
        %2238 = vmatprep.subr.mxu0 0.0
        %2239 = vmatpush2.msra.mxu0 0.0
        %2240 = vmatprep.mubr.f32.mxu0 0.0
        %2241 = vmatmul.mubr.f32.gmra.mxu0 %v2099
        %v2242 = vpop.f32.mrf.mxu0
        %v2243 = vadd.f32 0.0, %v2242
        %v2244 = vpop.f32.mrf.mxu0
        %2245 = vdwg.mxu0
        %v2246 = vmax.f32 %v2243, 0.0
        %vm2247 = vcmask 15360
        %v2249 = vsel %vm2247, %v2172, 0
        %v2252 = vsel %vm390, %v2246, 0
        %2254 = vmatprep.subr.mxu0 0.0
        %2255 = vmatpush1.msra.mxu0 0.0
        %2256 = vmatprep.subr.mxu0 0.0
        %2257 = vmatpush1.msra.mxu0 0.0
        %2258 = vmatprep.subr.mxu0 0.0
        %2259 = vmatpush1.msra.mxu0 0.0
        %2260 = vmatprep.subr.mxu0 0.0
        %2261 = vmatpush1.msra.mxu0 0.0
        %2262 = vmatprep.subr.mxu0 0.0
        %2263 = vmatpush1.msra.mxu0 0.0
        %2264 = vmatprep.subr.mxu0 0.0
        %2265 = vmatpush1.msra.mxu0 0.0
        %2266 = vmatprep.subr.mxu0 0.0
        %2267 = vmatpush1.msra.mxu0 0.0
        %2268 = vmatprep.subr.mxu0 0.0
        %2269 = vmatpush1.msra.mxu0 0.0
        %2270 = vmatprep.subr.mxu0 0.0
        %2271 = vmatpush1.msra.mxu0 0.0
        %2272 = vmatprep.subr.mxu0 0.0
        %2273 = vmatpush1.msra.mxu0 0.0
        %2274 = vmatprep.subr.mxu0 0.0
        %2275 = vmatpush1.msra.mxu0 0.0
        %2276 = vmatprep.subr.mxu0 0.0
        %2277 = vmatpush1.msra.mxu0 0.0
        %2278 = vmatprep.subr.mxu0 0.0
        %2279 = vmatpush1.msra.mxu0 0.0
        %2280 = vmatprep.subr.mxu0 0.0
        %2281 = vmatpush1.msra.mxu0 0.0
        %2282 = vmatprep.subr.mxu0 0.0
        %2283 = vmatpush1.msra.mxu0 0.0
        %2284 = vmatprep.subr.mxu0 0.0
        %2285 = vmatpush1.msra.mxu0 %v2252
        %2286 = vmatprep.subr.mxu0 0.0
        %2287 = vmatpush2.msra.mxu0 0.0
        %2288 = vmatprep.subr.mxu0 0.0
        %2289 = vmatpush2.msra.mxu0 0.0
        %2290 = vmatprep.subr.mxu0 0.0
        %2291 = vmatpush2.msra.mxu0 0.0
        %2292 = vmatprep.subr.mxu0 0.0
        %2293 = vmatpush2.msra.mxu0 0.0
        %2294 = vmatprep.subr.mxu0 0.0
        %2295 = vmatpush2.msra.mxu0 0.0
        %2296 = vmatprep.subr.mxu0 0.0
        %2297 = vmatpush2.msra.mxu0 0.0
        %2298 = vmatprep.subr.mxu0 0.0
        %2299 = vmatpush2.msra.mxu0 0.0
        %2300 = vmatprep.subr.mxu0 0.0
        %2301 = vmatpush2.msra.mxu0 0.0
        %2302 = vmatprep.subr.mxu0 0.0
        %2303 = vmatpush2.msra.mxu0 0.0
        %2304 = vmatprep.subr.mxu0 0.0
        %2305 = vmatpush2.msra.mxu0 0.0
        %2306 = vmatprep.subr.mxu0 0.0
        %2307 = vmatpush2.msra.mxu0 0.0
        %2308 = vmatprep.subr.mxu0 0.0
        %2309 = vmatpush2.msra.mxu0 0.0
        %2310 = vmatprep.subr.mxu0 0.0
        %2311 = vmatpush2.msra.mxu0 0.0
        %2312 = vmatprep.subr.mxu0 0.0
        %2313 = vmatpush2.msra.mxu0 0.0
        %2314 = vmatprep.subr.mxu0 0.0
        %2315 = vmatpush2.msra.mxu0 0.0
        %2316 = vmatprep.subr.mxu0 0.0
        %2317 = vmatpush2.msra.mxu0 0.0
        %2318 = vmatprep.mubr.f32.mxu0 0.0
        %2319 = vmatmul.mubr.f32.gmra.mxu0 %v2249
        %v2320 = vpop.f32.mrf.mxu0
        %v2321 = vadd.f32 0.0, %v2320
        %v2322 = vpop.f32.mrf.mxu0
        %2323 = vdwg.mxu0
        %v2325 = vsel %vm390, %v2171, 0
        %2327 = vmatprep.subr.mxu0 0.0
        %2328 = vmatpush1.msra.mxu0 0.0
        %2329 = vmatprep.subr.mxu0 0.0
        %2330 = vmatpush1.msra.mxu0 0.0
        %2331 = vmatprep.subr.mxu0 0.0
        %2332 = vmatpush1.msra.mxu0 0.0
        %2333 = vmatprep.subr.mxu0 0.0
        %2334 = vmatpush1.msra.mxu0 0.0
        %2335 = vmatprep.subr.mxu0 0.0
        %2336 = vmatpush1.msra.mxu0 0.0
        %2337 = vmatprep.subr.mxu0 0.0
        %2338 = vmatpush1.msra.mxu0 0.0
        %2339 = vmatprep.subr.mxu0 0.0
        %2340 = vmatpush1.msra.mxu0 0.0
        %2341 = vmatprep.subr.mxu0 0.0
        %2342 = vmatpush1.msra.mxu0 0.0
        %2343 = vmatprep.subr.mxu0 0.0
        %2344 = vmatpush1.msra.mxu0 0.0
        %2345 = vmatprep.subr.mxu0 0.0
        %2346 = vmatpush1.msra.mxu0 0.0
        %2347 = vmatprep.subr.mxu0 0.0
        %2348 = vmatpush1.msra.mxu0 0.0
        %2349 = vmatprep.subr.mxu0 0.0
        %2350 = vmatpush1.msra.mxu0 0.0
        %2351 = vmatprep.subr.mxu0 0.0
        %2352 = vmatpush1.msra.mxu0 0.0
        %2353 = vmatprep.subr.mxu0 0.0
        %2354 = vmatpush1.msra.mxu0 0.0
        %2355 = vmatprep.subr.mxu0 0.0
        %2356 = vmatpush1.msra.mxu0 0.0
        %2357 = vmatprep.subr.mxu0 0.0
        %2358 = vmatpush1.msra.mxu0 %v2325
        %2359 = vmatprep.subr.mxu0 0.0
        %2360 = vmatpush2.msra.mxu0 0.0
        %2361 = vmatprep.subr.mxu0 0.0
        %2362 = vmatpush2.msra.mxu0 0.0
        %2363 = vmatprep.subr.mxu0 0.0
        %2364 = vmatpush2.msra.mxu0 0.0
        %2365 = vmatprep.subr.mxu0 0.0
        %2366 = vmatpush2.msra.mxu0 0.0
        %2367 = vmatprep.subr.mxu0 0.0
        %2368 = vmatpush2.msra.mxu0 0.0
        %2369 = vmatprep.subr.mxu0 0.0
        %2370 = vmatpush2.msra.mxu0 0.0
        %2371 = vmatprep.subr.mxu0 0.0
        %2372 = vmatpush2.msra.mxu0 0.0
        %2373 = vmatprep.subr.mxu0 0.0
        %2374 = vmatpush2.msra.mxu0 0.0
        %2375 = vmatprep.subr.mxu0 0.0
        %2376 = vmatpush2.msra.mxu0 0.0
        %2377 = vmatprep.subr.mxu0 0.0
        %2378 = vmatpush2.msra.mxu0 0.0
        %2379 = vmatprep.subr.mxu0 0.0
        %2380 = vmatpush2.msra.mxu0 0.0
        %2381 = vmatprep.subr.mxu0 0.0
        %2382 = vmatpush2.msra.mxu0 0.0
        %2383 = vmatprep.subr.mxu0 0.0
        %2384 = vmatpush2.msra.mxu0 0.0
        %2385 = vmatprep.subr.mxu0 0.0
        %2386 = vmatpush2.msra.mxu0 0.0
        %2387 = vmatprep.subr.mxu0 0.0
        %2388 = vmatpush2.msra.mxu0 0.0
        %2389 = vmatprep.subr.mxu0 0.0
        %2390 = vmatpush2.msra.mxu0 0.0
        %2391 = vmatprep.mubr.f32.mxu0 0.0
        %2392 = vmatmul.mubr.f32.gmra.mxu0 %v2249
        %v2393 = vpop.f32.mrf.mxu0
        %v2394 = vadd.f32 %v2321, %v2393
        %v2395 = vpop.f32.mrf.mxu0
        %2396 = vdwg.mxu0
        %v2397 = vxor.u32 %v2394, 2147483648
        %v2398 = vmul.f32 %v2397, 1.442695
        %v2399 = vpow.pop %v2398
        %v2400 = vadd.f32 %v2399, 1.0
        %v2401 = vrcp.pop %v2400
        %v2402 = vmul.f32 1.0, %v2401
        %2404 = vset.pattern.permute.xlu0 0
        %2405 = vperm.xlu0 %2404, %v2402
        %v2406 = vpop.permute.xlu0 %2405
        %v2408 = vmul.f32 %v2406, %v313
        %v2409 = vmul.f32 %v2406, %v314
        %v2410 = vld [vmem:[%s307] sm:$0xff]
        %v2411 = vld [vmem:[%s307 + $0x8] sm:$0xff]
        %2412 = vst [vmem:[#allocation3] sm:$0xff] 0.0
        %2413 = vst [vmem:[#allocation3 + $0x8] sm:$0xff] 0.0
        %vm2414 = vcmask 277504
        %2415 = vst.msk [vmem:[#allocation3 + $0x10] sm:$0xff] %vm2414, 0.0
        %v2416 = vmax.f32 %v2089, 0.0
        %v2417 = vmax.f32 %v2090, 0.0
        %2420 = vrot.lane.b32.xlu0 %v2416, 17
        %v2421 = vpop.permute.xlu0 %2420
        %2422 = vrot.lane.b32.xlu0 %v2417, 17
        %v2423 = vpop.permute.xlu0 %2422
        %vm2424 = vcmask 138240
        %v2425 = vsel %vm2424, %v2421, %v2423
        %vm2429 = vcmask 1047688
        %2430 = vst.msk [vmem:[#allocation3] sm:$0xff] %vm2429, %v2421
        %2431 = vst [vmem:[#allocation3 + $0x8] sm:$0xff] %v2425
        %2432 = vst.msk [vmem:[#allocation3 + $0x10] sm:$0xff] %vm2424, %v2423
        %2433 = vst [vmem:[#allocation4] sm:$0xff] 0.0
        %2434 = vst [vmem:[#allocation4 + $0x8] sm:$0xff] 0.0
        %2435 = vst.msk [vmem:[#allocation4 + $0x10] sm:$0xff] %vm2414, 0.0
        %v2436 = vmax.f32 %v2408, 0.0
        %v2437 = vmax.f32 %v2409, 0.0
        %2440 = vrot.lane.b32.xlu0 %v2436, 17
        %v2441 = vpop.permute.xlu0 %2440
        %2442 = vrot.lane.b32.xlu0 %v2437, 17
        %v2443 = vpop.permute.xlu0 %2442
        %v2444 = vsel %vm2424, %v2441, %v2443
        %2448 = vst.msk [vmem:[#allocation4] sm:$0xff] %vm2429, %v2441
        %2449 = vst [vmem:[#allocation4 + $0x8] sm:$0xff] %v2444
        %2450 = vst.msk [vmem:[#allocation4 + $0x10] sm:$0xff] %vm2424, %v2443
        %2451 = vst [vmem:[#allocation5] sm:$0xff] 0.0
        %2452 = vst [vmem:[#allocation5 + $0x8] sm:$0xff] 0.0
        %2453 = vst.msk [vmem:[#allocation5 + $0x10] sm:$0xff] %vm2414, 0.0
        %v2454 = vmax.f32 %v2410, 0.0
        %v2455 = vmax.f32 %v2411, 0.0
        %2458 = vrot.lane.b32.xlu0 %v2454, 17
        %v2459 = vpop.permute.xlu0 %2458
        %2460 = vrot.lane.b32.xlu0 %v2455, 17
        %v2461 = vpop.permute.xlu0 %2460
        %v2462 = vsel %vm2424, %v2459, %v2461
        %2466 = vst.msk [vmem:[#allocation5] sm:$0xff] %vm2429, %v2459
        %2467 = vst [vmem:[#allocation5 + $0x8] sm:$0xff] %v2462
        %2468 = vst.msk [vmem:[#allocation5 + $0x10] sm:$0xff] %vm2424, %v2461
        %v2469 = vld [vmem:[#allocation3] sm:$0xff]
        %v2470 = vld [vmem:[#allocation3 + $0x8] sm:$0xff]
        %v2471 = vld [vmem:[#allocation3 + $0x10] sm:$0xff]
        %v2472 = vsel %vm556, %v2469, 0.0
        %v2473 = vsel %vm557, %v2470, 0.0
        %v2474 = vld [vmem:[%s5] sm:$0xff]
        %s2475 = scalar_lea.vmem %s5, 8
        %v2476 = vld [vmem:[%s2475] sm:$0xff]
        %2480 = vrot.lane.b32.xlu0 %v2469, 127
        %v2481 = vpop.permute.xlu0 %2480
        %2482 = vrot.lane.b32.xlu0 %v2470, 127
        %v2483 = vpop.permute.xlu0 %2482
        %2484 = vrot.lane.b32.xlu0 %v2471, 127
        %v2485 = vpop.permute.xlu0 %2484
        %v2486 = vsel %vm529, %v2481, %v2483
        %v2487 = vsel %vm529, %v2483, %v2485
        %v2491 = vsel %vm2097, %v2476, 0
        %2493 = vmatprep.subr.mxu0 0.0
        %2494 = vmatpush1.msra.mxu0 0.0
        %2495 = vmatprep.subr.mxu0 0.0
        %2496 = vmatpush1.msra.mxu0 0.0
        %2497 = vmatprep.subr.mxu0 0.0
        %2498 = vmatpush1.msra.mxu0 0.0
        %2499 = vmatprep.subr.mxu0 0.0
        %2500 = vmatpush1.msra.mxu0 0.0
        %2501 = vmatprep.subr.mxu0 0.0
        %2502 = vmatpush1.msra.mxu0 0.0
        %2503 = vmatprep.subr.mxu0 0.0
        %2504 = vmatpush1.msra.mxu0 0.0
        %2505 = vmatprep.subr.mxu0 0.0
        %2506 = vmatpush1.msra.mxu0 0.0
        %2507 = vmatprep.subr.mxu0 0.0
        %2508 = vmatpush1.msra.mxu0 0.0
        %2509 = vmatprep.subr.mxu0 0.0
        %2510 = vmatpush1.msra.mxu0 0.0
        %2511 = vmatprep.subr.mxu0 0.0
        %2512 = vmatpush1.msra.mxu0 0.0
        %2513 = vmatprep.subr.mxu0 0.0
        %2514 = vmatpush1.msra.mxu0 0.0
        %2515 = vmatprep.subr.mxu0 0.0
        %2516 = vmatpush1.msra.mxu0 0.0
        %2517 = vmatprep.subr.mxu0 0.0
        %2518 = vmatpush1.msra.mxu0 0.0
        %2519 = vmatprep.subr.mxu0 0.0
        %2520 = vmatpush1.msra.mxu0 0.0
        %2521 = vmatprep.subr.mxu0 0.0
        %2522 = vmatpush1.msra.mxu0 0.0
        %2523 = vmatprep.subr.mxu0 %v2487
        %2524 = vmatpush1.msra.mxu0 %v2486
        %2525 = vmatprep.subr.mxu0 0.0
        %2526 = vmatpush2.msra.mxu0 0.0
        %2527 = vmatprep.subr.mxu0 0.0
        %2528 = vmatpush2.msra.mxu0 0.0
        %2529 = vmatprep.subr.mxu0 0.0
        %2530 = vmatpush2.msra.mxu0 0.0
        %2531 = vmatprep.subr.mxu0 0.0
        %2532 = vmatpush2.msra.mxu0 0.0
        %2533 = vmatprep.subr.mxu0 0.0
        %2534 = vmatpush2.msra.mxu0 0.0
        %2535 = vmatprep.subr.mxu0 0.0
        %2536 = vmatpush2.msra.mxu0 0.0
        %2537 = vmatprep.subr.mxu0 0.0
        %2538 = vmatpush2.msra.mxu0 0.0
        %2539 = vmatprep.subr.mxu0 0.0
        %2540 = vmatpush2.msra.mxu0 0.0
        %2541 = vmatprep.subr.mxu0 0.0
        %2542 = vmatpush2.msra.mxu0 0.0
        %2543 = vmatprep.subr.mxu0 0.0
        %2544 = vmatpush2.msra.mxu0 0.0
        %2545 = vmatprep.subr.mxu0 0.0
        %2546 = vmatpush2.msra.mxu0 0.0
        %2547 = vmatprep.subr.mxu0 0.0
        %2548 = vmatpush2.msra.mxu0 0.0
        %2549 = vmatprep.subr.mxu0 0.0
        %2550 = vmatpush2.msra.mxu0 0.0
        %2551 = vmatprep.subr.mxu0 0.0
        %2552 = vmatpush2.msra.mxu0 0.0
        %2553 = vmatprep.subr.mxu0 0.0
        %2554 = vmatpush2.msra.mxu0 0.0
        %2555 = vmatprep.subr.mxu0 0.0
        %2556 = vmatpush2.msra.mxu0 0.0
        %2557 = vmatprep.mubr.f32.mxu0 0.0
        %2558 = vmatmul.mubr.f32.gmra.mxu0 %v2491
        %v2559 = vpop.f32.mrf.mxu0
        %v2560 = vadd.f32 0.0, %v2559
        %v2561 = vpop.f32.mrf.mxu0
        %v2562 = vadd.f32 0.0, %v2561
        %2563 = vdwg.mxu0
        %v2565 = vsel %vm2097, %v2474, 0
        %2567 = vmatprep.subr.mxu0 0.0
        %2568 = vmatpush1.msra.mxu0 0.0
        %2569 = vmatprep.subr.mxu0 0.0
        %2570 = vmatpush1.msra.mxu0 0.0
        %2571 = vmatprep.subr.mxu0 0.0
        %2572 = vmatpush1.msra.mxu0 0.0
        %2573 = vmatprep.subr.mxu0 0.0
        %2574 = vmatpush1.msra.mxu0 0.0
        %2575 = vmatprep.subr.mxu0 0.0
        %2576 = vmatpush1.msra.mxu0 0.0
        %2577 = vmatprep.subr.mxu0 0.0
        %2578 = vmatpush1.msra.mxu0 0.0
        %2579 = vmatprep.subr.mxu0 0.0
        %2580 = vmatpush1.msra.mxu0 0.0
        %2581 = vmatprep.subr.mxu0 0.0
        %2582 = vmatpush1.msra.mxu0 0.0
        %2583 = vmatprep.subr.mxu0 0.0
        %2584 = vmatpush1.msra.mxu0 0.0
        %2585 = vmatprep.subr.mxu0 0.0
        %2586 = vmatpush1.msra.mxu0 0.0
        %2587 = vmatprep.subr.mxu0 0.0
        %2588 = vmatpush1.msra.mxu0 0.0
        %2589 = vmatprep.subr.mxu0 0.0
        %2590 = vmatpush1.msra.mxu0 0.0
        %2591 = vmatprep.subr.mxu0 0.0
        %2592 = vmatpush1.msra.mxu0 0.0
        %2593 = vmatprep.subr.mxu0 0.0
        %2594 = vmatpush1.msra.mxu0 0.0
        %2595 = vmatprep.subr.mxu0 0.0
        %2596 = vmatpush1.msra.mxu0 0.0
        %2597 = vmatprep.subr.mxu0 %v2473
        %2598 = vmatpush1.msra.mxu0 %v2472
        %2599 = vmatprep.subr.mxu0 0.0
        %2600 = vmatpush2.msra.mxu0 0.0
        %2601 = vmatprep.subr.mxu0 0.0
        %2602 = vmatpush2.msra.mxu0 0.0
        %2603 = vmatprep.subr.mxu0 0.0
        %2604 = vmatpush2.msra.mxu0 0.0
        %2605 = vmatprep.subr.mxu0 0.0
        %2606 = vmatpush2.msra.mxu0 0.0
        %2607 = vmatprep.subr.mxu0 0.0
        %2608 = vmatpush2.msra.mxu0 0.0
        %2609 = vmatprep.subr.mxu0 0.0
        %2610 = vmatpush2.msra.mxu0 0.0
        %2611 = vmatprep.subr.mxu0 0.0
        %2612 = vmatpush2.msra.mxu0 0.0
        %2613 = vmatprep.subr.mxu0 0.0
        %2614 = vmatpush2.msra.mxu0 0.0
        %2615 = vmatprep.subr.mxu0 0.0
        %2616 = vmatpush2.msra.mxu0 0.0
        %2617 = vmatprep.subr.mxu0 0.0
        %2618 = vmatpush2.msra.mxu0 0.0
        %2619 = vmatprep.subr.mxu0 0.0
        %2620 = vmatpush2.msra.mxu0 0.0
        %2621 = vmatprep.subr.mxu0 0.0
        %2622 = vmatpush2.msra.mxu0 0.0
        %2623 = vmatprep.subr.mxu0 0.0
        %2624 = vmatpush2.msra.mxu0 0.0
        %2625 = vmatprep.subr.mxu0 0.0
        %2626 = vmatpush2.msra.mxu0 0.0
        %2627 = vmatprep.subr.mxu0 0.0
        %2628 = vmatpush2.msra.mxu0 0.0
        %2629 = vmatprep.subr.mxu0 0.0
        %2630 = vmatpush2.msra.mxu0 0.0
        %2631 = vmatprep.mubr.f32.mxu0 0.0
        %2632 = vmatmul.mubr.f32.gmra.mxu0 %v2565
        %v2633 = vpop.f32.mrf.mxu0
        %v2634 = vadd.f32 %v2560, %v2633
        %v2635 = vpop.f32.mrf.mxu0
        %v2636 = vadd.f32 %v2562, %v2635
        %2637 = vdwg.mxu0
        %2638 = vrot.lane.b32.xlu0 %v2469, 126
        %v2639 = vpop.permute.xlu0 %2638
        %2640 = vrot.lane.b32.xlu0 %v2470, 126
        %v2641 = vpop.permute.xlu0 %2640
        %2642 = vrot.lane.b32.xlu0 %v2471, 126
        %v2643 = vpop.permute.xlu0 %2642
        %v2644 = vsel %vm564, %v2639, %v2641
        %v2645 = vsel %vm564, %v2641, %v2643
        %v2648 = vsel %vm628, %v2644, 0.0
        %v2649 = vsel %vm629, %v2645, 0.0
        %s2650 = scalar_lea.vmem %s5, 16
        %v2651 = vld [vmem:[%s2650] sm:$0xff]
        %v2653 = vsel %vm2097, %v2651, 0
        %2655 = vmatprep.subr.mxu0 0.0
        %2656 = vmatpush1.msra.mxu0 0.0
        %2657 = vmatprep.subr.mxu0 0.0
        %2658 = vmatpush1.msra.mxu0 0.0
        %2659 = vmatprep.subr.mxu0 0.0
        %2660 = vmatpush1.msra.mxu0 0.0
        %2661 = vmatprep.subr.mxu0 0.0
        %2662 = vmatpush1.msra.mxu0 0.0
        %2663 = vmatprep.subr.mxu0 0.0
        %2664 = vmatpush1.msra.mxu0 0.0
        %2665 = vmatprep.subr.mxu0 0.0
        %2666 = vmatpush1.msra.mxu0 0.0
        %2667 = vmatprep.subr.mxu0 0.0
        %2668 = vmatpush1.msra.mxu0 0.0
        %2669 = vmatprep.subr.mxu0 0.0
        %2670 = vmatpush1.msra.mxu0 0.0
        %2671 = vmatprep.subr.mxu0 0.0
        %2672 = vmatpush1.msra.mxu0 0.0
        %2673 = vmatprep.subr.mxu0 0.0
        %2674 = vmatpush1.msra.mxu0 0.0
        %2675 = vmatprep.subr.mxu0 0.0
        %2676 = vmatpush1.msra.mxu0 0.0
        %2677 = vmatprep.subr.mxu0 0.0
        %2678 = vmatpush1.msra.mxu0 0.0
        %2679 = vmatprep.subr.mxu0 0.0
        %2680 = vmatpush1.msra.mxu0 0.0
        %2681 = vmatprep.subr.mxu0 0.0
        %2682 = vmatpush1.msra.mxu0 0.0
        %2683 = vmatprep.subr.mxu0 0.0
        %2684 = vmatpush1.msra.mxu0 0.0
        %2685 = vmatprep.subr.mxu0 %v2649
        %2686 = vmatpush1.msra.mxu0 %v2648
        %2687 = vmatprep.subr.mxu0 0.0
        %2688 = vmatpush2.msra.mxu0 0.0
        %2689 = vmatprep.subr.mxu0 0.0
        %2690 = vmatpush2.msra.mxu0 0.0
        %2691 = vmatprep.subr.mxu0 0.0
        %2692 = vmatpush2.msra.mxu0 0.0
        %2693 = vmatprep.subr.mxu0 0.0
        %2694 = vmatpush2.msra.mxu0 0.0
        %2695 = vmatprep.subr.mxu0 0.0
        %2696 = vmatpush2.msra.mxu0 0.0
        %2697 = vmatprep.subr.mxu0 0.0
        %2698 = vmatpush2.msra.mxu0 0.0
        %2699 = vmatprep.subr.mxu0 0.0
        %2700 = vmatpush2.msra.mxu0 0.0
        %2701 = vmatprep.subr.mxu0 0.0
        %2702 = vmatpush2.msra.mxu0 0.0
        %2703 = vmatprep.subr.mxu0 0.0
        %2704 = vmatpush2.msra.mxu0 0.0
        %2705 = vmatprep.subr.mxu0 0.0
        %2706 = vmatpush2.msra.mxu0 0.0
        %2707 = vmatprep.subr.mxu0 0.0
        %2708 = vmatpush2.msra.mxu0 0.0
        %2709 = vmatprep.subr.mxu0 0.0
        %2710 = vmatpush2.msra.mxu0 0.0
        %2711 = vmatprep.subr.mxu0 0.0
        %2712 = vmatpush2.msra.mxu0 0.0
        %2713 = vmatprep.subr.mxu0 0.0
        %2714 = vmatpush2.msra.mxu0 0.0
        %2715 = vmatprep.subr.mxu0 0.0
        %2716 = vmatpush2.msra.mxu0 0.0
        %2717 = vmatprep.subr.mxu0 0.0
        %2718 = vmatpush2.msra.mxu0 0.0
        %2719 = vmatprep.mubr.f32.mxu0 0.0
        %2720 = vmatmul.mubr.f32.gmra.mxu0 %v2653
        %v2721 = vpop.f32.mrf.mxu0
        %v2722 = vadd.f32 0.0, %v2721
        %v2723 = vpop.f32.mrf.mxu0
        %v2724 = vadd.f32 0.0, %v2723
        %2725 = vdwg.mxu0
        %v2726 = vadd.f32 %v2634, %v2722
        %v2727 = vadd.f32 %v2636, %v2724
        %2728 = vrot.lane.b32.xlu0 %v2469, 112
        %v2729 = vpop.permute.xlu0 %2728
        %2730 = vrot.lane.b32.xlu0 %v2470, 112
        %v2731 = vpop.permute.xlu0 %2730
        %2732 = vrot.lane.b32.xlu0 %v2471, 112
        %v2733 = vpop.permute.xlu0 %2732
        %v2734 = vsel %vm737, %v2729, %v2731
        %v2735 = vsel %vm737, %v2731, %v2733
        %v2738 = vsel %vm556, %v2734, 0.0
        %v2739 = vsel %vm557, %v2735, 0.0
        %s2740 = scalar_lea.vmem %s5, 24
        %v2741 = vld [vmem:[%s2740] sm:$0xff]
        %v2743 = vsel %vm2097, %v2741, 0
        %2745 = vmatprep.subr.mxu0 0.0
        %2746 = vmatpush1.msra.mxu0 0.0
        %2747 = vmatprep.subr.mxu0 0.0
        %2748 = vmatpush1.msra.mxu0 0.0
        %2749 = vmatprep.subr.mxu0 0.0
        %2750 = vmatpush1.msra.mxu0 0.0
        %2751 = vmatprep.subr.mxu0 0.0
        %2752 = vmatpush1.msra.mxu0 0.0
        %2753 = vmatprep.subr.mxu0 0.0
        %2754 = vmatpush1.msra.mxu0 0.0
        %2755 = vmatprep.subr.mxu0 0.0
        %2756 = vmatpush1.msra.mxu0 0.0
        %2757 = vmatprep.subr.mxu0 0.0
        %2758 = vmatpush1.msra.mxu0 0.0
        %2759 = vmatprep.subr.mxu0 0.0
        %2760 = vmatpush1.msra.mxu0 0.0
        %2761 = vmatprep.subr.mxu0 0.0
        %2762 = vmatpush1.msra.mxu0 0.0
        %2763 = vmatprep.subr.mxu0 0.0
        %2764 = vmatpush1.msra.mxu0 0.0
        %2765 = vmatprep.subr.mxu0 0.0
        %2766 = vmatpush1.msra.mxu0 0.0
        %2767 = vmatprep.subr.mxu0 0.0
        %2768 = vmatpush1.msra.mxu0 0.0
        %2769 = vmatprep.subr.mxu0 0.0
        %2770 = vmatpush1.msra.mxu0 0.0
        %2771 = vmatprep.subr.mxu0 0.0
        %2772 = vmatpush1.msra.mxu0 0.0
        %2773 = vmatprep.subr.mxu0 0.0
        %2774 = vmatpush1.msra.mxu0 0.0
        %2775 = vmatprep.subr.mxu0 %v2739
        %2776 = vmatpush1.msra.mxu0 %v2738
        %2777 = vmatprep.subr.mxu0 0.0
        %2778 = vmatpush2.msra.mxu0 0.0
        %2779 = vmatprep.subr.mxu0 0.0
        %2780 = vmatpush2.msra.mxu0 0.0
        %2781 = vmatprep.subr.mxu0 0.0
        %2782 = vmatpush2.msra.mxu0 0.0
        %2783 = vmatprep.subr.mxu0 0.0
        %2784 = vmatpush2.msra.mxu0 0.0
        %2785 = vmatprep.subr.mxu0 0.0
        %2786 = vmatpush2.msra.mxu0 0.0
        %2787 = vmatprep.subr.mxu0 0.0
        %2788 = vmatpush2.msra.mxu0 0.0
        %2789 = vmatprep.subr.mxu0 0.0
        %2790 = vmatpush2.msra.mxu0 0.0
        %2791 = vmatprep.subr.mxu0 0.0
        %2792 = vmatpush2.msra.mxu0 0.0
        %2793 = vmatprep.subr.mxu0 0.0
        %2794 = vmatpush2.msra.mxu0 0.0
        %2795 = vmatprep.subr.mxu0 0.0
        %2796 = vmatpush2.msra.mxu0 0.0
        %2797 = vmatprep.subr.mxu0 0.0
        %2798 = vmatpush2.msra.mxu0 0.0
        %2799 = vmatprep.subr.mxu0 0.0
        %2800 = vmatpush2.msra.mxu0 0.0
        %2801 = vmatprep.subr.mxu0 0.0
        %2802 = vmatpush2.msra.mxu0 0.0
        %2803 = vmatprep.subr.mxu0 0.0
        %2804 = vmatpush2.msra.mxu0 0.0
        %2805 = vmatprep.subr.mxu0 0.0
        %2806 = vmatpush2.msra.mxu0 0.0
        %2807 = vmatprep.subr.mxu0 0.0
        %2808 = vmatpush2.msra.mxu0 0.0
        %2809 = vmatprep.mubr.f32.mxu0 0.0
        %2810 = vmatmul.mubr.f32.gmra.mxu0 %v2743
        %v2811 = vpop.f32.mrf.mxu0
        %v2812 = vadd.f32 0.0, %v2811
        %v2813 = vpop.f32.mrf.mxu0
        %v2814 = vadd.f32 0.0, %v2813
        %2815 = vdwg.mxu0
        %v2816 = vadd.f32 %v2726, %v2812
        %v2817 = vadd.f32 %v2727, %v2814
        %s2818 = scalar_lea.vmem %s5, 32
        %v2819 = vld [vmem:[%s2818] sm:$0xff]
        %2820 = vrot.lane.b32.xlu0 %v2469, 111
        %v2821 = vpop.permute.xlu0 %2820
        %2822 = vrot.lane.b32.xlu0 %v2470, 111
        %v2823 = vpop.permute.xlu0 %2822
        %2824 = vrot.lane.b32.xlu0 %v2471, 111
        %v2825 = vpop.permute.xlu0 %2824
        %v2826 = vsel %vm768, %v2821, %v2823
        %v2827 = vsel %vm768, %v2823, %v2825
        %v2831 = vsel %vm2097, %v2819, 0
        %2833 = vmatprep.subr.mxu0 0.0
        %2834 = vmatpush1.msra.mxu0 0.0
        %2835 = vmatprep.subr.mxu0 0.0
        %2836 = vmatpush1.msra.mxu0 0.0
        %2837 = vmatprep.subr.mxu0 0.0
        %2838 = vmatpush1.msra.mxu0 0.0
        %2839 = vmatprep.subr.mxu0 0.0
        %2840 = vmatpush1.msra.mxu0 0.0
        %2841 = vmatprep.subr.mxu0 0.0
        %2842 = vmatpush1.msra.mxu0 0.0
        %2843 = vmatprep.subr.mxu0 0.0
        %2844 = vmatpush1.msra.mxu0 0.0
        %2845 = vmatprep.subr.mxu0 0.0
        %2846 = vmatpush1.msra.mxu0 0.0
        %2847 = vmatprep.subr.mxu0 0.0
        %2848 = vmatpush1.msra.mxu0 0.0
        %2849 = vmatprep.subr.mxu0 0.0
        %2850 = vmatpush1.msra.mxu0 0.0
        %2851 = vmatprep.subr.mxu0 0.0
        %2852 = vmatpush1.msra.mxu0 0.0
        %2853 = vmatprep.subr.mxu0 0.0
        %2854 = vmatpush1.msra.mxu0 0.0
        %2855 = vmatprep.subr.mxu0 0.0
        %2856 = vmatpush1.msra.mxu0 0.0
        %2857 = vmatprep.subr.mxu0 0.0
        %2858 = vmatpush1.msra.mxu0 0.0
        %2859 = vmatprep.subr.mxu0 0.0
        %2860 = vmatpush1.msra.mxu0 0.0
        %2861 = vmatprep.subr.mxu0 0.0
        %2862 = vmatpush1.msra.mxu0 0.0
        %2863 = vmatprep.subr.mxu0 %v2827
        %2864 = vmatpush1.msra.mxu0 %v2826
        %2865 = vmatprep.subr.mxu0 0.0
        %2866 = vmatpush2.msra.mxu0 0.0
        %2867 = vmatprep.subr.mxu0 0.0
        %2868 = vmatpush2.msra.mxu0 0.0
        %2869 = vmatprep.subr.mxu0 0.0
        %2870 = vmatpush2.msra.mxu0 0.0
        %2871 = vmatprep.subr.mxu0 0.0
        %2872 = vmatpush2.msra.mxu0 0.0
        %2873 = vmatprep.subr.mxu0 0.0
        %2874 = vmatpush2.msra.mxu0 0.0
        %2875 = vmatprep.subr.mxu0 0.0
        %2876 = vmatpush2.msra.mxu0 0.0
        %2877 = vmatprep.subr.mxu0 0.0
        %2878 = vmatpush2.msra.mxu0 0.0
        %2879 = vmatprep.subr.mxu0 0.0
        %2880 = vmatpush2.msra.mxu0 0.0
        %2881 = vmatprep.subr.mxu0 0.0
        %2882 = vmatpush2.msra.mxu0 0.0
        %2883 = vmatprep.subr.mxu0 0.0
        %2884 = vmatpush2.msra.mxu0 0.0
        %2885 = vmatprep.subr.mxu0 0.0
        %2886 = vmatpush2.msra.mxu0 0.0
        %2887 = vmatprep.subr.mxu0 0.0
        %2888 = vmatpush2.msra.mxu0 0.0
        %2889 = vmatprep.subr.mxu0 0.0
        %2890 = vmatpush2.msra.mxu0 0.0
        %2891 = vmatprep.subr.mxu0 0.0
        %2892 = vmatpush2.msra.mxu0 0.0
        %2893 = vmatprep.subr.mxu0 0.0
        %2894 = vmatpush2.msra.mxu0 0.0
        %2895 = vmatprep.subr.mxu0 0.0
        %2896 = vmatpush2.msra.mxu0 0.0
        %2897 = vmatprep.mubr.f32.mxu0 0.0
        %2898 = vmatmul.mubr.f32.gmra.mxu0 %v2831
        %v2899 = vpop.f32.mrf.mxu0
        %v2900 = vadd.f32 0.0, %v2899
        %v2901 = vpop.f32.mrf.mxu0
        %v2902 = vadd.f32 0.0, %v2901
        %2903 = vdwg.mxu0
        %v2904 = vadd.f32 %v2816, %v2900
        %v2905 = vadd.f32 %v2817, %v2902
        %2906 = vrot.lane.b32.xlu0 %v2469, 110
        %v2907 = vpop.permute.xlu0 %2906
        %2908 = vrot.lane.b32.xlu0 %v2470, 110
        %v2909 = vpop.permute.xlu0 %2908
        %2910 = vrot.lane.b32.xlu0 %v2471, 110
        %v2911 = vpop.permute.xlu0 %2910
        %v2912 = vsel %vm799, %v2907, %v2909
        %v2913 = vsel %vm799, %v2909, %v2911
        %v2916 = vsel %vm628, %v2912, 0.0
        %v2917 = vsel %vm629, %v2913, 0.0
        %s2918 = scalar_lea.vmem %s5, 40
        %v2919 = vld [vmem:[%s2918] sm:$0xff]
        %v2921 = vsel %vm2097, %v2919, 0
        %2923 = vmatprep.subr.mxu0 0.0
        %2924 = vmatpush1.msra.mxu0 0.0
        %2925 = vmatprep.subr.mxu0 0.0
        %2926 = vmatpush1.msra.mxu0 0.0
        %2927 = vmatprep.subr.mxu0 0.0
        %2928 = vmatpush1.msra.mxu0 0.0
        %2929 = vmatprep.subr.mxu0 0.0
        %2930 = vmatpush1.msra.mxu0 0.0
        %2931 = vmatprep.subr.mxu0 0.0
        %2932 = vmatpush1.msra.mxu0 0.0
        %2933 = vmatprep.subr.mxu0 0.0
        %2934 = vmatpush1.msra.mxu0 0.0
        %2935 = vmatprep.subr.mxu0 0.0
        %2936 = vmatpush1.msra.mxu0 0.0
        %2937 = vmatprep.subr.mxu0 0.0
        %2938 = vmatpush1.msra.mxu0 0.0
        %2939 = vmatprep.subr.mxu0 0.0
        %2940 = vmatpush1.msra.mxu0 0.0
        %2941 = vmatprep.subr.mxu0 0.0
        %2942 = vmatpush1.msra.mxu0 0.0
        %2943 = vmatprep.subr.mxu0 0.0
        %2944 = vmatpush1.msra.mxu0 0.0
        %2945 = vmatprep.subr.mxu0 0.0
        %2946 = vmatpush1.msra.mxu0 0.0
        %2947 = vmatprep.subr.mxu0 0.0
        %2948 = vmatpush1.msra.mxu0 0.0
        %2949 = vmatprep.subr.mxu0 0.0
        %2950 = vmatpush1.msra.mxu0 0.0
        %2951 = vmatprep.subr.mxu0 0.0
        %2952 = vmatpush1.msra.mxu0 0.0
        %2953 = vmatprep.subr.mxu0 %v2917
        %2954 = vmatpush1.msra.mxu0 %v2916
        %2955 = vmatprep.subr.mxu0 0.0
        %2956 = vmatpush2.msra.mxu0 0.0
        %2957 = vmatprep.subr.mxu0 0.0
        %2958 = vmatpush2.msra.mxu0 0.0
        %2959 = vmatprep.subr.mxu0 0.0
        %2960 = vmatpush2.msra.mxu0 0.0
        %2961 = vmatprep.subr.mxu0 0.0
        %2962 = vmatpush2.msra.mxu0 0.0
        %2963 = vmatprep.subr.mxu0 0.0
        %2964 = vmatpush2.msra.mxu0 0.0
        %2965 = vmatprep.subr.mxu0 0.0
        %2966 = vmatpush2.msra.mxu0 0.0
        %2967 = vmatprep.subr.mxu0 0.0
        %2968 = vmatpush2.msra.mxu0 0.0
        %2969 = vmatprep.subr.mxu0 0.0
        %2970 = vmatpush2.msra.mxu0 0.0
        %2971 = vmatprep.subr.mxu0 0.0
        %2972 = vmatpush2.msra.mxu0 0.0
        %2973 = vmatprep.subr.mxu0 0.0
        %2974 = vmatpush2.msra.mxu0 0.0
        %2975 = vmatprep.subr.mxu0 0.0
        %2976 = vmatpush2.msra.mxu0 0.0
        %2977 = vmatprep.subr.mxu0 0.0
        %2978 = vmatpush2.msra.mxu0 0.0
        %2979 = vmatprep.subr.mxu0 0.0
        %2980 = vmatpush2.msra.mxu0 0.0
        %2981 = vmatprep.subr.mxu0 0.0
        %2982 = vmatpush2.msra.mxu0 0.0
        %2983 = vmatprep.subr.mxu0 0.0
        %2984 = vmatpush2.msra.mxu0 0.0
        %2985 = vmatprep.subr.mxu0 0.0
        %2986 = vmatpush2.msra.mxu0 0.0
        %2987 = vmatprep.mubr.f32.mxu0 0.0
        %2988 = vmatmul.mubr.f32.gmra.mxu0 %v2921
        %v2989 = vpop.f32.mrf.mxu0
        %v2990 = vadd.f32 0.0, %v2989
        %v2991 = vpop.f32.mrf.mxu0
        %v2992 = vadd.f32 0.0, %v2991
        %2993 = vdwg.mxu0
        %v2994 = vadd.f32 %v2904, %v2990
        %v2995 = vadd.f32 %v2905, %v2992
        %2996 = vrot.lane.b32.xlu0 %v2469, 96
        %v2997 = vpop.permute.xlu0 %2996
        %2998 = vrot.lane.b32.xlu0 %v2470, 96
        %v2999 = vpop.permute.xlu0 %2998
        %3000 = vrot.lane.b32.xlu0 %v2471, 96
        %v3001 = vpop.permute.xlu0 %3000
        %v3002 = vsel %vm960, %v2997, %v2999
        %v3003 = vsel %vm960, %v2999, %v3001
        %v3006 = vsel %vm556, %v3002, 0.0
        %v3007 = vsel %vm557, %v3003, 0.0
        %s3008 = scalar_lea.vmem %s5, 48
        %v3009 = vld [vmem:[%s3008] sm:$0xff]
        %v3011 = vsel %vm2097, %v3009, 0
        %3013 = vmatprep.subr.mxu0 0.0
        %3014 = vmatpush1.msra.mxu0 0.0
        %3015 = vmatprep.subr.mxu0 0.0
        %3016 = vmatpush1.msra.mxu0 0.0
        %3017 = vmatprep.subr.mxu0 0.0
        %3018 = vmatpush1.msra.mxu0 0.0
        %3019 = vmatprep.subr.mxu0 0.0
        %3020 = vmatpush1.msra.mxu0 0.0
        %3021 = vmatprep.subr.mxu0 0.0
        %3022 = vmatpush1.msra.mxu0 0.0
        %3023 = vmatprep.subr.mxu0 0.0
        %3024 = vmatpush1.msra.mxu0 0.0
        %3025 = vmatprep.subr.mxu0 0.0
        %3026 = vmatpush1.msra.mxu0 0.0
        %3027 = vmatprep.subr.mxu0 0.0
        %3028 = vmatpush1.msra.mxu0 0.0
        %3029 = vmatprep.subr.mxu0 0.0
        %3030 = vmatpush1.msra.mxu0 0.0
        %3031 = vmatprep.subr.mxu0 0.0
        %3032 = vmatpush1.msra.mxu0 0.0
        %3033 = vmatprep.subr.mxu0 0.0
        %3034 = vmatpush1.msra.mxu0 0.0
        %3035 = vmatprep.subr.mxu0 0.0
        %3036 = vmatpush1.msra.mxu0 0.0
        %3037 = vmatprep.subr.mxu0 0.0
        %3038 = vmatpush1.msra.mxu0 0.0
        %3039 = vmatprep.subr.mxu0 0.0
        %3040 = vmatpush1.msra.mxu0 0.0
        %3041 = vmatprep.subr.mxu0 0.0
        %3042 = vmatpush1.msra.mxu0 0.0
        %3043 = vmatprep.subr.mxu0 %v3007
        %3044 = vmatpush1.msra.mxu0 %v3006
        %3045 = vmatprep.subr.mxu0 0.0
        %3046 = vmatpush2.msra.mxu0 0.0
        %3047 = vmatprep.subr.mxu0 0.0
        %3048 = vmatpush2.msra.mxu0 0.0
        %3049 = vmatprep.subr.mxu0 0.0
        %3050 = vmatpush2.msra.mxu0 0.0
        %3051 = vmatprep.subr.mxu0 0.0
        %3052 = vmatpush2.msra.mxu0 0.0
        %3053 = vmatprep.subr.mxu0 0.0
        %3054 = vmatpush2.msra.mxu0 0.0
        %3055 = vmatprep.subr.mxu0 0.0
        %3056 = vmatpush2.msra.mxu0 0.0
        %3057 = vmatprep.subr.mxu0 0.0
        %3058 = vmatpush2.msra.mxu0 0.0
        %3059 = vmatprep.subr.mxu0 0.0
        %3060 = vmatpush2.msra.mxu0 0.0
        %3061 = vmatprep.subr.mxu0 0.0
        %3062 = vmatpush2.msra.mxu0 0.0
        %3063 = vmatprep.subr.mxu0 0.0
        %3064 = vmatpush2.msra.mxu0 0.0
        %3065 = vmatprep.subr.mxu0 0.0
        %3066 = vmatpush2.msra.mxu0 0.0
        %3067 = vmatprep.subr.mxu0 0.0
        %3068 = vmatpush2.msra.mxu0 0.0
        %3069 = vmatprep.subr.mxu0 0.0
        %3070 = vmatpush2.msra.mxu0 0.0
        %3071 = vmatprep.subr.mxu0 0.0
        %3072 = vmatpush2.msra.mxu0 0.0
        %3073 = vmatprep.subr.mxu0 0.0
        %3074 = vmatpush2.msra.mxu0 0.0
        %3075 = vmatprep.subr.mxu0 0.0
        %3076 = vmatpush2.msra.mxu0 0.0
        %3077 = vmatprep.mubr.f32.mxu0 0.0
        %3078 = vmatmul.mubr.f32.gmra.mxu0 %v3011
        %v3079 = vpop.f32.mrf.mxu0
        %v3080 = vadd.f32 0.0, %v3079
        %v3081 = vpop.f32.mrf.mxu0
        %v3082 = vadd.f32 0.0, %v3081
        %3083 = vdwg.mxu0
        %v3084 = vadd.f32 %v2994, %v3080
        %v3085 = vadd.f32 %v2995, %v3082
        %s3086 = scalar_lea.vmem %s5, 56
        %v3087 = vld [vmem:[%s3086] sm:$0xff]
        %3088 = vrot.lane.b32.xlu0 %v2469, 95
        %v3089 = vpop.permute.xlu0 %3088
        %3090 = vrot.lane.b32.xlu0 %v2470, 95
        %v3091 = vpop.permute.xlu0 %3090
        %3092 = vrot.lane.b32.xlu0 %v2471, 95
        %v3093 = vpop.permute.xlu0 %3092
        %v3094 = vsel %vm991, %v3089, %v3091
        %v3095 = vsel %vm991, %v3091, %v3093
        %v3099 = vsel %vm2097, %v3087, 0
        %3101 = vmatprep.subr.mxu0 0.0
        %3102 = vmatpush1.msra.mxu0 0.0
        %3103 = vmatprep.subr.mxu0 0.0
        %3104 = vmatpush1.msra.mxu0 0.0
        %3105 = vmatprep.subr.mxu0 0.0
        %3106 = vmatpush1.msra.mxu0 0.0
        %3107 = vmatprep.subr.mxu0 0.0
        %3108 = vmatpush1.msra.mxu0 0.0
        %3109 = vmatprep.subr.mxu0 0.0
        %3110 = vmatpush1.msra.mxu0 0.0
        %3111 = vmatprep.subr.mxu0 0.0
        %3112 = vmatpush1.msra.mxu0 0.0
        %3113 = vmatprep.subr.mxu0 0.0
        %3114 = vmatpush1.msra.mxu0 0.0
        %3115 = vmatprep.subr.mxu0 0.0
        %3116 = vmatpush1.msra.mxu0 0.0
        %3117 = vmatprep.subr.mxu0 0.0
        %3118 = vmatpush1.msra.mxu0 0.0
        %3119 = vmatprep.subr.mxu0 0.0
        %3120 = vmatpush1.msra.mxu0 0.0
        %3121 = vmatprep.subr.mxu0 0.0
        %3122 = vmatpush1.msra.mxu0 0.0
        %3123 = vmatprep.subr.mxu0 0.0
        %3124 = vmatpush1.msra.mxu0 0.0
        %3125 = vmatprep.subr.mxu0 0.0
        %3126 = vmatpush1.msra.mxu0 0.0
        %3127 = vmatprep.subr.mxu0 0.0
        %3128 = vmatpush1.msra.mxu0 0.0
        %3129 = vmatprep.subr.mxu0 0.0
        %3130 = vmatpush1.msra.mxu0 0.0
        %3131 = vmatprep.subr.mxu0 %v3095
        %3132 = vmatpush1.msra.mxu0 %v3094
        %3133 = vmatprep.subr.mxu0 0.0
        %3134 = vmatpush2.msra.mxu0 0.0
        %3135 = vmatprep.subr.mxu0 0.0
        %3136 = vmatpush2.msra.mxu0 0.0
        %3137 = vmatprep.subr.mxu0 0.0
        %3138 = vmatpush2.msra.mxu0 0.0
        %3139 = vmatprep.subr.mxu0 0.0
        %3140 = vmatpush2.msra.mxu0 0.0
        %3141 = vmatprep.subr.mxu0 0.0
        %3142 = vmatpush2.msra.mxu0 0.0
        %3143 = vmatprep.subr.mxu0 0.0
        %3144 = vmatpush2.msra.mxu0 0.0
        %3145 = vmatprep.subr.mxu0 0.0
        %3146 = vmatpush2.msra.mxu0 0.0
        %3147 = vmatprep.subr.mxu0 0.0
        %3148 = vmatpush2.msra.mxu0 0.0
        %3149 = vmatprep.subr.mxu0 0.0
        %3150 = vmatpush2.msra.mxu0 0.0
        %3151 = vmatprep.subr.mxu0 0.0
        %3152 = vmatpush2.msra.mxu0 0.0
        %3153 = vmatprep.subr.mxu0 0.0
        %3154 = vmatpush2.msra.mxu0 0.0
        %3155 = vmatprep.subr.mxu0 0.0
        %3156 = vmatpush2.msra.mxu0 0.0
        %3157 = vmatprep.subr.mxu0 0.0
        %3158 = vmatpush2.msra.mxu0 0.0
        %3159 = vmatprep.subr.mxu0 0.0
        %3160 = vmatpush2.msra.mxu0 0.0
        %3161 = vmatprep.subr.mxu0 0.0
        %3162 = vmatpush2.msra.mxu0 0.0
        %3163 = vmatprep.subr.mxu0 0.0
        %3164 = vmatpush2.msra.mxu0 0.0
        %3165 = vmatprep.mubr.f32.mxu0 0.0
        %3166 = vmatmul.mubr.f32.gmra.mxu0 %v3099
        %v3167 = vpop.f32.mrf.mxu0
        %v3168 = vadd.f32 0.0, %v3167
        %v3169 = vpop.f32.mrf.mxu0
        %v3170 = vadd.f32 0.0, %v3169
        %3171 = vdwg.mxu0
        %v3172 = vadd.f32 %v3084, %v3168
        %v3173 = vadd.f32 %v3085, %v3170
        %3174 = vrot.lane.b32.xlu0 %v2469, 94
        %v3175 = vpop.permute.xlu0 %3174
        %3176 = vrot.lane.b32.xlu0 %v2470, 94
        %v3177 = vpop.permute.xlu0 %3176
        %3178 = vrot.lane.b32.xlu0 %v2471, 94
        %v3179 = vpop.permute.xlu0 %3178
        %v3180 = vsel %vm1022, %v3175, %v3177
        %v3181 = vsel %vm1022, %v3177, %v3179
        %v3184 = vsel %vm628, %v3180, 0.0
        %v3185 = vsel %vm629, %v3181, 0.0
        %s3186 = scalar_lea.vmem %s5, 64
        %v3187 = vld [vmem:[%s3186] sm:$0xff]
        %v3189 = vsel %vm2097, %v3187, 0
        %3191 = vmatprep.subr.mxu0 0.0
        %3192 = vmatpush1.msra.mxu0 0.0
        %3193 = vmatprep.subr.mxu0 0.0
        %3194 = vmatpush1.msra.mxu0 0.0
        %3195 = vmatprep.subr.mxu0 0.0
        %3196 = vmatpush1.msra.mxu0 0.0
        %3197 = vmatprep.subr.mxu0 0.0
        %3198 = vmatpush1.msra.mxu0 0.0
        %3199 = vmatprep.subr.mxu0 0.0
        %3200 = vmatpush1.msra.mxu0 0.0
        %3201 = vmatprep.subr.mxu0 0.0
        %3202 = vmatpush1.msra.mxu0 0.0
        %3203 = vmatprep.subr.mxu0 0.0
        %3204 = vmatpush1.msra.mxu0 0.0
        %3205 = vmatprep.subr.mxu0 0.0
        %3206 = vmatpush1.msra.mxu0 0.0
        %3207 = vmatprep.subr.mxu0 0.0
        %3208 = vmatpush1.msra.mxu0 0.0
        %3209 = vmatprep.subr.mxu0 0.0
        %3210 = vmatpush1.msra.mxu0 0.0
        %3211 = vmatprep.subr.mxu0 0.0
        %3212 = vmatpush1.msra.mxu0 0.0
        %3213 = vmatprep.subr.mxu0 0.0
        %3214 = vmatpush1.msra.mxu0 0.0
        %3215 = vmatprep.subr.mxu0 0.0
        %3216 = vmatpush1.msra.mxu0 0.0
        %3217 = vmatprep.subr.mxu0 0.0
        %3218 = vmatpush1.msra.mxu0 0.0
        %3219 = vmatprep.subr.mxu0 0.0
        %3220 = vmatpush1.msra.mxu0 0.0
        %3221 = vmatprep.subr.mxu0 %v3185
        %3222 = vmatpush1.msra.mxu0 %v3184
        %3223 = vmatprep.subr.mxu0 0.0
        %3224 = vmatpush2.msra.mxu0 0.0
        %3225 = vmatprep.subr.mxu0 0.0
        %3226 = vmatpush2.msra.mxu0 0.0
        %3227 = vmatprep.subr.mxu0 0.0
        %3228 = vmatpush2.msra.mxu0 0.0
        %3229 = vmatprep.subr.mxu0 0.0
        %3230 = vmatpush2.msra.mxu0 0.0
        %3231 = vmatprep.subr.mxu0 0.0
        %3232 = vmatpush2.msra.mxu0 0.0
        %3233 = vmatprep.subr.mxu0 0.0
        %3234 = vmatpush2.msra.mxu0 0.0
        %3235 = vmatprep.subr.mxu0 0.0
        %3236 = vmatpush2.msra.mxu0 0.0
        %3237 = vmatprep.subr.mxu0 0.0
        %3238 = vmatpush2.msra.mxu0 0.0
        %3239 = vmatprep.subr.mxu0 0.0
        %3240 = vmatpush2.msra.mxu0 0.0
        %3241 = vmatprep.subr.mxu0 0.0
        %3242 = vmatpush2.msra.mxu0 0.0
        %3243 = vmatprep.subr.mxu0 0.0
        %3244 = vmatpush2.msra.mxu0 0.0
        %3245 = vmatprep.subr.mxu0 0.0
        %3246 = vmatpush2.msra.mxu0 0.0
        %3247 = vmatprep.subr.mxu0 0.0
        %3248 = vmatpush2.msra.mxu0 0.0
        %3249 = vmatprep.subr.mxu0 0.0
        %3250 = vmatpush2.msra.mxu0 0.0
        %3251 = vmatprep.subr.mxu0 0.0
        %3252 = vmatpush2.msra.mxu0 0.0
        %3253 = vmatprep.subr.mxu0 0.0
        %3254 = vmatpush2.msra.mxu0 0.0
        %3255 = vmatprep.mubr.f32.mxu0 0.0
        %3256 = vmatmul.mubr.f32.gmra.mxu0 %v3189
        %v3257 = vpop.f32.mrf.mxu0
        %v3258 = vadd.f32 0.0, %v3257
        %v3259 = vpop.f32.mrf.mxu0
        %v3260 = vadd.f32 0.0, %v3259
        %3261 = vdwg.mxu0
        %v3262 = vadd.f32 %v3172, %v3258
        %v3263 = vadd.f32 %v3173, %v3260
        %v3264 = vld [vmem:[#allocation4] sm:$0xff]
        %v3265 = vld [vmem:[#allocation4 + $0x8] sm:$0xff]
        %v3266 = vld [vmem:[#allocation4 + $0x10] sm:$0xff]
        %v3267 = vsel %vm556, %v3264, 0.0
        %v3268 = vsel %vm557, %v3265, 0.0
        %s3269 = scalar_lea.vmem %s5, 72
        %v3270 = vld [vmem:[%s3269] sm:$0xff]
        %v3272 = vsel %vm2097, %v3270, 0
        %3274 = vmatprep.subr.mxu0 0.0
        %3275 = vmatpush1.msra.mxu0 0.0
        %3276 = vmatprep.subr.mxu0 0.0
        %3277 = vmatpush1.msra.mxu0 0.0
        %3278 = vmatprep.subr.mxu0 0.0
        %3279 = vmatpush1.msra.mxu0 0.0
        %3280 = vmatprep.subr.mxu0 0.0
        %3281 = vmatpush1.msra.mxu0 0.0
        %3282 = vmatprep.subr.mxu0 0.0
        %3283 = vmatpush1.msra.mxu0 0.0
        %3284 = vmatprep.subr.mxu0 0.0
        %3285 = vmatpush1.msra.mxu0 0.0
        %3286 = vmatprep.subr.mxu0 0.0
        %3287 = vmatpush1.msra.mxu0 0.0
        %3288 = vmatprep.subr.mxu0 0.0
        %3289 = vmatpush1.msra.mxu0 0.0
        %3290 = vmatprep.subr.mxu0 0.0
        %3291 = vmatpush1.msra.mxu0 0.0
        %3292 = vmatprep.subr.mxu0 0.0
        %3293 = vmatpush1.msra.mxu0 0.0
        %3294 = vmatprep.subr.mxu0 0.0
        %3295 = vmatpush1.msra.mxu0 0.0
        %3296 = vmatprep.subr.mxu0 0.0
        %3297 = vmatpush1.msra.mxu0 0.0
        %3298 = vmatprep.subr.mxu0 0.0
        %3299 = vmatpush1.msra.mxu0 0.0
        %3300 = vmatprep.subr.mxu0 0.0
        %3301 = vmatpush1.msra.mxu0 0.0
        %3302 = vmatprep.subr.mxu0 0.0
        %3303 = vmatpush1.msra.mxu0 0.0
        %3304 = vmatprep.subr.mxu0 %v3268
        %3305 = vmatpush1.msra.mxu0 %v3267
        %3306 = vmatprep.subr.mxu0 0.0
        %3307 = vmatpush2.msra.mxu0 0.0
        %3308 = vmatprep.subr.mxu0 0.0
        %3309 = vmatpush2.msra.mxu0 0.0
        %3310 = vmatprep.subr.mxu0 0.0
        %3311 = vmatpush2.msra.mxu0 0.0
        %3312 = vmatprep.subr.mxu0 0.0
        %3313 = vmatpush2.msra.mxu0 0.0
        %3314 = vmatprep.subr.mxu0 0.0
        %3315 = vmatpush2.msra.mxu0 0.0
        %3316 = vmatprep.subr.mxu0 0.0
        %3317 = vmatpush2.msra.mxu0 0.0
        %3318 = vmatprep.subr.mxu0 0.0
        %3319 = vmatpush2.msra.mxu0 0.0
        %3320 = vmatprep.subr.mxu0 0.0
        %3321 = vmatpush2.msra.mxu0 0.0
        %3322 = vmatprep.subr.mxu0 0.0
        %3323 = vmatpush2.msra.mxu0 0.0
        %3324 = vmatprep.subr.mxu0 0.0
        %3325 = vmatpush2.msra.mxu0 0.0
        %3326 = vmatprep.subr.mxu0 0.0
        %3327 = vmatpush2.msra.mxu0 0.0
        %3328 = vmatprep.subr.mxu0 0.0
        %3329 = vmatpush2.msra.mxu0 0.0
        %3330 = vmatprep.subr.mxu0 0.0
        %3331 = vmatpush2.msra.mxu0 0.0
        %3332 = vmatprep.subr.mxu0 0.0
        %3333 = vmatpush2.msra.mxu0 0.0
        %3334 = vmatprep.subr.mxu0 0.0
        %3335 = vmatpush2.msra.mxu0 0.0
        %3336 = vmatprep.subr.mxu0 0.0
        %3337 = vmatpush2.msra.mxu0 0.0
        %3338 = vmatprep.mubr.f32.mxu0 0.0
        %3339 = vmatmul.mubr.f32.gmra.mxu0 %v3272
        %v3340 = vpop.f32.mrf.mxu0
        %v3341 = vadd.f32 0.0, %v3340
        %v3342 = vpop.f32.mrf.mxu0
        %v3343 = vadd.f32 0.0, %v3342
        %3344 = vdwg.mxu0
        %v3345 = vadd.f32 %v3262, %v3341
        %v3346 = vadd.f32 %v3263, %v3343
        %s3347 = scalar_lea.vmem %s5, 80
        %v3348 = vld [vmem:[%s3347] sm:$0xff]
        %3352 = vrot.lane.b32.xlu0 %v3264, 127
        %v3353 = vpop.permute.xlu0 %3352
        %3354 = vrot.lane.b32.xlu0 %v3265, 127
        %v3355 = vpop.permute.xlu0 %3354
        %3356 = vrot.lane.b32.xlu0 %v3266, 127
        %v3357 = vpop.permute.xlu0 %3356
        %v3358 = vsel %vm529, %v3353, %v3355
        %v3359 = vsel %vm529, %v3355, %v3357
        %v3363 = vsel %vm2097, %v3348, 0
        %3365 = vmatprep.subr.mxu0 0.0
        %3366 = vmatpush1.msra.mxu0 0.0
        %3367 = vmatprep.subr.mxu0 0.0
        %3368 = vmatpush1.msra.mxu0 0.0
        %3369 = vmatprep.subr.mxu0 0.0
        %3370 = vmatpush1.msra.mxu0 0.0
        %3371 = vmatprep.subr.mxu0 0.0
        %3372 = vmatpush1.msra.mxu0 0.0
        %3373 = vmatprep.subr.mxu0 0.0
        %3374 = vmatpush1.msra.mxu0 0.0
        %3375 = vmatprep.subr.mxu0 0.0
        %3376 = vmatpush1.msra.mxu0 0.0
        %3377 = vmatprep.subr.mxu0 0.0
        %3378 = vmatpush1.msra.mxu0 0.0
        %3379 = vmatprep.subr.mxu0 0.0
        %3380 = vmatpush1.msra.mxu0 0.0
        %3381 = vmatprep.subr.mxu0 0.0
        %3382 = vmatpush1.msra.mxu0 0.0
        %3383 = vmatprep.subr.mxu0 0.0
        %3384 = vmatpush1.msra.mxu0 0.0
        %3385 = vmatprep.subr.mxu0 0.0
        %3386 = vmatpush1.msra.mxu0 0.0
        %3387 = vmatprep.subr.mxu0 0.0
        %3388 = vmatpush1.msra.mxu0 0.0
        %3389 = vmatprep.subr.mxu0 0.0
        %3390 = vmatpush1.msra.mxu0 0.0
        %3391 = vmatprep.subr.mxu0 0.0
        %3392 = vmatpush1.msra.mxu0 0.0
        %3393 = vmatprep.subr.mxu0 0.0
        %3394 = vmatpush1.msra.mxu0 0.0
        %3395 = vmatprep.subr.mxu0 %v3359
        %3396 = vmatpush1.msra.mxu0 %v3358
        %3397 = vmatprep.subr.mxu0 0.0
        %3398 = vmatpush2.msra.mxu0 0.0
        %3399 = vmatprep.subr.mxu0 0.0
        %3400 = vmatpush2.msra.mxu0 0.0
        %3401 = vmatprep.subr.mxu0 0.0
        %3402 = vmatpush2.msra.mxu0 0.0
        %3403 = vmatprep.subr.mxu0 0.0
        %3404 = vmatpush2.msra.mxu0 0.0
        %3405 = vmatprep.subr.mxu0 0.0
        %3406 = vmatpush2.msra.mxu0 0.0
        %3407 = vmatprep.subr.mxu0 0.0
        %3408 = vmatpush2.msra.mxu0 0.0
        %3409 = vmatprep.subr.mxu0 0.0
        %3410 = vmatpush2.msra.mxu0 0.0
        %3411 = vmatprep.subr.mxu0 0.0
        %3412 = vmatpush2.msra.mxu0 0.0
        %3413 = vmatprep.subr.mxu0 0.0
        %3414 = vmatpush2.msra.mxu0 0.0
        %3415 = vmatprep.subr.mxu0 0.0
        %3416 = vmatpush2.msra.mxu0 0.0
        %3417 = vmatprep.subr.mxu0 0.0
        %3418 = vmatpush2.msra.mxu0 0.0
        %3419 = vmatprep.subr.mxu0 0.0
        %3420 = vmatpush2.msra.mxu0 0.0
        %3421 = vmatprep.subr.mxu0 0.0
        %3422 = vmatpush2.msra.mxu0 0.0
        %3423 = vmatprep.subr.mxu0 0.0
        %3424 = vmatpush2.msra.mxu0 0.0
        %3425 = vmatprep.subr.mxu0 0.0
        %3426 = vmatpush2.msra.mxu0 0.0
        %3427 = vmatprep.subr.mxu0 0.0
        %3428 = vmatpush2.msra.mxu0 0.0
        %3429 = vmatprep.mubr.f32.mxu0 0.0
        %3430 = vmatmul.mubr.f32.gmra.mxu0 %v3363
        %v3431 = vpop.f32.mrf.mxu0
        %v3432 = vadd.f32 0.0, %v3431
        %v3433 = vpop.f32.mrf.mxu0
        %v3434 = vadd.f32 0.0, %v3433
        %3435 = vdwg.mxu0
        %v3436 = vadd.f32 %v3345, %v3432
        %v3437 = vadd.f32 %v3346, %v3434
        %3438 = vrot.lane.b32.xlu0 %v3264, 126
        %v3439 = vpop.permute.xlu0 %3438
        %3440 = vrot.lane.b32.xlu0 %v3265, 126
        %v3441 = vpop.permute.xlu0 %3440
        %3442 = vrot.lane.b32.xlu0 %v3266, 126
        %v3443 = vpop.permute.xlu0 %3442
        %v3444 = vsel %vm564, %v3439, %v3441
        %v3445 = vsel %vm564, %v3441, %v3443
        %v3448 = vsel %vm628, %v3444, 0.0
        %v3449 = vsel %vm629, %v3445, 0.0
        %s3450 = scalar_lea.vmem %s5, 88
        %v3451 = vld [vmem:[%s3450] sm:$0xff]
        %v3453 = vsel %vm2097, %v3451, 0
        %3455 = vmatprep.subr.mxu0 0.0
        %3456 = vmatpush1.msra.mxu0 0.0
        %3457 = vmatprep.subr.mxu0 0.0
        %3458 = vmatpush1.msra.mxu0 0.0
        %3459 = vmatprep.subr.mxu0 0.0
        %3460 = vmatpush1.msra.mxu0 0.0
        %3461 = vmatprep.subr.mxu0 0.0
        %3462 = vmatpush1.msra.mxu0 0.0
        %3463 = vmatprep.subr.mxu0 0.0
        %3464 = vmatpush1.msra.mxu0 0.0
        %3465 = vmatprep.subr.mxu0 0.0
        %3466 = vmatpush1.msra.mxu0 0.0
        %3467 = vmatprep.subr.mxu0 0.0
        %3468 = vmatpush1.msra.mxu0 0.0
        %3469 = vmatprep.subr.mxu0 0.0
        %3470 = vmatpush1.msra.mxu0 0.0
        %3471 = vmatprep.subr.mxu0 0.0
        %3472 = vmatpush1.msra.mxu0 0.0
        %3473 = vmatprep.subr.mxu0 0.0
        %3474 = vmatpush1.msra.mxu0 0.0
        %3475 = vmatprep.subr.mxu0 0.0
        %3476 = vmatpush1.msra.mxu0 0.0
        %3477 = vmatprep.subr.mxu0 0.0
        %3478 = vmatpush1.msra.mxu0 0.0
        %3479 = vmatprep.subr.mxu0 0.0
        %3480 = vmatpush1.msra.mxu0 0.0
        %3481 = vmatprep.subr.mxu0 0.0
        %3482 = vmatpush1.msra.mxu0 0.0
        %3483 = vmatprep.subr.mxu0 0.0
        %3484 = vmatpush1.msra.mxu0 0.0
        %3485 = vmatprep.subr.mxu0 %v3449
        %3486 = vmatpush1.msra.mxu0 %v3448
        %3487 = vmatprep.subr.mxu0 0.0
        %3488 = vmatpush2.msra.mxu0 0.0
        %3489 = vmatprep.subr.mxu0 0.0
        %3490 = vmatpush2.msra.mxu0 0.0
        %3491 = vmatprep.subr.mxu0 0.0
        %3492 = vmatpush2.msra.mxu0 0.0
        %3493 = vmatprep.subr.mxu0 0.0
        %3494 = vmatpush2.msra.mxu0 0.0
        %3495 = vmatprep.subr.mxu0 0.0
        %3496 = vmatpush2.msra.mxu0 0.0
        %3497 = vmatprep.subr.mxu0 0.0
        %3498 = vmatpush2.msra.mxu0 0.0
        %3499 = vmatprep.subr.mxu0 0.0
        %3500 = vmatpush2.msra.mxu0 0.0
        %3501 = vmatprep.subr.mxu0 0.0
        %3502 = vmatpush2.msra.mxu0 0.0
        %3503 = vmatprep.subr.mxu0 0.0
        %3504 = vmatpush2.msra.mxu0 0.0
        %3505 = vmatprep.subr.mxu0 0.0
        %3506 = vmatpush2.msra.mxu0 0.0
        %3507 = vmatprep.subr.mxu0 0.0
        %3508 = vmatpush2.msra.mxu0 0.0
        %3509 = vmatprep.subr.mxu0 0.0
        %3510 = vmatpush2.msra.mxu0 0.0
        %3511 = vmatprep.subr.mxu0 0.0
        %3512 = vmatpush2.msra.mxu0 0.0
        %3513 = vmatprep.subr.mxu0 0.0
        %3514 = vmatpush2.msra.mxu0 0.0
        %3515 = vmatprep.subr.mxu0 0.0
        %3516 = vmatpush2.msra.mxu0 0.0
        %3517 = vmatprep.subr.mxu0 0.0
        %3518 = vmatpush2.msra.mxu0 0.0
        %3519 = vmatprep.mubr.f32.mxu0 0.0
        %3520 = vmatmul.mubr.f32.gmra.mxu0 %v3453
        %v3521 = vpop.f32.mrf.mxu0
        %v3522 = vadd.f32 0.0, %v3521
        %v3523 = vpop.f32.mrf.mxu0
        %v3524 = vadd.f32 0.0, %v3523
        %3525 = vdwg.mxu0
        %v3526 = vadd.f32 %v3436, %v3522
        %v3527 = vadd.f32 %v3437, %v3524
        %3528 = vrot.lane.b32.xlu0 %v3264, 112
        %v3529 = vpop.permute.xlu0 %3528
        %3530 = vrot.lane.b32.xlu0 %v3265, 112
        %v3531 = vpop.permute.xlu0 %3530
        %3532 = vrot.lane.b32.xlu0 %v3266, 112
        %v3533 = vpop.permute.xlu0 %3532
        %v3534 = vsel %vm737, %v3529, %v3531
        %v3535 = vsel %vm737, %v3531, %v3533
        %v3538 = vsel %vm556, %v3534, 0.0
        %v3539 = vsel %vm557, %v3535, 0.0
        %s3540 = scalar_lea.vmem %s5, 96
        %v3541 = vld [vmem:[%s3540] sm:$0xff]
        %v3543 = vsel %vm2097, %v3541, 0
        %3545 = vmatprep.subr.mxu0 0.0
        %3546 = vmatpush1.msra.mxu0 0.0
        %3547 = vmatprep.subr.mxu0 0.0
        %3548 = vmatpush1.msra.mxu0 0.0
        %3549 = vmatprep.subr.mxu0 0.0
        %3550 = vmatpush1.msra.mxu0 0.0
        %3551 = vmatprep.subr.mxu0 0.0
        %3552 = vmatpush1.msra.mxu0 0.0
        %3553 = vmatprep.subr.mxu0 0.0
        %3554 = vmatpush1.msra.mxu0 0.0
        %3555 = vmatprep.subr.mxu0 0.0
        %3556 = vmatpush1.msra.mxu0 0.0
        %3557 = vmatprep.subr.mxu0 0.0
        %3558 = vmatpush1.msra.mxu0 0.0
        %3559 = vmatprep.subr.mxu0 0.0
        %3560 = vmatpush1.msra.mxu0 0.0
        %3561 = vmatprep.subr.mxu0 0.0
        %3562 = vmatpush1.msra.mxu0 0.0
        %3563 = vmatprep.subr.mxu0 0.0
        %3564 = vmatpush1.msra.mxu0 0.0
        %3565 = vmatprep.subr.mxu0 0.0
        %3566 = vmatpush1.msra.mxu0 0.0
        %3567 = vmatprep.subr.mxu0 0.0
        %3568 = vmatpush1.msra.mxu0 0.0
        %3569 = vmatprep.subr.mxu0 0.0
        %3570 = vmatpush1.msra.mxu0 0.0
        %3571 = vmatprep.subr.mxu0 0.0
        %3572 = vmatpush1.msra.mxu0 0.0
        %3573 = vmatprep.subr.mxu0 0.0
        %3574 = vmatpush1.msra.mxu0 0.0
        %3575 = vmatprep.subr.mxu0 %v3539
        %3576 = vmatpush1.msra.mxu0 %v3538
        %3577 = vmatprep.subr.mxu0 0.0
        %3578 = vmatpush2.msra.mxu0 0.0
        %3579 = vmatprep.subr.mxu0 0.0
        %3580 = vmatpush2.msra.mxu0 0.0
        %3581 = vmatprep.subr.mxu0 0.0
        %3582 = vmatpush2.msra.mxu0 0.0
        %3583 = vmatprep.subr.mxu0 0.0
        %3584 = vmatpush2.msra.mxu0 0.0
        %3585 = vmatprep.subr.mxu0 0.0
        %3586 = vmatpush2.msra.mxu0 0.0
        %3587 = vmatprep.subr.mxu0 0.0
        %3588 = vmatpush2.msra.mxu0 0.0
        %3589 = vmatprep.subr.mxu0 0.0
        %3590 = vmatpush2.msra.mxu0 0.0
        %3591 = vmatprep.subr.mxu0 0.0
        %3592 = vmatpush2.msra.mxu0 0.0
        %3593 = vmatprep.subr.mxu0 0.0
        %3594 = vmatpush2.msra.mxu0 0.0
        %3595 = vmatprep.subr.mxu0 0.0
        %3596 = vmatpush2.msra.mxu0 0.0
        %3597 = vmatprep.subr.mxu0 0.0
        %3598 = vmatpush2.msra.mxu0 0.0
        %3599 = vmatprep.subr.mxu0 0.0
        %3600 = vmatpush2.msra.mxu0 0.0
        %3601 = vmatprep.subr.mxu0 0.0
        %3602 = vmatpush2.msra.mxu0 0.0
        %3603 = vmatprep.subr.mxu0 0.0
        %3604 = vmatpush2.msra.mxu0 0.0
        %3605 = vmatprep.subr.mxu0 0.0
        %3606 = vmatpush2.msra.mxu0 0.0
        %3607 = vmatprep.subr.mxu0 0.0
        %3608 = vmatpush2.msra.mxu0 0.0
        %3609 = vmatprep.mubr.f32.mxu0 0.0
        %3610 = vmatmul.mubr.f32.gmra.mxu0 %v3543
        %v3611 = vpop.f32.mrf.mxu0
        %v3612 = vadd.f32 0.0, %v3611
        %v3613 = vpop.f32.mrf.mxu0
        %v3614 = vadd.f32 0.0, %v3613
        %3615 = vdwg.mxu0
        %v3616 = vadd.f32 %v3526, %v3612
        %v3617 = vadd.f32 %v3527, %v3614
        %s3618 = scalar_lea.vmem %s5, 104
        %v3619 = vld [vmem:[%s3618] sm:$0xff]
        %3620 = vrot.lane.b32.xlu0 %v3264, 111
        %v3621 = vpop.permute.xlu0 %3620
        %3622 = vrot.lane.b32.xlu0 %v3265, 111
        %v3623 = vpop.permute.xlu0 %3622
        %3624 = vrot.lane.b32.xlu0 %v3266, 111
        %v3625 = vpop.permute.xlu0 %3624
        %v3626 = vsel %vm768, %v3621, %v3623
        %v3627 = vsel %vm768, %v3623, %v3625
        %v3631 = vsel %vm2097, %v3619, 0
        %3633 = vmatprep.subr.mxu0 0.0
        %3634 = vmatpush1.msra.mxu0 0.0
        %3635 = vmatprep.subr.mxu0 0.0
        %3636 = vmatpush1.msra.mxu0 0.0
        %3637 = vmatprep.subr.mxu0 0.0
        %3638 = vmatpush1.msra.mxu0 0.0
        %3639 = vmatprep.subr.mxu0 0.0
        %3640 = vmatpush1.msra.mxu0 0.0
        %3641 = vmatprep.subr.mxu0 0.0
        %3642 = vmatpush1.msra.mxu0 0.0
        %3643 = vmatprep.subr.mxu0 0.0
        %3644 = vmatpush1.msra.mxu0 0.0
        %3645 = vmatprep.subr.mxu0 0.0
        %3646 = vmatpush1.msra.mxu0 0.0
        %3647 = vmatprep.subr.mxu0 0.0
        %3648 = vmatpush1.msra.mxu0 0.0
        %3649 = vmatprep.subr.mxu0 0.0
        %3650 = vmatpush1.msra.mxu0 0.0
        %3651 = vmatprep.subr.mxu0 0.0
        %3652 = vmatpush1.msra.mxu0 0.0
        %3653 = vmatprep.subr.mxu0 0.0
        %3654 = vmatpush1.msra.mxu0 0.0
        %3655 = vmatprep.subr.mxu0 0.0
        %3656 = vmatpush1.msra.mxu0 0.0
        %3657 = vmatprep.subr.mxu0 0.0
        %3658 = vmatpush1.msra.mxu0 0.0
        %3659 = vmatprep.subr.mxu0 0.0
        %3660 = vmatpush1.msra.mxu0 0.0
        %3661 = vmatprep.subr.mxu0 0.0
        %3662 = vmatpush1.msra.mxu0 0.0
        %3663 = vmatprep.subr.mxu0 %v3627
        %3664 = vmatpush1.msra.mxu0 %v3626
        %3665 = vmatprep.subr.mxu0 0.0
        %3666 = vmatpush2.msra.mxu0 0.0
        %3667 = vmatprep.subr.mxu0 0.0
        %3668 = vmatpush2.msra.mxu0 0.0
        %3669 = vmatprep.subr.mxu0 0.0
        %3670 = vmatpush2.msra.mxu0 0.0
        %3671 = vmatprep.subr.mxu0 0.0
        %3672 = vmatpush2.msra.mxu0 0.0
        %3673 = vmatprep.subr.mxu0 0.0
        %3674 = vmatpush2.msra.mxu0 0.0
        %3675 = vmatprep.subr.mxu0 0.0
        %3676 = vmatpush2.msra.mxu0 0.0
        %3677 = vmatprep.subr.mxu0 0.0
        %3678 = vmatpush2.msra.mxu0 0.0
        %3679 = vmatprep.subr.mxu0 0.0
        %3680 = vmatpush2.msra.mxu0 0.0
        %3681 = vmatprep.subr.mxu0 0.0
        %3682 = vmatpush2.msra.mxu0 0.0
        %3683 = vmatprep.subr.mxu0 0.0
        %3684 = vmatpush2.msra.mxu0 0.0
        %3685 = vmatprep.subr.mxu0 0.0
        %3686 = vmatpush2.msra.mxu0 0.0
        %3687 = vmatprep.subr.mxu0 0.0
        %3688 = vmatpush2.msra.mxu0 0.0
        %3689 = vmatprep.subr.mxu0 0.0
        %3690 = vmatpush2.msra.mxu0 0.0
        %3691 = vmatprep.subr.mxu0 0.0
        %3692 = vmatpush2.msra.mxu0 0.0
        %3693 = vmatprep.subr.mxu0 0.0
        %3694 = vmatpush2.msra.mxu0 0.0
        %3695 = vmatprep.subr.mxu0 0.0
        %3696 = vmatpush2.msra.mxu0 0.0
        %3697 = vmatprep.mubr.f32.mxu0 0.0
        %3698 = vmatmul.mubr.f32.gmra.mxu0 %v3631
        %v3699 = vpop.f32.mrf.mxu0
        %v3700 = vadd.f32 0.0, %v3699
        %v3701 = vpop.f32.mrf.mxu0
        %v3702 = vadd.f32 0.0, %v3701
        %3703 = vdwg.mxu0
        %v3704 = vadd.f32 %v3616, %v3700
        %v3705 = vadd.f32 %v3617, %v3702
        %3706 = vrot.lane.b32.xlu0 %v3264, 110
        %v3707 = vpop.permute.xlu0 %3706
        %3708 = vrot.lane.b32.xlu0 %v3265, 110
        %v3709 = vpop.permute.xlu0 %3708
        %3710 = vrot.lane.b32.xlu0 %v3266, 110
        %v3711 = vpop.permute.xlu0 %3710
        %v3712 = vsel %vm799, %v3707, %v3709
        %v3713 = vsel %vm799, %v3709, %v3711
        %v3716 = vsel %vm628, %v3712, 0.0
        %v3717 = vsel %vm629, %v3713, 0.0
        %s3718 = scalar_lea.vmem %s5, 112
        %v3719 = vld [vmem:[%s3718] sm:$0xff]
        %v3721 = vsel %vm2097, %v3719, 0
        %3723 = vmatprep.subr.mxu0 0.0
        %3724 = vmatpush1.msra.mxu0 0.0
        %3725 = vmatprep.subr.mxu0 0.0
        %3726 = vmatpush1.msra.mxu0 0.0
        %3727 = vmatprep.subr.mxu0 0.0
        %3728 = vmatpush1.msra.mxu0 0.0
        %3729 = vmatprep.subr.mxu0 0.0
        %3730 = vmatpush1.msra.mxu0 0.0
        %3731 = vmatprep.subr.mxu0 0.0
        %3732 = vmatpush1.msra.mxu0 0.0
        %3733 = vmatprep.subr.mxu0 0.0
        %3734 = vmatpush1.msra.mxu0 0.0
        %3735 = vmatprep.subr.mxu0 0.0
        %3736 = vmatpush1.msra.mxu0 0.0
        %3737 = vmatprep.subr.mxu0 0.0
        %3738 = vmatpush1.msra.mxu0 0.0
        %3739 = vmatprep.subr.mxu0 0.0
        %3740 = vmatpush1.msra.mxu0 0.0
        %3741 = vmatprep.subr.mxu0 0.0
        %3742 = vmatpush1.msra.mxu0 0.0
        %3743 = vmatprep.subr.mxu0 0.0
        %3744 = vmatpush1.msra.mxu0 0.0
        %3745 = vmatprep.subr.mxu0 0.0
        %3746 = vmatpush1.msra.mxu0 0.0
        %3747 = vmatprep.subr.mxu0 0.0
        %3748 = vmatpush1.msra.mxu0 0.0
        %3749 = vmatprep.subr.mxu0 0.0
        %3750 = vmatpush1.msra.mxu0 0.0
        %3751 = vmatprep.subr.mxu0 0.0
        %3752 = vmatpush1.msra.mxu0 0.0
        %3753 = vmatprep.subr.mxu0 %v3717
        %3754 = vmatpush1.msra.mxu0 %v3716
        %3755 = vmatprep.subr.mxu0 0.0
        %3756 = vmatpush2.msra.mxu0 0.0
        %3757 = vmatprep.subr.mxu0 0.0
        %3758 = vmatpush2.msra.mxu0 0.0
        %3759 = vmatprep.subr.mxu0 0.0
        %3760 = vmatpush2.msra.mxu0 0.0
        %3761 = vmatprep.subr.mxu0 0.0
        %3762 = vmatpush2.msra.mxu0 0.0
        %3763 = vmatprep.subr.mxu0 0.0
        %3764 = vmatpush2.msra.mxu0 0.0
        %3765 = vmatprep.subr.mxu0 0.0
        %3766 = vmatpush2.msra.mxu0 0.0
        %3767 = vmatprep.subr.mxu0 0.0
        %3768 = vmatpush2.msra.mxu0 0.0
        %3769 = vmatprep.subr.mxu0 0.0
        %3770 = vmatpush2.msra.mxu0 0.0
        %3771 = vmatprep.subr.mxu0 0.0
        %3772 = vmatpush2.msra.mxu0 0.0
        %3773 = vmatprep.subr.mxu0 0.0
        %3774 = vmatpush2.msra.mxu0 0.0
        %3775 = vmatprep.subr.mxu0 0.0
        %3776 = vmatpush2.msra.mxu0 0.0
        %3777 = vmatprep.subr.mxu0 0.0
        %3778 = vmatpush2.msra.mxu0 0.0
        %3779 = vmatprep.subr.mxu0 0.0
        %3780 = vmatpush2.msra.mxu0 0.0
        %3781 = vmatprep.subr.mxu0 0.0
        %3782 = vmatpush2.msra.mxu0 0.0
        %3783 = vmatprep.subr.mxu0 0.0
        %3784 = vmatpush2.msra.mxu0 0.0
        %3785 = vmatprep.subr.mxu0 0.0
        %3786 = vmatpush2.msra.mxu0 0.0
        %3787 = vmatprep.mubr.f32.mxu0 0.0
        %3788 = vmatmul.mubr.f32.gmra.mxu0 %v3721
        %v3789 = vpop.f32.mrf.mxu0
        %v3790 = vadd.f32 0.0, %v3789
        %v3791 = vpop.f32.mrf.mxu0
        %v3792 = vadd.f32 0.0, %v3791
        %3793 = vdwg.mxu0
        %v3794 = vadd.f32 %v3704, %v3790
        %v3795 = vadd.f32 %v3705, %v3792
        %3796 = vrot.lane.b32.xlu0 %v3264, 96
        %v3797 = vpop.permute.xlu0 %3796
        %3798 = vrot.lane.b32.xlu0 %v3265, 96
        %v3799 = vpop.permute.xlu0 %3798
        %3800 = vrot.lane.b32.xlu0 %v3266, 96
        %v3801 = vpop.permute.xlu0 %3800
        %v3802 = vsel %vm960, %v3797, %v3799
        %v3803 = vsel %vm960, %v3799, %v3801
        %v3806 = vsel %vm556, %v3802, 0.0
        %v3807 = vsel %vm557, %v3803, 0.0
        %s3808 = scalar_lea.vmem %s5, 120
        %v3809 = vld [vmem:[%s3808] sm:$0xff]
        %v3811 = vsel %vm2097, %v3809, 0
        %3813 = vmatprep.subr.mxu0 0.0
        %3814 = vmatpush1.msra.mxu0 0.0
        %3815 = vmatprep.subr.mxu0 0.0
        %3816 = vmatpush1.msra.mxu0 0.0
        %3817 = vmatprep.subr.mxu0 0.0
        %3818 = vmatpush1.msra.mxu0 0.0
        %3819 = vmatprep.subr.mxu0 0.0
        %3820 = vmatpush1.msra.mxu0 0.0
        %3821 = vmatprep.subr.mxu0 0.0
        %3822 = vmatpush1.msra.mxu0 0.0
        %3823 = vmatprep.subr.mxu0 0.0
        %3824 = vmatpush1.msra.mxu0 0.0
        %3825 = vmatprep.subr.mxu0 0.0
        %3826 = vmatpush1.msra.mxu0 0.0
        %3827 = vmatprep.subr.mxu0 0.0
        %3828 = vmatpush1.msra.mxu0 0.0
        %3829 = vmatprep.subr.mxu0 0.0
        %3830 = vmatpush1.msra.mxu0 0.0
        %3831 = vmatprep.subr.mxu0 0.0
        %3832 = vmatpush1.msra.mxu0 0.0
        %3833 = vmatprep.subr.mxu0 0.0
        %3834 = vmatpush1.msra.mxu0 0.0
        %3835 = vmatprep.subr.mxu0 0.0
        %3836 = vmatpush1.msra.mxu0 0.0
        %3837 = vmatprep.subr.mxu0 0.0
        %3838 = vmatpush1.msra.mxu0 0.0
        %3839 = vmatprep.subr.mxu0 0.0
        %3840 = vmatpush1.msra.mxu0 0.0
        %3841 = vmatprep.subr.mxu0 0.0
        %3842 = vmatpush1.msra.mxu0 0.0
        %3843 = vmatprep.subr.mxu0 %v3807
        %3844 = vmatpush1.msra.mxu0 %v3806
        %3845 = vmatprep.subr.mxu0 0.0
        %3846 = vmatpush2.msra.mxu0 0.0
        %3847 = vmatprep.subr.mxu0 0.0
        %3848 = vmatpush2.msra.mxu0 0.0
        %3849 = vmatprep.subr.mxu0 0.0
        %3850 = vmatpush2.msra.mxu0 0.0
        %3851 = vmatprep.subr.mxu0 0.0
        %3852 = vmatpush2.msra.mxu0 0.0
        %3853 = vmatprep.subr.mxu0 0.0
        %3854 = vmatpush2.msra.mxu0 0.0
        %3855 = vmatprep.subr.mxu0 0.0
        %3856 = vmatpush2.msra.mxu0 0.0
        %3857 = vmatprep.subr.mxu0 0.0
        %3858 = vmatpush2.msra.mxu0 0.0
        %3859 = vmatprep.subr.mxu0 0.0
        %3860 = vmatpush2.msra.mxu0 0.0
        %3861 = vmatprep.subr.mxu0 0.0
        %3862 = vmatpush2.msra.mxu0 0.0
        %3863 = vmatprep.subr.mxu0 0.0
        %3864 = vmatpush2.msra.mxu0 0.0
        %3865 = vmatprep.subr.mxu0 0.0
        %3866 = vmatpush2.msra.mxu0 0.0
        %3867 = vmatprep.subr.mxu0 0.0
        %3868 = vmatpush2.msra.mxu0 0.0
        %3869 = vmatprep.subr.mxu0 0.0
        %3870 = vmatpush2.msra.mxu0 0.0
        %3871 = vmatprep.subr.mxu0 0.0
        %3872 = vmatpush2.msra.mxu0 0.0
        %3873 = vmatprep.subr.mxu0 0.0
        %3874 = vmatpush2.msra.mxu0 0.0
        %3875 = vmatprep.subr.mxu0 0.0
        %3876 = vmatpush2.msra.mxu0 0.0
        %3877 = vmatprep.mubr.f32.mxu0 0.0
        %3878 = vmatmul.mubr.f32.gmra.mxu0 %v3811
        %v3879 = vpop.f32.mrf.mxu0
        %v3880 = vadd.f32 0.0, %v3879
        %v3881 = vpop.f32.mrf.mxu0
        %v3882 = vadd.f32 0.0, %v3881
        %3883 = vdwg.mxu0
        %v3884 = vadd.f32 %v3794, %v3880
        %v3885 = vadd.f32 %v3795, %v3882
        %s3886 = scalar_lea.vmem %s5, 128
        %v3887 = vld [vmem:[%s3886] sm:$0xff]
        %3888 = vrot.lane.b32.xlu0 %v3264, 95
        %v3889 = vpop.permute.xlu0 %3888
        %3890 = vrot.lane.b32.xlu0 %v3265, 95
        %v3891 = vpop.permute.xlu0 %3890
        %3892 = vrot.lane.b32.xlu0 %v3266, 95
        %v3893 = vpop.permute.xlu0 %3892
        %v3894 = vsel %vm991, %v3889, %v3891
        %v3895 = vsel %vm991, %v3891, %v3893
        %v3899 = vsel %vm2097, %v3887, 0
        %3901 = vmatprep.subr.mxu0 0.0
        %3902 = vmatpush1.msra.mxu0 0.0
        %3903 = vmatprep.subr.mxu0 0.0
        %3904 = vmatpush1.msra.mxu0 0.0
        %3905 = vmatprep.subr.mxu0 0.0
        %3906 = vmatpush1.msra.mxu0 0.0
        %3907 = vmatprep.subr.mxu0 0.0
        %3908 = vmatpush1.msra.mxu0 0.0
        %3909 = vmatprep.subr.mxu0 0.0
        %3910 = vmatpush1.msra.mxu0 0.0
        %3911 = vmatprep.subr.mxu0 0.0
        %3912 = vmatpush1.msra.mxu0 0.0
        %3913 = vmatprep.subr.mxu0 0.0
        %3914 = vmatpush1.msra.mxu0 0.0
        %3915 = vmatprep.subr.mxu0 0.0
        %3916 = vmatpush1.msra.mxu0 0.0
        %3917 = vmatprep.subr.mxu0 0.0
        %3918 = vmatpush1.msra.mxu0 0.0
        %3919 = vmatprep.subr.mxu0 0.0
        %3920 = vmatpush1.msra.mxu0 0.0
        %3921 = vmatprep.subr.mxu0 0.0
        %3922 = vmatpush1.msra.mxu0 0.0
        %3923 = vmatprep.subr.mxu0 0.0
        %3924 = vmatpush1.msra.mxu0 0.0
        %3925 = vmatprep.subr.mxu0 0.0
        %3926 = vmatpush1.msra.mxu0 0.0
        %3927 = vmatprep.subr.mxu0 0.0
        %3928 = vmatpush1.msra.mxu0 0.0
        %3929 = vmatprep.subr.mxu0 0.0
        %3930 = vmatpush1.msra.mxu0 0.0
        %3931 = vmatprep.subr.mxu0 %v3895
        %3932 = vmatpush1.msra.mxu0 %v3894
        %3933 = vmatprep.subr.mxu0 0.0
        %3934 = vmatpush2.msra.mxu0 0.0
        %3935 = vmatprep.subr.mxu0 0.0
        %3936 = vmatpush2.msra.mxu0 0.0
        %3937 = vmatprep.subr.mxu0 0.0
        %3938 = vmatpush2.msra.mxu0 0.0
        %3939 = vmatprep.subr.mxu0 0.0
        %3940 = vmatpush2.msra.mxu0 0.0
        %3941 = vmatprep.subr.mxu0 0.0
        %3942 = vmatpush2.msra.mxu0 0.0
        %3943 = vmatprep.subr.mxu0 0.0
        %3944 = vmatpush2.msra.mxu0 0.0
        %3945 = vmatprep.subr.mxu0 0.0
        %3946 = vmatpush2.msra.mxu0 0.0
        %3947 = vmatprep.subr.mxu0 0.0
        %3948 = vmatpush2.msra.mxu0 0.0
        %3949 = vmatprep.subr.mxu0 0.0
        %3950 = vmatpush2.msra.mxu0 0.0
        %3951 = vmatprep.subr.mxu0 0.0
        %3952 = vmatpush2.msra.mxu0 0.0
        %3953 = vmatprep.subr.mxu0 0.0
        %3954 = vmatpush2.msra.mxu0 0.0
        %3955 = vmatprep.subr.mxu0 0.0
        %3956 = vmatpush2.msra.mxu0 0.0
        %3957 = vmatprep.subr.mxu0 0.0
        %3958 = vmatpush2.msra.mxu0 0.0
        %3959 = vmatprep.subr.mxu0 0.0
        %3960 = vmatpush2.msra.mxu0 0.0
        %3961 = vmatprep.subr.mxu0 0.0
        %3962 = vmatpush2.msra.mxu0 0.0
        %3963 = vmatprep.subr.mxu0 0.0
        %3964 = vmatpush2.msra.mxu0 0.0
        %3965 = vmatprep.mubr.f32.mxu0 0.0
        %3966 = vmatmul.mubr.f32.gmra.mxu0 %v3899
        %v3967 = vpop.f32.mrf.mxu0
        %v3968 = vadd.f32 0.0, %v3967
        %v3969 = vpop.f32.mrf.mxu0
        %v3970 = vadd.f32 0.0, %v3969
        %3971 = vdwg.mxu0
        %v3972 = vadd.f32 %v3884, %v3968
        %v3973 = vadd.f32 %v3885, %v3970
        %3974 = vrot.lane.b32.xlu0 %v3264, 94
        %v3975 = vpop.permute.xlu0 %3974
        %3976 = vrot.lane.b32.xlu0 %v3265, 94
        %v3977 = vpop.permute.xlu0 %3976
        %3978 = vrot.lane.b32.xlu0 %v3266, 94
        %v3979 = vpop.permute.xlu0 %3978
        %v3980 = vsel %vm1022, %v3975, %v3977
        %v3981 = vsel %vm1022, %v3977, %v3979
        %v3984 = vsel %vm628, %v3980, 0.0
        %v3985 = vsel %vm629, %v3981, 0.0
        %s3986 = scalar_lea.vmem %s5, 136
        %v3987 = vld [vmem:[%s3986] sm:$0xff]
        %v3989 = vsel %vm2097, %v3987, 0
        %3991 = vmatprep.subr.mxu0 0.0
        %3992 = vmatpush1.msra.mxu0 0.0
        %3993 = vmatprep.subr.mxu0 0.0
        %3994 = vmatpush1.msra.mxu0 0.0
        %3995 = vmatprep.subr.mxu0 0.0
        %3996 = vmatpush1.msra.mxu0 0.0
        %3997 = vmatprep.subr.mxu0 0.0
        %3998 = vmatpush1.msra.mxu0 0.0
        %3999 = vmatprep.subr.mxu0 0.0
        %4000 = vmatpush1.msra.mxu0 0.0
        %4001 = vmatprep.subr.mxu0 0.0
        %4002 = vmatpush1.msra.mxu0 0.0
        %4003 = vmatprep.subr.mxu0 0.0
        %4004 = vmatpush1.msra.mxu0 0.0
        %4005 = vmatprep.subr.mxu0 0.0
        %4006 = vmatpush1.msra.mxu0 0.0
        %4007 = vmatprep.subr.mxu0 0.0
        %4008 = vmatpush1.msra.mxu0 0.0
        %4009 = vmatprep.subr.mxu0 0.0
        %4010 = vmatpush1.msra.mxu0 0.0
        %4011 = vmatprep.subr.mxu0 0.0
        %4012 = vmatpush1.msra.mxu0 0.0
        %4013 = vmatprep.subr.mxu0 0.0
        %4014 = vmatpush1.msra.mxu0 0.0
        %4015 = vmatprep.subr.mxu0 0.0
        %4016 = vmatpush1.msra.mxu0 0.0
        %4017 = vmatprep.subr.mxu0 0.0
        %4018 = vmatpush1.msra.mxu0 0.0
        %4019 = vmatprep.subr.mxu0 0.0
        %4020 = vmatpush1.msra.mxu0 0.0
        %4021 = vmatprep.subr.mxu0 %v3985
        %4022 = vmatpush1.msra.mxu0 %v3984
        %4023 = vmatprep.subr.mxu0 0.0
        %4024 = vmatpush2.msra.mxu0 0.0
        %4025 = vmatprep.subr.mxu0 0.0
        %4026 = vmatpush2.msra.mxu0 0.0
        %4027 = vmatprep.subr.mxu0 0.0
        %4028 = vmatpush2.msra.mxu0 0.0
        %4029 = vmatprep.subr.mxu0 0.0
        %4030 = vmatpush2.msra.mxu0 0.0
        %4031 = vmatprep.subr.mxu0 0.0
        %4032 = vmatpush2.msra.mxu0 0.0
        %4033 = vmatprep.subr.mxu0 0.0
        %4034 = vmatpush2.msra.mxu0 0.0
        %4035 = vmatprep.subr.mxu0 0.0
        %4036 = vmatpush2.msra.mxu0 0.0
        %4037 = vmatprep.subr.mxu0 0.0
        %4038 = vmatpush2.msra.mxu0 0.0
        %4039 = vmatprep.subr.mxu0 0.0
        %4040 = vmatpush2.msra.mxu0 0.0
        %4041 = vmatprep.subr.mxu0 0.0
        %4042 = vmatpush2.msra.mxu0 0.0
        %4043 = vmatprep.subr.mxu0 0.0
        %4044 = vmatpush2.msra.mxu0 0.0
        %4045 = vmatprep.subr.mxu0 0.0
        %4046 = vmatpush2.msra.mxu0 0.0
        %4047 = vmatprep.subr.mxu0 0.0
        %4048 = vmatpush2.msra.mxu0 0.0
        %4049 = vmatprep.subr.mxu0 0.0
        %4050 = vmatpush2.msra.mxu0 0.0
        %4051 = vmatprep.subr.mxu0 0.0
        %4052 = vmatpush2.msra.mxu0 0.0
        %4053 = vmatprep.subr.mxu0 0.0
        %4054 = vmatpush2.msra.mxu0 0.0
        %4055 = vmatprep.mubr.f32.mxu0 0.0
        %4056 = vmatmul.mubr.f32.gmra.mxu0 %v3989
        %v4057 = vpop.f32.mrf.mxu0
        %v4058 = vadd.f32 0.0, %v4057
        %v4059 = vpop.f32.mrf.mxu0
        %v4060 = vadd.f32 0.0, %v4059
        %4061 = vdwg.mxu0
        %v4062 = vadd.f32 %v3972, %v4058
        %v4063 = vadd.f32 %v3973, %v4060
        %v4064 = vld [vmem:[#allocation5] sm:$0xff]
        %v4065 = vld [vmem:[#allocation5 + $0x8] sm:$0xff]
        %v4066 = vld [vmem:[#allocation5 + $0x10] sm:$0xff]
        %v4067 = vsel %vm556, %v4064, 0.0
        %v4068 = vsel %vm557, %v4065, 0.0
        %s4069 = scalar_lea.vmem %s5, 144
        %v4070 = vld [vmem:[%s4069] sm:$0xff]
        %v4072 = vsel %vm2097, %v4070, 0
        %4074 = vmatprep.subr.mxu0 0.0
        %4075 = vmatpush1.msra.mxu0 0.0
        %4076 = vmatprep.subr.mxu0 0.0
        %4077 = vmatpush1.msra.mxu0 0.0
        %4078 = vmatprep.subr.mxu0 0.0
        %4079 = vmatpush1.msra.mxu0 0.0
        %4080 = vmatprep.subr.mxu0 0.0
        %4081 = vmatpush1.msra.mxu0 0.0
        %4082 = vmatprep.subr.mxu0 0.0
        %4083 = vmatpush1.msra.mxu0 0.0
        %4084 = vmatprep.subr.mxu0 0.0
        %4085 = vmatpush1.msra.mxu0 0.0
        %4086 = vmatprep.subr.mxu0 0.0
        %4087 = vmatpush1.msra.mxu0 0.0
        %4088 = vmatprep.subr.mxu0 0.0
        %4089 = vmatpush1.msra.mxu0 0.0
        %4090 = vmatprep.subr.mxu0 0.0
        %4091 = vmatpush1.msra.mxu0 0.0
        %4092 = vmatprep.subr.mxu0 0.0
        %4093 = vmatpush1.msra.mxu0 0.0
        %4094 = vmatprep.subr.mxu0 0.0
        %4095 = vmatpush1.msra.mxu0 0.0
        %4096 = vmatprep.subr.mxu0 0.0
        %4097 = vmatpush1.msra.mxu0 0.0
        %4098 = vmatprep.subr.mxu0 0.0
        %4099 = vmatpush1.msra.mxu0 0.0
        %4100 = vmatprep.subr.mxu0 0.0
        %4101 = vmatpush1.msra.mxu0 0.0
        %4102 = vmatprep.subr.mxu0 0.0
        %4103 = vmatpush1.msra.mxu0 0.0
        %4104 = vmatprep.subr.mxu0 %v4068
        %4105 = vmatpush1.msra.mxu0 %v4067
        %4106 = vmatprep.subr.mxu0 0.0
        %4107 = vmatpush2.msra.mxu0 0.0
        %4108 = vmatprep.subr.mxu0 0.0
        %4109 = vmatpush2.msra.mxu0 0.0
        %4110 = vmatprep.subr.mxu0 0.0
        %4111 = vmatpush2.msra.mxu0 0.0
        %4112 = vmatprep.subr.mxu0 0.0
        %4113 = vmatpush2.msra.mxu0 0.0
        %4114 = vmatprep.subr.mxu0 0.0
        %4115 = vmatpush2.msra.mxu0 0.0
        %4116 = vmatprep.subr.mxu0 0.0
        %4117 = vmatpush2.msra.mxu0 0.0
        %4118 = vmatprep.subr.mxu0 0.0
        %4119 = vmatpush2.msra.mxu0 0.0
        %4120 = vmatprep.subr.mxu0 0.0
        %4121 = vmatpush2.msra.mxu0 0.0
        %4122 = vmatprep.subr.mxu0 0.0
        %4123 = vmatpush2.msra.mxu0 0.0
        %4124 = vmatprep.subr.mxu0 0.0
        %4125 = vmatpush2.msra.mxu0 0.0
        %4126 = vmatprep.subr.mxu0 0.0
        %4127 = vmatpush2.msra.mxu0 0.0
        %4128 = vmatprep.subr.mxu0 0.0
        %4129 = vmatpush2.msra.mxu0 0.0
        %4130 = vmatprep.subr.mxu0 0.0
        %4131 = vmatpush2.msra.mxu0 0.0
        %4132 = vmatprep.subr.mxu0 0.0
        %4133 = vmatpush2.msra.mxu0 0.0
        %4134 = vmatprep.subr.mxu0 0.0
        %4135 = vmatpush2.msra.mxu0 0.0
        %4136 = vmatprep.subr.mxu0 0.0
        %4137 = vmatpush2.msra.mxu0 0.0
        %4138 = vmatprep.mubr.f32.mxu0 0.0
        %4139 = vmatmul.mubr.f32.gmra.mxu0 %v4072
        %v4140 = vpop.f32.mrf.mxu0
        %v4141 = vadd.f32 0.0, %v4140
        %v4142 = vpop.f32.mrf.mxu0
        %v4143 = vadd.f32 0.0, %v4142
        %4144 = vdwg.mxu0
        %v4145 = vadd.f32 %v4062, %v4141
        %v4146 = vadd.f32 %v4063, %v4143
        %s4147 = scalar_lea.vmem %s5, 152
        %v4148 = vld [vmem:[%s4147] sm:$0xff]
        %4152 = vrot.lane.b32.xlu0 %v4064, 127
        %v4153 = vpop.permute.xlu0 %4152
        %4154 = vrot.lane.b32.xlu0 %v4065, 127
        %v4155 = vpop.permute.xlu0 %4154
        %4156 = vrot.lane.b32.xlu0 %v4066, 127
        %v4157 = vpop.permute.xlu0 %4156
        %v4158 = vsel %vm529, %v4153, %v4155
        %v4159 = vsel %vm529, %v4155, %v4157
        %v4163 = vsel %vm2097, %v4148, 0
        %4165 = vmatprep.subr.mxu0 0.0
        %4166 = vmatpush1.msra.mxu0 0.0
        %4167 = vmatprep.subr.mxu0 0.0
        %4168 = vmatpush1.msra.mxu0 0.0
        %4169 = vmatprep.subr.mxu0 0.0
        %4170 = vmatpush1.msra.mxu0 0.0
        %4171 = vmatprep.subr.mxu0 0.0
        %4172 = vmatpush1.msra.mxu0 0.0
        %4173 = vmatprep.subr.mxu0 0.0
        %4174 = vmatpush1.msra.mxu0 0.0
        %4175 = vmatprep.subr.mxu0 0.0
        %4176 = vmatpush1.msra.mxu0 0.0
        %4177 = vmatprep.subr.mxu0 0.0
        %4178 = vmatpush1.msra.mxu0 0.0
        %4179 = vmatprep.subr.mxu0 0.0
        %4180 = vmatpush1.msra.mxu0 0.0
        %4181 = vmatprep.subr.mxu0 0.0
        %4182 = vmatpush1.msra.mxu0 0.0
        %4183 = vmatprep.subr.mxu0 0.0
        %4184 = vmatpush1.msra.mxu0 0.0
        %4185 = vmatprep.subr.mxu0 0.0
        %4186 = vmatpush1.msra.mxu0 0.0
        %4187 = vmatprep.subr.mxu0 0.0
        %4188 = vmatpush1.msra.mxu0 0.0
        %4189 = vmatprep.subr.mxu0 0.0
        %4190 = vmatpush1.msra.mxu0 0.0
        %4191 = vmatprep.subr.mxu0 0.0
        %4192 = vmatpush1.msra.mxu0 0.0
        %4193 = vmatprep.subr.mxu0 0.0
        %4194 = vmatpush1.msra.mxu0 0.0
        %4195 = vmatprep.subr.mxu0 %v4159
        %4196 = vmatpush1.msra.mxu0 %v4158
        %4197 = vmatprep.subr.mxu0 0.0
        %4198 = vmatpush2.msra.mxu0 0.0
        %4199 = vmatprep.subr.mxu0 0.0
        %4200 = vmatpush2.msra.mxu0 0.0
        %4201 = vmatprep.subr.mxu0 0.0
        %4202 = vmatpush2.msra.mxu0 0.0
        %4203 = vmatprep.subr.mxu0 0.0
        %4204 = vmatpush2.msra.mxu0 0.0
        %4205 = vmatprep.subr.mxu0 0.0
        %4206 = vmatpush2.msra.mxu0 0.0
        %4207 = vmatprep.subr.mxu0 0.0
        %4208 = vmatpush2.msra.mxu0 0.0
        %4209 = vmatprep.subr.mxu0 0.0
        %4210 = vmatpush2.msra.mxu0 0.0
        %4211 = vmatprep.subr.mxu0 0.0
        %4212 = vmatpush2.msra.mxu0 0.0
        %4213 = vmatprep.subr.mxu0 0.0
        %4214 = vmatpush2.msra.mxu0 0.0
        %4215 = vmatprep.subr.mxu0 0.0
        %4216 = vmatpush2.msra.mxu0 0.0
        %4217 = vmatprep.subr.mxu0 0.0
        %4218 = vmatpush2.msra.mxu0 0.0
        %4219 = vmatprep.subr.mxu0 0.0
        %4220 = vmatpush2.msra.mxu0 0.0
        %4221 = vmatprep.subr.mxu0 0.0
        %4222 = vmatpush2.msra.mxu0 0.0
        %4223 = vmatprep.subr.mxu0 0.0
        %4224 = vmatpush2.msra.mxu0 0.0
        %4225 = vmatprep.subr.mxu0 0.0
        %4226 = vmatpush2.msra.mxu0 0.0
        %4227 = vmatprep.subr.mxu0 0.0
        %4228 = vmatpush2.msra.mxu0 0.0
        %4229 = vmatprep.mubr.f32.mxu0 0.0
        %4230 = vmatmul.mubr.f32.gmra.mxu0 %v4163
        %v4231 = vpop.f32.mrf.mxu0
        %v4232 = vadd.f32 0.0, %v4231
        %v4233 = vpop.f32.mrf.mxu0
        %v4234 = vadd.f32 0.0, %v4233
        %4235 = vdwg.mxu0
        %v4236 = vadd.f32 %v4145, %v4232
        %v4237 = vadd.f32 %v4146, %v4234
        %4238 = vrot.lane.b32.xlu0 %v4064, 126
        %v4239 = vpop.permute.xlu0 %4238
        %4240 = vrot.lane.b32.xlu0 %v4065, 126
        %v4241 = vpop.permute.xlu0 %4240
        %4242 = vrot.lane.b32.xlu0 %v4066, 126
        %v4243 = vpop.permute.xlu0 %4242
        %v4244 = vsel %vm564, %v4239, %v4241
        %v4245 = vsel %vm564, %v4241, %v4243
        %v4248 = vsel %vm628, %v4244, 0.0
        %v4249 = vsel %vm629, %v4245, 0.0
        %s4250 = scalar_lea.vmem %s5, 160
        %v4251 = vld [vmem:[%s4250] sm:$0xff]
        %v4253 = vsel %vm2097, %v4251, 0
        %4255 = vmatprep.subr.mxu0 0.0
        %4256 = vmatpush1.msra.mxu0 0.0
        %4257 = vmatprep.subr.mxu0 0.0
        %4258 = vmatpush1.msra.mxu0 0.0
        %4259 = vmatprep.subr.mxu0 0.0
        %4260 = vmatpush1.msra.mxu0 0.0
        %4261 = vmatprep.subr.mxu0 0.0
        %4262 = vmatpush1.msra.mxu0 0.0
        %4263 = vmatprep.subr.mxu0 0.0
        %4264 = vmatpush1.msra.mxu0 0.0
        %4265 = vmatprep.subr.mxu0 0.0
        %4266 = vmatpush1.msra.mxu0 0.0
        %4267 = vmatprep.subr.mxu0 0.0
        %4268 = vmatpush1.msra.mxu0 0.0
        %4269 = vmatprep.subr.mxu0 0.0
        %4270 = vmatpush1.msra.mxu0 0.0
        %4271 = vmatprep.subr.mxu0 0.0
        %4272 = vmatpush1.msra.mxu0 0.0
        %4273 = vmatprep.subr.mxu0 0.0
        %4274 = vmatpush1.msra.mxu0 0.0
        %4275 = vmatprep.subr.mxu0 0.0
        %4276 = vmatpush1.msra.mxu0 0.0
        %4277 = vmatprep.subr.mxu0 0.0
        %4278 = vmatpush1.msra.mxu0 0.0
        %4279 = vmatprep.subr.mxu0 0.0
        %4280 = vmatpush1.msra.mxu0 0.0
        %4281 = vmatprep.subr.mxu0 0.0
        %4282 = vmatpush1.msra.mxu0 0.0
        %4283 = vmatprep.subr.mxu0 0.0
        %4284 = vmatpush1.msra.mxu0 0.0
        %4285 = vmatprep.subr.mxu0 %v4249
        %4286 = vmatpush1.msra.mxu0 %v4248
        %4287 = vmatprep.subr.mxu0 0.0
        %4288 = vmatpush2.msra.mxu0 0.0
        %4289 = vmatprep.subr.mxu0 0.0
        %4290 = vmatpush2.msra.mxu0 0.0
        %4291 = vmatprep.subr.mxu0 0.0
        %4292 = vmatpush2.msra.mxu0 0.0
        %4293 = vmatprep.subr.mxu0 0.0
        %4294 = vmatpush2.msra.mxu0 0.0
        %4295 = vmatprep.subr.mxu0 0.0
        %4296 = vmatpush2.msra.mxu0 0.0
        %4297 = vmatprep.subr.mxu0 0.0
        %4298 = vmatpush2.msra.mxu0 0.0
        %4299 = vmatprep.subr.mxu0 0.0
        %4300 = vmatpush2.msra.mxu0 0.0
        %4301 = vmatprep.subr.mxu0 0.0
        %4302 = vmatpush2.msra.mxu0 0.0
        %4303 = vmatprep.subr.mxu0 0.0
        %4304 = vmatpush2.msra.mxu0 0.0
        %4305 = vmatprep.subr.mxu0 0.0
        %4306 = vmatpush2.msra.mxu0 0.0
        %4307 = vmatprep.subr.mxu0 0.0
        %4308 = vmatpush2.msra.mxu0 0.0
        %4309 = vmatprep.subr.mxu0 0.0
        %4310 = vmatpush2.msra.mxu0 0.0
        %4311 = vmatprep.subr.mxu0 0.0
        %4312 = vmatpush2.msra.mxu0 0.0
        %4313 = vmatprep.subr.mxu0 0.0
        %4314 = vmatpush2.msra.mxu0 0.0
        %4315 = vmatprep.subr.mxu0 0.0
        %4316 = vmatpush2.msra.mxu0 0.0
        %4317 = vmatprep.subr.mxu0 0.0
        %4318 = vmatpush2.msra.mxu0 0.0
        %4319 = vmatprep.mubr.f32.mxu0 0.0
        %4320 = vmatmul.mubr.f32.gmra.mxu0 %v4253
        %v4321 = vpop.f32.mrf.mxu0
        %v4322 = vadd.f32 0.0, %v4321
        %v4323 = vpop.f32.mrf.mxu0
        %v4324 = vadd.f32 0.0, %v4323
        %4325 = vdwg.mxu0
        %v4326 = vadd.f32 %v4236, %v4322
        %v4327 = vadd.f32 %v4237, %v4324
        %4328 = vrot.lane.b32.xlu0 %v4064, 112
        %v4329 = vpop.permute.xlu0 %4328
        %4330 = vrot.lane.b32.xlu0 %v4065, 112
        %v4331 = vpop.permute.xlu0 %4330
        %4332 = vrot.lane.b32.xlu0 %v4066, 112
        %v4333 = vpop.permute.xlu0 %4332
        %v4334 = vsel %vm737, %v4329, %v4331
        %v4335 = vsel %vm737, %v4331, %v4333
        %v4338 = vsel %vm556, %v4334, 0.0
        %v4339 = vsel %vm557, %v4335, 0.0
        %s4340 = scalar_lea.vmem %s5, 168
        %v4341 = vld [vmem:[%s4340] sm:$0xff]
        %v4343 = vsel %vm2097, %v4341, 0
        %4345 = vmatprep.subr.mxu0 0.0
        %4346 = vmatpush1.msra.mxu0 0.0
        %4347 = vmatprep.subr.mxu0 0.0
        %4348 = vmatpush1.msra.mxu0 0.0
        %4349 = vmatprep.subr.mxu0 0.0
        %4350 = vmatpush1.msra.mxu0 0.0
        %4351 = vmatprep.subr.mxu0 0.0
        %4352 = vmatpush1.msra.mxu0 0.0
        %4353 = vmatprep.subr.mxu0 0.0
        %4354 = vmatpush1.msra.mxu0 0.0
        %4355 = vmatprep.subr.mxu0 0.0
        %4356 = vmatpush1.msra.mxu0 0.0
        %4357 = vmatprep.subr.mxu0 0.0
        %4358 = vmatpush1.msra.mxu0 0.0
        %4359 = vmatprep.subr.mxu0 0.0
        %4360 = vmatpush1.msra.mxu0 0.0
        %4361 = vmatprep.subr.mxu0 0.0
        %4362 = vmatpush1.msra.mxu0 0.0
        %4363 = vmatprep.subr.mxu0 0.0
        %4364 = vmatpush1.msra.mxu0 0.0
        %4365 = vmatprep.subr.mxu0 0.0
        %4366 = vmatpush1.msra.mxu0 0.0
        %4367 = vmatprep.subr.mxu0 0.0
        %4368 = vmatpush1.msra.mxu0 0.0
        %4369 = vmatprep.subr.mxu0 0.0
        %4370 = vmatpush1.msra.mxu0 0.0
        %4371 = vmatprep.subr.mxu0 0.0
        %4372 = vmatpush1.msra.mxu0 0.0
        %4373 = vmatprep.subr.mxu0 0.0
        %4374 = vmatpush1.msra.mxu0 0.0
        %4375 = vmatprep.subr.mxu0 %v4339
        %4376 = vmatpush1.msra.mxu0 %v4338
        %4377 = vmatprep.subr.mxu0 0.0
        %4378 = vmatpush2.msra.mxu0 0.0
        %4379 = vmatprep.subr.mxu0 0.0
        %4380 = vmatpush2.msra.mxu0 0.0
        %4381 = vmatprep.subr.mxu0 0.0
        %4382 = vmatpush2.msra.mxu0 0.0
        %4383 = vmatprep.subr.mxu0 0.0
        %4384 = vmatpush2.msra.mxu0 0.0
        %4385 = vmatprep.subr.mxu0 0.0
        %4386 = vmatpush2.msra.mxu0 0.0
        %4387 = vmatprep.subr.mxu0 0.0
        %4388 = vmatpush2.msra.mxu0 0.0
        %4389 = vmatprep.subr.mxu0 0.0
        %4390 = vmatpush2.msra.mxu0 0.0
        %4391 = vmatprep.subr.mxu0 0.0
        %4392 = vmatpush2.msra.mxu0 0.0
        %4393 = vmatprep.subr.mxu0 0.0
        %4394 = vmatpush2.msra.mxu0 0.0
        %4395 = vmatprep.subr.mxu0 0.0
        %4396 = vmatpush2.msra.mxu0 0.0
        %4397 = vmatprep.subr.mxu0 0.0
        %4398 = vmatpush2.msra.mxu0 0.0
        %4399 = vmatprep.subr.mxu0 0.0
        %4400 = vmatpush2.msra.mxu0 0.0
        %4401 = vmatprep.subr.mxu0 0.0
        %4402 = vmatpush2.msra.mxu0 0.0
        %4403 = vmatprep.subr.mxu0 0.0
        %4404 = vmatpush2.msra.mxu0 0.0
        %4405 = vmatprep.subr.mxu0 0.0
        %4406 = vmatpush2.msra.mxu0 0.0
        %4407 = vmatprep.subr.mxu0 0.0
        %4408 = vmatpush2.msra.mxu0 0.0
        %4409 = vmatprep.mubr.f32.mxu0 0.0
        %4410 = vmatmul.mubr.f32.gmra.mxu0 %v4343
        %v4411 = vpop.f32.mrf.mxu0
        %v4412 = vadd.f32 0.0, %v4411
        %v4413 = vpop.f32.mrf.mxu0
        %v4414 = vadd.f32 0.0, %v4413
        %4415 = vdwg.mxu0
        %v4416 = vadd.f32 %v4326, %v4412
        %v4417 = vadd.f32 %v4327, %v4414
        %s4418 = scalar_lea.vmem %s5, 176
        %v4419 = vld [vmem:[%s4418] sm:$0xff]
        %4420 = vrot.lane.b32.xlu0 %v4064, 111
        %v4421 = vpop.permute.xlu0 %4420
        %4422 = vrot.lane.b32.xlu0 %v4065, 111
        %v4423 = vpop.permute.xlu0 %4422
        %4424 = vrot.lane.b32.xlu0 %v4066, 111
        %v4425 = vpop.permute.xlu0 %4424
        %v4426 = vsel %vm768, %v4421, %v4423
        %v4427 = vsel %vm768, %v4423, %v4425
        %v4431 = vsel %vm2097, %v4419, 0
        %4433 = vmatprep.subr.mxu0 0.0
        %4434 = vmatpush1.msra.mxu0 0.0
        %4435 = vmatprep.subr.mxu0 0.0
        %4436 = vmatpush1.msra.mxu0 0.0
        %4437 = vmatprep.subr.mxu0 0.0
        %4438 = vmatpush1.msra.mxu0 0.0
        %4439 = vmatprep.subr.mxu0 0.0
        %4440 = vmatpush1.msra.mxu0 0.0
        %4441 = vmatprep.subr.mxu0 0.0
        %4442 = vmatpush1.msra.mxu0 0.0
        %4443 = vmatprep.subr.mxu0 0.0
        %4444 = vmatpush1.msra.mxu0 0.0
        %4445 = vmatprep.subr.mxu0 0.0
        %4446 = vmatpush1.msra.mxu0 0.0
        %4447 = vmatprep.subr.mxu0 0.0
        %4448 = vmatpush1.msra.mxu0 0.0
        %4449 = vmatprep.subr.mxu0 0.0
        %4450 = vmatpush1.msra.mxu0 0.0
        %4451 = vmatprep.subr.mxu0 0.0
        %4452 = vmatpush1.msra.mxu0 0.0
        %4453 = vmatprep.subr.mxu0 0.0
        %4454 = vmatpush1.msra.mxu0 0.0
        %4455 = vmatprep.subr.mxu0 0.0
        %4456 = vmatpush1.msra.mxu0 0.0
        %4457 = vmatprep.subr.mxu0 0.0
        %4458 = vmatpush1.msra.mxu0 0.0
        %4459 = vmatprep.subr.mxu0 0.0
        %4460 = vmatpush1.msra.mxu0 0.0
        %4461 = vmatprep.subr.mxu0 0.0
        %4462 = vmatpush1.msra.mxu0 0.0
        %4463 = vmatprep.subr.mxu0 %v4427
        %4464 = vmatpush1.msra.mxu0 %v4426
        %4465 = vmatprep.subr.mxu0 0.0
        %4466 = vmatpush2.msra.mxu0 0.0
        %4467 = vmatprep.subr.mxu0 0.0
        %4468 = vmatpush2.msra.mxu0 0.0
        %4469 = vmatprep.subr.mxu0 0.0
        %4470 = vmatpush2.msra.mxu0 0.0
        %4471 = vmatprep.subr.mxu0 0.0
        %4472 = vmatpush2.msra.mxu0 0.0
        %4473 = vmatprep.subr.mxu0 0.0
        %4474 = vmatpush2.msra.mxu0 0.0
        %4475 = vmatprep.subr.mxu0 0.0
        %4476 = vmatpush2.msra.mxu0 0.0
        %4477 = vmatprep.subr.mxu0 0.0
        %4478 = vmatpush2.msra.mxu0 0.0
        %4479 = vmatprep.subr.mxu0 0.0
        %4480 = vmatpush2.msra.mxu0 0.0
        %4481 = vmatprep.subr.mxu0 0.0
        %4482 = vmatpush2.msra.mxu0 0.0
        %4483 = vmatprep.subr.mxu0 0.0
        %4484 = vmatpush2.msra.mxu0 0.0
        %4485 = vmatprep.subr.mxu0 0.0
        %4486 = vmatpush2.msra.mxu0 0.0
        %4487 = vmatprep.subr.mxu0 0.0
        %4488 = vmatpush2.msra.mxu0 0.0
        %4489 = vmatprep.subr.mxu0 0.0
        %4490 = vmatpush2.msra.mxu0 0.0
        %4491 = vmatprep.subr.mxu0 0.0
        %4492 = vmatpush2.msra.mxu0 0.0
        %4493 = vmatprep.subr.mxu0 0.0
        %4494 = vmatpush2.msra.mxu0 0.0
        %4495 = vmatprep.subr.mxu0 0.0
        %4496 = vmatpush2.msra.mxu0 0.0
        %4497 = vmatprep.mubr.f32.mxu0 0.0
        %4498 = vmatmul.mubr.f32.gmra.mxu0 %v4431
        %v4499 = vpop.f32.mrf.mxu0
        %v4500 = vadd.f32 0.0, %v4499
        %v4501 = vpop.f32.mrf.mxu0
        %v4502 = vadd.f32 0.0, %v4501
        %4503 = vdwg.mxu0
        %v4504 = vadd.f32 %v4416, %v4500
        %v4505 = vadd.f32 %v4417, %v4502
        %4506 = vrot.lane.b32.xlu0 %v4064, 110
        %v4507 = vpop.permute.xlu0 %4506
        %4508 = vrot.lane.b32.xlu0 %v4065, 110
        %v4509 = vpop.permute.xlu0 %4508
        %4510 = vrot.lane.b32.xlu0 %v4066, 110
        %v4511 = vpop.permute.xlu0 %4510
        %v4512 = vsel %vm799, %v4507, %v4509
        %v4513 = vsel %vm799, %v4509, %v4511
        %v4516 = vsel %vm628, %v4512, 0.0
        %v4517 = vsel %vm629, %v4513, 0.0
        %s4518 = scalar_lea.vmem %s5, 184
        %v4519 = vld [vmem:[%s4518] sm:$0xff]
        %v4521 = vsel %vm2097, %v4519, 0
        %4523 = vmatprep.subr.mxu0 0.0
        %4524 = vmatpush1.msra.mxu0 0.0
        %4525 = vmatprep.subr.mxu0 0.0
        %4526 = vmatpush1.msra.mxu0 0.0
        %4527 = vmatprep.subr.mxu0 0.0
        %4528 = vmatpush1.msra.mxu0 0.0
        %4529 = vmatprep.subr.mxu0 0.0
        %4530 = vmatpush1.msra.mxu0 0.0
        %4531 = vmatprep.subr.mxu0 0.0
        %4532 = vmatpush1.msra.mxu0 0.0
        %4533 = vmatprep.subr.mxu0 0.0
        %4534 = vmatpush1.msra.mxu0 0.0
        %4535 = vmatprep.subr.mxu0 0.0
        %4536 = vmatpush1.msra.mxu0 0.0
        %4537 = vmatprep.subr.mxu0 0.0
        %4538 = vmatpush1.msra.mxu0 0.0
        %4539 = vmatprep.subr.mxu0 0.0
        %4540 = vmatpush1.msra.mxu0 0.0
        %4541 = vmatprep.subr.mxu0 0.0
        %4542 = vmatpush1.msra.mxu0 0.0
        %4543 = vmatprep.subr.mxu0 0.0
        %4544 = vmatpush1.msra.mxu0 0.0
        %4545 = vmatprep.subr.mxu0 0.0
        %4546 = vmatpush1.msra.mxu0 0.0
        %4547 = vmatprep.subr.mxu0 0.0
        %4548 = vmatpush1.msra.mxu0 0.0
        %4549 = vmatprep.subr.mxu0 0.0
        %4550 = vmatpush1.msra.mxu0 0.0
        %4551 = vmatprep.subr.mxu0 0.0
        %4552 = vmatpush1.msra.mxu0 0.0
        %4553 = vmatprep.subr.mxu0 %v4517
        %4554 = vmatpush1.msra.mxu0 %v4516
        %4555 = vmatprep.subr.mxu0 0.0
        %4556 = vmatpush2.msra.mxu0 0.0
        %4557 = vmatprep.subr.mxu0 0.0
        %4558 = vmatpush2.msra.mxu0 0.0
        %4559 = vmatprep.subr.mxu0 0.0
        %4560 = vmatpush2.msra.mxu0 0.0
        %4561 = vmatprep.subr.mxu0 0.0
        %4562 = vmatpush2.msra.mxu0 0.0
        %4563 = vmatprep.subr.mxu0 0.0
        %4564 = vmatpush2.msra.mxu0 0.0
        %4565 = vmatprep.subr.mxu0 0.0
        %4566 = vmatpush2.msra.mxu0 0.0
        %4567 = vmatprep.subr.mxu0 0.0
        %4568 = vmatpush2.msra.mxu0 0.0
        %4569 = vmatprep.subr.mxu0 0.0
        %4570 = vmatpush2.msra.mxu0 0.0
        %4571 = vmatprep.subr.mxu0 0.0
        %4572 = vmatpush2.msra.mxu0 0.0
        %4573 = vmatprep.subr.mxu0 0.0
        %4574 = vmatpush2.msra.mxu0 0.0
        %4575 = vmatprep.subr.mxu0 0.0
        %4576 = vmatpush2.msra.mxu0 0.0
        %4577 = vmatprep.subr.mxu0 0.0
        %4578 = vmatpush2.msra.mxu0 0.0
        %4579 = vmatprep.subr.mxu0 0.0
        %4580 = vmatpush2.msra.mxu0 0.0
        %4581 = vmatprep.subr.mxu0 0.0
        %4582 = vmatpush2.msra.mxu0 0.0
        %4583 = vmatprep.subr.mxu0 0.0
        %4584 = vmatpush2.msra.mxu0 0.0
        %4585 = vmatprep.subr.mxu0 0.0
        %4586 = vmatpush2.msra.mxu0 0.0
        %4587 = vmatprep.mubr.f32.mxu0 0.0
        %4588 = vmatmul.mubr.f32.gmra.mxu0 %v4521
        %v4589 = vpop.f32.mrf.mxu0
        %v4590 = vadd.f32 0.0, %v4589
        %v4591 = vpop.f32.mrf.mxu0
        %v4592 = vadd.f32 0.0, %v4591
        %4593 = vdwg.mxu0
        %v4594 = vadd.f32 %v4504, %v4590
        %v4595 = vadd.f32 %v4505, %v4592
        %4596 = vrot.lane.b32.xlu0 %v4064, 96
        %v4597 = vpop.permute.xlu0 %4596
        %4598 = vrot.lane.b32.xlu0 %v4065, 96
        %v4599 = vpop.permute.xlu0 %4598
        %4600 = vrot.lane.b32.xlu0 %v4066, 96
        %v4601 = vpop.permute.xlu0 %4600
        %v4602 = vsel %vm960, %v4597, %v4599
        %v4603 = vsel %vm960, %v4599, %v4601
        %v4606 = vsel %vm556, %v4602, 0.0
        %v4607 = vsel %vm557, %v4603, 0.0
        %s4608 = scalar_lea.vmem %s5, 192
        %v4609 = vld [vmem:[%s4608] sm:$0xff]
        %v4611 = vsel %vm2097, %v4609, 0
        %4613 = vmatprep.subr.mxu0 0.0
        %4614 = vmatpush1.msra.mxu0 0.0
        %4615 = vmatprep.subr.mxu0 0.0
        %4616 = vmatpush1.msra.mxu0 0.0
        %4617 = vmatprep.subr.mxu0 0.0
        %4618 = vmatpush1.msra.mxu0 0.0
        %4619 = vmatprep.subr.mxu0 0.0
        %4620 = vmatpush1.msra.mxu0 0.0
        %4621 = vmatprep.subr.mxu0 0.0
        %4622 = vmatpush1.msra.mxu0 0.0
        %4623 = vmatprep.subr.mxu0 0.0
        %4624 = vmatpush1.msra.mxu0 0.0
        %4625 = vmatprep.subr.mxu0 0.0
        %4626 = vmatpush1.msra.mxu0 0.0
        %4627 = vmatprep.subr.mxu0 0.0
        %4628 = vmatpush1.msra.mxu0 0.0
        %4629 = vmatprep.subr.mxu0 0.0
        %4630 = vmatpush1.msra.mxu0 0.0
        %4631 = vmatprep.subr.mxu0 0.0
        %4632 = vmatpush1.msra.mxu0 0.0
        %4633 = vmatprep.subr.mxu0 0.0
        %4634 = vmatpush1.msra.mxu0 0.0
        %4635 = vmatprep.subr.mxu0 0.0
        %4636 = vmatpush1.msra.mxu0 0.0
        %4637 = vmatprep.subr.mxu0 0.0
        %4638 = vmatpush1.msra.mxu0 0.0
        %4639 = vmatprep.subr.mxu0 0.0
        %4640 = vmatpush1.msra.mxu0 0.0
        %4641 = vmatprep.subr.mxu0 0.0
        %4642 = vmatpush1.msra.mxu0 0.0
        %4643 = vmatprep.subr.mxu0 %v4607
        %4644 = vmatpush1.msra.mxu0 %v4606
        %4645 = vmatprep.subr.mxu0 0.0
        %4646 = vmatpush2.msra.mxu0 0.0
        %4647 = vmatprep.subr.mxu0 0.0
        %4648 = vmatpush2.msra.mxu0 0.0
        %4649 = vmatprep.subr.mxu0 0.0
        %4650 = vmatpush2.msra.mxu0 0.0
        %4651 = vmatprep.subr.mxu0 0.0
        %4652 = vmatpush2.msra.mxu0 0.0
        %4653 = vmatprep.subr.mxu0 0.0
        %4654 = vmatpush2.msra.mxu0 0.0
        %4655 = vmatprep.subr.mxu0 0.0
        %4656 = vmatpush2.msra.mxu0 0.0
        %4657 = vmatprep.subr.mxu0 0.0
        %4658 = vmatpush2.msra.mxu0 0.0
        %4659 = vmatprep.subr.mxu0 0.0
        %4660 = vmatpush2.msra.mxu0 0.0
        %4661 = vmatprep.subr.mxu0 0.0
        %4662 = vmatpush2.msra.mxu0 0.0
        %4663 = vmatprep.subr.mxu0 0.0
        %4664 = vmatpush2.msra.mxu0 0.0
        %4665 = vmatprep.subr.mxu0 0.0
        %4666 = vmatpush2.msra.mxu0 0.0
        %4667 = vmatprep.subr.mxu0 0.0
        %4668 = vmatpush2.msra.mxu0 0.0
        %4669 = vmatprep.subr.mxu0 0.0
        %4670 = vmatpush2.msra.mxu0 0.0
        %4671 = vmatprep.subr.mxu0 0.0
        %4672 = vmatpush2.msra.mxu0 0.0
        %4673 = vmatprep.subr.mxu0 0.0
        %4674 = vmatpush2.msra.mxu0 0.0
        %4675 = vmatprep.subr.mxu0 0.0
        %4676 = vmatpush2.msra.mxu0 0.0
        %4677 = vmatprep.mubr.f32.mxu0 0.0
        %4678 = vmatmul.mubr.f32.gmra.mxu0 %v4611
        %v4679 = vpop.f32.mrf.mxu0
        %v4680 = vadd.f32 0.0, %v4679
        %v4681 = vpop.f32.mrf.mxu0
        %v4682 = vadd.f32 0.0, %v4681
        %4683 = vdwg.mxu0
        %v4684 = vadd.f32 %v4594, %v4680
        %v4685 = vadd.f32 %v4595, %v4682
        %s4686 = scalar_lea.vmem %s5, 200
        %v4687 = vld [vmem:[%s4686] sm:$0xff]
        %4688 = vrot.lane.b32.xlu0 %v4064, 95
        %v4689 = vpop.permute.xlu0 %4688
        %4690 = vrot.lane.b32.xlu0 %v4065, 95
        %v4691 = vpop.permute.xlu0 %4690
        %4692 = vrot.lane.b32.xlu0 %v4066, 95
        %v4693 = vpop.permute.xlu0 %4692
        %v4694 = vsel %vm991, %v4689, %v4691
        %v4695 = vsel %vm991, %v4691, %v4693
        %v4699 = vsel %vm2097, %v4687, 0
        %4701 = vmatprep.subr.mxu0 0.0
        %4702 = vmatpush1.msra.mxu0 0.0
        %4703 = vmatprep.subr.mxu0 0.0
        %4704 = vmatpush1.msra.mxu0 0.0
        %4705 = vmatprep.subr.mxu0 0.0
        %4706 = vmatpush1.msra.mxu0 0.0
        %4707 = vmatprep.subr.mxu0 0.0
        %4708 = vmatpush1.msra.mxu0 0.0
        %4709 = vmatprep.subr.mxu0 0.0
        %4710 = vmatpush1.msra.mxu0 0.0
        %4711 = vmatprep.subr.mxu0 0.0
        %4712 = vmatpush1.msra.mxu0 0.0
        %4713 = vmatprep.subr.mxu0 0.0
        %4714 = vmatpush1.msra.mxu0 0.0
        %4715 = vmatprep.subr.mxu0 0.0
        %4716 = vmatpush1.msra.mxu0 0.0
        %4717 = vmatprep.subr.mxu0 0.0
        %4718 = vmatpush1.msra.mxu0 0.0
        %4719 = vmatprep.subr.mxu0 0.0
        %4720 = vmatpush1.msra.mxu0 0.0
        %4721 = vmatprep.subr.mxu0 0.0
        %4722 = vmatpush1.msra.mxu0 0.0
        %4723 = vmatprep.subr.mxu0 0.0
        %4724 = vmatpush1.msra.mxu0 0.0
        %4725 = vmatprep.subr.mxu0 0.0
        %4726 = vmatpush1.msra.mxu0 0.0
        %4727 = vmatprep.subr.mxu0 0.0
        %4728 = vmatpush1.msra.mxu0 0.0
        %4729 = vmatprep.subr.mxu0 0.0
        %4730 = vmatpush1.msra.mxu0 0.0
        %4731 = vmatprep.subr.mxu0 %v4695
        %4732 = vmatpush1.msra.mxu0 %v4694
        %4733 = vmatprep.subr.mxu0 0.0
        %4734 = vmatpush2.msra.mxu0 0.0
        %4735 = vmatprep.subr.mxu0 0.0
        %4736 = vmatpush2.msra.mxu0 0.0
        %4737 = vmatprep.subr.mxu0 0.0
        %4738 = vmatpush2.msra.mxu0 0.0
        %4739 = vmatprep.subr.mxu0 0.0
        %4740 = vmatpush2.msra.mxu0 0.0
        %4741 = vmatprep.subr.mxu0 0.0
        %4742 = vmatpush2.msra.mxu0 0.0
        %4743 = vmatprep.subr.mxu0 0.0
        %4744 = vmatpush2.msra.mxu0 0.0
        %4745 = vmatprep.subr.mxu0 0.0
        %4746 = vmatpush2.msra.mxu0 0.0
        %4747 = vmatprep.subr.mxu0 0.0
        %4748 = vmatpush2.msra.mxu0 0.0
        %4749 = vmatprep.subr.mxu0 0.0
        %4750 = vmatpush2.msra.mxu0 0.0
        %4751 = vmatprep.subr.mxu0 0.0
        %4752 = vmatpush2.msra.mxu0 0.0
        %4753 = vmatprep.subr.mxu0 0.0
        %4754 = vmatpush2.msra.mxu0 0.0
        %4755 = vmatprep.subr.mxu0 0.0
        %4756 = vmatpush2.msra.mxu0 0.0
        %4757 = vmatprep.subr.mxu0 0.0
        %4758 = vmatpush2.msra.mxu0 0.0
        %4759 = vmatprep.subr.mxu0 0.0
        %4760 = vmatpush2.msra.mxu0 0.0
        %4761 = vmatprep.subr.mxu0 0.0
        %4762 = vmatpush2.msra.mxu0 0.0
        %4763 = vmatprep.subr.mxu0 0.0
        %4764 = vmatpush2.msra.mxu0 0.0
        %4765 = vmatprep.mubr.f32.mxu0 0.0
        %4766 = vmatmul.mubr.f32.gmra.mxu0 %v4699
        %v4767 = vpop.f32.mrf.mxu0
        %v4768 = vadd.f32 0.0, %v4767
        %v4769 = vpop.f32.mrf.mxu0
        %v4770 = vadd.f32 0.0, %v4769
        %4771 = vdwg.mxu0
        %v4772 = vadd.f32 %v4684, %v4768
        %v4773 = vadd.f32 %v4685, %v4770
        %4774 = vrot.lane.b32.xlu0 %v4064, 94
        %v4775 = vpop.permute.xlu0 %4774
        %4776 = vrot.lane.b32.xlu0 %v4065, 94
        %v4777 = vpop.permute.xlu0 %4776
        %4778 = vrot.lane.b32.xlu0 %v4066, 94
        %v4779 = vpop.permute.xlu0 %4778
        %v4780 = vsel %vm1022, %v4775, %v4777
        %v4781 = vsel %vm1022, %v4777, %v4779
        %v4784 = vsel %vm628, %v4780, 0.0
        %v4785 = vsel %vm629, %v4781, 0.0
        %s4786 = scalar_lea.vmem %s5, 208
        %v4787 = vld [vmem:[%s4786] sm:$0xff]
        %v4789 = vsel %vm2097, %v4787, 0
        %4791 = vmatprep.subr.mxu0 0.0
        %4792 = vmatpush1.msra.mxu0 0.0
        %4793 = vmatprep.subr.mxu0 0.0
        %4794 = vmatpush1.msra.mxu0 0.0
        %4795 = vmatprep.subr.mxu0 0.0
        %4796 = vmatpush1.msra.mxu0 0.0
        %4797 = vmatprep.subr.mxu0 0.0
        %4798 = vmatpush1.msra.mxu0 0.0
        %4799 = vmatprep.subr.mxu0 0.0
        %4800 = vmatpush1.msra.mxu0 0.0
        %4801 = vmatprep.subr.mxu0 0.0
        %4802 = vmatpush1.msra.mxu0 0.0
        %4803 = vmatprep.subr.mxu0 0.0
        %4804 = vmatpush1.msra.mxu0 0.0
        %4805 = vmatprep.subr.mxu0 0.0
        %4806 = vmatpush1.msra.mxu0 0.0
        %4807 = vmatprep.subr.mxu0 0.0
        %4808 = vmatpush1.msra.mxu0 0.0
        %4809 = vmatprep.subr.mxu0 0.0
        %4810 = vmatpush1.msra.mxu0 0.0
        %4811 = vmatprep.subr.mxu0 0.0
        %4812 = vmatpush1.msra.mxu0 0.0
        %4813 = vmatprep.subr.mxu0 0.0
        %4814 = vmatpush1.msra.mxu0 0.0
        %4815 = vmatprep.subr.mxu0 0.0
        %4816 = vmatpush1.msra.mxu0 0.0
        %4817 = vmatprep.subr.mxu0 0.0
        %4818 = vmatpush1.msra.mxu0 0.0
        %4819 = vmatprep.subr.mxu0 0.0
        %4820 = vmatpush1.msra.mxu0 0.0
        %4821 = vmatprep.subr.mxu0 %v4785
        %4822 = vmatpush1.msra.mxu0 %v4784
        %4823 = vmatprep.subr.mxu0 0.0
        %4824 = vmatpush2.msra.mxu0 0.0
        %4825 = vmatprep.subr.mxu0 0.0
        %4826 = vmatpush2.msra.mxu0 0.0
        %4827 = vmatprep.subr.mxu0 0.0
        %4828 = vmatpush2.msra.mxu0 0.0
        %4829 = vmatprep.subr.mxu0 0.0
        %4830 = vmatpush2.msra.mxu0 0.0
        %4831 = vmatprep.subr.mxu0 0.0
        %4832 = vmatpush2.msra.mxu0 0.0
        %4833 = vmatprep.subr.mxu0 0.0
        %4834 = vmatpush2.msra.mxu0 0.0
        %4835 = vmatprep.subr.mxu0 0.0
        %4836 = vmatpush2.msra.mxu0 0.0
        %4837 = vmatprep.subr.mxu0 0.0
        %4838 = vmatpush2.msra.mxu0 0.0
        %4839 = vmatprep.subr.mxu0 0.0
        %4840 = vmatpush2.msra.mxu0 0.0
        %4841 = vmatprep.subr.mxu0 0.0
        %4842 = vmatpush2.msra.mxu0 0.0
        %4843 = vmatprep.subr.mxu0 0.0
        %4844 = vmatpush2.msra.mxu0 0.0
        %4845 = vmatprep.subr.mxu0 0.0
        %4846 = vmatpush2.msra.mxu0 0.0
        %4847 = vmatprep.subr.mxu0 0.0
        %4848 = vmatpush2.msra.mxu0 0.0
        %4849 = vmatprep.subr.mxu0 0.0
        %4850 = vmatpush2.msra.mxu0 0.0
        %4851 = vmatprep.subr.mxu0 0.0
        %4852 = vmatpush2.msra.mxu0 0.0
        %4853 = vmatprep.subr.mxu0 0.0
        %4854 = vmatpush2.msra.mxu0 0.0
        %4855 = vmatprep.mubr.f32.mxu0 0.0
        %4856 = vmatmul.mubr.f32.gmra.mxu0 %v4789
        %v4857 = vpop.f32.mrf.mxu0
        %v4858 = vadd.f32 0.0, %v4857
        %v4859 = vpop.f32.mrf.mxu0
        %v4860 = vadd.f32 0.0, %v4859
        %4861 = vdwg.mxu0
        %v4862 = vadd.f32 %v4772, %v4858
        %v4863 = vadd.f32 %v4773, %v4860
        %v4864 = vld [vmem:[%s6] sm:$0xff]
        %4866 = vset.pattern.permute.xlu0 0
        %4867 = vperm.xlu0 %4866, %v4864
        %v4868 = vpop.permute.xlu0 %4867
        %v4870 = vadd.f32 %v4862, %v4868
        %v4871 = vadd.f32 %v4863, %v4868
        %v4872 = vadd.f32 %v4870, %v4871
        %4873 = vadd.xlane.f32.xlu0 %v4872
        %v4874 = vpop.xlane.xlu0 %4873
        %v4875 = vrot.slane %v4874, 4
        %v4876 = vadd.f32 %v4874, %v4875
        %v4877 = vrot.slane %v4876, 2
        %v4878 = vadd.f32 %v4876, %v4877
        %v4879 = vrot.slane %v4878, 1
        %v4880 = vadd.f32 %v4878, %v4879
        %s4881 = vtos %v4880
        %v4882 = vstv %s4881
        %v4883 = vrcp.pop 2048.0
        %v4884 = vmul.f32 %v4882, %v4883
        %v4885 = vsub.f32 %v4870, %v4884
        %v4886 = vsub.f32 %v4871, %v4884
        %v4887 = vmul.f32 %v4885, %v4885
        %v4888 = vmul.f32 %v4886, %v4886
        %v4889 = vadd.f32 %v4887, %v4888
        %4890 = vadd.xlane.f32.xlu0 %v4889
        %v4891 = vpop.xlane.xlu0 %4890
        %v4892 = vrot.slane %v4891, 4
        %v4893 = vadd.f32 %v4891, %v4892
        %v4894 = vrot.slane %v4893, 2
        %v4895 = vadd.f32 %v4893, %v4894
        %v4896 = vrot.slane %v4895, 1
        %v4897 = vadd.f32 %v4895, %v4896
        %s4898 = vtos %v4897
        %v4899 = vstv %s4898
        %v4900 = vmul.f32 %v4899, %v4883
        %v4901 = vadd.f32 %v4900, 1e-05
        %v4902 = vrsqrt.pop %v4901
        %v4903 = vmul.f32 %v4885, %v4902
        %v4904 = vmul.f32 %v4886, %v4902
        %4905 = vst [vmem:[%s312] sm:$0xff] %v4903
        %4906 = vst [vmem:[%s312 + $0x8] sm:$0xff] %v4904
        %p4907 = scmp.lt.s32.totalorder %s19, 1
        %s4908 = scalar_select %p4907, %s19, 1
        %s4909 = smul.addr %s4908, 2
        %s4910 = smul.addr %s4909, 8
        %s4911 = scalar_lea.vmem %s7, %s4910
        // Predicated region
        $region53: #{attention_block_forward.3} parent=47 // pred_check
          %p4912 = pneg %p194
        $region54: #{attention_block_forward.3} parent=47 // pred_check_branch
          %4914 = sbr.rel (%p4912) target = $region56
        $region55: #{attention_block_forward.3} parent=47 // pred_region
          _
        $region56: #{attention_block_forward.3} parent=47 // pred_fallthru
          _
      $region48: #{attention_block_forward.3} parent=5 // pred_fallthru
        _
      %p4915 = scmp.le.s32.totalorder 2, %s14
      // Predicated region
      $region57: #{attention_block_forward.3} parent=5 // pred_check
        %p4916 = pneg %p4915
      $region58: #{attention_block_forward.3} parent=5 // pred_check_branch
        %4918 = sbr.rel (%p4916) target = $region60
      $region59: #{attention_block_forward.3} parent=5 // pred_region
        %s4919 = ssub.s32 %s14, 2
        // Predicated region
        $region61: #{attention_block_forward.3} parent=59 // pred_check
          %p4920 = pneg %p200
        $region62: #{attention_block_forward.3} parent=59 // pred_check_branch
          %4922 = sbr.rel (%p4920) target = $region64
        $region63: #{attention_block_forward.3} parent=59 // pred_region
          %p4923 = scmp.lt.s32.totalorder %s20, 1
          %s4924 = scalar_select %p4923, %s20, 1
          %s4925 = smul.addr %s4924, 2
          %s4926 = smul.addr %s4925, 8
          %s4927 = scalar_lea.vmem %s7, %s4926
        $region64: #{attention_block_forward.3} parent=59 // pred_fallthru
          _
      $region60: #{attention_block_forward.3} parent=5 // pred_fallthru
        _
    $region6: #{attention_block_forward.3} parent=1 // loop_footer
      %s18 = sadd.s32 1, %s14
    $region7: #{attention_block_forward.3} parent=1 // loop_footer_branch
      %13 = sbr.rel target = $region3
    $region8: #{attention_block_forward.3} parent=1 // loop_exit
      _
    %4928 = vsyncpa [#allocation7], 1
    %s4929 = scalar_lea.sflag [#allocation7], 1
    %4930 = vsyncpa %s4929, 1

</llo_original>
